<compile_context>
chip_gen: v5e
topology: v5e:2x2
jax: 0.10.0
libtpu: 0.0.40
codegen_flags: <defaults>
</compile_context>

<pallas_src>
import functools
import math

import jax
import jax.numpy as jnp
from jax.experimental import pallas as pl
from jax.experimental.pallas import tpu as pltpu

_LN10_OVER_10 = math.log(10.0) / 10.0
_LN200 = math.log(200.0)
DEFAULT_SLOPE = 0.01   # assumed CNN2D_cell / DeCNN2D_cell LeakyReLU default slope
OUT_GATE_SLOPE = 0.04  # leaky(leaky(., 0.2), 0.2) == leaky(., 0.04)


def _ceil8(n):
    return -(-n // 8) * 8


def _leaky(v, slope):
    return jnp.where(v >= 0, v, slope * v)


# ----------------------------------------------------------------------------
# Fused whole-forward kernel (one invocation per image; grid=(B,))
# ----------------------------------------------------------------------------
def _fused_forward_kernel(*refs, n_encoders, n_forecasters, n_cells,
                          enc_in_p, enc_gru_p, fore_gru_p, out_ch, H, W):
    masks_ref, x_ref = refs[0], refs[1]
    out_ref = refs[-1]
    wit = iter(refs[2:-1])          # flat weight refs, consumed in pack_params order

    M = H * W
    mvals = masks_ref[...]          # [9, M] precomputed 0/1 tap-validity masks
    mrows = [mvals[t:t + 1, :] != 0.0 for t in range(9)]

    def make_taps(v):
        """9 shifted / zero-padded copies of v [C, M] for a 3x3 'same' conv.

        Kept in f32 so each tap is an (8,128)-tile-aligned slab (alignment-free
        sublane concat); the stacked operand is cast to bf16 once before the MXU.
        NOTE: for v6e/v7x the bf16 stacks could additionally be padded to x16
        sublanes; the fused gate/out stacks (144) already are.
        """
        taps = []
        for t in range(9):
            if t == 4:                       # center tap: no shift, always valid
                taps.append(v)
                continue
            sh, sw = t // 3 - 1, t % 3 - 1
            delta = sh * W + sw
            r = pltpu.roll(v, shift=(-delta) % M, axis=1)
            taps.append(jnp.where(mrows[t], r, 0.0))
        return taps

    def conv(w_ref, b_ref, tap_lists):
        """One MXU matmul per conv: taps (and the x/h streams) stacked along K."""
        stack = jnp.concatenate([tp for taps in tap_lists for tp in taps], axis=0)
        return (jnp.dot(w_ref[...], stack.astype(jnp.bfloat16),
                        preferred_element_type=jnp.float32) + b_ref[...])

    def gru(x_taps, h, wg_ref, bg_ref, wo_ref, bo_ref, ch_p):
        h_taps = make_taps(h)
        in_streams = ([x_taps] if x_taps is not None else []) + [h_taps]
        # fused update|reset conv (CNN2D_cell -> LeakyReLU assumed) then sigmoid.
        g = _leaky(conv(wg_ref, bg_ref, in_streams), DEFAULT_SLOPE)
        u = jax.nn.sigmoid(g[:ch_p, :])      # update gate
        r = jax.nn.sigmoid(g[ch_p:, :])      # reset gate
        # TODO(synk): nn.Dropout(0.1) on u / r treated as eval-mode identity.
        hr_taps = make_taps(h * r)
        o_streams = ([x_taps] if x_taps is not None else []) + [hr_taps]
        # out_gate: CNN2D_cell(negative_slope=0.2) + explicit F.leaky_relu(., 0.2)
        # in ConvGRUcell.forward  ->  single fused LeakyReLU with slope 0.04.
        o = _leaky(conv(wo_ref, bo_ref, o_streams), OUT_GATE_SLOPE)
        return h * u + o * (1.0 - u)

    # ---------------- encoders ----------------
    hidden = [jnp.zeros((enc_gru_p[j], M), jnp.float32) for j in range(n_cells)]
    for e in range(n_encoders):
        inp = x_ref[e * enc_in_p:(e + 1) * enc_in_p, :]
        new_hidden = []
        for j in range(n_cells):
            wd, bd, wg, bg, wo, bo = [next(wit) for _ in range(6)]
            # Downsample (CNN2D_cell): conv3x3 + LeakyReLU, fused prologue.
            x = _leaky(conv(wd, bd, [make_taps(inp)]), DEFAULT_SLOPE)
            x_taps = make_taps(x)
            h_new = gru(x_taps, hidden[j], wg, bg, wo, bo, enc_gru_p[j])
            new_hidden.append(h_new)
            inp = h_new
        hidden = new_hidden

    # ---------------- forecasters ----------------
    hidden = hidden[::-1]
    for f in range(n_forecasters):
        inp = None                            # first GRU cell gets x = zeros
        new_hidden = []
        for j in range(n_cells):
            wg, bg, wo, bo, wup, bup = [next(wit) for _ in range(6)]
            x_taps = make_taps(inp) if inp is not None else None
            h_new = gru(x_taps, hidden[j], wg, bg, wo, bo, fore_gru_p[j])
            new_hidden.append(h_new)
            # Upsample (DeCNN2D_cell): ConvTranspose2d(s=1,p=1) == conv with
            # flipped kernel, + LeakyReLU.  Fused epilogue.
            inp = _leaky(conv(wup, bup, [make_taps(h_new)]), DEFAULT_SLOPE)
        hidden = new_hidden
        wout, bout = next(wit), next(wit)
        # Output 1x1 conv + LeakyReLU, fused with the radar transform:
        # (10**(y/10)/200)**(5/8) == exp(0.625*(y*ln10/10 - ln200)) -> single exp.
        y = (jnp.dot(wout[...], inp.astype(jnp.bfloat16),
                     preferred_element_type=jnp.float32) + bout[...])
        y = _leaky(y, DEFAULT_SLOPE)
        out_ref[f * out_ch:(f + 1) * out_ch, :] = jnp.exp(
            0.625 * (y * _LN10_OVER_10 - _LN200))


# ----------------------------------------------------------------------------
# Host-side wrapper: one pallas_call for the whole forward
# ----------------------------------------------------------------------------
def _make_masks(H, W):
    """[9, H*W] 0/1 validity mask for each tap of a 3x3 'same' conv (per image)."""
    M = H * W
    idx = jnp.arange(M, dtype=jnp.int32)
    hh, ww = idx // W, idx % W
    rows = []
    for t in range(9):
        sh, sw = t // 3 - 1, t % 3 - 1
        rows.append((hh + sh >= 0) & (hh + sh < H) & (ww + sw >= 0) & (ww + sw < W))
    return jnp.stack(rows, axis=0).astype(jnp.float32)


def multi_unit_forward(x, flat_w, cfg):
    """x: [B, n_encoders, C_in, H, W] -> forecast [B, n_forecasters*out_ch, H, W]."""
    B, n_enc, c_in, H, W = x.shape
    M = H * W
    assert n_enc == cfg['n_encoders'] and c_in == cfg['enc_in']
    assert M % 128 == 0, "H*W must be a multiple of 128 (lane-dense blocks)"
    assert list(cfg['enc_gru_ch'])[::-1] == list(cfg['fore_gru_ch'])
    n_cells = cfg['n_cells']
    cin_p = _ceil8(c_in)
    enc_gru_p = tuple(_ceil8(c) for c in cfg['enc_gru_ch'])
    fore_gru_p = tuple(_ceil8(c) for c in cfg['fore_gru_ch'])

    # Lane-dense activation layout [C, B*H*W]; each grid block is one image.
    xp = jnp.pad(x, ((0, 0), (0, 0), (0, cin_p - c_in), (0, 0), (0, 0)))
    x_slab = xp.transpose(1, 2, 0, 3, 4).reshape(n_enc * cin_p, B * M)
    masks = _make_masks(H, W)

    n_out = cfg['n_forecasters'] * cfg['out_ch']
    kern = functools.partial(
        _fused_forward_kernel,
        n_encoders=cfg['n_encoders'], n_forecasters=cfg['n_forecasters'],
        n_cells=n_cells, enc_in_p=cin_p, enc_gru_p=enc_gru_p,
        fore_gru_p=fore_gru_p, out_ch=cfg['out_ch'], H=H, W=W)

    in_specs = [pl.BlockSpec((9, M), lambda b: (0, 0)),              # masks (resident)
                pl.BlockSpec((n_enc * cin_p, M), lambda b: (0, b))]  # inputs per image
    for wa in flat_w:                                                # weights (resident)
        in_specs.append(pl.BlockSpec(wa.shape, lambda b: (0, 0)))

    out = pl.pallas_call(
        kern,
        out_shape=jax.ShapeDtypeStruct((n_out, B * M), jnp.float32),
        grid=(B,),
        in_specs=in_specs,
        out_specs=pl.BlockSpec((n_out, M), lambda b: (0, b)),
        compiler_params=pltpu.CompilerParams(
            dimension_semantics=("parallel",)),
    )(masks, x_slab, *flat_w)

    return out.reshape(n_out, B, H, W).transpose(1, 0, 2, 3)


# ----------------------------------------------------------------------------
# Parameter construction (PyTorch layouts) and packing into the kernel layout
# ----------------------------------------------------------------------------
def _make_conv(key, cin, cout, k, transpose=False):
    kw_, kb_ = jax.random.split(key)
    shape = (cin, cout, k, k) if transpose else (cout, cin, k, k)
    return {'w': 0.1 * jax.random.normal(kw_, shape, jnp.float32),
            'b': 0.05 * jax.random.normal(kb_, (cout,), jnp.float32)}


def make_params(key, cfg):
    keys = iter(jax.random.split(key, 256))
    params = {'encoders': [], 'forecasters': []}
    for _ in range(cfg['n_encoders']):
        down, gru = [], []
        for j in range(cfg['n_cells']):
            cin = cfg['enc_in'] if j == 0 else cfg['enc_gru_ch'][j - 1]
            down.append(_make_conv(next(keys), cin, cfg['enc_down_ch'][j], cfg['down_k']))
            gi, go = cfg['enc_down_ch'][j], cfg['enc_gru_ch'][j]
            gru.append({name: _make_conv(next(keys), gi + go, go, cfg['gru_k'])
                        for name in ('reset', 'update', 'out')})
        params['encoders'].append({'down': down, 'gru': gru})
    for _ in range(cfg['n_forecasters']):
        gru, up = [], []
        for j in range(cfg['n_cells']):
            gi = cfg['fore_in'] if j == 0 else cfg['fore_up_ch'][j - 1]
            go = cfg['fore_gru_ch'][j]
            gru.append({name: _make_conv(next(keys), gi + go, go, cfg['gru_k'])
                        for name in ('reset', 'update', 'out')})
            up.append(_make_conv(next(keys), go, cfg['fore_up_ch'][j], cfg['up_k'],
                                 transpose=True))
        out = _make_conv(next(keys), cfg['fore_up_ch'][-1], cfg['out_ch'], cfg['out_k'])
        params['forecasters'].append({'gru': gru, 'up': up, 'out': out})
    return params


def _pack_w3x3(w, cout_p):
    """Conv2d weight [Cout,Cin,3,3] -> [cout_p, 9*ceil8(Cin)] bf16 (tap-major,
    channel-minor columns -- must match the in-kernel tap stacking order)."""
    cout, cin, kh, kw = w.shape
    assert kh == 3 and kw == 3
    cin_p = _ceil8(cin)
    w = jnp.pad(w, ((0, cout_p - cout), (0, cin_p - cin), (0, 0), (0, 0)))
    return w.transpose(0, 2, 3, 1).reshape(cout_p, 9 * cin_p).astype(jnp.bfloat16)


def _pack_bias(b, cout_p):
    return jnp.pad(b, (0, cout_p - b.shape[0])).reshape(cout_p, 1).astype(jnp.float32)


def _pack_gru(pg, cx, ch, has_x):
    """Fuse update|reset into one stacked weight; x-stream columns first, h-stream
    columns second (or h only when x is always zero, i.e. forecaster cell 0)."""
    ch_p = _ceil8(ch)

    def split_pack(w):
        parts = ([_pack_w3x3(w[:, :cx], ch_p)] if has_x else [])
        parts.append(_pack_w3x3(w[:, cx:], ch_p))
        return jnp.concatenate(parts, axis=1)

    wg = jnp.concatenate([split_pack(pg['update']['w']),
                          split_pack(pg['reset']['w'])], axis=0)
    bg = jnp.concatenate([_pack_bias(pg['update']['b'], ch_p),
                          _pack_bias(pg['reset']['b'], ch_p)], axis=0)
    wo = split_pack(pg['out']['w'])
    bo = _pack_bias(pg['out']['b'], ch_p)
    return [wg, bg, wo, bo]


def _check_cfg(cfg):
    assert cfg['down_k'] == 3 and cfg['down_s'] == 1 and cfg['down_p'] == 1
    assert cfg['gru_k'] == 3 and cfg['gru_s'] == 1 and cfg['gru_p'] == 1
    assert cfg['up_k'] == 3 and cfg['up_s'] == 1 and cfg['up_p'] == 1
    assert cfg['out_k'] == 1 and cfg['out_s'] == 1 and cfg['out_p'] == 0


def pack_params(params, cfg):
    """Flatten all weights into the kernel's stacked-tap layout, in the exact
    order the fused kernel consumes them."""
    _check_cfg(cfg)
    flat = []
    for e in range(cfg['n_encoders']):
        ep = params['encoders'][e]
        for j in range(cfg['n_cells']):
            cx, ch = cfg['enc_down_ch'][j], cfg['enc_gru_ch'][j]
            flat.append(_pack_w3x3(ep['down'][j]['w'], _ceil8(cx)))
            flat.append(_pack_bias(ep['down'][j]['b'], _ceil8(cx)))
            flat += _pack_gru(ep['gru'][j], cx, ch, has_x=True)
    for f in range(cfg['n_forecasters']):
        fp = params['forecasters'][f]
        for j in range(cfg['n_cells']):
            cx = cfg['fore_in'] if j == 0 else cfg['fore_up_ch'][j - 1]
            ch = cfg['fore_gru_ch'][j]
            cup = cfg['fore_up_ch'][j]
            flat += _pack_gru(fp['gru'][j], cx, ch, has_x=(j > 0))
            # ConvTranspose2d [Cin,Cout,3,3] (s=1,p=1) == conv with flipped kernel.
            w_eq = jnp.flip(fp['up'][j]['w'], axis=(2, 3)).transpose(1, 0, 2, 3)
            flat.append(_pack_w3x3(w_eq, _ceil8(cup)))
            flat.append(_pack_bias(fp['up'][j]['b'], _ceil8(cup)))
        cup_p = _ceil8(cfg['fore_up_ch'][-1])
        w1 = fp['out']['w'].reshape(cfg['out_ch'], -1)                 # 1x1 conv
        w1 = jnp.pad(w1, ((0, 0), (0, cup_p - w1.shape[1]))).astype(jnp.bfloat16)
        flat.append(w1)
        flat.append(fp['out']['b'].reshape(cfg['out_ch'], 1).astype(jnp.float32))
    return flat


# ----------------------------------------------------------------------------
# Main
# ----------------------------------------------------------------------------
if __name__ == "__main__":
    cfg = dict(
        n_encoders=2, n_forecasters=2, n_cells=2,
        enc_in=4,
        enc_down_ch=[8, 8], enc_gru_ch=[8, 8],
        down_k=3, down_s=1, down_p=1,
        gru_k=3, gru_s=1, gru_p=1,
        fore_in=8, fore_up_ch=[8, 8], fore_gru_ch=[8, 8],
        up_k=3, up_s=1, up_p=1,
        out_ch=1, out_k=1, out_s=1, out_p=0,
    )
    B, H, W = 2, 16, 16

    key = jax.random.PRNGKey(0)
    kx, kp = jax.random.split(key)
    x = jax.random.normal(kx, (B, cfg['n_encoders'], cfg['enc_in'], H, W), jnp.float32)
    params = make_params(kp, cfg)
    flat_w = pack_params(params, cfg)

    fwd = jax.jit(functools.partial(multi_unit_forward, cfg=cfg))
    out = fwd(x, flat_w)
    jax.block_until_ready(out)
    assert out.shape == (B, cfg['n_forecasters'] * cfg['out_ch'], H, W)
    assert bool(jnp.all(jnp.isfinite(out)))
    print("KERNEL_OK")
</pallas_src>

<mosaic_0001>
module attributes {stable_mosaic.version = 11 : i64} {
  func.func @_fused_forward_kernel(%arg0: i32, %arg1: memref<9x256xf32, #tpu.memory_space<vmem>>, %arg2: memref<16x256xf32, #tpu.memory_space<vmem>>, %arg3: memref<8x72xbf16, #tpu.memory_space<vmem>>, %arg4: memref<8x1xf32, #tpu.memory_space<vmem>>, %arg5: memref<16x144xbf16, #tpu.memory_space<vmem>>, %arg6: memref<16x1xf32, #tpu.memory_space<vmem>>, %arg7: memref<8x144xbf16, #tpu.memory_space<vmem>>, %arg8: memref<8x1xf32, #tpu.memory_space<vmem>>, %arg9: memref<8x72xbf16, #tpu.memory_space<vmem>>, %arg10: memref<8x1xf32, #tpu.memory_space<vmem>>, %arg11: memref<16x144xbf16, #tpu.memory_space<vmem>>, %arg12: memref<16x1xf32, #tpu.memory_space<vmem>>, %arg13: memref<8x144xbf16, #tpu.memory_space<vmem>>, %arg14: memref<8x1xf32, #tpu.memory_space<vmem>>, %arg15: memref<8x72xbf16, #tpu.memory_space<vmem>>, %arg16: memref<8x1xf32, #tpu.memory_space<vmem>>, %arg17: memref<16x144xbf16, #tpu.memory_space<vmem>>, %arg18: memref<16x1xf32, #tpu.memory_space<vmem>>, %arg19: memref<8x144xbf16, #tpu.memory_space<vmem>>, %arg20: memref<8x1xf32, #tpu.memory_space<vmem>>, %arg21: memref<8x72xbf16, #tpu.memory_space<vmem>>, %arg22: memref<8x1xf32, #tpu.memory_space<vmem>>, %arg23: memref<16x144xbf16, #tpu.memory_space<vmem>>, %arg24: memref<16x1xf32, #tpu.memory_space<vmem>>, %arg25: memref<8x144xbf16, #tpu.memory_space<vmem>>, %arg26: memref<8x1xf32, #tpu.memory_space<vmem>>, %arg27: memref<16x72xbf16, #tpu.memory_space<vmem>>, %arg28: memref<16x1xf32, #tpu.memory_space<vmem>>, %arg29: memref<8x72xbf16, #tpu.memory_space<vmem>>, %arg30: memref<8x1xf32, #tpu.memory_space<vmem>>, %arg31: memref<8x72xbf16, #tpu.memory_space<vmem>>, %arg32: memref<8x1xf32, #tpu.memory_space<vmem>>, %arg33: memref<16x144xbf16, #tpu.memory_space<vmem>>, %arg34: memref<16x1xf32, #tpu.memory_space<vmem>>, %arg35: memref<8x144xbf16, #tpu.memory_space<vmem>>, %arg36: memref<8x1xf32, #tpu.memory_space<vmem>>, %arg37: memref<8x72xbf16, #tpu.memory_space<vmem>>, %arg38: memref<8x1xf32, #tpu.memory_space<vmem>>, %arg39: memref<1x8xbf16, #tpu.memory_space<vmem>>, %arg40: memref<1x1xf32, #tpu.memory_space<vmem>>, %arg41: memref<16x72xbf16, #tpu.memory_space<vmem>>, %arg42: memref<16x1xf32, #tpu.memory_space<vmem>>, %arg43: memref<8x72xbf16, #tpu.memory_space<vmem>>, %arg44: memref<8x1xf32, #tpu.memory_space<vmem>>, %arg45: memref<8x72xbf16, #tpu.memory_space<vmem>>, %arg46: memref<8x1xf32, #tpu.memory_space<vmem>>, %arg47: memref<16x144xbf16, #tpu.memory_space<vmem>>, %arg48: memref<16x1xf32, #tpu.memory_space<vmem>>, %arg49: memref<8x144xbf16, #tpu.memory_space<vmem>>, %arg50: memref<8x1xf32, #tpu.memory_space<vmem>>, %arg51: memref<8x72xbf16, #tpu.memory_space<vmem>>, %arg52: memref<8x1xf32, #tpu.memory_space<vmem>>, %arg53: memref<1x8xbf16, #tpu.memory_space<vmem>>, %arg54: memref<1x1xf32, #tpu.memory_space<vmem>>, %arg55: memref<2x256xf32, #tpu.memory_space<vmem>>) attributes {dimension_semantics = [#tpu.dimension_semantics<parallel>], iteration_bounds = array<i64: 2>, scalar_prefetch = 0 : i64, scratch_operands = 0 : i64, tpu.core_type = #tpu.core_type<tc>, window_params = [{pipeline_mode = #tpu.pipeline_mode<synchronous>, transform_indices = @transform_0, window_bounds = array<i64: 9, 256>}, {transform_indices = @transform_1, window_bounds = array<i64: 16, 256>}, {pipeline_mode = #tpu.pipeline_mode<synchronous>, transform_indices = @transform_2, window_bounds = array<i64: 8, 72>}, {pipeline_mode = #tpu.pipeline_mode<synchronous>, transform_indices = @transform_3, window_bounds = array<i64: 8, 1>}, {pipeline_mode = #tpu.pipeline_mode<synchronous>, transform_indices = @transform_4, window_bounds = array<i64: 16, 144>}, {pipeline_mode = #tpu.pipeline_mode<synchronous>, transform_indices = @transform_5, window_bounds = array<i64: 16, 1>}, {pipeline_mode = #tpu.pipeline_mode<synchronous>, transform_indices = @transform_6, window_bounds = array<i64: 8, 144>}, {pipeline_mode = #tpu.pipeline_mode<synchronous>, transform_indices = @transform_7, window_bounds = array<i64: 8, 1>}, {pipeline_mode = #tpu.pipeline_mode<synchronous>, transform_indices = @transform_8, window_bounds = array<i64: 8, 72>}, {pipeline_mode = #tpu.pipeline_mode<synchronous>, transform_indices = @transform_9, window_bounds = array<i64: 8, 1>}, {pipeline_mode = #tpu.pipeline_mode<synchronous>, transform_indices = @transform_10, window_bounds = array<i64: 16, 144>}, {pipeline_mode = #tpu.pipeline_mode<synchronous>, transform_indices = @transform_11, window_bounds = array<i64: 16, 1>}, {pipeline_mode = #tpu.pipeline_mode<synchronous>, transform_indices = @transform_12, window_bounds = array<i64: 8, 144>}, {pipeline_mode = #tpu.pipeline_mode<synchronous>, transform_indices = @transform_13, window_bounds = array<i64: 8, 1>}, {pipeline_mode = #tpu.pipeline_mode<synchronous>, transform_indices = @transform_14, window_bounds = array<i64: 8, 72>}, {pipeline_mode = #tpu.pipeline_mode<synchronous>, transform_indices = @transform_15, window_bounds = array<i64: 8, 1>}, {pipeline_mode = #tpu.pipeline_mode<synchronous>, transform_indices = @transform_16, window_bounds = array<i64: 16, 144>}, {pipeline_mode = #tpu.pipeline_mode<synchronous>, transform_indices = @transform_17, window_bounds = array<i64: 16, 1>}, {pipeline_mode = #tpu.pipeline_mode<synchronous>, transform_indices = @transform_18, window_bounds = array<i64: 8, 144>}, {pipeline_mode = #tpu.pipeline_mode<synchronous>, transform_indices = @transform_19, window_bounds = array<i64: 8, 1>}, {pipeline_mode = #tpu.pipeline_mode<synchronous>, transform_indices = @transform_20, window_bounds = array<i64: 8, 72>}, {pipeline_mode = #tpu.pipeline_mode<synchronous>, transform_indices = @transform_21, window_bounds = array<i64: 8, 1>}, {pipeline_mode = #tpu.pipeline_mode<synchronous>, transform_indices = @transform_22, window_bounds = array<i64: 16, 144>}, {pipeline_mode = #tpu.pipeline_mode<synchronous>, transform_indices = @transform_23, window_bounds = array<i64: 16, 1>}, {pipeline_mode = #tpu.pipeline_mode<synchronous>, transform_indices = @transform_24, window_bounds = array<i64: 8, 144>}, {pipeline_mode = #tpu.pipeline_mode<synchronous>, transform_indices = @transform_25, window_bounds = array<i64: 8, 1>}, {pipeline_mode = #tpu.pipeline_mode<synchronous>, transform_indices = @transform_26, window_bounds = array<i64: 16, 72>}, {pipeline_mode = #tpu.pipeline_mode<synchronous>, transform_indices = @transform_27, window_bounds = array<i64: 16, 1>}, {pipeline_mode = #tpu.pipeline_mode<synchronous>, transform_indices = @transform_28, window_bounds = array<i64: 8, 72>}, {pipeline_mode = #tpu.pipeline_mode<synchronous>, transform_indices = @transform_29, window_bounds = array<i64: 8, 1>}, {pipeline_mode = #tpu.pipeline_mode<synchronous>, transform_indices = @transform_30, window_bounds = array<i64: 8, 72>}, {pipeline_mode = #tpu.pipeline_mode<synchronous>, transform_indices = @transform_31, window_bounds = array<i64: 8, 1>}, {pipeline_mode = #tpu.pipeline_mode<synchronous>, transform_indices = @transform_32, window_bounds = array<i64: 16, 144>}, {pipeline_mode = #tpu.pipeline_mode<synchronous>, transform_indices = @transform_33, window_bounds = array<i64: 16, 1>}, {pipeline_mode = #tpu.pipeline_mode<synchronous>, transform_indices = @transform_34, window_bounds = array<i64: 8, 144>}, {pipeline_mode = #tpu.pipeline_mode<synchronous>, transform_indices = @transform_35, window_bounds = array<i64: 8, 1>}, {pipeline_mode = #tpu.pipeline_mode<synchronous>, transform_indices = @transform_36, window_bounds = array<i64: 8, 72>}, {pipeline_mode = #tpu.pipeline_mode<synchronous>, transform_indices = @transform_37, window_bounds = array<i64: 8, 1>}, {pipeline_mode = #tpu.pipeline_mode<synchronous>, transform_indices = @transform_38, window_bounds = array<i64: 1, 8>}, {pipeline_mode = #tpu.pipeline_mode<synchronous>, transform_indices = @transform_39, window_bounds = array<i64: 1, 1>}, {pipeline_mode = #tpu.pipeline_mode<synchronous>, transform_indices = @transform_40, window_bounds = array<i64: 16, 72>}, {pipeline_mode = #tpu.pipeline_mode<synchronous>, transform_indices = @transform_41, window_bounds = array<i64: 16, 1>}, {pipeline_mode = #tpu.pipeline_mode<synchronous>, transform_indices = @transform_42, window_bounds = array<i64: 8, 72>}, {pipeline_mode = #tpu.pipeline_mode<synchronous>, transform_indices = @transform_43, window_bounds = array<i64: 8, 1>}, {pipeline_mode = #tpu.pipeline_mode<synchronous>, transform_indices = @transform_44, window_bounds = array<i64: 8, 72>}, {pipeline_mode = #tpu.pipeline_mode<synchronous>, transform_indices = @transform_45, window_bounds = array<i64: 8, 1>}, {pipeline_mode = #tpu.pipeline_mode<synchronous>, transform_indices = @transform_46, window_bounds = array<i64: 16, 144>}, {pipeline_mode = #tpu.pipeline_mode<synchronous>, transform_indices = @transform_47, window_bounds = array<i64: 16, 1>}, {pipeline_mode = #tpu.pipeline_mode<synchronous>, transform_indices = @transform_48, window_bounds = array<i64: 8, 144>}, {pipeline_mode = #tpu.pipeline_mode<synchronous>, transform_indices = @transform_49, window_bounds = array<i64: 8, 1>}, {pipeline_mode = #tpu.pipeline_mode<synchronous>, transform_indices = @transform_50, window_bounds = array<i64: 8, 72>}, {pipeline_mode = #tpu.pipeline_mode<synchronous>, transform_indices = @transform_51, window_bounds = array<i64: 8, 1>}, {pipeline_mode = #tpu.pipeline_mode<synchronous>, transform_indices = @transform_52, window_bounds = array<i64: 1, 8>}, {pipeline_mode = #tpu.pipeline_mode<synchronous>, transform_indices = @transform_53, window_bounds = array<i64: 1, 1>}, {transform_indices = @transform_54, window_bounds = array<i64: 2, 256>}]} {
    %c0 = arith.constant 0 : index
    %c0_0 = arith.constant 0 : index
    %0 = vector.load %arg1[%c0, %c0_0] : memref<9x256xf32, #tpu.memory_space<vmem>>, vector<9x256xf32>
    %1 = vector.extract_strided_slice %0 {offsets = [0, 0], sizes = [1, 256], strides = [1, 1]} : vector<9x256xf32> to vector<1x256xf32>
    %cst = arith.constant 0.000000e+00 : f32
    %2 = vector.broadcast %cst : f32 to vector<1x256xf32>
    %3 = arith.cmpf one, %1, %2 : vector<1x256xf32>
    %4 = vector.extract_strided_slice %0 {offsets = [1, 0], sizes = [1, 256], strides = [1, 1]} : vector<9x256xf32> to vector<1x256xf32>
    %cst_1 = arith.constant 0.000000e+00 : f32
    %5 = vector.broadcast %cst_1 : f32 to vector<1x256xf32>
    %6 = arith.cmpf one, %4, %5 : vector<1x256xf32>
    %7 = vector.extract_strided_slice %0 {offsets = [2, 0], sizes = [1, 256], strides = [1, 1]} : vector<9x256xf32> to vector<1x256xf32>
    %cst_2 = arith.constant 0.000000e+00 : f32
    %8 = vector.broadcast %cst_2 : f32 to vector<1x256xf32>
    %9 = arith.cmpf one, %7, %8 : vector<1x256xf32>
    %10 = vector.extract_strided_slice %0 {offsets = [3, 0], sizes = [1, 256], strides = [1, 1]} : vector<9x256xf32> to vector<1x256xf32>
    %cst_3 = arith.constant 0.000000e+00 : f32
    %11 = vector.broadcast %cst_3 : f32 to vector<1x256xf32>
    %12 = arith.cmpf one, %10, %11 : vector<1x256xf32>
    %13 = vector.extract_strided_slice %0 {offsets = [5, 0], sizes = [1, 256], strides = [1, 1]} : vector<9x256xf32> to vector<1x256xf32>
    %cst_4 = arith.constant 0.000000e+00 : f32
    %14 = vector.broadcast %cst_4 : f32 to vector<1x256xf32>
    %15 = arith.cmpf one, %13, %14 : vector<1x256xf32>
    %16 = vector.extract_strided_slice %0 {offsets = [6, 0], sizes = [1, 256], strides = [1, 1]} : vector<9x256xf32> to vector<1x256xf32>
    %cst_5 = arith.constant 0.000000e+00 : f32
    %17 = vector.broadcast %cst_5 : f32 to vector<1x256xf32>
    %18 = arith.cmpf one, %16, %17 : vector<1x256xf32>
    %19 = vector.extract_strided_slice %0 {offsets = [7, 0], sizes = [1, 256], strides = [1, 1]} : vector<9x256xf32> to vector<1x256xf32>
    %cst_6 = arith.constant 0.000000e+00 : f32
    %20 = vector.broadcast %cst_6 : f32 to vector<1x256xf32>
    %21 = arith.cmpf one, %19, %20 : vector<1x256xf32>
    %22 = vector.extract_strided_slice %0 {offsets = [8, 0], sizes = [1, 256], strides = [1, 1]} : vector<9x256xf32> to vector<1x256xf32>
    %cst_7 = arith.constant 0.000000e+00 : f32
    %23 = vector.broadcast %cst_7 : f32 to vector<1x256xf32>
    %24 = arith.cmpf one, %22, %23 : vector<1x256xf32>
    %cst_8 = arith.constant 0.000000e+00 : f32
    %25 = vector.broadcast %cst_8 : f32 to vector<8x256xf32>
    %cst_9 = arith.constant 0.000000e+00 : f32
    %26 = vector.broadcast %cst_9 : f32 to vector<8x256xf32>
    %c0_10 = arith.constant 0 : index
    %c0_11 = arith.constant 0 : index
    %27 = vector.load %arg2[%c0_10, %c0_11] : memref<16x256xf32, #tpu.memory_space<vmem>>, vector<8x256xf32>
    %c17_i32 = arith.constant 17 : i32
    %28 = tpu.dynamic_rotate %27 by %c17_i32 dim 1 : vector<8x256xf32>, i32 -> vector<8x256xf32>
    %cst_12 = arith.constant 0.000000e+00 : f32
    %29 = vector.shape_cast %3 : vector<1x256xi1> to vector<1x256xi1>
    %30 = vector.broadcast %29 : vector<1x256xi1> to vector<8x256xi1>
    %31 = vector.broadcast %cst_12 : f32 to vector<8x256xf32>
    %32 = arith.select %30, %28, %31 : vector<8x256xi1>, vector<8x256xf32>
    %c16_i32 = arith.constant 16 : i32
    %33 = tpu.dynamic_rotate %27 by %c16_i32 dim 1 : vector<8x256xf32>, i32 -> vector<8x256xf32>
    %cst_13 = arith.constant 0.000000e+00 : f32
    %34 = vector.shape_cast %6 : vector<1x256xi1> to vector<1x256xi1>
    %35 = vector.broadcast %34 : vector<1x256xi1> to vector<8x256xi1>
    %36 = vector.broadcast %cst_13 : f32 to vector<8x256xf32>
    %37 = arith.select %35, %33, %36 : vector<8x256xi1>, vector<8x256xf32>
    %c15_i32 = arith.constant 15 : i32
    %38 = tpu.dynamic_rotate %27 by %c15_i32 dim 1 : vector<8x256xf32>, i32 -> vector<8x256xf32>
    %cst_14 = arith.constant 0.000000e+00 : f32
    %39 = vector.shape_cast %9 : vector<1x256xi1> to vector<1x256xi1>
    %40 = vector.broadcast %39 : vector<1x256xi1> to vector<8x256xi1>
    %41 = vector.broadcast %cst_14 : f32 to vector<8x256xf32>
    %42 = arith.select %40, %38, %41 : vector<8x256xi1>, vector<8x256xf32>
    %c1_i32 = arith.constant 1 : i32
    %43 = tpu.dynamic_rotate %27 by %c1_i32 dim 1 : vector<8x256xf32>, i32 -> vector<8x256xf32>
    %cst_15 = arith.constant 0.000000e+00 : f32
    %44 = vector.shape_cast %12 : vector<1x256xi1> to vector<1x256xi1>
    %45 = vector.broadcast %44 : vector<1x256xi1> to vector<8x256xi1>
    %46 = vector.broadcast %cst_15 : f32 to vector<8x256xf32>
    %47 = arith.select %45, %43, %46 : vector<8x256xi1>, vector<8x256xf32>
    %c255_i32 = arith.constant 255 : i32
    %48 = tpu.dynamic_rotate %27 by %c255_i32 dim 1 : vector<8x256xf32>, i32 -> vector<8x256xf32>
    %cst_16 = arith.constant 0.000000e+00 : f32
    %49 = vector.shape_cast %15 : vector<1x256xi1> to vector<1x256xi1>
    %50 = vector.broadcast %49 : vector<1x256xi1> to vector<8x256xi1>
    %51 = vector.broadcast %cst_16 : f32 to vector<8x256xf32>
    %52 = arith.select %50, %48, %51 : vector<8x256xi1>, vector<8x256xf32>
    %c241_i32 = arith.constant 241 : i32
    %53 = tpu.dynamic_rotate %27 by %c241_i32 dim 1 : vector<8x256xf32>, i32 -> vector<8x256xf32>
    %cst_17 = arith.constant 0.000000e+00 : f32
    %54 = vector.shape_cast %18 : vector<1x256xi1> to vector<1x256xi1>
    %55 = vector.broadcast %54 : vector<1x256xi1> to vector<8x256xi1>
    %56 = vector.broadcast %cst_17 : f32 to vector<8x256xf32>
    %57 = arith.select %55, %53, %56 : vector<8x256xi1>, vector<8x256xf32>
    %c240_i32 = arith.constant 240 : i32
    %58 = tpu.dynamic_rotate %27 by %c240_i32 dim 1 : vector<8x256xf32>, i32 -> vector<8x256xf32>
    %cst_18 = arith.constant 0.000000e+00 : f32
    %59 = vector.shape_cast %21 : vector<1x256xi1> to vector<1x256xi1>
    %60 = vector.broadcast %59 : vector<1x256xi1> to vector<8x256xi1>
    %61 = vector.broadcast %cst_18 : f32 to vector<8x256xf32>
    %62 = arith.select %60, %58, %61 : vector<8x256xi1>, vector<8x256xf32>
    %c239_i32 = arith.constant 239 : i32
    %63 = tpu.dynamic_rotate %27 by %c239_i32 dim 1 : vector<8x256xf32>, i32 -> vector<8x256xf32>
    %cst_19 = arith.constant 0.000000e+00 : f32
    %64 = vector.shape_cast %24 : vector<1x256xi1> to vector<1x256xi1>
    %65 = vector.broadcast %64 : vector<1x256xi1> to vector<8x256xi1>
    %66 = vector.broadcast %cst_19 : f32 to vector<8x256xf32>
    %67 = arith.select %65, %63, %66 : vector<8x256xi1>, vector<8x256xf32>
    %68 = tpu.concatenate %32, %37, %42, %47, %27, %52, %57, %62, %67 in 0 : vector<8x256xf32>, vector<8x256xf32>, vector<8x256xf32>, vector<8x256xf32>, vector<8x256xf32>, vector<8x256xf32>, vector<8x256xf32>, vector<8x256xf32>, vector<8x256xf32> -> vector<72x256xf32>
    %c0_20 = arith.constant 0 : index
    %c0_21 = arith.constant 0 : index
    %69 = vector.load %arg3[%c0_20, %c0_21] : memref<8x72xbf16, #tpu.memory_space<vmem>>, vector<8x72xbf16>
    %70 = arith.truncf %68 : vector<72x256xf32> to vector<72x256xbf16>
    %cst_22 = arith.constant dense<0.000000e+00> : vector<8x256xf32>
    %71 = tpu.matmul %69, %70, %cst_22 {dimension_numbers = #tpu.dot_dimension_numbers<[1], [0], [0], [1], [0, 0, 1, 1], [], []>} : vector<8x72xbf16>, vector<72x256xbf16>, vector<8x256xf32> -> vector<8x256xf32>
    %c0_23 = arith.constant 0 : index
    %c0_24 = arith.constant 0 : index
    %72 = vector.load %arg4[%c0_23, %c0_24] : memref<8x1xf32, #tpu.memory_space<vmem>>, vector<8x1xf32>
    %73 = vector.broadcast %72 : vector<8x1xf32> to vector<8x256xf32>
    %74 = arith.addf %71, %73 : vector<8x256xf32>
    %cst_25 = arith.constant 0.000000e+00 : f32
    %75 = vector.broadcast %cst_25 : f32 to vector<8x256xf32>
    %76 = arith.cmpf oge, %74, %75 : vector<8x256xf32>
    %cst_26 = arith.constant 0.00999999977 : f32
    %77 = vector.broadcast %cst_26 : f32 to vector<8x256xf32>
    %78 = arith.mulf %77, %74 : vector<8x256xf32>
    %79 = arith.select %76, %74, %78 : vector<8x256xi1>, vector<8x256xf32>
    %c17_i32_27 = arith.constant 17 : i32
    %80 = tpu.dynamic_rotate %79 by %c17_i32_27 dim 1 : vector<8x256xf32>, i32 -> vector<8x256xf32>
    %cst_28 = arith.constant 0.000000e+00 : f32
    %81 = vector.shape_cast %3 : vector<1x256xi1> to vector<1x256xi1>
    %82 = vector.broadcast %81 : vector<1x256xi1> to vector<8x256xi1>
    %83 = vector.broadcast %cst_28 : f32 to vector<8x256xf32>
    %84 = arith.select %82, %80, %83 : vector<8x256xi1>, vector<8x256xf32>
    %c16_i32_29 = arith.constant 16 : i32
    %85 = tpu.dynamic_rotate %79 by %c16_i32_29 dim 1 : vector<8x256xf32>, i32 -> vector<8x256xf32>
    %cst_30 = arith.constant 0.000000e+00 : f32
    %86 = vector.shape_cast %6 : vector<1x256xi1> to vector<1x256xi1>
    %87 = vector.broadcast %86 : vector<1x256xi1> to vector<8x256xi1>
    %88 = vector.broadcast %cst_30 : f32 to vector<8x256xf32>
    %89 = arith.select %87, %85, %88 : vector<8x256xi1>, vector<8x256xf32>
    %c15_i32_31 = arith.constant 15 : i32
    %90 = tpu.dynamic_rotate %79 by %c15_i32_31 dim 1 : vector<8x256xf32>, i32 -> vector<8x256xf32>
    %cst_32 = arith.constant 0.000000e+00 : f32
    %91 = vector.shape_cast %9 : vector<1x256xi1> to vector<1x256xi1>
    %92 = vector.broadcast %91 : vector<1x256xi1> to vector<8x256xi1>
    %93 = vector.broadcast %cst_32 : f32 to vector<8x256xf32>
    %94 = arith.select %92, %90, %93 : vector<8x256xi1>, vector<8x256xf32>
    %c1_i32_33 = arith.constant 1 : i32
    %95 = tpu.dynamic_rotate %79 by %c1_i32_33 dim 1 : vector<8x256xf32>, i32 -> vector<8x256xf32>
    %cst_34 = arith.constant 0.000000e+00 : f32
    %96 = vector.shape_cast %12 : vector<1x256xi1> to vector<1x256xi1>
    %97 = vector.broadcast %96 : vector<1x256xi1> to vector<8x256xi1>
    %98 = vector.broadcast %cst_34 : f32 to vector<8x256xf32>
    %99 = arith.select %97, %95, %98 : vector<8x256xi1>, vector<8x256xf32>
    %c255_i32_35 = arith.constant 255 : i32
    %100 = tpu.dynamic_rotate %79 by %c255_i32_35 dim 1 : vector<8x256xf32>, i32 -> vector<8x256xf32>
    %cst_36 = arith.constant 0.000000e+00 : f32
    %101 = vector.shape_cast %15 : vector<1x256xi1> to vector<1x256xi1>
    %102 = vector.broadcast %101 : vector<1x256xi1> to vector<8x256xi1>
    %103 = vector.broadcast %cst_36 : f32 to vector<8x256xf32>
    %104 = arith.select %102, %100, %103 : vector<8x256xi1>, vector<8x256xf32>
    %c241_i32_37 = arith.constant 241 : i32
    %105 = tpu.dynamic_rotate %79 by %c241_i32_37 dim 1 : vector<8x256xf32>, i32 -> vector<8x256xf32>
    %cst_38 = arith.constant 0.000000e+00 : f32
    %106 = vector.shape_cast %18 : vector<1x256xi1> to vector<1x256xi1>
    %107 = vector.broadcast %106 : vector<1x256xi1> to vector<8x256xi1>
    %108 = vector.broadcast %cst_38 : f32 to vector<8x256xf32>
    %109 = arith.select %107, %105, %108 : vector<8x256xi1>, vector<8x256xf32>
    %c240_i32_39 = arith.constant 240 : i32
    %110 = tpu.dynamic_rotate %79 by %c240_i32_39 dim 1 : vector<8x256xf32>, i32 -> vector<8x256xf32>
    %cst_40 = arith.constant 0.000000e+00 : f32
    %111 = vector.shape_cast %21 : vector<1x256xi1> to vector<1x256xi1>
    %112 = vector.broadcast %111 : vector<1x256xi1> to vector<8x256xi1>
    %113 = vector.broadcast %cst_40 : f32 to vector<8x256xf32>
    %114 = arith.select %112, %110, %113 : vector<8x256xi1>, vector<8x256xf32>
    %c239_i32_41 = arith.constant 239 : i32
    %115 = tpu.dynamic_rotate %79 by %c239_i32_41 dim 1 : vector<8x256xf32>, i32 -> vector<8x256xf32>
    %cst_42 = arith.constant 0.000000e+00 : f32
    %116 = vector.shape_cast %24 : vector<1x256xi1> to vector<1x256xi1>
    %117 = vector.broadcast %116 : vector<1x256xi1> to vector<8x256xi1>
    %118 = vector.broadcast %cst_42 : f32 to vector<8x256xf32>
    %119 = arith.select %117, %115, %118 : vector<8x256xi1>, vector<8x256xf32>
    %c17_i32_43 = arith.constant 17 : i32
    %120 = tpu.dynamic_rotate %25 by %c17_i32_43 dim 1 : vector<8x256xf32>, i32 -> vector<8x256xf32>
    %cst_44 = arith.constant 0.000000e+00 : f32
    %121 = vector.shape_cast %3 : vector<1x256xi1> to vector<1x256xi1>
    %122 = vector.broadcast %121 : vector<1x256xi1> to vector<8x256xi1>
    %123 = vector.broadcast %cst_44 : f32 to vector<8x256xf32>
    %124 = arith.select %122, %120, %123 : vector<8x256xi1>, vector<8x256xf32>
    %c16_i32_45 = arith.constant 16 : i32
    %125 = tpu.dynamic_rotate %25 by %c16_i32_45 dim 1 : vector<8x256xf32>, i32 -> vector<8x256xf32>
    %cst_46 = arith.constant 0.000000e+00 : f32
    %126 = vector.shape_cast %6 : vector<1x256xi1> to vector<1x256xi1>
    %127 = vector.broadcast %126 : vector<1x256xi1> to vector<8x256xi1>
    %128 = vector.broadcast %cst_46 : f32 to vector<8x256xf32>
    %129 = arith.select %127, %125, %128 : vector<8x256xi1>, vector<8x256xf32>
    %c15_i32_47 = arith.constant 15 : i32
    %130 = tpu.dynamic_rotate %25 by %c15_i32_47 dim 1 : vector<8x256xf32>, i32 -> vector<8x256xf32>
    %cst_48 = arith.constant 0.000000e+00 : f32
    %131 = vector.shape_cast %9 : vector<1x256xi1> to vector<1x256xi1>
    %132 = vector.broadcast %131 : vector<1x256xi1> to vector<8x256xi1>
    %133 = vector.broadcast %cst_48 : f32 to vector<8x256xf32>
    %134 = arith.select %132, %130, %133 : vector<8x256xi1>, vector<8x256xf32>
    %c1_i32_49 = arith.constant 1 : i32
    %135 = tpu.dynamic_rotate %25 by %c1_i32_49 dim 1 : vector<8x256xf32>, i32 -> vector<8x256xf32>
    %cst_50 = arith.constant 0.000000e+00 : f32
    %136 = vector.shape_cast %12 : vector<1x256xi1> to vector<1x256xi1>
    %137 = vector.broadcast %136 : vector<1x256xi1> to vector<8x256xi1>
    %138 = vector.broadcast %cst_50 : f32 to vector<8x256xf32>
    %139 = arith.select %137, %135, %138 : vector<8x256xi1>, vector<8x256xf32>
    %c255_i32_51 = arith.constant 255 : i32
    %140 = tpu.dynamic_rotate %25 by %c255_i32_51 dim 1 : vector<8x256xf32>, i32 -> vector<8x256xf32>
    %cst_52 = arith.constant 0.000000e+00 : f32
    %141 = vector.shape_cast %15 : vector<1x256xi1> to vector<1x256xi1>
    %142 = vector.broadcast %141 : vector<1x256xi1> to vector<8x256xi1>
    %143 = vector.broadcast %cst_52 : f32 to vector<8x256xf32>
    %144 = arith.select %142, %140, %143 : vector<8x256xi1>, vector<8x256xf32>
    %c241_i32_53 = arith.constant 241 : i32
    %145 = tpu.dynamic_rotate %25 by %c241_i32_53 dim 1 : vector<8x256xf32>, i32 -> vector<8x256xf32>
    %cst_54 = arith.constant 0.000000e+00 : f32
    %146 = vector.shape_cast %18 : vector<1x256xi1> to vector<1x256xi1>
    %147 = vector.broadcast %146 : vector<1x256xi1> to vector<8x256xi1>
    %148 = vector.broadcast %cst_54 : f32 to vector<8x256xf32>
    %149 = arith.select %147, %145, %148 : vector<8x256xi1>, vector<8x256xf32>
    %c240_i32_55 = arith.constant 240 : i32
    %150 = tpu.dynamic_rotate %25 by %c240_i32_55 dim 1 : vector<8x256xf32>, i32 -> vector<8x256xf32>
    %cst_56 = arith.constant 0.000000e+00 : f32
    %151 = vector.shape_cast %21 : vector<1x256xi1> to vector<1x256xi1>
    %152 = vector.broadcast %151 : vector<1x256xi1> to vector<8x256xi1>
    %153 = vector.broadcast %cst_56 : f32 to vector<8x256xf32>
    %154 = arith.select %152, %150, %153 : vector<8x256xi1>, vector<8x256xf32>
    %c239_i32_57 = arith.constant 239 : i32
    %155 = tpu.dynamic_rotate %25 by %c239_i32_57 dim 1 : vector<8x256xf32>, i32 -> vector<8x256xf32>
    %cst_58 = arith.constant 0.000000e+00 : f32
    %156 = vector.shape_cast %24 : vector<1x256xi1> to vector<1x256xi1>
    %157 = vector.broadcast %156 : vector<1x256xi1> to vector<8x256xi1>
    %158 = vector.broadcast %cst_58 : f32 to vector<8x256xf32>
    %159 = arith.select %157, %155, %158 : vector<8x256xi1>, vector<8x256xf32>
    %160 = tpu.concatenate %84, %89, %94, %99, %79, %104, %109, %114, %119, %124, %129, %134, %139, %25, %144, %149 in 0 : vector<8x256xf32>, vector<8x256xf32>, vector<8x256xf32>, vector<8x256xf32>, vector<8x256xf32>, vector<8x256xf32>, vector<8x256xf32>, vector<8x256xf32>, vector<8x256xf32>, vector<8x256xf32>, vector<8x256xf32>, vector<8x256xf32>, vector<8x256xf32>, vector<8x256xf32>, vector<8x256xf32>, vector<8x256xf32> -> vector<128x256xf32>
    %161 = tpu.concatenate %154, %159 in 0 : vector<8x256xf32>, vector<8x256xf32> -> vector<16x256xf32>
    %162 = tpu.concatenate %160, %161 in 0 : vector<128x256xf32>, vector<16x256xf32> -> vector<144x256xf32>
    %c0_59 = arith.constant 0 : index
    %c0_60 = arith.constant 0 : index
    %163 = vector.load %arg5[%c0_59, %c0_60] : memref<16x144xbf16, #tpu.memory_space<vmem>>, vector<16x144xbf16>
    %164 = arith.truncf %162 : vector<144x256xf32> to vector<144x256xbf16>
    %cst_61 = arith.constant dense<0.000000e+00> : vector<16x256xf32>
    %165 = tpu.matmul %163, %164, %cst_61 {dimension_numbers = #tpu.dot_dimension_numbers<[1], [0], [0], [1], [0, 0, 1, 1], [], []>} : vector<16x144xbf16>, vector<144x256xbf16>, vector<16x256xf32> -> vector<16x256xf32>
    %c0_62 = arith.constant 0 : index
    %c0_63 = arith.constant 0 : index
    %166 = vector.load %arg6[%c0_62, %c0_63] : memref<16x1xf32, #tpu.memory_space<vmem>>, vector<16x1xf32>
    %167 = vector.broadcast %166 : vector<16x1xf32> to vector<16x256xf32>
    %168 = arith.addf %165, %167 : vector<16x256xf32>
    %cst_64 = arith.constant 0.000000e+00 : f32
    %169 = vector.broadcast %cst_64 : f32 to vector<16x256xf32>
    %170 = arith.cmpf oge, %168, %169 : vector<16x256xf32>
    %cst_65 = arith.constant 0.00999999977 : f32
    %171 = vector.broadcast %cst_65 : f32 to vector<16x256xf32>
    %172 = arith.mulf %171, %168 : vector<16x256xf32>
    %173 = arith.select %170, %168, %172 : vector<16x256xi1>, vector<16x256xf32>
    %174 = vector.extract_strided_slice %173 {offsets = [0, 0], sizes = [8, 256], strides = [1, 1]} : vector<16x256xf32> to vector<8x256xf32>
    %175 = arith.negf %174 : vector<8x256xf32>
    %176 = math.exp %175 : vector<8x256xf32>
    %cst_66 = arith.constant 1.000000e+00 : f32
    %177 = vector.broadcast %cst_66 : f32 to vector<8x256xf32>
    %178 = arith.addf %177, %176 : vector<8x256xf32>
    %179 = arith.divf %177, %178 : vector<8x256xf32>
    %180 = vector.extract_strided_slice %173 {offsets = [8, 0], sizes = [8, 256], strides = [1, 1]} : vector<16x256xf32> to vector<8x256xf32>
    %181 = arith.negf %180 : vector<8x256xf32>
    %182 = math.exp %181 : vector<8x256xf32>
    %cst_67 = arith.constant 1.000000e+00 : f32
    %183 = vector.broadcast %cst_67 : f32 to vector<8x256xf32>
    %184 = arith.addf %183, %182 : vector<8x256xf32>
    %185 = arith.divf %183, %184 : vector<8x256xf32>
    %186 = arith.mulf %25, %185 : vector<8x256xf32>
    %c17_i32_68 = arith.constant 17 : i32
    %187 = tpu.dynamic_rotate %186 by %c17_i32_68 dim 1 : vector<8x256xf32>, i32 -> vector<8x256xf32>
    %cst_69 = arith.constant 0.000000e+00 : f32
    %188 = vector.shape_cast %3 : vector<1x256xi1> to vector<1x256xi1>
    %189 = vector.broadcast %188 : vector<1x256xi1> to vector<8x256xi1>
    %190 = vector.broadcast %cst_69 : f32 to vector<8x256xf32>
    %191 = arith.select %189, %187, %190 : vector<8x256xi1>, vector<8x256xf32>
    %c16_i32_70 = arith.constant 16 : i32
    %192 = tpu.dynamic_rotate %186 by %c16_i32_70 dim 1 : vector<8x256xf32>, i32 -> vector<8x256xf32>
    %cst_71 = arith.constant 0.000000e+00 : f32
    %193 = vector.shape_cast %6 : vector<1x256xi1> to vector<1x256xi1>
    %194 = vector.broadcast %193 : vector<1x256xi1> to vector<8x256xi1>
    %195 = vector.broadcast %cst_71 : f32 to vector<8x256xf32>
    %196 = arith.select %194, %192, %195 : vector<8x256xi1>, vector<8x256xf32>
    %c15_i32_72 = arith.constant 15 : i32
    %197 = tpu.dynamic_rotate %186 by %c15_i32_72 dim 1 : vector<8x256xf32>, i32 -> vector<8x256xf32>
    %cst_73 = arith.constant 0.000000e+00 : f32
    %198 = vector.shape_cast %9 : vector<1x256xi1> to vector<1x256xi1>
    %199 = vector.broadcast %198 : vector<1x256xi1> to vector<8x256xi1>
    %200 = vector.broadcast %cst_73 : f32 to vector<8x256xf32>
    %201 = arith.select %199, %197, %200 : vector<8x256xi1>, vector<8x256xf32>
    %c1_i32_74 = arith.constant 1 : i32
    %202 = tpu.dynamic_rotate %186 by %c1_i32_74 dim 1 : vector<8x256xf32>, i32 -> vector<8x256xf32>
    %cst_75 = arith.constant 0.000000e+00 : f32
    %203 = vector.shape_cast %12 : vector<1x256xi1> to vector<1x256xi1>
    %204 = vector.broadcast %203 : vector<1x256xi1> to vector<8x256xi1>
    %205 = vector.broadcast %cst_75 : f32 to vector<8x256xf32>
    %206 = arith.select %204, %202, %205 : vector<8x256xi1>, vector<8x256xf32>
    %c255_i32_76 = arith.constant 255 : i32
    %207 = tpu.dynamic_rotate %186 by %c255_i32_76 dim 1 : vector<8x256xf32>, i32 -> vector<8x256xf32>
    %cst_77 = arith.constant 0.000000e+00 : f32
    %208 = vector.shape_cast %15 : vector<1x256xi1> to vector<1x256xi1>
    %209 = vector.broadcast %208 : vector<1x256xi1> to vector<8x256xi1>
    %210 = vector.broadcast %cst_77 : f32 to vector<8x256xf32>
    %211 = arith.select %209, %207, %210 : vector<8x256xi1>, vector<8x256xf32>
    %c241_i32_78 = arith.constant 241 : i32
    %212 = tpu.dynamic_rotate %186 by %c241_i32_78 dim 1 : vector<8x256xf32>, i32 -> vector<8x256xf32>
    %cst_79 = arith.constant 0.000000e+00 : f32
    %213 = vector.shape_cast %18 : vector<1x256xi1> to vector<1x256xi1>
    %214 = vector.broadcast %213 : vector<1x256xi1> to vector<8x256xi1>
    %215 = vector.broadcast %cst_79 : f32 to vector<8x256xf32>
    %216 = arith.select %214, %212, %215 : vector<8x256xi1>, vector<8x256xf32>
    %c240_i32_80 = arith.constant 240 : i32
    %217 = tpu.dynamic_rotate %186 by %c240_i32_80 dim 1 : vector<8x256xf32>, i32 -> vector<8x256xf32>
    %cst_81 = arith.constant 0.000000e+00 : f32
    %218 = vector.shape_cast %21 : vector<1x256xi1> to vector<1x256xi1>
    %219 = vector.broadcast %218 : vector<1x256xi1> to vector<8x256xi1>
    %220 = vector.broadcast %cst_81 : f32 to vector<8x256xf32>
    %221 = arith.select %219, %217, %220 : vector<8x256xi1>, vector<8x256xf32>
    %c239_i32_82 = arith.constant 239 : i32
    %222 = tpu.dynamic_rotate %186 by %c239_i32_82 dim 1 : vector<8x256xf32>, i32 -> vector<8x256xf32>
    %cst_83 = arith.constant 0.000000e+00 : f32
    %223 = vector.shape_cast %24 : vector<1x256xi1> to vector<1x256xi1>
    %224 = vector.broadcast %223 : vector<1x256xi1> to vector<8x256xi1>
    %225 = vector.broadcast %cst_83 : f32 to vector<8x256xf32>
    %226 = arith.select %224, %222, %225 : vector<8x256xi1>, vector<8x256xf32>
    %227 = tpu.concatenate %84, %89, %94, %99, %79, %104, %109, %114, %119, %191, %196, %201, %206, %186, %211, %216 in 0 : vector<8x256xf32>, vector<8x256xf32>, vector<8x256xf32>, vector<8x256xf32>, vector<8x256xf32>, vector<8x256xf32>, vector<8x256xf32>, vector<8x256xf32>, vector<8x256xf32>, vector<8x256xf32>, vector<8x256xf32>, vector<8x256xf32>, vector<8x256xf32>, vector<8x256xf32>, vector<8x256xf32>, vector<8x256xf32> -> vector<128x256xf32>
    %228 = tpu.concatenate %221, %226 in 0 : vector<8x256xf32>, vector<8x256xf32> -> vector<16x256xf32>
    %229 = tpu.concatenate %227, %228 in 0 : vector<128x256xf32>, vector<16x256xf32> -> vector<144x256xf32>
    %c0_84 = arith.constant 0 : index
    %c0_85 = arith.constant 0 : index
    %230 = vector.load %arg7[%c0_84, %c0_85] : memref<8x144xbf16, #tpu.memory_space<vmem>>, vector<8x144xbf16>
    %231 = arith.truncf %229 : vector<144x256xf32> to vector<144x256xbf16>
    %cst_86 = arith.constant dense<0.000000e+00> : vector<8x256xf32>
    %232 = tpu.matmul %230, %231, %cst_86 {dimension_numbers = #tpu.dot_dimension_numbers<[1], [0], [0], [1], [0, 0, 1, 1], [], []>} : vector<8x144xbf16>, vector<144x256xbf16>, vector<8x256xf32> -> vector<8x256xf32>
    %c0_87 = arith.constant 0 : index
    %c0_88 = arith.constant 0 : index
    %233 = vector.load %arg8[%c0_87, %c0_88] : memref<8x1xf32, #tpu.memory_space<vmem>>, vector<8x1xf32>
    %234 = vector.broadcast %233 : vector<8x1xf32> to vector<8x256xf32>
    %235 = arith.addf %232, %234 : vector<8x256xf32>
    %cst_89 = arith.constant 0.000000e+00 : f32
    %236 = vector.broadcast %cst_89 : f32 to vector<8x256xf32>
    %237 = arith.cmpf oge, %235, %236 : vector<8x256xf32>
    %cst_90 = arith.constant 4.000000e-02 : f32
    %238 = vector.broadcast %cst_90 : f32 to vector<8x256xf32>
    %239 = arith.mulf %238, %235 : vector<8x256xf32>
    %240 = arith.select %237, %235, %239 : vector<8x256xi1>, vector<8x256xf32>
    %241 = arith.mulf %25, %179 : vector<8x256xf32>
    %cst_91 = arith.constant 1.000000e+00 : f32
    %242 = vector.broadcast %cst_91 : f32 to vector<8x256xf32>
    %243 = arith.subf %242, %179 : vector<8x256xf32>
    %244 = arith.mulf %240, %243 : vector<8x256xf32>
    %245 = arith.addf %241, %244 : vector<8x256xf32>
    %c17_i32_92 = arith.constant 17 : i32
    %246 = tpu.dynamic_rotate %245 by %c17_i32_92 dim 1 : vector<8x256xf32>, i32 -> vector<8x256xf32>
    %cst_93 = arith.constant 0.000000e+00 : f32
    %247 = vector.shape_cast %3 : vector<1x256xi1> to vector<1x256xi1>
    %248 = vector.broadcast %247 : vector<1x256xi1> to vector<8x256xi1>
    %249 = vector.broadcast %cst_93 : f32 to vector<8x256xf32>
    %250 = arith.select %248, %246, %249 : vector<8x256xi1>, vector<8x256xf32>
    %c16_i32_94 = arith.constant 16 : i32
    %251 = tpu.dynamic_rotate %245 by %c16_i32_94 dim 1 : vector<8x256xf32>, i32 -> vector<8x256xf32>
    %cst_95 = arith.constant 0.000000e+00 : f32
    %252 = vector.shape_cast %6 : vector<1x256xi1> to vector<1x256xi1>
    %253 = vector.broadcast %252 : vector<1x256xi1> to vector<8x256xi1>
    %254 = vector.broadcast %cst_95 : f32 to vector<8x256xf32>
    %255 = arith.select %253, %251, %254 : vector<8x256xi1>, vector<8x256xf32>
    %c15_i32_96 = arith.constant 15 : i32
    %256 = tpu.dynamic_rotate %245 by %c15_i32_96 dim 1 : vector<8x256xf32>, i32 -> vector<8x256xf32>
    %cst_97 = arith.constant 0.000000e+00 : f32
    %257 = vector.shape_cast %9 : vector<1x256xi1> to vector<1x256xi1>
    %258 = vector.broadcast %257 : vector<1x256xi1> to vector<8x256xi1>
    %259 = vector.broadcast %cst_97 : f32 to vector<8x256xf32>
    %260 = arith.select %258, %256, %259 : vector<8x256xi1>, vector<8x256xf32>
    %c1_i32_98 = arith.constant 1 : i32
    %261 = tpu.dynamic_rotate %245 by %c1_i32_98 dim 1 : vector<8x256xf32>, i32 -> vector<8x256xf32>
    %cst_99 = arith.constant 0.000000e+00 : f32
    %262 = vector.shape_cast %12 : vector<1x256xi1> to vector<1x256xi1>
    %263 = vector.broadcast %262 : vector<1x256xi1> to vector<8x256xi1>
    %264 = vector.broadcast %cst_99 : f32 to vector<8x256xf32>
    %265 = arith.select %263, %261, %264 : vector<8x256xi1>, vector<8x256xf32>
    %c255_i32_100 = arith.constant 255 : i32
    %266 = tpu.dynamic_rotate %245 by %c255_i32_100 dim 1 : vector<8x256xf32>, i32 -> vector<8x256xf32>
    %cst_101 = arith.constant 0.000000e+00 : f32
    %267 = vector.shape_cast %15 : vector<1x256xi1> to vector<1x256xi1>
    %268 = vector.broadcast %267 : vector<1x256xi1> to vector<8x256xi1>
    %269 = vector.broadcast %cst_101 : f32 to vector<8x256xf32>
    %270 = arith.select %268, %266, %269 : vector<8x256xi1>, vector<8x256xf32>
    %c241_i32_102 = arith.constant 241 : i32
    %271 = tpu.dynamic_rotate %245 by %c241_i32_102 dim 1 : vector<8x256xf32>, i32 -> vector<8x256xf32>
    %cst_103 = arith.constant 0.000000e+00 : f32
    %272 = vector.shape_cast %18 : vector<1x256xi1> to vector<1x256xi1>
    %273 = vector.broadcast %272 : vector<1x256xi1> to vector<8x256xi1>
    %274 = vector.broadcast %cst_103 : f32 to vector<8x256xf32>
    %275 = arith.select %273, %271, %274 : vector<8x256xi1>, vector<8x256xf32>
    %c240_i32_104 = arith.constant 240 : i32
    %276 = tpu.dynamic_rotate %245 by %c240_i32_104 dim 1 : vector<8x256xf32>, i32 -> vector<8x256xf32>
    %cst_105 = arith.constant 0.000000e+00 : f32
    %277 = vector.shape_cast %21 : vector<1x256xi1> to vector<1x256xi1>
    %278 = vector.broadcast %277 : vector<1x256xi1> to vector<8x256xi1>
    %279 = vector.broadcast %cst_105 : f32 to vector<8x256xf32>
    %280 = arith.select %278, %276, %279 : vector<8x256xi1>, vector<8x256xf32>
    %c239_i32_106 = arith.constant 239 : i32
    %281 = tpu.dynamic_rotate %245 by %c239_i32_106 dim 1 : vector<8x256xf32>, i32 -> vector<8x256xf32>
    %cst_107 = arith.constant 0.000000e+00 : f32
    %282 = vector.shape_cast %24 : vector<1x256xi1> to vector<1x256xi1>
    %283 = vector.broadcast %282 : vector<1x256xi1> to vector<8x256xi1>
    %284 = vector.broadcast %cst_107 : f32 to vector<8x256xf32>
    %285 = arith.select %283, %281, %284 : vector<8x256xi1>, vector<8x256xf32>
    %286 = tpu.concatenate %250, %255, %260, %265, %245, %270, %275, %280, %285 in 0 : vector<8x256xf32>, vector<8x256xf32>, vector<8x256xf32>, vector<8x256xf32>, vector<8x256xf32>, vector<8x256xf32>, vector<8x256xf32>, vector<8x256xf32>, vector<8x256xf32> -> vector<72x256xf32>
    %c0_108 = arith.constant 0 : index
    %c0_109 = arith.constant 0 : index
    %287 = vector.load %arg9[%c0_108, %c0_109] : memref<8x72xbf16, #tpu.memory_space<vmem>>, vector<8x72xbf16>
    %288 = arith.truncf %286 : vector<72x256xf32> to vector<72x256xbf16>
    %cst_110 = arith.constant dense<0.000000e+00> : vector<8x256xf32>
    %289 = tpu.matmul %287, %288, %cst_110 {dimension_numbers = #tpu.dot_dimension_numbers<[1], [0], [0], [1], [0, 0, 1, 1], [], []>} : vector<8x72xbf16>, vector<72x256xbf16>, vector<8x256xf32> -> vector<8x256xf32>
    %c0_111 = arith.constant 0 : index
    %c0_112 = arith.constant 0 : index
    %290 = vector.load %arg10[%c0_111, %c0_112] : memref<8x1xf32, #tpu.memory_space<vmem>>, vector<8x1xf32>
    %291 = vector.broadcast %290 : vector<8x1xf32> to vector<8x256xf32>
    %292 = arith.addf %289, %291 : vector<8x256xf32>
    %cst_113 = arith.constant 0.000000e+00 : f32
    %293 = vector.broadcast %cst_113 : f32 to vector<8x256xf32>
    %294 = arith.cmpf oge, %292, %293 : vector<8x256xf32>
    %cst_114 = arith.constant 0.00999999977 : f32
    %295 = vector.broadcast %cst_114 : f32 to vector<8x256xf32>
    %296 = arith.mulf %295, %292 : vector<8x256xf32>
    %297 = arith.select %294, %292, %296 : vector<8x256xi1>, vector<8x256xf32>
    %c17_i32_115 = arith.constant 17 : i32
    %298 = tpu.dynamic_rotate %297 by %c17_i32_115 dim 1 : vector<8x256xf32>, i32 -> vector<8x256xf32>
    %cst_116 = arith.constant 0.000000e+00 : f32
    %299 = vector.shape_cast %3 : vector<1x256xi1> to vector<1x256xi1>
    %300 = vector.broadcast %299 : vector<1x256xi1> to vector<8x256xi1>
    %301 = vector.broadcast %cst_116 : f32 to vector<8x256xf32>
    %302 = arith.select %300, %298, %301 : vector<8x256xi1>, vector<8x256xf32>
    %c16_i32_117 = arith.constant 16 : i32
    %303 = tpu.dynamic_rotate %297 by %c16_i32_117 dim 1 : vector<8x256xf32>, i32 -> vector<8x256xf32>
    %cst_118 = arith.constant 0.000000e+00 : f32
    %304 = vector.shape_cast %6 : vector<1x256xi1> to vector<1x256xi1>
    %305 = vector.broadcast %304 : vector<1x256xi1> to vector<8x256xi1>
    %306 = vector.broadcast %cst_118 : f32 to vector<8x256xf32>
    %307 = arith.select %305, %303, %306 : vector<8x256xi1>, vector<8x256xf32>
    %c15_i32_119 = arith.constant 15 : i32
    %308 = tpu.dynamic_rotate %297 by %c15_i32_119 dim 1 : vector<8x256xf32>, i32 -> vector<8x256xf32>
    %cst_120 = arith.constant 0.000000e+00 : f32
    %309 = vector.shape_cast %9 : vector<1x256xi1> to vector<1x256xi1>
    %310 = vector.broadcast %309 : vector<1x256xi1> to vector<8x256xi1>
    %311 = vector.broadcast %cst_120 : f32 to vector<8x256xf32>
    %312 = arith.select %310, %308, %311 : vector<8x256xi1>, vector<8x256xf32>
    %c1_i32_121 = arith.constant 1 : i32
    %313 = tpu.dynamic_rotate %297 by %c1_i32_121 dim 1 : vector<8x256xf32>, i32 -> vector<8x256xf32>
    %cst_122 = arith.constant 0.000000e+00 : f32
    %314 = vector.shape_cast %12 : vector<1x256xi1> to vector<1x256xi1>
    %315 = vector.broadcast %314 : vector<1x256xi1> to vector<8x256xi1>
    %316 = vector.broadcast %cst_122 : f32 to vector<8x256xf32>
    %317 = arith.select %315, %313, %316 : vector<8x256xi1>, vector<8x256xf32>
    %c255_i32_123 = arith.constant 255 : i32
    %318 = tpu.dynamic_rotate %297 by %c255_i32_123 dim 1 : vector<8x256xf32>, i32 -> vector<8x256xf32>
    %cst_124 = arith.constant 0.000000e+00 : f32
    %319 = vector.shape_cast %15 : vector<1x256xi1> to vector<1x256xi1>
    %320 = vector.broadcast %319 : vector<1x256xi1> to vector<8x256xi1>
    %321 = vector.broadcast %cst_124 : f32 to vector<8x256xf32>
    %322 = arith.select %320, %318, %321 : vector<8x256xi1>, vector<8x256xf32>
    %c241_i32_125 = arith.constant 241 : i32
    %323 = tpu.dynamic_rotate %297 by %c241_i32_125 dim 1 : vector<8x256xf32>, i32 -> vector<8x256xf32>
    %cst_126 = arith.constant 0.000000e+00 : f32
    %324 = vector.shape_cast %18 : vector<1x256xi1> to vector<1x256xi1>
    %325 = vector.broadcast %324 : vector<1x256xi1> to vector<8x256xi1>
    %326 = vector.broadcast %cst_126 : f32 to vector<8x256xf32>
    %327 = arith.select %325, %323, %326 : vector<8x256xi1>, vector<8x256xf32>
    %c240_i32_127 = arith.constant 240 : i32
    %328 = tpu.dynamic_rotate %297 by %c240_i32_127 dim 1 : vector<8x256xf32>, i32 -> vector<8x256xf32>
    %cst_128 = arith.constant 0.000000e+00 : f32
    %329 = vector.shape_cast %21 : vector<1x256xi1> to vector<1x256xi1>
    %330 = vector.broadcast %329 : vector<1x256xi1> to vector<8x256xi1>
    %331 = vector.broadcast %cst_128 : f32 to vector<8x256xf32>
    %332 = arith.select %330, %328, %331 : vector<8x256xi1>, vector<8x256xf32>
    %c239_i32_129 = arith.constant 239 : i32
    %333 = tpu.dynamic_rotate %297 by %c239_i32_129 dim 1 : vector<8x256xf32>, i32 -> vector<8x256xf32>
    %cst_130 = arith.constant 0.000000e+00 : f32
    %334 = vector.shape_cast %24 : vector<1x256xi1> to vector<1x256xi1>
    %335 = vector.broadcast %334 : vector<1x256xi1> to vector<8x256xi1>
    %336 = vector.broadcast %cst_130 : f32 to vector<8x256xf32>
    %337 = arith.select %335, %333, %336 : vector<8x256xi1>, vector<8x256xf32>
    %c17_i32_131 = arith.constant 17 : i32
    %338 = tpu.dynamic_rotate %26 by %c17_i32_131 dim 1 : vector<8x256xf32>, i32 -> vector<8x256xf32>
    %cst_132 = arith.constant 0.000000e+00 : f32
    %339 = vector.shape_cast %3 : vector<1x256xi1> to vector<1x256xi1>
    %340 = vector.broadcast %339 : vector<1x256xi1> to vector<8x256xi1>
    %341 = vector.broadcast %cst_132 : f32 to vector<8x256xf32>
    %342 = arith.select %340, %338, %341 : vector<8x256xi1>, vector<8x256xf32>
    %c16_i32_133 = arith.constant 16 : i32
    %343 = tpu.dynamic_rotate %26 by %c16_i32_133 dim 1 : vector<8x256xf32>, i32 -> vector<8x256xf32>
    %cst_134 = arith.constant 0.000000e+00 : f32
    %344 = vector.shape_cast %6 : vector<1x256xi1> to vector<1x256xi1>
    %345 = vector.broadcast %344 : vector<1x256xi1> to vector<8x256xi1>
    %346 = vector.broadcast %cst_134 : f32 to vector<8x256xf32>
    %347 = arith.select %345, %343, %346 : vector<8x256xi1>, vector<8x256xf32>
    %c15_i32_135 = arith.constant 15 : i32
    %348 = tpu.dynamic_rotate %26 by %c15_i32_135 dim 1 : vector<8x256xf32>, i32 -> vector<8x256xf32>
    %cst_136 = arith.constant 0.000000e+00 : f32
    %349 = vector.shape_cast %9 : vector<1x256xi1> to vector<1x256xi1>
    %350 = vector.broadcast %349 : vector<1x256xi1> to vector<8x256xi1>
    %351 = vector.broadcast %cst_136 : f32 to vector<8x256xf32>
    %352 = arith.select %350, %348, %351 : vector<8x256xi1>, vector<8x256xf32>
    %c1_i32_137 = arith.constant 1 : i32
    %353 = tpu.dynamic_rotate %26 by %c1_i32_137 dim 1 : vector<8x256xf32>, i32 -> vector<8x256xf32>
    %cst_138 = arith.constant 0.000000e+00 : f32
    %354 = vector.shape_cast %12 : vector<1x256xi1> to vector<1x256xi1>
    %355 = vector.broadcast %354 : vector<1x256xi1> to vector<8x256xi1>
    %356 = vector.broadcast %cst_138 : f32 to vector<8x256xf32>
    %357 = arith.select %355, %353, %356 : vector<8x256xi1>, vector<8x256xf32>
    %c255_i32_139 = arith.constant 255 : i32
    %358 = tpu.dynamic_rotate %26 by %c255_i32_139 dim 1 : vector<8x256xf32>, i32 -> vector<8x256xf32>
    %cst_140 = arith.constant 0.000000e+00 : f32
    %359 = vector.shape_cast %15 : vector<1x256xi1> to vector<1x256xi1>
    %360 = vector.broadcast %359 : vector<1x256xi1> to vector<8x256xi1>
    %361 = vector.broadcast %cst_140 : f32 to vector<8x256xf32>
    %362 = arith.select %360, %358, %361 : vector<8x256xi1>, vector<8x256xf32>
    %c241_i32_141 = arith.constant 241 : i32
    %363 = tpu.dynamic_rotate %26 by %c241_i32_141 dim 1 : vector<8x256xf32>, i32 -> vector<8x256xf32>
    %cst_142 = arith.constant 0.000000e+00 : f32
    %364 = vector.shape_cast %18 : vector<1x256xi1> to vector<1x256xi1>
    %365 = vector.broadcast %364 : vector<1x256xi1> to vector<8x256xi1>
    %366 = vector.broadcast %cst_142 : f32 to vector<8x256xf32>
    %367 = arith.select %365, %363, %366 : vector<8x256xi1>, vector<8x256xf32>
    %c240_i32_143 = arith.constant 240 : i32
    %368 = tpu.dynamic_rotate %26 by %c240_i32_143 dim 1 : vector<8x256xf32>, i32 -> vector<8x256xf32>
    %cst_144 = arith.constant 0.000000e+00 : f32
    %369 = vector.shape_cast %21 : vector<1x256xi1> to vector<1x256xi1>
    %370 = vector.broadcast %369 : vector<1x256xi1> to vector<8x256xi1>
    %371 = vector.broadcast %cst_144 : f32 to vector<8x256xf32>
    %372 = arith.select %370, %368, %371 : vector<8x256xi1>, vector<8x256xf32>
    %c239_i32_145 = arith.constant 239 : i32
    %373 = tpu.dynamic_rotate %26 by %c239_i32_145 dim 1 : vector<8x256xf32>, i32 -> vector<8x256xf32>
    %cst_146 = arith.constant 0.000000e+00 : f32
    %374 = vector.shape_cast %24 : vector<1x256xi1> to vector<1x256xi1>
    %375 = vector.broadcast %374 : vector<1x256xi1> to vector<8x256xi1>
    %376 = vector.broadcast %cst_146 : f32 to vector<8x256xf32>
    %377 = arith.select %375, %373, %376 : vector<8x256xi1>, vector<8x256xf32>
    %378 = tpu.concatenate %302, %307, %312, %317, %297, %322, %327, %332, %337, %342, %347, %352, %357, %26, %362, %367 in 0 : vector<8x256xf32>, vector<8x256xf32>, vector<8x256xf32>, vector<8x256xf32>, vector<8x256xf32>, vector<8x256xf32>, vector<8x256xf32>, vector<8x256xf32>, vector<8x256xf32>, vector<8x256xf32>, vector<8x256xf32>, vector<8x256xf32>, vector<8x256xf32>, vector<8x256xf32>, vector<8x256xf32>, vector<8x256xf32> -> vector<128x256xf32>
    %379 = tpu.concatenate %372, %377 in 0 : vector<8x256xf32>, vector<8x256xf32> -> vector<16x256xf32>
    %380 = tpu.concatenate %378, %379 in 0 : vector<128x256xf32>, vector<16x256xf32> -> vector<144x256xf32>
    %c0_147 = arith.constant 0 : index
    %c0_148 = arith.constant 0 : index
    %381 = vector.load %arg11[%c0_147, %c0_148] : memref<16x144xbf16, #tpu.memory_space<vmem>>, vector<16x144xbf16>
    %382 = arith.truncf %380 : vector<144x256xf32> to vector<144x256xbf16>
    %cst_149 = arith.constant dense<0.000000e+00> : vector<16x256xf32>
    %383 = tpu.matmul %381, %382, %cst_149 {dimension_numbers = #tpu.dot_dimension_numbers<[1], [0], [0], [1], [0, 0, 1, 1], [], []>} : vector<16x144xbf16>, vector<144x256xbf16>, vector<16x256xf32> -> vector<16x256xf32>
    %c0_150 = arith.constant 0 : index
    %c0_151 = arith.constant 0 : index
    %384 = vector.load %arg12[%c0_150, %c0_151] : memref<16x1xf32, #tpu.memory_space<vmem>>, vector<16x1xf32>
    %385 = vector.broadcast %384 : vector<16x1xf32> to vector<16x256xf32>
    %386 = arith.addf %383, %385 : vector<16x256xf32>
    %cst_152 = arith.constant 0.000000e+00 : f32
    %387 = vector.broadcast %cst_152 : f32 to vector<16x256xf32>
    %388 = arith.cmpf oge, %386, %387 : vector<16x256xf32>
    %cst_153 = arith.constant 0.00999999977 : f32
    %389 = vector.broadcast %cst_153 : f32 to vector<16x256xf32>
    %390 = arith.mulf %389, %386 : vector<16x256xf32>
    %391 = arith.select %388, %386, %390 : vector<16x256xi1>, vector<16x256xf32>
    %392 = vector.extract_strided_slice %391 {offsets = [0, 0], sizes = [8, 256], strides = [1, 1]} : vector<16x256xf32> to vector<8x256xf32>
    %393 = arith.negf %392 : vector<8x256xf32>
    %394 = math.exp %393 : vector<8x256xf32>
    %cst_154 = arith.constant 1.000000e+00 : f32
    %395 = vector.broadcast %cst_154 : f32 to vector<8x256xf32>
    %396 = arith.addf %395, %394 : vector<8x256xf32>
    %397 = arith.divf %395, %396 : vector<8x256xf32>
    %398 = vector.extract_strided_slice %391 {offsets = [8, 0], sizes = [8, 256], strides = [1, 1]} : vector<16x256xf32> to vector<8x256xf32>
    %399 = arith.negf %398 : vector<8x256xf32>
    %400 = math.exp %399 : vector<8x256xf32>
    %cst_155 = arith.constant 1.000000e+00 : f32
    %401 = vector.broadcast %cst_155 : f32 to vector<8x256xf32>
    %402 = arith.addf %401, %400 : vector<8x256xf32>
    %403 = arith.divf %401, %402 : vector<8x256xf32>
    %404 = arith.mulf %26, %403 : vector<8x256xf32>
    %c17_i32_156 = arith.constant 17 : i32
    %405 = tpu.dynamic_rotate %404 by %c17_i32_156 dim 1 : vector<8x256xf32>, i32 -> vector<8x256xf32>
    %cst_157 = arith.constant 0.000000e+00 : f32
    %406 = vector.shape_cast %3 : vector<1x256xi1> to vector<1x256xi1>
    %407 = vector.broadcast %406 : vector<1x256xi1> to vector<8x256xi1>
    %408 = vector.broadcast %cst_157 : f32 to vector<8x256xf32>
    %409 = arith.select %407, %405, %408 : vector<8x256xi1>, vector<8x256xf32>
    %c16_i32_158 = arith.constant 16 : i32
    %410 = tpu.dynamic_rotate %404 by %c16_i32_158 dim 1 : vector<8x256xf32>, i32 -> vector<8x256xf32>
    %cst_159 = arith.constant 0.000000e+00 : f32
    %411 = vector.shape_cast %6 : vector<1x256xi1> to vector<1x256xi1>
    %412 = vector.broadcast %411 : vector<1x256xi1> to vector<8x256xi1>
    %413 = vector.broadcast %cst_159 : f32 to vector<8x256xf32>
    %414 = arith.select %412, %410, %413 : vector<8x256xi1>, vector<8x256xf32>
    %c15_i32_160 = arith.constant 15 : i32
    %415 = tpu.dynamic_rotate %404 by %c15_i32_160 dim 1 : vector<8x256xf32>, i32 -> vector<8x256xf32>
    %cst_161 = arith.constant 0.000000e+00 : f32
    %416 = vector.shape_cast %9 : vector<1x256xi1> to vector<1x256xi1>
    %417 = vector.broadcast %416 : vector<1x256xi1> to vector<8x256xi1>
    %418 = vector.broadcast %cst_161 : f32 to vector<8x256xf32>
    %419 = arith.select %417, %415, %418 : vector<8x256xi1>, vector<8x256xf32>
    %c1_i32_162 = arith.constant 1 : i32
    %420 = tpu.dynamic_rotate %404 by %c1_i32_162 dim 1 : vector<8x256xf32>, i32 -> vector<8x256xf32>
    %cst_163 = arith.constant 0.000000e+00 : f32
    %421 = vector.shape_cast %12 : vector<1x256xi1> to vector<1x256xi1>
    %422 = vector.broadcast %421 : vector<1x256xi1> to vector<8x256xi1>
    %423 = vector.broadcast %cst_163 : f32 to vector<8x256xf32>
    %424 = arith.select %422, %420, %423 : vector<8x256xi1>, vector<8x256xf32>
    %c255_i32_164 = arith.constant 255 : i32
    %425 = tpu.dynamic_rotate %404 by %c255_i32_164 dim 1 : vector<8x256xf32>, i32 -> vector<8x256xf32>
    %cst_165 = arith.constant 0.000000e+00 : f32
    %426 = vector.shape_cast %15 : vector<1x256xi1> to vector<1x256xi1>
    %427 = vector.broadcast %426 : vector<1x256xi1> to vector<8x256xi1>
    %428 = vector.broadcast %cst_165 : f32 to vector<8x256xf32>
    %429 = arith.select %427, %425, %428 : vector<8x256xi1>, vector<8x256xf32>
    %c241_i32_166 = arith.constant 241 : i32
    %430 = tpu.dynamic_rotate %404 by %c241_i32_166 dim 1 : vector<8x256xf32>, i32 -> vector<8x256xf32>
    %cst_167 = arith.constant 0.000000e+00 : f32
    %431 = vector.shape_cast %18 : vector<1x256xi1> to vector<1x256xi1>
    %432 = vector.broadcast %431 : vector<1x256xi1> to vector<8x256xi1>
    %433 = vector.broadcast %cst_167 : f32 to vector<8x256xf32>
    %434 = arith.select %432, %430, %433 : vector<8x256xi1>, vector<8x256xf32>
    %c240_i32_168 = arith.constant 240 : i32
    %435 = tpu.dynamic_rotate %404 by %c240_i32_168 dim 1 : vector<8x256xf32>, i32 -> vector<8x256xf32>
    %cst_169 = arith.constant 0.000000e+00 : f32
    %436 = vector.shape_cast %21 : vector<1x256xi1> to vector<1x256xi1>
    %437 = vector.broadcast %436 : vector<1x256xi1> to vector<8x256xi1>
    %438 = vector.broadcast %cst_169 : f32 to vector<8x256xf32>
    %439 = arith.select %437, %435, %438 : vector<8x256xi1>, vector<8x256xf32>
    %c239_i32_170 = arith.constant 239 : i32
    %440 = tpu.dynamic_rotate %404 by %c239_i32_170 dim 1 : vector<8x256xf32>, i32 -> vector<8x256xf32>
    %cst_171 = arith.constant 0.000000e+00 : f32
    %441 = vector.shape_cast %24 : vector<1x256xi1> to vector<1x256xi1>
    %442 = vector.broadcast %441 : vector<1x256xi1> to vector<8x256xi1>
    %443 = vector.broadcast %cst_171 : f32 to vector<8x256xf32>
    %444 = arith.select %442, %440, %443 : vector<8x256xi1>, vector<8x256xf32>
    %445 = tpu.concatenate %302, %307, %312, %317, %297, %322, %327, %332, %337, %409, %414, %419, %424, %404, %429, %434 in 0 : vector<8x256xf32>, vector<8x256xf32>, vector<8x256xf32>, vector<8x256xf32>, vector<8x256xf32>, vector<8x256xf32>, vector<8x256xf32>, vector<8x256xf32>, vector<8x256xf32>, vector<8x256xf32>, vector<8x256xf32>, vector<8x256xf32>, vector<8x256xf32>, vector<8x256xf32>, vector<8x256xf32>, vector<8x256xf32> -> vector<128x256xf32>
    %446 = tpu.concatenate %439, %444 in 0 : vector<8x256xf32>, vector<8x256xf32> -> vector<16x256xf32>
    %447 = tpu.concatenate %445, %446 in 0 : vector<128x256xf32>, vector<16x256xf32> -> vector<144x256xf32>
    %c0_172 = arith.constant 0 : index
    %c0_173 = arith.constant 0 : index
    %448 = vector.load %arg13[%c0_172, %c0_173] : memref<8x144xbf16, #tpu.memory_space<vmem>>, vector<8x144xbf16>
    %449 = arith.truncf %447 : vector<144x256xf32> to vector<144x256xbf16>
    %cst_174 = arith.constant dense<0.000000e+00> : vector<8x256xf32>
    %450 = tpu.matmul %448, %449, %cst_174 {dimension_numbers = #tpu.dot_dimension_numbers<[1], [0], [0], [1], [0, 0, 1, 1], [], []>} : vector<8x144xbf16>, vector<144x256xbf16>, vector<8x256xf32> -> vector<8x256xf32>
    %c0_175 = arith.constant 0 : index
    %c0_176 = arith.constant 0 : index
    %451 = vector.load %arg14[%c0_175, %c0_176] : memref<8x1xf32, #tpu.memory_space<vmem>>, vector<8x1xf32>
    %452 = vector.broadcast %451 : vector<8x1xf32> to vector<8x256xf32>
    %453 = arith.addf %450, %452 : vector<8x256xf32>
    %cst_177 = arith.constant 0.000000e+00 : f32
    %454 = vector.broadcast %cst_177 : f32 to vector<8x256xf32>
    %455 = arith.cmpf oge, %453, %454 : vector<8x256xf32>
    %cst_178 = arith.constant 4.000000e-02 : f32
    %456 = vector.broadcast %cst_178 : f32 to vector<8x256xf32>
    %457 = arith.mulf %456, %453 : vector<8x256xf32>
    %458 = arith.select %455, %453, %457 : vector<8x256xi1>, vector<8x256xf32>
    %459 = arith.mulf %26, %397 : vector<8x256xf32>
    %cst_179 = arith.constant 1.000000e+00 : f32
    %460 = vector.broadcast %cst_179 : f32 to vector<8x256xf32>
    %461 = arith.subf %460, %397 : vector<8x256xf32>
    %462 = arith.mulf %458, %461 : vector<8x256xf32>
    %463 = arith.addf %459, %462 : vector<8x256xf32>
    %c8 = arith.constant 8 : index
    %c0_180 = arith.constant 0 : index
    %464 = vector.load %arg2[%c8, %c0_180] : memref<16x256xf32, #tpu.memory_space<vmem>>, vector<8x256xf32>
    %c17_i32_181 = arith.constant 17 : i32
    %465 = tpu.dynamic_rotate %464 by %c17_i32_181 dim 1 : vector<8x256xf32>, i32 -> vector<8x256xf32>
    %cst_182 = arith.constant 0.000000e+00 : f32
    %466 = vector.shape_cast %3 : vector<1x256xi1> to vector<1x256xi1>
    %467 = vector.broadcast %466 : vector<1x256xi1> to vector<8x256xi1>
    %468 = vector.broadcast %cst_182 : f32 to vector<8x256xf32>
    %469 = arith.select %467, %465, %468 : vector<8x256xi1>, vector<8x256xf32>
    %c16_i32_183 = arith.constant 16 : i32
    %470 = tpu.dynamic_rotate %464 by %c16_i32_183 dim 1 : vector<8x256xf32>, i32 -> vector<8x256xf32>
    %cst_184 = arith.constant 0.000000e+00 : f32
    %471 = vector.shape_cast %6 : vector<1x256xi1> to vector<1x256xi1>
    %472 = vector.broadcast %471 : vector<1x256xi1> to vector<8x256xi1>
    %473 = vector.broadcast %cst_184 : f32 to vector<8x256xf32>
    %474 = arith.select %472, %470, %473 : vector<8x256xi1>, vector<8x256xf32>
    %c15_i32_185 = arith.constant 15 : i32
    %475 = tpu.dynamic_rotate %464 by %c15_i32_185 dim 1 : vector<8x256xf32>, i32 -> vector<8x256xf32>
    %cst_186 = arith.constant 0.000000e+00 : f32
    %476 = vector.shape_cast %9 : vector<1x256xi1> to vector<1x256xi1>
    %477 = vector.broadcast %476 : vector<1x256xi1> to vector<8x256xi1>
    %478 = vector.broadcast %cst_186 : f32 to vector<8x256xf32>
    %479 = arith.select %477, %475, %478 : vector<8x256xi1>, vector<8x256xf32>
    %c1_i32_187 = arith.constant 1 : i32
    %480 = tpu.dynamic_rotate %464 by %c1_i32_187 dim 1 : vector<8x256xf32>, i32 -> vector<8x256xf32>
    %cst_188 = arith.constant 0.000000e+00 : f32
    %481 = vector.shape_cast %12 : vector<1x256xi1> to vector<1x256xi1>
    %482 = vector.broadcast %481 : vector<1x256xi1> to vector<8x256xi1>
    %483 = vector.broadcast %cst_188 : f32 to vector<8x256xf32>
    %484 = arith.select %482, %480, %483 : vector<8x256xi1>, vector<8x256xf32>
    %c255_i32_189 = arith.constant 255 : i32
    %485 = tpu.dynamic_rotate %464 by %c255_i32_189 dim 1 : vector<8x256xf32>, i32 -> vector<8x256xf32>
    %cst_190 = arith.constant 0.000000e+00 : f32
    %486 = vector.shape_cast %15 : vector<1x256xi1> to vector<1x256xi1>
    %487 = vector.broadcast %486 : vector<1x256xi1> to vector<8x256xi1>
    %488 = vector.broadcast %cst_190 : f32 to vector<8x256xf32>
    %489 = arith.select %487, %485, %488 : vector<8x256xi1>, vector<8x256xf32>
    %c241_i32_191 = arith.constant 241 : i32
    %490 = tpu.dynamic_rotate %464 by %c241_i32_191 dim 1 : vector<8x256xf32>, i32 -> vector<8x256xf32>
    %cst_192 = arith.constant 0.000000e+00 : f32
    %491 = vector.shape_cast %18 : vector<1x256xi1> to vector<1x256xi1>
    %492 = vector.broadcast %491 : vector<1x256xi1> to vector<8x256xi1>
    %493 = vector.broadcast %cst_192 : f32 to vector<8x256xf32>
    %494 = arith.select %492, %490, %493 : vector<8x256xi1>, vector<8x256xf32>
    %c240_i32_193 = arith.constant 240 : i32
    %495 = tpu.dynamic_rotate %464 by %c240_i32_193 dim 1 : vector<8x256xf32>, i32 -> vector<8x256xf32>
    %cst_194 = arith.constant 0.000000e+00 : f32
    %496 = vector.shape_cast %21 : vector<1x256xi1> to vector<1x256xi1>
    %497 = vector.broadcast %496 : vector<1x256xi1> to vector<8x256xi1>
    %498 = vector.broadcast %cst_194 : f32 to vector<8x256xf32>
    %499 = arith.select %497, %495, %498 : vector<8x256xi1>, vector<8x256xf32>
    %c239_i32_195 = arith.constant 239 : i32
    %500 = tpu.dynamic_rotate %464 by %c239_i32_195 dim 1 : vector<8x256xf32>, i32 -> vector<8x256xf32>
    %cst_196 = arith.constant 0.000000e+00 : f32
    %501 = vector.shape_cast %24 : vector<1x256xi1> to vector<1x256xi1>
    %502 = vector.broadcast %501 : vector<1x256xi1> to vector<8x256xi1>
    %503 = vector.broadcast %cst_196 : f32 to vector<8x256xf32>
    %504 = arith.select %502, %500, %503 : vector<8x256xi1>, vector<8x256xf32>
    %505 = tpu.concatenate %469, %474, %479, %484, %464, %489, %494, %499, %504 in 0 : vector<8x256xf32>, vector<8x256xf32>, vector<8x256xf32>, vector<8x256xf32>, vector<8x256xf32>, vector<8x256xf32>, vector<8x256xf32>, vector<8x256xf32>, vector<8x256xf32> -> vector<72x256xf32>
    %c0_197 = arith.constant 0 : index
    %c0_198 = arith.constant 0 : index
    %506 = vector.load %arg15[%c0_197, %c0_198] : memref<8x72xbf16, #tpu.memory_space<vmem>>, vector<8x72xbf16>
    %507 = arith.truncf %505 : vector<72x256xf32> to vector<72x256xbf16>
    %cst_199 = arith.constant dense<0.000000e+00> : vector<8x256xf32>
    %508 = tpu.matmul %506, %507, %cst_199 {dimension_numbers = #tpu.dot_dimension_numbers<[1], [0], [0], [1], [0, 0, 1, 1], [], []>} : vector<8x72xbf16>, vector<72x256xbf16>, vector<8x256xf32> -> vector<8x256xf32>
    %c0_200 = arith.constant 0 : index
    %c0_201 = arith.constant 0 : index
    %509 = vector.load %arg16[%c0_200, %c0_201] : memref<8x1xf32, #tpu.memory_space<vmem>>, vector<8x1xf32>
    %510 = vector.broadcast %509 : vector<8x1xf32> to vector<8x256xf32>
    %511 = arith.addf %508, %510 : vector<8x256xf32>
    %cst_202 = arith.constant 0.000000e+00 : f32
    %512 = vector.broadcast %cst_202 : f32 to vector<8x256xf32>
    %513 = arith.cmpf oge, %511, %512 : vector<8x256xf32>
    %cst_203 = arith.constant 0.00999999977 : f32
    %514 = vector.broadcast %cst_203 : f32 to vector<8x256xf32>
    %515 = arith.mulf %514, %511 : vector<8x256xf32>
    %516 = arith.select %513, %511, %515 : vector<8x256xi1>, vector<8x256xf32>
    %c17_i32_204 = arith.constant 17 : i32
    %517 = tpu.dynamic_rotate %516 by %c17_i32_204 dim 1 : vector<8x256xf32>, i32 -> vector<8x256xf32>
    %cst_205 = arith.constant 0.000000e+00 : f32
    %518 = vector.shape_cast %3 : vector<1x256xi1> to vector<1x256xi1>
    %519 = vector.broadcast %518 : vector<1x256xi1> to vector<8x256xi1>
    %520 = vector.broadcast %cst_205 : f32 to vector<8x256xf32>
    %521 = arith.select %519, %517, %520 : vector<8x256xi1>, vector<8x256xf32>
    %c16_i32_206 = arith.constant 16 : i32
    %522 = tpu.dynamic_rotate %516 by %c16_i32_206 dim 1 : vector<8x256xf32>, i32 -> vector<8x256xf32>
    %cst_207 = arith.constant 0.000000e+00 : f32
    %523 = vector.shape_cast %6 : vector<1x256xi1> to vector<1x256xi1>
    %524 = vector.broadcast %523 : vector<1x256xi1> to vector<8x256xi1>
    %525 = vector.broadcast %cst_207 : f32 to vector<8x256xf32>
    %526 = arith.select %524, %522, %525 : vector<8x256xi1>, vector<8x256xf32>
    %c15_i32_208 = arith.constant 15 : i32
    %527 = tpu.dynamic_rotate %516 by %c15_i32_208 dim 1 : vector<8x256xf32>, i32 -> vector<8x256xf32>
    %cst_209 = arith.constant 0.000000e+00 : f32
    %528 = vector.shape_cast %9 : vector<1x256xi1> to vector<1x256xi1>
    %529 = vector.broadcast %528 : vector<1x256xi1> to vector<8x256xi1>
    %530 = vector.broadcast %cst_209 : f32 to vector<8x256xf32>
    %531 = arith.select %529, %527, %530 : vector<8x256xi1>, vector<8x256xf32>
    %c1_i32_210 = arith.constant 1 : i32
    %532 = tpu.dynamic_rotate %516 by %c1_i32_210 dim 1 : vector<8x256xf32>, i32 -> vector<8x256xf32>
    %cst_211 = arith.constant 0.000000e+00 : f32
    %533 = vector.shape_cast %12 : vector<1x256xi1> to vector<1x256xi1>
    %534 = vector.broadcast %533 : vector<1x256xi1> to vector<8x256xi1>
    %535 = vector.broadcast %cst_211 : f32 to vector<8x256xf32>
    %536 = arith.select %534, %532, %535 : vector<8x256xi1>, vector<8x256xf32>
    %c255_i32_212 = arith.constant 255 : i32
    %537 = tpu.dynamic_rotate %516 by %c255_i32_212 dim 1 : vector<8x256xf32>, i32 -> vector<8x256xf32>
    %cst_213 = arith.constant 0.000000e+00 : f32
    %538 = vector.shape_cast %15 : vector<1x256xi1> to vector<1x256xi1>
    %539 = vector.broadcast %538 : vector<1x256xi1> to vector<8x256xi1>
    %540 = vector.broadcast %cst_213 : f32 to vector<8x256xf32>
    %541 = arith.select %539, %537, %540 : vector<8x256xi1>, vector<8x256xf32>
    %c241_i32_214 = arith.constant 241 : i32
    %542 = tpu.dynamic_rotate %516 by %c241_i32_214 dim 1 : vector<8x256xf32>, i32 -> vector<8x256xf32>
    %cst_215 = arith.constant 0.000000e+00 : f32
    %543 = vector.shape_cast %18 : vector<1x256xi1> to vector<1x256xi1>
    %544 = vector.broadcast %543 : vector<1x256xi1> to vector<8x256xi1>
    %545 = vector.broadcast %cst_215 : f32 to vector<8x256xf32>
    %546 = arith.select %544, %542, %545 : vector<8x256xi1>, vector<8x256xf32>
    %c240_i32_216 = arith.constant 240 : i32
    %547 = tpu.dynamic_rotate %516 by %c240_i32_216 dim 1 : vector<8x256xf32>, i32 -> vector<8x256xf32>
    %cst_217 = arith.constant 0.000000e+00 : f32
    %548 = vector.shape_cast %21 : vector<1x256xi1> to vector<1x256xi1>
    %549 = vector.broadcast %548 : vector<1x256xi1> to vector<8x256xi1>
    %550 = vector.broadcast %cst_217 : f32 to vector<8x256xf32>
    %551 = arith.select %549, %547, %550 : vector<8x256xi1>, vector<8x256xf32>
    %c239_i32_218 = arith.constant 239 : i32
    %552 = tpu.dynamic_rotate %516 by %c239_i32_218 dim 1 : vector<8x256xf32>, i32 -> vector<8x256xf32>
    %cst_219 = arith.constant 0.000000e+00 : f32
    %553 = vector.shape_cast %24 : vector<1x256xi1> to vector<1x256xi1>
    %554 = vector.broadcast %553 : vector<1x256xi1> to vector<8x256xi1>
    %555 = vector.broadcast %cst_219 : f32 to vector<8x256xf32>
    %556 = arith.select %554, %552, %555 : vector<8x256xi1>, vector<8x256xf32>
    %c17_i32_220 = arith.constant 17 : i32
    %557 = tpu.dynamic_rotate %245 by %c17_i32_220 dim 1 : vector<8x256xf32>, i32 -> vector<8x256xf32>
    %cst_221 = arith.constant 0.000000e+00 : f32
    %558 = vector.shape_cast %3 : vector<1x256xi1> to vector<1x256xi1>
    %559 = vector.broadcast %558 : vector<1x256xi1> to vector<8x256xi1>
    %560 = vector.broadcast %cst_221 : f32 to vector<8x256xf32>
    %561 = arith.select %559, %557, %560 : vector<8x256xi1>, vector<8x256xf32>
    %c16_i32_222 = arith.constant 16 : i32
    %562 = tpu.dynamic_rotate %245 by %c16_i32_222 dim 1 : vector<8x256xf32>, i32 -> vector<8x256xf32>
    %cst_223 = arith.constant 0.000000e+00 : f32
    %563 = vector.shape_cast %6 : vector<1x256xi1> to vector<1x256xi1>
    %564 = vector.broadcast %563 : vector<1x256xi1> to vector<8x256xi1>
    %565 = vector.broadcast %cst_223 : f32 to vector<8x256xf32>
    %566 = arith.select %564, %562, %565 : vector<8x256xi1>, vector<8x256xf32>
    %c15_i32_224 = arith.constant 15 : i32
    %567 = tpu.dynamic_rotate %245 by %c15_i32_224 dim 1 : vector<8x256xf32>, i32 -> vector<8x256xf32>
    %cst_225 = arith.constant 0.000000e+00 : f32
    %568 = vector.shape_cast %9 : vector<1x256xi1> to vector<1x256xi1>
    %569 = vector.broadcast %568 : vector<1x256xi1> to vector<8x256xi1>
    %570 = vector.broadcast %cst_225 : f32 to vector<8x256xf32>
    %571 = arith.select %569, %567, %570 : vector<8x256xi1>, vector<8x256xf32>
    %c1_i32_226 = arith.constant 1 : i32
    %572 = tpu.dynamic_rotate %245 by %c1_i32_226 dim 1 : vector<8x256xf32>, i32 -> vector<8x256xf32>
    %cst_227 = arith.constant 0.000000e+00 : f32
    %573 = vector.shape_cast %12 : vector<1x256xi1> to vector<1x256xi1>
    %574 = vector.broadcast %573 : vector<1x256xi1> to vector<8x256xi1>
    %575 = vector.broadcast %cst_227 : f32 to vector<8x256xf32>
    %576 = arith.select %574, %572, %575 : vector<8x256xi1>, vector<8x256xf32>
    %c255_i32_228 = arith.constant 255 : i32
    %577 = tpu.dynamic_rotate %245 by %c255_i32_228 dim 1 : vector<8x256xf32>, i32 -> vector<8x256xf32>
    %cst_229 = arith.constant 0.000000e+00 : f32
    %578 = vector.shape_cast %15 : vector<1x256xi1> to vector<1x256xi1>
    %579 = vector.broadcast %578 : vector<1x256xi1> to vector<8x256xi1>
    %580 = vector.broadcast %cst_229 : f32 to vector<8x256xf32>
    %581 = arith.select %579, %577, %580 : vector<8x256xi1>, vector<8x256xf32>
    %c241_i32_230 = arith.constant 241 : i32
    %582 = tpu.dynamic_rotate %245 by %c241_i32_230 dim 1 : vector<8x256xf32>, i32 -> vector<8x256xf32>
    %cst_231 = arith.constant 0.000000e+00 : f32
    %583 = vector.shape_cast %18 : vector<1x256xi1> to vector<1x256xi1>
    %584 = vector.broadcast %583 : vector<1x256xi1> to vector<8x256xi1>
    %585 = vector.broadcast %cst_231 : f32 to vector<8x256xf32>
    %586 = arith.select %584, %582, %585 : vector<8x256xi1>, vector<8x256xf32>
    %c240_i32_232 = arith.constant 240 : i32
    %587 = tpu.dynamic_rotate %245 by %c240_i32_232 dim 1 : vector<8x256xf32>, i32 -> vector<8x256xf32>
    %cst_233 = arith.constant 0.000000e+00 : f32
    %588 = vector.shape_cast %21 : vector<1x256xi1> to vector<1x256xi1>
    %589 = vector.broadcast %588 : vector<1x256xi1> to vector<8x256xi1>
    %590 = vector.broadcast %cst_233 : f32 to vector<8x256xf32>
    %591 = arith.select %589, %587, %590 : vector<8x256xi1>, vector<8x256xf32>
    %c239_i32_234 = arith.constant 239 : i32
    %592 = tpu.dynamic_rotate %245 by %c239_i32_234 dim 1 : vector<8x256xf32>, i32 -> vector<8x256xf32>
    %cst_235 = arith.constant 0.000000e+00 : f32
    %593 = vector.shape_cast %24 : vector<1x256xi1> to vector<1x256xi1>
    %594 = vector.broadcast %593 : vector<1x256xi1> to vector<8x256xi1>
    %595 = vector.broadcast %cst_235 : f32 to vector<8x256xf32>
    %596 = arith.select %594, %592, %595 : vector<8x256xi1>, vector<8x256xf32>
    %597 = tpu.concatenate %521, %526, %531, %536, %516, %541, %546, %551, %556, %561, %566, %571, %576, %245, %581, %586 in 0 : vector<8x256xf32>, vector<8x256xf32>, vector<8x256xf32>, vector<8x256xf32>, vector<8x256xf32>, vector<8x256xf32>, vector<8x256xf32>, vector<8x256xf32>, vector<8x256xf32>, vector<8x256xf32>, vector<8x256xf32>, vector<8x256xf32>, vector<8x256xf32>, vector<8x256xf32>, vector<8x256xf32>, vector<8x256xf32> -> vector<128x256xf32>
    %598 = tpu.concatenate %591, %596 in 0 : vector<8x256xf32>, vector<8x256xf32> -> vector<16x256xf32>
    %599 = tpu.concatenate %597, %598 in 0 : vector<128x256xf32>, vector<16x256xf32> -> vector<144x256xf32>
    %c0_236 = arith.constant 0 : index
    %c0_237 = arith.constant 0 : index
    %600 = vector.load %arg17[%c0_236, %c0_237] : memref<16x144xbf16, #tpu.memory_space<vmem>>, vector<16x144xbf16>
    %601 = arith.truncf %599 : vector<144x256xf32> to vector<144x256xbf16>
    %cst_238 = arith.constant dense<0.000000e+00> : vector<16x256xf32>
    %602 = tpu.matmul %600, %601, %cst_238 {dimension_numbers = #tpu.dot_dimension_numbers<[1], [0], [0], [1], [0, 0, 1, 1], [], []>} : vector<16x144xbf16>, vector<144x256xbf16>, vector<16x256xf32> -> vector<16x256xf32>
    %c0_239 = arith.constant 0 : index
    %c0_240 = arith.constant 0 : index
    %603 = vector.load %arg18[%c0_239, %c0_240] : memref<16x1xf32, #tpu.memory_space<vmem>>, vector<16x1xf32>
    %604 = vector.broadcast %603 : vector<16x1xf32> to vector<16x256xf32>
    %605 = arith.addf %602, %604 : vector<16x256xf32>
    %cst_241 = arith.constant 0.000000e+00 : f32
    %606 = vector.broadcast %cst_241 : f32 to vector<16x256xf32>
    %607 = arith.cmpf oge, %605, %606 : vector<16x256xf32>
    %cst_242 = arith.constant 0.00999999977 : f32
    %608 = vector.broadcast %cst_242 : f32 to vector<16x256xf32>
    %609 = arith.mulf %608, %605 : vector<16x256xf32>
    %610 = arith.select %607, %605, %609 : vector<16x256xi1>, vector<16x256xf32>
    %611 = vector.extract_strided_slice %610 {offsets = [0, 0], sizes = [8, 256], strides = [1, 1]} : vector<16x256xf32> to vector<8x256xf32>
    %612 = arith.negf %611 : vector<8x256xf32>
    %613 = math.exp %612 : vector<8x256xf32>
    %cst_243 = arith.constant 1.000000e+00 : f32
    %614 = vector.broadcast %cst_243 : f32 to vector<8x256xf32>
    %615 = arith.addf %614, %613 : vector<8x256xf32>
    %616 = arith.divf %614, %615 : vector<8x256xf32>
    %617 = vector.extract_strided_slice %610 {offsets = [8, 0], sizes = [8, 256], strides = [1, 1]} : vector<16x256xf32> to vector<8x256xf32>
    %618 = arith.negf %617 : vector<8x256xf32>
    %619 = math.exp %618 : vector<8x256xf32>
    %cst_244 = arith.constant 1.000000e+00 : f32
    %620 = vector.broadcast %cst_244 : f32 to vector<8x256xf32>
    %621 = arith.addf %620, %619 : vector<8x256xf32>
    %622 = arith.divf %620, %621 : vector<8x256xf32>
    %623 = arith.mulf %245, %622 : vector<8x256xf32>
    %c17_i32_245 = arith.constant 17 : i32
    %624 = tpu.dynamic_rotate %623 by %c17_i32_245 dim 1 : vector<8x256xf32>, i32 -> vector<8x256xf32>
    %cst_246 = arith.constant 0.000000e+00 : f32
    %625 = vector.shape_cast %3 : vector<1x256xi1> to vector<1x256xi1>
    %626 = vector.broadcast %625 : vector<1x256xi1> to vector<8x256xi1>
    %627 = vector.broadcast %cst_246 : f32 to vector<8x256xf32>
    %628 = arith.select %626, %624, %627 : vector<8x256xi1>, vector<8x256xf32>
    %c16_i32_247 = arith.constant 16 : i32
    %629 = tpu.dynamic_rotate %623 by %c16_i32_247 dim 1 : vector<8x256xf32>, i32 -> vector<8x256xf32>
    %cst_248 = arith.constant 0.000000e+00 : f32
    %630 = vector.shape_cast %6 : vector<1x256xi1> to vector<1x256xi1>
    %631 = vector.broadcast %630 : vector<1x256xi1> to vector<8x256xi1>
    %632 = vector.broadcast %cst_248 : f32 to vector<8x256xf32>
    %633 = arith.select %631, %629, %632 : vector<8x256xi1>, vector<8x256xf32>
    %c15_i32_249 = arith.constant 15 : i32
    %634 = tpu.dynamic_rotate %623 by %c15_i32_249 dim 1 : vector<8x256xf32>, i32 -> vector<8x256xf32>
    %cst_250 = arith.constant 0.000000e+00 : f32
    %635 = vector.shape_cast %9 : vector<1x256xi1> to vector<1x256xi1>
    %636 = vector.broadcast %635 : vector<1x256xi1> to vector<8x256xi1>
    %637 = vector.broadcast %cst_250 : f32 to vector<8x256xf32>
    %638 = arith.select %636, %634, %637 : vector<8x256xi1>, vector<8x256xf32>
    %c1_i32_251 = arith.constant 1 : i32
    %639 = tpu.dynamic_rotate %623 by %c1_i32_251 dim 1 : vector<8x256xf32>, i32 -> vector<8x256xf32>
    %cst_252 = arith.constant 0.000000e+00 : f32
    %640 = vector.shape_cast %12 : vector<1x256xi1> to vector<1x256xi1>
    %641 = vector.broadcast %640 : vector<1x256xi1> to vector<8x256xi1>
    %642 = vector.broadcast %cst_252 : f32 to vector<8x256xf32>
    %643 = arith.select %641, %639, %642 : vector<8x256xi1>, vector<8x256xf32>
    %c255_i32_253 = arith.constant 255 : i32
    %644 = tpu.dynamic_rotate %623 by %c255_i32_253 dim 1 : vector<8x256xf32>, i32 -> vector<8x256xf32>
    %cst_254 = arith.constant 0.000000e+00 : f32
    %645 = vector.shape_cast %15 : vector<1x256xi1> to vector<1x256xi1>
    %646 = vector.broadcast %645 : vector<1x256xi1> to vector<8x256xi1>
    %647 = vector.broadcast %cst_254 : f32 to vector<8x256xf32>
    %648 = arith.select %646, %644, %647 : vector<8x256xi1>, vector<8x256xf32>
    %c241_i32_255 = arith.constant 241 : i32
    %649 = tpu.dynamic_rotate %623 by %c241_i32_255 dim 1 : vector<8x256xf32>, i32 -> vector<8x256xf32>
    %cst_256 = arith.constant 0.000000e+00 : f32
    %650 = vector.shape_cast %18 : vector<1x256xi1> to vector<1x256xi1>
    %651 = vector.broadcast %650 : vector<1x256xi1> to vector<8x256xi1>
    %652 = vector.broadcast %cst_256 : f32 to vector<8x256xf32>
    %653 = arith.select %651, %649, %652 : vector<8x256xi1>, vector<8x256xf32>
    %c240_i32_257 = arith.constant 240 : i32
    %654 = tpu.dynamic_rotate %623 by %c240_i32_257 dim 1 : vector<8x256xf32>, i32 -> vector<8x256xf32>
    %cst_258 = arith.constant 0.000000e+00 : f32
    %655 = vector.shape_cast %21 : vector<1x256xi1> to vector<1x256xi1>
    %656 = vector.broadcast %655 : vector<1x256xi1> to vector<8x256xi1>
    %657 = vector.broadcast %cst_258 : f32 to vector<8x256xf32>
    %658 = arith.select %656, %654, %657 : vector<8x256xi1>, vector<8x256xf32>
    %c239_i32_259 = arith.constant 239 : i32
    %659 = tpu.dynamic_rotate %623 by %c239_i32_259 dim 1 : vector<8x256xf32>, i32 -> vector<8x256xf32>
    %cst_260 = arith.constant 0.000000e+00 : f32
    %660 = vector.shape_cast %24 : vector<1x256xi1> to vector<1x256xi1>
    %661 = vector.broadcast %660 : vector<1x256xi1> to vector<8x256xi1>
    %662 = vector.broadcast %cst_260 : f32 to vector<8x256xf32>
    %663 = arith.select %661, %659, %662 : vector<8x256xi1>, vector<8x256xf32>
    %664 = tpu.concatenate %521, %526, %531, %536, %516, %541, %546, %551, %556, %628, %633, %638, %643, %623, %648, %653 in 0 : vector<8x256xf32>, vector<8x256xf32>, vector<8x256xf32>, vector<8x256xf32>, vector<8x256xf32>, vector<8x256xf32>, vector<8x256xf32>, vector<8x256xf32>, vector<8x256xf32>, vector<8x256xf32>, vector<8x256xf32>, vector<8x256xf32>, vector<8x256xf32>, vector<8x256xf32>, vector<8x256xf32>, vector<8x256xf32> -> vector<128x256xf32>
    %665 = tpu.concatenate %658, %663 in 0 : vector<8x256xf32>, vector<8x256xf32> -> vector<16x256xf32>
    %666 = tpu.concatenate %664, %665 in 0 : vector<128x256xf32>, vector<16x256xf32> -> vector<144x256xf32>
    %c0_261 = arith.constant 0 : index
    %c0_262 = arith.constant 0 : index
    %667 = vector.load %arg19[%c0_261, %c0_262] : memref<8x144xbf16, #tpu.memory_space<vmem>>, vector<8x144xbf16>
    %668 = arith.truncf %666 : vector<144x256xf32> to vector<144x256xbf16>
    %cst_263 = arith.constant dense<0.000000e+00> : vector<8x256xf32>
    %669 = tpu.matmul %667, %668, %cst_263 {dimension_numbers = #tpu.dot_dimension_numbers<[1], [0], [0], [1], [0, 0, 1, 1], [], []>} : vector<8x144xbf16>, vector<144x256xbf16>, vector<8x256xf32> -> vector<8x256xf32>
    %c0_264 = arith.constant 0 : index
    %c0_265 = arith.constant 0 : index
    %670 = vector.load %arg20[%c0_264, %c0_265] : memref<8x1xf32, #tpu.memory_space<vmem>>, vector<8x1xf32>
    %671 = vector.broadcast %670 : vector<8x1xf32> to vector<8x256xf32>
    %672 = arith.addf %669, %671 : vector<8x256xf32>
    %cst_266 = arith.constant 0.000000e+00 : f32
    %673 = vector.broadcast %cst_266 : f32 to vector<8x256xf32>
    %674 = arith.cmpf oge, %672, %673 : vector<8x256xf32>
    %cst_267 = arith.constant 4.000000e-02 : f32
    %675 = vector.broadcast %cst_267 : f32 to vector<8x256xf32>
    %676 = arith.mulf %675, %672 : vector<8x256xf32>
    %677 = arith.select %674, %672, %676 : vector<8x256xi1>, vector<8x256xf32>
    %678 = arith.mulf %245, %616 : vector<8x256xf32>
    %cst_268 = arith.constant 1.000000e+00 : f32
    %679 = vector.broadcast %cst_268 : f32 to vector<8x256xf32>
    %680 = arith.subf %679, %616 : vector<8x256xf32>
    %681 = arith.mulf %677, %680 : vector<8x256xf32>
    %682 = arith.addf %678, %681 : vector<8x256xf32>
    %c17_i32_269 = arith.constant 17 : i32
    %683 = tpu.dynamic_rotate %682 by %c17_i32_269 dim 1 : vector<8x256xf32>, i32 -> vector<8x256xf32>
    %cst_270 = arith.constant 0.000000e+00 : f32
    %684 = vector.shape_cast %3 : vector<1x256xi1> to vector<1x256xi1>
    %685 = vector.broadcast %684 : vector<1x256xi1> to vector<8x256xi1>
    %686 = vector.broadcast %cst_270 : f32 to vector<8x256xf32>
    %687 = arith.select %685, %683, %686 : vector<8x256xi1>, vector<8x256xf32>
    %c16_i32_271 = arith.constant 16 : i32
    %688 = tpu.dynamic_rotate %682 by %c16_i32_271 dim 1 : vector<8x256xf32>, i32 -> vector<8x256xf32>
    %cst_272 = arith.constant 0.000000e+00 : f32
    %689 = vector.shape_cast %6 : vector<1x256xi1> to vector<1x256xi1>
    %690 = vector.broadcast %689 : vector<1x256xi1> to vector<8x256xi1>
    %691 = vector.broadcast %cst_272 : f32 to vector<8x256xf32>
    %692 = arith.select %690, %688, %691 : vector<8x256xi1>, vector<8x256xf32>
    %c15_i32_273 = arith.constant 15 : i32
    %693 = tpu.dynamic_rotate %682 by %c15_i32_273 dim 1 : vector<8x256xf32>, i32 -> vector<8x256xf32>
    %cst_274 = arith.constant 0.000000e+00 : f32
    %694 = vector.shape_cast %9 : vector<1x256xi1> to vector<1x256xi1>
    %695 = vector.broadcast %694 : vector<1x256xi1> to vector<8x256xi1>
    %696 = vector.broadcast %cst_274 : f32 to vector<8x256xf32>
    %697 = arith.select %695, %693, %696 : vector<8x256xi1>, vector<8x256xf32>
    %c1_i32_275 = arith.constant 1 : i32
    %698 = tpu.dynamic_rotate %682 by %c1_i32_275 dim 1 : vector<8x256xf32>, i32 -> vector<8x256xf32>
    %cst_276 = arith.constant 0.000000e+00 : f32
    %699 = vector.shape_cast %12 : vector<1x256xi1> to vector<1x256xi1>
    %700 = vector.broadcast %699 : vector<1x256xi1> to vector<8x256xi1>
    %701 = vector.broadcast %cst_276 : f32 to vector<8x256xf32>
    %702 = arith.select %700, %698, %701 : vector<8x256xi1>, vector<8x256xf32>
    %c255_i32_277 = arith.constant 255 : i32
    %703 = tpu.dynamic_rotate %682 by %c255_i32_277 dim 1 : vector<8x256xf32>, i32 -> vector<8x256xf32>
    %cst_278 = arith.constant 0.000000e+00 : f32
    %704 = vector.shape_cast %15 : vector<1x256xi1> to vector<1x256xi1>
    %705 = vector.broadcast %704 : vector<1x256xi1> to vector<8x256xi1>
    %706 = vector.broadcast %cst_278 : f32 to vector<8x256xf32>
    %707 = arith.select %705, %703, %706 : vector<8x256xi1>, vector<8x256xf32>
    %c241_i32_279 = arith.constant 241 : i32
    %708 = tpu.dynamic_rotate %682 by %c241_i32_279 dim 1 : vector<8x256xf32>, i32 -> vector<8x256xf32>
    %cst_280 = arith.constant 0.000000e+00 : f32
    %709 = vector.shape_cast %18 : vector<1x256xi1> to vector<1x256xi1>
    %710 = vector.broadcast %709 : vector<1x256xi1> to vector<8x256xi1>
    %711 = vector.broadcast %cst_280 : f32 to vector<8x256xf32>
    %712 = arith.select %710, %708, %711 : vector<8x256xi1>, vector<8x256xf32>
    %c240_i32_281 = arith.constant 240 : i32
    %713 = tpu.dynamic_rotate %682 by %c240_i32_281 dim 1 : vector<8x256xf32>, i32 -> vector<8x256xf32>
    %cst_282 = arith.constant 0.000000e+00 : f32
    %714 = vector.shape_cast %21 : vector<1x256xi1> to vector<1x256xi1>
    %715 = vector.broadcast %714 : vector<1x256xi1> to vector<8x256xi1>
    %716 = vector.broadcast %cst_282 : f32 to vector<8x256xf32>
    %717 = arith.select %715, %713, %716 : vector<8x256xi1>, vector<8x256xf32>
    %c239_i32_283 = arith.constant 239 : i32
    %718 = tpu.dynamic_rotate %682 by %c239_i32_283 dim 1 : vector<8x256xf32>, i32 -> vector<8x256xf32>
    %cst_284 = arith.constant 0.000000e+00 : f32
    %719 = vector.shape_cast %24 : vector<1x256xi1> to vector<1x256xi1>
    %720 = vector.broadcast %719 : vector<1x256xi1> to vector<8x256xi1>
    %721 = vector.broadcast %cst_284 : f32 to vector<8x256xf32>
    %722 = arith.select %720, %718, %721 : vector<8x256xi1>, vector<8x256xf32>
    %723 = tpu.concatenate %687, %692, %697, %702, %682, %707, %712, %717, %722 in 0 : vector<8x256xf32>, vector<8x256xf32>, vector<8x256xf32>, vector<8x256xf32>, vector<8x256xf32>, vector<8x256xf32>, vector<8x256xf32>, vector<8x256xf32>, vector<8x256xf32> -> vector<72x256xf32>
    %c0_285 = arith.constant 0 : index
    %c0_286 = arith.constant 0 : index
    %724 = vector.load %arg21[%c0_285, %c0_286] : memref<8x72xbf16, #tpu.memory_space<vmem>>, vector<8x72xbf16>
    %725 = arith.truncf %723 : vector<72x256xf32> to vector<72x256xbf16>
    %cst_287 = arith.constant dense<0.000000e+00> : vector<8x256xf32>
    %726 = tpu.matmul %724, %725, %cst_287 {dimension_numbers = #tpu.dot_dimension_numbers<[1], [0], [0], [1], [0, 0, 1, 1], [], []>} : vector<8x72xbf16>, vector<72x256xbf16>, vector<8x256xf32> -> vector<8x256xf32>
    %c0_288 = arith.constant 0 : index
    %c0_289 = arith.constant 0 : index
    %727 = vector.load %arg22[%c0_288, %c0_289] : memref<8x1xf32, #tpu.memory_space<vmem>>, vector<8x1xf32>
    %728 = vector.broadcast %727 : vector<8x1xf32> to vector<8x256xf32>
    %729 = arith.addf %726, %728 : vector<8x256xf32>
    %cst_290 = arith.constant 0.000000e+00 : f32
    %730 = vector.broadcast %cst_290 : f32 to vector<8x256xf32>
    %731 = arith.cmpf oge, %729, %730 : vector<8x256xf32>
    %cst_291 = arith.constant 0.00999999977 : f32
    %732 = vector.broadcast %cst_291 : f32 to vector<8x256xf32>
    %733 = arith.mulf %732, %729 : vector<8x256xf32>
    %734 = arith.select %731, %729, %733 : vector<8x256xi1>, vector<8x256xf32>
    %c17_i32_292 = arith.constant 17 : i32
    %735 = tpu.dynamic_rotate %734 by %c17_i32_292 dim 1 : vector<8x256xf32>, i32 -> vector<8x256xf32>
    %cst_293 = arith.constant 0.000000e+00 : f32
    %736 = vector.shape_cast %3 : vector<1x256xi1> to vector<1x256xi1>
    %737 = vector.broadcast %736 : vector<1x256xi1> to vector<8x256xi1>
    %738 = vector.broadcast %cst_293 : f32 to vector<8x256xf32>
    %739 = arith.select %737, %735, %738 : vector<8x256xi1>, vector<8x256xf32>
    %c16_i32_294 = arith.constant 16 : i32
    %740 = tpu.dynamic_rotate %734 by %c16_i32_294 dim 1 : vector<8x256xf32>, i32 -> vector<8x256xf32>
    %cst_295 = arith.constant 0.000000e+00 : f32
    %741 = vector.shape_cast %6 : vector<1x256xi1> to vector<1x256xi1>
    %742 = vector.broadcast %741 : vector<1x256xi1> to vector<8x256xi1>
    %743 = vector.broadcast %cst_295 : f32 to vector<8x256xf32>
    %744 = arith.select %742, %740, %743 : vector<8x256xi1>, vector<8x256xf32>
    %c15_i32_296 = arith.constant 15 : i32
    %745 = tpu.dynamic_rotate %734 by %c15_i32_296 dim 1 : vector<8x256xf32>, i32 -> vector<8x256xf32>
    %cst_297 = arith.constant 0.000000e+00 : f32
    %746 = vector.shape_cast %9 : vector<1x256xi1> to vector<1x256xi1>
    %747 = vector.broadcast %746 : vector<1x256xi1> to vector<8x256xi1>
    %748 = vector.broadcast %cst_297 : f32 to vector<8x256xf32>
    %749 = arith.select %747, %745, %748 : vector<8x256xi1>, vector<8x256xf32>
    %c1_i32_298 = arith.constant 1 : i32
    %750 = tpu.dynamic_rotate %734 by %c1_i32_298 dim 1 : vector<8x256xf32>, i32 -> vector<8x256xf32>
    %cst_299 = arith.constant 0.000000e+00 : f32
    %751 = vector.shape_cast %12 : vector<1x256xi1> to vector<1x256xi1>
    %752 = vector.broadcast %751 : vector<1x256xi1> to vector<8x256xi1>
    %753 = vector.broadcast %cst_299 : f32 to vector<8x256xf32>
    %754 = arith.select %752, %750, %753 : vector<8x256xi1>, vector<8x256xf32>
    %c255_i32_300 = arith.constant 255 : i32
    %755 = tpu.dynamic_rotate %734 by %c255_i32_300 dim 1 : vector<8x256xf32>, i32 -> vector<8x256xf32>
    %cst_301 = arith.constant 0.000000e+00 : f32
    %756 = vector.shape_cast %15 : vector<1x256xi1> to vector<1x256xi1>
    %757 = vector.broadcast %756 : vector<1x256xi1> to vector<8x256xi1>
    %758 = vector.broadcast %cst_301 : f32 to vector<8x256xf32>
    %759 = arith.select %757, %755, %758 : vector<8x256xi1>, vector<8x256xf32>
    %c241_i32_302 = arith.constant 241 : i32
    %760 = tpu.dynamic_rotate %734 by %c241_i32_302 dim 1 : vector<8x256xf32>, i32 -> vector<8x256xf32>
    %cst_303 = arith.constant 0.000000e+00 : f32
    %761 = vector.shape_cast %18 : vector<1x256xi1> to vector<1x256xi1>
    %762 = vector.broadcast %761 : vector<1x256xi1> to vector<8x256xi1>
    %763 = vector.broadcast %cst_303 : f32 to vector<8x256xf32>
    %764 = arith.select %762, %760, %763 : vector<8x256xi1>, vector<8x256xf32>
    %c240_i32_304 = arith.constant 240 : i32
    %765 = tpu.dynamic_rotate %734 by %c240_i32_304 dim 1 : vector<8x256xf32>, i32 -> vector<8x256xf32>
    %cst_305 = arith.constant 0.000000e+00 : f32
    %766 = vector.shape_cast %21 : vector<1x256xi1> to vector<1x256xi1>
    %767 = vector.broadcast %766 : vector<1x256xi1> to vector<8x256xi1>
    %768 = vector.broadcast %cst_305 : f32 to vector<8x256xf32>
    %769 = arith.select %767, %765, %768 : vector<8x256xi1>, vector<8x256xf32>
    %c239_i32_306 = arith.constant 239 : i32
    %770 = tpu.dynamic_rotate %734 by %c239_i32_306 dim 1 : vector<8x256xf32>, i32 -> vector<8x256xf32>
    %cst_307 = arith.constant 0.000000e+00 : f32
    %771 = vector.shape_cast %24 : vector<1x256xi1> to vector<1x256xi1>
    %772 = vector.broadcast %771 : vector<1x256xi1> to vector<8x256xi1>
    %773 = vector.broadcast %cst_307 : f32 to vector<8x256xf32>
    %774 = arith.select %772, %770, %773 : vector<8x256xi1>, vector<8x256xf32>
    %c17_i32_308 = arith.constant 17 : i32
    %775 = tpu.dynamic_rotate %463 by %c17_i32_308 dim 1 : vector<8x256xf32>, i32 -> vector<8x256xf32>
    %cst_309 = arith.constant 0.000000e+00 : f32
    %776 = vector.shape_cast %3 : vector<1x256xi1> to vector<1x256xi1>
    %777 = vector.broadcast %776 : vector<1x256xi1> to vector<8x256xi1>
    %778 = vector.broadcast %cst_309 : f32 to vector<8x256xf32>
    %779 = arith.select %777, %775, %778 : vector<8x256xi1>, vector<8x256xf32>
    %c16_i32_310 = arith.constant 16 : i32
    %780 = tpu.dynamic_rotate %463 by %c16_i32_310 dim 1 : vector<8x256xf32>, i32 -> vector<8x256xf32>
    %cst_311 = arith.constant 0.000000e+00 : f32
    %781 = vector.shape_cast %6 : vector<1x256xi1> to vector<1x256xi1>
    %782 = vector.broadcast %781 : vector<1x256xi1> to vector<8x256xi1>
    %783 = vector.broadcast %cst_311 : f32 to vector<8x256xf32>
    %784 = arith.select %782, %780, %783 : vector<8x256xi1>, vector<8x256xf32>
    %c15_i32_312 = arith.constant 15 : i32
    %785 = tpu.dynamic_rotate %463 by %c15_i32_312 dim 1 : vector<8x256xf32>, i32 -> vector<8x256xf32>
    %cst_313 = arith.constant 0.000000e+00 : f32
    %786 = vector.shape_cast %9 : vector<1x256xi1> to vector<1x256xi1>
    %787 = vector.broadcast %786 : vector<1x256xi1> to vector<8x256xi1>
    %788 = vector.broadcast %cst_313 : f32 to vector<8x256xf32>
    %789 = arith.select %787, %785, %788 : vector<8x256xi1>, vector<8x256xf32>
    %c1_i32_314 = arith.constant 1 : i32
    %790 = tpu.dynamic_rotate %463 by %c1_i32_314 dim 1 : vector<8x256xf32>, i32 -> vector<8x256xf32>
    %cst_315 = arith.constant 0.000000e+00 : f32
    %791 = vector.shape_cast %12 : vector<1x256xi1> to vector<1x256xi1>
    %792 = vector.broadcast %791 : vector<1x256xi1> to vector<8x256xi1>
    %793 = vector.broadcast %cst_315 : f32 to vector<8x256xf32>
    %794 = arith.select %792, %790, %793 : vector<8x256xi1>, vector<8x256xf32>
    %c255_i32_316 = arith.constant 255 : i32
    %795 = tpu.dynamic_rotate %463 by %c255_i32_316 dim 1 : vector<8x256xf32>, i32 -> vector<8x256xf32>
    %cst_317 = arith.constant 0.000000e+00 : f32
    %796 = vector.shape_cast %15 : vector<1x256xi1> to vector<1x256xi1>
    %797 = vector.broadcast %796 : vector<1x256xi1> to vector<8x256xi1>
    %798 = vector.broadcast %cst_317 : f32 to vector<8x256xf32>
    %799 = arith.select %797, %795, %798 : vector<8x256xi1>, vector<8x256xf32>
    %c241_i32_318 = arith.constant 241 : i32
    %800 = tpu.dynamic_rotate %463 by %c241_i32_318 dim 1 : vector<8x256xf32>, i32 -> vector<8x256xf32>
    %cst_319 = arith.constant 0.000000e+00 : f32
    %801 = vector.shape_cast %18 : vector<1x256xi1> to vector<1x256xi1>
    %802 = vector.broadcast %801 : vector<1x256xi1> to vector<8x256xi1>
    %803 = vector.broadcast %cst_319 : f32 to vector<8x256xf32>
    %804 = arith.select %802, %800, %803 : vector<8x256xi1>, vector<8x256xf32>
    %c240_i32_320 = arith.constant 240 : i32
    %805 = tpu.dynamic_rotate %463 by %c240_i32_320 dim 1 : vector<8x256xf32>, i32 -> vector<8x256xf32>
    %cst_321 = arith.constant 0.000000e+00 : f32
    %806 = vector.shape_cast %21 : vector<1x256xi1> to vector<1x256xi1>
    %807 = vector.broadcast %806 : vector<1x256xi1> to vector<8x256xi1>
    %808 = vector.broadcast %cst_321 : f32 to vector<8x256xf32>
    %809 = arith.select %807, %805, %808 : vector<8x256xi1>, vector<8x256xf32>
    %c239_i32_322 = arith.constant 239 : i32
    %810 = tpu.dynamic_rotate %463 by %c239_i32_322 dim 1 : vector<8x256xf32>, i32 -> vector<8x256xf32>
    %cst_323 = arith.constant 0.000000e+00 : f32
    %811 = vector.shape_cast %24 : vector<1x256xi1> to vector<1x256xi1>
    %812 = vector.broadcast %811 : vector<1x256xi1> to vector<8x256xi1>
    %813 = vector.broadcast %cst_323 : f32 to vector<8x256xf32>
    %814 = arith.select %812, %810, %813 : vector<8x256xi1>, vector<8x256xf32>
    %815 = tpu.concatenate %739, %744, %749, %754, %734, %759, %764, %769, %774, %779, %784, %789, %794, %463, %799, %804 in 0 : vector<8x256xf32>, vector<8x256xf32>, vector<8x256xf32>, vector<8x256xf32>, vector<8x256xf32>, vector<8x256xf32>, vector<8x256xf32>, vector<8x256xf32>, vector<8x256xf32>, vector<8x256xf32>, vector<8x256xf32>, vector<8x256xf32>, vector<8x256xf32>, vector<8x256xf32>, vector<8x256xf32>, vector<8x256xf32> -> vector<128x256xf32>
    %816 = tpu.concatenate %809, %814 in 0 : vector<8x256xf32>, vector<8x256xf32> -> vector<16x256xf32>
    %817 = tpu.concatenate %815, %816 in 0 : vector<128x256xf32>, vector<16x256xf32> -> vector<144x256xf32>
    %c0_324 = arith.constant 0 : index
    %c0_325 = arith.constant 0 : index
    %818 = vector.load %arg23[%c0_324, %c0_325] : memref<16x144xbf16, #tpu.memory_space<vmem>>, vector<16x144xbf16>
    %819 = arith.truncf %817 : vector<144x256xf32> to vector<144x256xbf16>
    %cst_326 = arith.constant dense<0.000000e+00> : vector<16x256xf32>
    %820 = tpu.matmul %818, %819, %cst_326 {dimension_numbers = #tpu.dot_dimension_numbers<[1], [0], [0], [1], [0, 0, 1, 1], [], []>} : vector<16x144xbf16>, vector<144x256xbf16>, vector<16x256xf32> -> vector<16x256xf32>
    %c0_327 = arith.constant 0 : index
    %c0_328 = arith.constant 0 : index
    %821 = vector.load %arg24[%c0_327, %c0_328] : memref<16x1xf32, #tpu.memory_space<vmem>>, vector<16x1xf32>
    %822 = vector.broadcast %821 : vector<16x1xf32> to vector<16x256xf32>
    %823 = arith.addf %820, %822 : vector<16x256xf32>
    %cst_329 = arith.constant 0.000000e+00 : f32
    %824 = vector.broadcast %cst_329 : f32 to vector<16x256xf32>
    %825 = arith.cmpf oge, %823, %824 : vector<16x256xf32>
    %cst_330 = arith.constant 0.00999999977 : f32
    %826 = vector.broadcast %cst_330 : f32 to vector<16x256xf32>
    %827 = arith.mulf %826, %823 : vector<16x256xf32>
    %828 = arith.select %825, %823, %827 : vector<16x256xi1>, vector<16x256xf32>
    %829 = vector.extract_strided_slice %828 {offsets = [0, 0], sizes = [8, 256], strides = [1, 1]} : vector<16x256xf32> to vector<8x256xf32>
    %830 = arith.negf %829 : vector<8x256xf32>
    %831 = math.exp %830 : vector<8x256xf32>
    %cst_331 = arith.constant 1.000000e+00 : f32
    %832 = vector.broadcast %cst_331 : f32 to vector<8x256xf32>
    %833 = arith.addf %832, %831 : vector<8x256xf32>
    %834 = arith.divf %832, %833 : vector<8x256xf32>
    %835 = vector.extract_strided_slice %828 {offsets = [8, 0], sizes = [8, 256], strides = [1, 1]} : vector<16x256xf32> to vector<8x256xf32>
    %836 = arith.negf %835 : vector<8x256xf32>
    %837 = math.exp %836 : vector<8x256xf32>
    %cst_332 = arith.constant 1.000000e+00 : f32
    %838 = vector.broadcast %cst_332 : f32 to vector<8x256xf32>
    %839 = arith.addf %838, %837 : vector<8x256xf32>
    %840 = arith.divf %838, %839 : vector<8x256xf32>
    %841 = arith.mulf %463, %840 : vector<8x256xf32>
    %c17_i32_333 = arith.constant 17 : i32
    %842 = tpu.dynamic_rotate %841 by %c17_i32_333 dim 1 : vector<8x256xf32>, i32 -> vector<8x256xf32>
    %cst_334 = arith.constant 0.000000e+00 : f32
    %843 = vector.shape_cast %3 : vector<1x256xi1> to vector<1x256xi1>
    %844 = vector.broadcast %843 : vector<1x256xi1> to vector<8x256xi1>
    %845 = vector.broadcast %cst_334 : f32 to vector<8x256xf32>
    %846 = arith.select %844, %842, %845 : vector<8x256xi1>, vector<8x256xf32>
    %c16_i32_335 = arith.constant 16 : i32
    %847 = tpu.dynamic_rotate %841 by %c16_i32_335 dim 1 : vector<8x256xf32>, i32 -> vector<8x256xf32>
    %cst_336 = arith.constant 0.000000e+00 : f32
    %848 = vector.shape_cast %6 : vector<1x256xi1> to vector<1x256xi1>
    %849 = vector.broadcast %848 : vector<1x256xi1> to vector<8x256xi1>
    %850 = vector.broadcast %cst_336 : f32 to vector<8x256xf32>
    %851 = arith.select %849, %847, %850 : vector<8x256xi1>, vector<8x256xf32>
    %c15_i32_337 = arith.constant 15 : i32
    %852 = tpu.dynamic_rotate %841 by %c15_i32_337 dim 1 : vector<8x256xf32>, i32 -> vector<8x256xf32>
    %cst_338 = arith.constant 0.000000e+00 : f32
    %853 = vector.shape_cast %9 : vector<1x256xi1> to vector<1x256xi1>
    %854 = vector.broadcast %853 : vector<1x256xi1> to vector<8x256xi1>
    %855 = vector.broadcast %cst_338 : f32 to vector<8x256xf32>
    %856 = arith.select %854, %852, %855 : vector<8x256xi1>, vector<8x256xf32>
    %c1_i32_339 = arith.constant 1 : i32
    %857 = tpu.dynamic_rotate %841 by %c1_i32_339 dim 1 : vector<8x256xf32>, i32 -> vector<8x256xf32>
    %cst_340 = arith.constant 0.000000e+00 : f32
    %858 = vector.shape_cast %12 : vector<1x256xi1> to vector<1x256xi1>
    %859 = vector.broadcast %858 : vector<1x256xi1> to vector<8x256xi1>
    %860 = vector.broadcast %cst_340 : f32 to vector<8x256xf32>
    %861 = arith.select %859, %857, %860 : vector<8x256xi1>, vector<8x256xf32>
    %c255_i32_341 = arith.constant 255 : i32
    %862 = tpu.dynamic_rotate %841 by %c255_i32_341 dim 1 : vector<8x256xf32>, i32 -> vector<8x256xf32>
    %cst_342 = arith.constant 0.000000e+00 : f32
    %863 = vector.shape_cast %15 : vector<1x256xi1> to vector<1x256xi1>
    %864 = vector.broadcast %863 : vector<1x256xi1> to vector<8x256xi1>
    %865 = vector.broadcast %cst_342 : f32 to vector<8x256xf32>
    %866 = arith.select %864, %862, %865 : vector<8x256xi1>, vector<8x256xf32>
    %c241_i32_343 = arith.constant 241 : i32
    %867 = tpu.dynamic_rotate %841 by %c241_i32_343 dim 1 : vector<8x256xf32>, i32 -> vector<8x256xf32>
    %cst_344 = arith.constant 0.000000e+00 : f32
    %868 = vector.shape_cast %18 : vector<1x256xi1> to vector<1x256xi1>
    %869 = vector.broadcast %868 : vector<1x256xi1> to vector<8x256xi1>
    %870 = vector.broadcast %cst_344 : f32 to vector<8x256xf32>
    %871 = arith.select %869, %867, %870 : vector<8x256xi1>, vector<8x256xf32>
    %c240_i32_345 = arith.constant 240 : i32
    %872 = tpu.dynamic_rotate %841 by %c240_i32_345 dim 1 : vector<8x256xf32>, i32 -> vector<8x256xf32>
    %cst_346 = arith.constant 0.000000e+00 : f32
    %873 = vector.shape_cast %21 : vector<1x256xi1> to vector<1x256xi1>
    %874 = vector.broadcast %873 : vector<1x256xi1> to vector<8x256xi1>
    %875 = vector.broadcast %cst_346 : f32 to vector<8x256xf32>
    %876 = arith.select %874, %872, %875 : vector<8x256xi1>, vector<8x256xf32>
    %c239_i32_347 = arith.constant 239 : i32
    %877 = tpu.dynamic_rotate %841 by %c239_i32_347 dim 1 : vector<8x256xf32>, i32 -> vector<8x256xf32>
    %cst_348 = arith.constant 0.000000e+00 : f32
    %878 = vector.shape_cast %24 : vector<1x256xi1> to vector<1x256xi1>
    %879 = vector.broadcast %878 : vector<1x256xi1> to vector<8x256xi1>
    %880 = vector.broadcast %cst_348 : f32 to vector<8x256xf32>
    %881 = arith.select %879, %877, %880 : vector<8x256xi1>, vector<8x256xf32>
    %882 = tpu.concatenate %739, %744, %749, %754, %734, %759, %764, %769, %774, %846, %851, %856, %861, %841, %866, %871 in 0 : vector<8x256xf32>, vector<8x256xf32>, vector<8x256xf32>, vector<8x256xf32>, vector<8x256xf32>, vector<8x256xf32>, vector<8x256xf32>, vector<8x256xf32>, vector<8x256xf32>, vector<8x256xf32>, vector<8x256xf32>, vector<8x256xf32>, vector<8x256xf32>, vector<8x256xf32>, vector<8x256xf32>, vector<8x256xf32> -> vector<128x256xf32>
    %883 = tpu.concatenate %876, %881 in 0 : vector<8x256xf32>, vector<8x256xf32> -> vector<16x256xf32>
    %884 = tpu.concatenate %882, %883 in 0 : vector<128x256xf32>, vector<16x256xf32> -> vector<144x256xf32>
    %c0_349 = arith.constant 0 : index
    %c0_350 = arith.constant 0 : index
    %885 = vector.load %arg25[%c0_349, %c0_350] : memref<8x144xbf16, #tpu.memory_space<vmem>>, vector<8x144xbf16>
    %886 = arith.truncf %884 : vector<144x256xf32> to vector<144x256xbf16>
    %cst_351 = arith.constant dense<0.000000e+00> : vector<8x256xf32>
    %887 = tpu.matmul %885, %886, %cst_351 {dimension_numbers = #tpu.dot_dimension_numbers<[1], [0], [0], [1], [0, 0, 1, 1], [], []>} : vector<8x144xbf16>, vector<144x256xbf16>, vector<8x256xf32> -> vector<8x256xf32>
    %c0_352 = arith.constant 0 : index
    %c0_353 = arith.constant 0 : index
    %888 = vector.load %arg26[%c0_352, %c0_353] : memref<8x1xf32, #tpu.memory_space<vmem>>, vector<8x1xf32>
    %889 = vector.broadcast %888 : vector<8x1xf32> to vector<8x256xf32>
    %890 = arith.addf %887, %889 : vector<8x256xf32>
    %cst_354 = arith.constant 0.000000e+00 : f32
    %891 = vector.broadcast %cst_354 : f32 to vector<8x256xf32>
    %892 = arith.cmpf oge, %890, %891 : vector<8x256xf32>
    %cst_355 = arith.constant 4.000000e-02 : f32
    %893 = vector.broadcast %cst_355 : f32 to vector<8x256xf32>
    %894 = arith.mulf %893, %890 : vector<8x256xf32>
    %895 = arith.select %892, %890, %894 : vector<8x256xi1>, vector<8x256xf32>
    %896 = arith.mulf %463, %834 : vector<8x256xf32>
    %cst_356 = arith.constant 1.000000e+00 : f32
    %897 = vector.broadcast %cst_356 : f32 to vector<8x256xf32>
    %898 = arith.subf %897, %834 : vector<8x256xf32>
    %899 = arith.mulf %895, %898 : vector<8x256xf32>
    %900 = arith.addf %896, %899 : vector<8x256xf32>
    %c17_i32_357 = arith.constant 17 : i32
    %901 = tpu.dynamic_rotate %900 by %c17_i32_357 dim 1 : vector<8x256xf32>, i32 -> vector<8x256xf32>
    %cst_358 = arith.constant 0.000000e+00 : f32
    %902 = vector.shape_cast %3 : vector<1x256xi1> to vector<1x256xi1>
    %903 = vector.broadcast %902 : vector<1x256xi1> to vector<8x256xi1>
    %904 = vector.broadcast %cst_358 : f32 to vector<8x256xf32>
    %905 = arith.select %903, %901, %904 : vector<8x256xi1>, vector<8x256xf32>
    %c16_i32_359 = arith.constant 16 : i32
    %906 = tpu.dynamic_rotate %900 by %c16_i32_359 dim 1 : vector<8x256xf32>, i32 -> vector<8x256xf32>
    %cst_360 = arith.constant 0.000000e+00 : f32
    %907 = vector.shape_cast %6 : vector<1x256xi1> to vector<1x256xi1>
    %908 = vector.broadcast %907 : vector<1x256xi1> to vector<8x256xi1>
    %909 = vector.broadcast %cst_360 : f32 to vector<8x256xf32>
    %910 = arith.select %908, %906, %909 : vector<8x256xi1>, vector<8x256xf32>
    %c15_i32_361 = arith.constant 15 : i32
    %911 = tpu.dynamic_rotate %900 by %c15_i32_361 dim 1 : vector<8x256xf32>, i32 -> vector<8x256xf32>
    %cst_362 = arith.constant 0.000000e+00 : f32
    %912 = vector.shape_cast %9 : vector<1x256xi1> to vector<1x256xi1>
    %913 = vector.broadcast %912 : vector<1x256xi1> to vector<8x256xi1>
    %914 = vector.broadcast %cst_362 : f32 to vector<8x256xf32>
    %915 = arith.select %913, %911, %914 : vector<8x256xi1>, vector<8x256xf32>
    %c1_i32_363 = arith.constant 1 : i32
    %916 = tpu.dynamic_rotate %900 by %c1_i32_363 dim 1 : vector<8x256xf32>, i32 -> vector<8x256xf32>
    %cst_364 = arith.constant 0.000000e+00 : f32
    %917 = vector.shape_cast %12 : vector<1x256xi1> to vector<1x256xi1>
    %918 = vector.broadcast %917 : vector<1x256xi1> to vector<8x256xi1>
    %919 = vector.broadcast %cst_364 : f32 to vector<8x256xf32>
    %920 = arith.select %918, %916, %919 : vector<8x256xi1>, vector<8x256xf32>
    %c255_i32_365 = arith.constant 255 : i32
    %921 = tpu.dynamic_rotate %900 by %c255_i32_365 dim 1 : vector<8x256xf32>, i32 -> vector<8x256xf32>
    %cst_366 = arith.constant 0.000000e+00 : f32
    %922 = vector.shape_cast %15 : vector<1x256xi1> to vector<1x256xi1>
    %923 = vector.broadcast %922 : vector<1x256xi1> to vector<8x256xi1>
    %924 = vector.broadcast %cst_366 : f32 to vector<8x256xf32>
    %925 = arith.select %923, %921, %924 : vector<8x256xi1>, vector<8x256xf32>
    %c241_i32_367 = arith.constant 241 : i32
    %926 = tpu.dynamic_rotate %900 by %c241_i32_367 dim 1 : vector<8x256xf32>, i32 -> vector<8x256xf32>
    %cst_368 = arith.constant 0.000000e+00 : f32
    %927 = vector.shape_cast %18 : vector<1x256xi1> to vector<1x256xi1>
    %928 = vector.broadcast %927 : vector<1x256xi1> to vector<8x256xi1>
    %929 = vector.broadcast %cst_368 : f32 to vector<8x256xf32>
    %930 = arith.select %928, %926, %929 : vector<8x256xi1>, vector<8x256xf32>
    %c240_i32_369 = arith.constant 240 : i32
    %931 = tpu.dynamic_rotate %900 by %c240_i32_369 dim 1 : vector<8x256xf32>, i32 -> vector<8x256xf32>
    %cst_370 = arith.constant 0.000000e+00 : f32
    %932 = vector.shape_cast %21 : vector<1x256xi1> to vector<1x256xi1>
    %933 = vector.broadcast %932 : vector<1x256xi1> to vector<8x256xi1>
    %934 = vector.broadcast %cst_370 : f32 to vector<8x256xf32>
    %935 = arith.select %933, %931, %934 : vector<8x256xi1>, vector<8x256xf32>
    %c239_i32_371 = arith.constant 239 : i32
    %936 = tpu.dynamic_rotate %900 by %c239_i32_371 dim 1 : vector<8x256xf32>, i32 -> vector<8x256xf32>
    %cst_372 = arith.constant 0.000000e+00 : f32
    %937 = vector.shape_cast %24 : vector<1x256xi1> to vector<1x256xi1>
    %938 = vector.broadcast %937 : vector<1x256xi1> to vector<8x256xi1>
    %939 = vector.broadcast %cst_372 : f32 to vector<8x256xf32>
    %940 = arith.select %938, %936, %939 : vector<8x256xi1>, vector<8x256xf32>
    %941 = tpu.concatenate %905, %910, %915, %920, %900, %925, %930, %935, %940 in 0 : vector<8x256xf32>, vector<8x256xf32>, vector<8x256xf32>, vector<8x256xf32>, vector<8x256xf32>, vector<8x256xf32>, vector<8x256xf32>, vector<8x256xf32>, vector<8x256xf32> -> vector<72x256xf32>
    %c0_373 = arith.constant 0 : index
    %c0_374 = arith.constant 0 : index
    %942 = vector.load %arg27[%c0_373, %c0_374] : memref<16x72xbf16, #tpu.memory_space<vmem>>, vector<16x72xbf16>
    %943 = arith.truncf %941 : vector<72x256xf32> to vector<72x256xbf16>
    %cst_375 = arith.constant dense<0.000000e+00> : vector<16x256xf32>
    %944 = tpu.matmul %942, %943, %cst_375 {dimension_numbers = #tpu.dot_dimension_numbers<[1], [0], [0], [1], [0, 0, 1, 1], [], []>} : vector<16x72xbf16>, vector<72x256xbf16>, vector<16x256xf32> -> vector<16x256xf32>
    %c0_376 = arith.constant 0 : index
    %c0_377 = arith.constant 0 : index
    %945 = vector.load %arg28[%c0_376, %c0_377] : memref<16x1xf32, #tpu.memory_space<vmem>>, vector<16x1xf32>
    %946 = vector.broadcast %945 : vector<16x1xf32> to vector<16x256xf32>
    %947 = arith.addf %944, %946 : vector<16x256xf32>
    %cst_378 = arith.constant 0.000000e+00 : f32
    %948 = vector.broadcast %cst_378 : f32 to vector<16x256xf32>
    %949 = arith.cmpf oge, %947, %948 : vector<16x256xf32>
    %cst_379 = arith.constant 0.00999999977 : f32
    %950 = vector.broadcast %cst_379 : f32 to vector<16x256xf32>
    %951 = arith.mulf %950, %947 : vector<16x256xf32>
    %952 = arith.select %949, %947, %951 : vector<16x256xi1>, vector<16x256xf32>
    %953 = vector.extract_strided_slice %952 {offsets = [0, 0], sizes = [8, 256], strides = [1, 1]} : vector<16x256xf32> to vector<8x256xf32>
    %954 = arith.negf %953 : vector<8x256xf32>
    %955 = math.exp %954 : vector<8x256xf32>
    %cst_380 = arith.constant 1.000000e+00 : f32
    %956 = vector.broadcast %cst_380 : f32 to vector<8x256xf32>
    %957 = arith.addf %956, %955 : vector<8x256xf32>
    %958 = arith.divf %956, %957 : vector<8x256xf32>
    %959 = vector.extract_strided_slice %952 {offsets = [8, 0], sizes = [8, 256], strides = [1, 1]} : vector<16x256xf32> to vector<8x256xf32>
    %960 = arith.negf %959 : vector<8x256xf32>
    %961 = math.exp %960 : vector<8x256xf32>
    %cst_381 = arith.constant 1.000000e+00 : f32
    %962 = vector.broadcast %cst_381 : f32 to vector<8x256xf32>
    %963 = arith.addf %962, %961 : vector<8x256xf32>
    %964 = arith.divf %962, %963 : vector<8x256xf32>
    %965 = arith.mulf %900, %964 : vector<8x256xf32>
    %c17_i32_382 = arith.constant 17 : i32
    %966 = tpu.dynamic_rotate %965 by %c17_i32_382 dim 1 : vector<8x256xf32>, i32 -> vector<8x256xf32>
    %cst_383 = arith.constant 0.000000e+00 : f32
    %967 = vector.shape_cast %3 : vector<1x256xi1> to vector<1x256xi1>
    %968 = vector.broadcast %967 : vector<1x256xi1> to vector<8x256xi1>
    %969 = vector.broadcast %cst_383 : f32 to vector<8x256xf32>
    %970 = arith.select %968, %966, %969 : vector<8x256xi1>, vector<8x256xf32>
    %c16_i32_384 = arith.constant 16 : i32
    %971 = tpu.dynamic_rotate %965 by %c16_i32_384 dim 1 : vector<8x256xf32>, i32 -> vector<8x256xf32>
    %cst_385 = arith.constant 0.000000e+00 : f32
    %972 = vector.shape_cast %6 : vector<1x256xi1> to vector<1x256xi1>
    %973 = vector.broadcast %972 : vector<1x256xi1> to vector<8x256xi1>
    %974 = vector.broadcast %cst_385 : f32 to vector<8x256xf32>
    %975 = arith.select %973, %971, %974 : vector<8x256xi1>, vector<8x256xf32>
    %c15_i32_386 = arith.constant 15 : i32
    %976 = tpu.dynamic_rotate %965 by %c15_i32_386 dim 1 : vector<8x256xf32>, i32 -> vector<8x256xf32>
    %cst_387 = arith.constant 0.000000e+00 : f32
    %977 = vector.shape_cast %9 : vector<1x256xi1> to vector<1x256xi1>
    %978 = vector.broadcast %977 : vector<1x256xi1> to vector<8x256xi1>
    %979 = vector.broadcast %cst_387 : f32 to vector<8x256xf32>
    %980 = arith.select %978, %976, %979 : vector<8x256xi1>, vector<8x256xf32>
    %c1_i32_388 = arith.constant 1 : i32
    %981 = tpu.dynamic_rotate %965 by %c1_i32_388 dim 1 : vector<8x256xf32>, i32 -> vector<8x256xf32>
    %cst_389 = arith.constant 0.000000e+00 : f32
    %982 = vector.shape_cast %12 : vector<1x256xi1> to vector<1x256xi1>
    %983 = vector.broadcast %982 : vector<1x256xi1> to vector<8x256xi1>
    %984 = vector.broadcast %cst_389 : f32 to vector<8x256xf32>
    %985 = arith.select %983, %981, %984 : vector<8x256xi1>, vector<8x256xf32>
    %c255_i32_390 = arith.constant 255 : i32
    %986 = tpu.dynamic_rotate %965 by %c255_i32_390 dim 1 : vector<8x256xf32>, i32 -> vector<8x256xf32>
    %cst_391 = arith.constant 0.000000e+00 : f32
    %987 = vector.shape_cast %15 : vector<1x256xi1> to vector<1x256xi1>
    %988 = vector.broadcast %987 : vector<1x256xi1> to vector<8x256xi1>
    %989 = vector.broadcast %cst_391 : f32 to vector<8x256xf32>
    %990 = arith.select %988, %986, %989 : vector<8x256xi1>, vector<8x256xf32>
    %c241_i32_392 = arith.constant 241 : i32
    %991 = tpu.dynamic_rotate %965 by %c241_i32_392 dim 1 : vector<8x256xf32>, i32 -> vector<8x256xf32>
    %cst_393 = arith.constant 0.000000e+00 : f32
    %992 = vector.shape_cast %18 : vector<1x256xi1> to vector<1x256xi1>
    %993 = vector.broadcast %992 : vector<1x256xi1> to vector<8x256xi1>
    %994 = vector.broadcast %cst_393 : f32 to vector<8x256xf32>
    %995 = arith.select %993, %991, %994 : vector<8x256xi1>, vector<8x256xf32>
    %c240_i32_394 = arith.constant 240 : i32
    %996 = tpu.dynamic_rotate %965 by %c240_i32_394 dim 1 : vector<8x256xf32>, i32 -> vector<8x256xf32>
    %cst_395 = arith.constant 0.000000e+00 : f32
    %997 = vector.shape_cast %21 : vector<1x256xi1> to vector<1x256xi1>
    %998 = vector.broadcast %997 : vector<1x256xi1> to vector<8x256xi1>
    %999 = vector.broadcast %cst_395 : f32 to vector<8x256xf32>
    %1000 = arith.select %998, %996, %999 : vector<8x256xi1>, vector<8x256xf32>
    %c239_i32_396 = arith.constant 239 : i32
    %1001 = tpu.dynamic_rotate %965 by %c239_i32_396 dim 1 : vector<8x256xf32>, i32 -> vector<8x256xf32>
    %cst_397 = arith.constant 0.000000e+00 : f32
    %1002 = vector.shape_cast %24 : vector<1x256xi1> to vector<1x256xi1>
    %1003 = vector.broadcast %1002 : vector<1x256xi1> to vector<8x256xi1>
    %1004 = vector.broadcast %cst_397 : f32 to vector<8x256xf32>
    %1005 = arith.select %1003, %1001, %1004 : vector<8x256xi1>, vector<8x256xf32>
    %1006 = tpu.concatenate %970, %975, %980, %985, %965, %990, %995, %1000, %1005 in 0 : vector<8x256xf32>, vector<8x256xf32>, vector<8x256xf32>, vector<8x256xf32>, vector<8x256xf32>, vector<8x256xf32>, vector<8x256xf32>, vector<8x256xf32>, vector<8x256xf32> -> vector<72x256xf32>
    %c0_398 = arith.constant 0 : index
    %c0_399 = arith.constant 0 : index
    %1007 = vector.load %arg29[%c0_398, %c0_399] : memref<8x72xbf16, #tpu.memory_space<vmem>>, vector<8x72xbf16>
    %1008 = arith.truncf %1006 : vector<72x256xf32> to vector<72x256xbf16>
    %cst_400 = arith.constant dense<0.000000e+00> : vector<8x256xf32>
    %1009 = tpu.matmul %1007, %1008, %cst_400 {dimension_numbers = #tpu.dot_dimension_numbers<[1], [0], [0], [1], [0, 0, 1, 1], [], []>} : vector<8x72xbf16>, vector<72x256xbf16>, vector<8x256xf32> -> vector<8x256xf32>
    %c0_401 = arith.constant 0 : index
    %c0_402 = arith.constant 0 : index
    %1010 = vector.load %arg30[%c0_401, %c0_402] : memref<8x1xf32, #tpu.memory_space<vmem>>, vector<8x1xf32>
    %1011 = vector.broadcast %1010 : vector<8x1xf32> to vector<8x256xf32>
    %1012 = arith.addf %1009, %1011 : vector<8x256xf32>
    %cst_403 = arith.constant 0.000000e+00 : f32
    %1013 = vector.broadcast %cst_403 : f32 to vector<8x256xf32>
    %1014 = arith.cmpf oge, %1012, %1013 : vector<8x256xf32>
    %cst_404 = arith.constant 4.000000e-02 : f32
    %1015 = vector.broadcast %cst_404 : f32 to vector<8x256xf32>
    %1016 = arith.mulf %1015, %1012 : vector<8x256xf32>
    %1017 = arith.select %1014, %1012, %1016 : vector<8x256xi1>, vector<8x256xf32>
    %1018 = arith.mulf %900, %958 : vector<8x256xf32>
    %cst_405 = arith.constant 1.000000e+00 : f32
    %1019 = vector.broadcast %cst_405 : f32 to vector<8x256xf32>
    %1020 = arith.subf %1019, %958 : vector<8x256xf32>
    %1021 = arith.mulf %1017, %1020 : vector<8x256xf32>
    %1022 = arith.addf %1018, %1021 : vector<8x256xf32>
    %c17_i32_406 = arith.constant 17 : i32
    %1023 = tpu.dynamic_rotate %1022 by %c17_i32_406 dim 1 : vector<8x256xf32>, i32 -> vector<8x256xf32>
    %cst_407 = arith.constant 0.000000e+00 : f32
    %1024 = vector.shape_cast %3 : vector<1x256xi1> to vector<1x256xi1>
    %1025 = vector.broadcast %1024 : vector<1x256xi1> to vector<8x256xi1>
    %1026 = vector.broadcast %cst_407 : f32 to vector<8x256xf32>
    %1027 = arith.select %1025, %1023, %1026 : vector<8x256xi1>, vector<8x256xf32>
    %c16_i32_408 = arith.constant 16 : i32
    %1028 = tpu.dynamic_rotate %1022 by %c16_i32_408 dim 1 : vector<8x256xf32>, i32 -> vector<8x256xf32>
    %cst_409 = arith.constant 0.000000e+00 : f32
    %1029 = vector.shape_cast %6 : vector<1x256xi1> to vector<1x256xi1>
    %1030 = vector.broadcast %1029 : vector<1x256xi1> to vector<8x256xi1>
    %1031 = vector.broadcast %cst_409 : f32 to vector<8x256xf32>
    %1032 = arith.select %1030, %1028, %1031 : vector<8x256xi1>, vector<8x256xf32>
    %c15_i32_410 = arith.constant 15 : i32
    %1033 = tpu.dynamic_rotate %1022 by %c15_i32_410 dim 1 : vector<8x256xf32>, i32 -> vector<8x256xf32>
    %cst_411 = arith.constant 0.000000e+00 : f32
    %1034 = vector.shape_cast %9 : vector<1x256xi1> to vector<1x256xi1>
    %1035 = vector.broadcast %1034 : vector<1x256xi1> to vector<8x256xi1>
    %1036 = vector.broadcast %cst_411 : f32 to vector<8x256xf32>
    %1037 = arith.select %1035, %1033, %1036 : vector<8x256xi1>, vector<8x256xf32>
    %c1_i32_412 = arith.constant 1 : i32
    %1038 = tpu.dynamic_rotate %1022 by %c1_i32_412 dim 1 : vector<8x256xf32>, i32 -> vector<8x256xf32>
    %cst_413 = arith.constant 0.000000e+00 : f32
    %1039 = vector.shape_cast %12 : vector<1x256xi1> to vector<1x256xi1>
    %1040 = vector.broadcast %1039 : vector<1x256xi1> to vector<8x256xi1>
    %1041 = vector.broadcast %cst_413 : f32 to vector<8x256xf32>
    %1042 = arith.select %1040, %1038, %1041 : vector<8x256xi1>, vector<8x256xf32>
    %c255_i32_414 = arith.constant 255 : i32
    %1043 = tpu.dynamic_rotate %1022 by %c255_i32_414 dim 1 : vector<8x256xf32>, i32 -> vector<8x256xf32>
    %cst_415 = arith.constant 0.000000e+00 : f32
    %1044 = vector.shape_cast %15 : vector<1x256xi1> to vector<1x256xi1>
    %1045 = vector.broadcast %1044 : vector<1x256xi1> to vector<8x256xi1>
    %1046 = vector.broadcast %cst_415 : f32 to vector<8x256xf32>
    %1047 = arith.select %1045, %1043, %1046 : vector<8x256xi1>, vector<8x256xf32>
    %c241_i32_416 = arith.constant 241 : i32
    %1048 = tpu.dynamic_rotate %1022 by %c241_i32_416 dim 1 : vector<8x256xf32>, i32 -> vector<8x256xf32>
    %cst_417 = arith.constant 0.000000e+00 : f32
    %1049 = vector.shape_cast %18 : vector<1x256xi1> to vector<1x256xi1>
    %1050 = vector.broadcast %1049 : vector<1x256xi1> to vector<8x256xi1>
    %1051 = vector.broadcast %cst_417 : f32 to vector<8x256xf32>
    %1052 = arith.select %1050, %1048, %1051 : vector<8x256xi1>, vector<8x256xf32>
    %c240_i32_418 = arith.constant 240 : i32
    %1053 = tpu.dynamic_rotate %1022 by %c240_i32_418 dim 1 : vector<8x256xf32>, i32 -> vector<8x256xf32>
    %cst_419 = arith.constant 0.000000e+00 : f32
    %1054 = vector.shape_cast %21 : vector<1x256xi1> to vector<1x256xi1>
    %1055 = vector.broadcast %1054 : vector<1x256xi1> to vector<8x256xi1>
    %1056 = vector.broadcast %cst_419 : f32 to vector<8x256xf32>
    %1057 = arith.select %1055, %1053, %1056 : vector<8x256xi1>, vector<8x256xf32>
    %c239_i32_420 = arith.constant 239 : i32
    %1058 = tpu.dynamic_rotate %1022 by %c239_i32_420 dim 1 : vector<8x256xf32>, i32 -> vector<8x256xf32>
    %cst_421 = arith.constant 0.000000e+00 : f32
    %1059 = vector.shape_cast %24 : vector<1x256xi1> to vector<1x256xi1>
    %1060 = vector.broadcast %1059 : vector<1x256xi1> to vector<8x256xi1>
    %1061 = vector.broadcast %cst_421 : f32 to vector<8x256xf32>
    %1062 = arith.select %1060, %1058, %1061 : vector<8x256xi1>, vector<8x256xf32>
    %1063 = tpu.concatenate %1027, %1032, %1037, %1042, %1022, %1047, %1052, %1057, %1062 in 0 : vector<8x256xf32>, vector<8x256xf32>, vector<8x256xf32>, vector<8x256xf32>, vector<8x256xf32>, vector<8x256xf32>, vector<8x256xf32>, vector<8x256xf32>, vector<8x256xf32> -> vector<72x256xf32>
    %c0_422 = arith.constant 0 : index
    %c0_423 = arith.constant 0 : index
    %1064 = vector.load %arg31[%c0_422, %c0_423] : memref<8x72xbf16, #tpu.memory_space<vmem>>, vector<8x72xbf16>
    %1065 = arith.truncf %1063 : vector<72x256xf32> to vector<72x256xbf16>
    %cst_424 = arith.constant dense<0.000000e+00> : vector<8x256xf32>
    %1066 = tpu.matmul %1064, %1065, %cst_424 {dimension_numbers = #tpu.dot_dimension_numbers<[1], [0], [0], [1], [0, 0, 1, 1], [], []>} : vector<8x72xbf16>, vector<72x256xbf16>, vector<8x256xf32> -> vector<8x256xf32>
    %c0_425 = arith.constant 0 : index
    %c0_426 = arith.constant 0 : index
    %1067 = vector.load %arg32[%c0_425, %c0_426] : memref<8x1xf32, #tpu.memory_space<vmem>>, vector<8x1xf32>
    %1068 = vector.broadcast %1067 : vector<8x1xf32> to vector<8x256xf32>
    %1069 = arith.addf %1066, %1068 : vector<8x256xf32>
    %cst_427 = arith.constant 0.000000e+00 : f32
    %1070 = vector.broadcast %cst_427 : f32 to vector<8x256xf32>
    %1071 = arith.cmpf oge, %1069, %1070 : vector<8x256xf32>
    %cst_428 = arith.constant 0.00999999977 : f32
    %1072 = vector.broadcast %cst_428 : f32 to vector<8x256xf32>
    %1073 = arith.mulf %1072, %1069 : vector<8x256xf32>
    %1074 = arith.select %1071, %1069, %1073 : vector<8x256xi1>, vector<8x256xf32>
    %c17_i32_429 = arith.constant 17 : i32
    %1075 = tpu.dynamic_rotate %1074 by %c17_i32_429 dim 1 : vector<8x256xf32>, i32 -> vector<8x256xf32>
    %cst_430 = arith.constant 0.000000e+00 : f32
    %1076 = vector.shape_cast %3 : vector<1x256xi1> to vector<1x256xi1>
    %1077 = vector.broadcast %1076 : vector<1x256xi1> to vector<8x256xi1>
    %1078 = vector.broadcast %cst_430 : f32 to vector<8x256xf32>
    %1079 = arith.select %1077, %1075, %1078 : vector<8x256xi1>, vector<8x256xf32>
    %c16_i32_431 = arith.constant 16 : i32
    %1080 = tpu.dynamic_rotate %1074 by %c16_i32_431 dim 1 : vector<8x256xf32>, i32 -> vector<8x256xf32>
    %cst_432 = arith.constant 0.000000e+00 : f32
    %1081 = vector.shape_cast %6 : vector<1x256xi1> to vector<1x256xi1>
    %1082 = vector.broadcast %1081 : vector<1x256xi1> to vector<8x256xi1>
    %1083 = vector.broadcast %cst_432 : f32 to vector<8x256xf32>
    %1084 = arith.select %1082, %1080, %1083 : vector<8x256xi1>, vector<8x256xf32>
    %c15_i32_433 = arith.constant 15 : i32
    %1085 = tpu.dynamic_rotate %1074 by %c15_i32_433 dim 1 : vector<8x256xf32>, i32 -> vector<8x256xf32>
    %cst_434 = arith.constant 0.000000e+00 : f32
    %1086 = vector.shape_cast %9 : vector<1x256xi1> to vector<1x256xi1>
    %1087 = vector.broadcast %1086 : vector<1x256xi1> to vector<8x256xi1>
    %1088 = vector.broadcast %cst_434 : f32 to vector<8x256xf32>
    %1089 = arith.select %1087, %1085, %1088 : vector<8x256xi1>, vector<8x256xf32>
    %c1_i32_435 = arith.constant 1 : i32
    %1090 = tpu.dynamic_rotate %1074 by %c1_i32_435 dim 1 : vector<8x256xf32>, i32 -> vector<8x256xf32>
    %cst_436 = arith.constant 0.000000e+00 : f32
    %1091 = vector.shape_cast %12 : vector<1x256xi1> to vector<1x256xi1>
    %1092 = vector.broadcast %1091 : vector<1x256xi1> to vector<8x256xi1>
    %1093 = vector.broadcast %cst_436 : f32 to vector<8x256xf32>
    %1094 = arith.select %1092, %1090, %1093 : vector<8x256xi1>, vector<8x256xf32>
    %c255_i32_437 = arith.constant 255 : i32
    %1095 = tpu.dynamic_rotate %1074 by %c255_i32_437 dim 1 : vector<8x256xf32>, i32 -> vector<8x256xf32>
    %cst_438 = arith.constant 0.000000e+00 : f32
    %1096 = vector.shape_cast %15 : vector<1x256xi1> to vector<1x256xi1>
    %1097 = vector.broadcast %1096 : vector<1x256xi1> to vector<8x256xi1>
    %1098 = vector.broadcast %cst_438 : f32 to vector<8x256xf32>
    %1099 = arith.select %1097, %1095, %1098 : vector<8x256xi1>, vector<8x256xf32>
    %c241_i32_439 = arith.constant 241 : i32
    %1100 = tpu.dynamic_rotate %1074 by %c241_i32_439 dim 1 : vector<8x256xf32>, i32 -> vector<8x256xf32>
    %cst_440 = arith.constant 0.000000e+00 : f32
    %1101 = vector.shape_cast %18 : vector<1x256xi1> to vector<1x256xi1>
    %1102 = vector.broadcast %1101 : vector<1x256xi1> to vector<8x256xi1>
    %1103 = vector.broadcast %cst_440 : f32 to vector<8x256xf32>
    %1104 = arith.select %1102, %1100, %1103 : vector<8x256xi1>, vector<8x256xf32>
    %c240_i32_441 = arith.constant 240 : i32
    %1105 = tpu.dynamic_rotate %1074 by %c240_i32_441 dim 1 : vector<8x256xf32>, i32 -> vector<8x256xf32>
    %cst_442 = arith.constant 0.000000e+00 : f32
    %1106 = vector.shape_cast %21 : vector<1x256xi1> to vector<1x256xi1>
    %1107 = vector.broadcast %1106 : vector<1x256xi1> to vector<8x256xi1>
    %1108 = vector.broadcast %cst_442 : f32 to vector<8x256xf32>
    %1109 = arith.select %1107, %1105, %1108 : vector<8x256xi1>, vector<8x256xf32>
    %c239_i32_443 = arith.constant 239 : i32
    %1110 = tpu.dynamic_rotate %1074 by %c239_i32_443 dim 1 : vector<8x256xf32>, i32 -> vector<8x256xf32>
    %cst_444 = arith.constant 0.000000e+00 : f32
    %1111 = vector.shape_cast %24 : vector<1x256xi1> to vector<1x256xi1>
    %1112 = vector.broadcast %1111 : vector<1x256xi1> to vector<8x256xi1>
    %1113 = vector.broadcast %cst_444 : f32 to vector<8x256xf32>
    %1114 = arith.select %1112, %1110, %1113 : vector<8x256xi1>, vector<8x256xf32>
    %c17_i32_445 = arith.constant 17 : i32
    %1115 = tpu.dynamic_rotate %682 by %c17_i32_445 dim 1 : vector<8x256xf32>, i32 -> vector<8x256xf32>
    %cst_446 = arith.constant 0.000000e+00 : f32
    %1116 = vector.shape_cast %3 : vector<1x256xi1> to vector<1x256xi1>
    %1117 = vector.broadcast %1116 : vector<1x256xi1> to vector<8x256xi1>
    %1118 = vector.broadcast %cst_446 : f32 to vector<8x256xf32>
    %1119 = arith.select %1117, %1115, %1118 : vector<8x256xi1>, vector<8x256xf32>
    %c16_i32_447 = arith.constant 16 : i32
    %1120 = tpu.dynamic_rotate %682 by %c16_i32_447 dim 1 : vector<8x256xf32>, i32 -> vector<8x256xf32>
    %cst_448 = arith.constant 0.000000e+00 : f32
    %1121 = vector.shape_cast %6 : vector<1x256xi1> to vector<1x256xi1>
    %1122 = vector.broadcast %1121 : vector<1x256xi1> to vector<8x256xi1>
    %1123 = vector.broadcast %cst_448 : f32 to vector<8x256xf32>
    %1124 = arith.select %1122, %1120, %1123 : vector<8x256xi1>, vector<8x256xf32>
    %c15_i32_449 = arith.constant 15 : i32
    %1125 = tpu.dynamic_rotate %682 by %c15_i32_449 dim 1 : vector<8x256xf32>, i32 -> vector<8x256xf32>
    %cst_450 = arith.constant 0.000000e+00 : f32
    %1126 = vector.shape_cast %9 : vector<1x256xi1> to vector<1x256xi1>
    %1127 = vector.broadcast %1126 : vector<1x256xi1> to vector<8x256xi1>
    %1128 = vector.broadcast %cst_450 : f32 to vector<8x256xf32>
    %1129 = arith.select %1127, %1125, %1128 : vector<8x256xi1>, vector<8x256xf32>
    %c1_i32_451 = arith.constant 1 : i32
    %1130 = tpu.dynamic_rotate %682 by %c1_i32_451 dim 1 : vector<8x256xf32>, i32 -> vector<8x256xf32>
    %cst_452 = arith.constant 0.000000e+00 : f32
    %1131 = vector.shape_cast %12 : vector<1x256xi1> to vector<1x256xi1>
    %1132 = vector.broadcast %1131 : vector<1x256xi1> to vector<8x256xi1>
    %1133 = vector.broadcast %cst_452 : f32 to vector<8x256xf32>
    %1134 = arith.select %1132, %1130, %1133 : vector<8x256xi1>, vector<8x256xf32>
    %c255_i32_453 = arith.constant 255 : i32
    %1135 = tpu.dynamic_rotate %682 by %c255_i32_453 dim 1 : vector<8x256xf32>, i32 -> vector<8x256xf32>
    %cst_454 = arith.constant 0.000000e+00 : f32
    %1136 = vector.shape_cast %15 : vector<1x256xi1> to vector<1x256xi1>
    %1137 = vector.broadcast %1136 : vector<1x256xi1> to vector<8x256xi1>
    %1138 = vector.broadcast %cst_454 : f32 to vector<8x256xf32>
    %1139 = arith.select %1137, %1135, %1138 : vector<8x256xi1>, vector<8x256xf32>
    %c241_i32_455 = arith.constant 241 : i32
    %1140 = tpu.dynamic_rotate %682 by %c241_i32_455 dim 1 : vector<8x256xf32>, i32 -> vector<8x256xf32>
    %cst_456 = arith.constant 0.000000e+00 : f32
    %1141 = vector.shape_cast %18 : vector<1x256xi1> to vector<1x256xi1>
    %1142 = vector.broadcast %1141 : vector<1x256xi1> to vector<8x256xi1>
    %1143 = vector.broadcast %cst_456 : f32 to vector<8x256xf32>
    %1144 = arith.select %1142, %1140, %1143 : vector<8x256xi1>, vector<8x256xf32>
    %c240_i32_457 = arith.constant 240 : i32
    %1145 = tpu.dynamic_rotate %682 by %c240_i32_457 dim 1 : vector<8x256xf32>, i32 -> vector<8x256xf32>
    %cst_458 = arith.constant 0.000000e+00 : f32
    %1146 = vector.shape_cast %21 : vector<1x256xi1> to vector<1x256xi1>
    %1147 = vector.broadcast %1146 : vector<1x256xi1> to vector<8x256xi1>
    %1148 = vector.broadcast %cst_458 : f32 to vector<8x256xf32>
    %1149 = arith.select %1147, %1145, %1148 : vector<8x256xi1>, vector<8x256xf32>
    %c239_i32_459 = arith.constant 239 : i32
    %1150 = tpu.dynamic_rotate %682 by %c239_i32_459 dim 1 : vector<8x256xf32>, i32 -> vector<8x256xf32>
    %cst_460 = arith.constant 0.000000e+00 : f32
    %1151 = vector.shape_cast %24 : vector<1x256xi1> to vector<1x256xi1>
    %1152 = vector.broadcast %1151 : vector<1x256xi1> to vector<8x256xi1>
    %1153 = vector.broadcast %cst_460 : f32 to vector<8x256xf32>
    %1154 = arith.select %1152, %1150, %1153 : vector<8x256xi1>, vector<8x256xf32>
    %1155 = tpu.concatenate %1079, %1084, %1089, %1094, %1074, %1099, %1104, %1109, %1114, %1119, %1124, %1129, %1134, %682, %1139, %1144 in 0 : vector<8x256xf32>, vector<8x256xf32>, vector<8x256xf32>, vector<8x256xf32>, vector<8x256xf32>, vector<8x256xf32>, vector<8x256xf32>, vector<8x256xf32>, vector<8x256xf32>, vector<8x256xf32>, vector<8x256xf32>, vector<8x256xf32>, vector<8x256xf32>, vector<8x256xf32>, vector<8x256xf32>, vector<8x256xf32> -> vector<128x256xf32>
    %1156 = tpu.concatenate %1149, %1154 in 0 : vector<8x256xf32>, vector<8x256xf32> -> vector<16x256xf32>
    %1157 = tpu.concatenate %1155, %1156 in 0 : vector<128x256xf32>, vector<16x256xf32> -> vector<144x256xf32>
    %c0_461 = arith.constant 0 : index
    %c0_462 = arith.constant 0 : index
    %1158 = vector.load %arg33[%c0_461, %c0_462] : memref<16x144xbf16, #tpu.memory_space<vmem>>, vector<16x144xbf16>
    %1159 = arith.truncf %1157 : vector<144x256xf32> to vector<144x256xbf16>
    %cst_463 = arith.constant dense<0.000000e+00> : vector<16x256xf32>
    %1160 = tpu.matmul %1158, %1159, %cst_463 {dimension_numbers = #tpu.dot_dimension_numbers<[1], [0], [0], [1], [0, 0, 1, 1], [], []>} : vector<16x144xbf16>, vector<144x256xbf16>, vector<16x256xf32> -> vector<16x256xf32>
    %c0_464 = arith.constant 0 : index
    %c0_465 = arith.constant 0 : index
    %1161 = vector.load %arg34[%c0_464, %c0_465] : memref<16x1xf32, #tpu.memory_space<vmem>>, vector<16x1xf32>
    %1162 = vector.broadcast %1161 : vector<16x1xf32> to vector<16x256xf32>
    %1163 = arith.addf %1160, %1162 : vector<16x256xf32>
    %cst_466 = arith.constant 0.000000e+00 : f32
    %1164 = vector.broadcast %cst_466 : f32 to vector<16x256xf32>
    %1165 = arith.cmpf oge, %1163, %1164 : vector<16x256xf32>
    %cst_467 = arith.constant 0.00999999977 : f32
    %1166 = vector.broadcast %cst_467 : f32 to vector<16x256xf32>
    %1167 = arith.mulf %1166, %1163 : vector<16x256xf32>
    %1168 = arith.select %1165, %1163, %1167 : vector<16x256xi1>, vector<16x256xf32>
    %1169 = vector.extract_strided_slice %1168 {offsets = [0, 0], sizes = [8, 256], strides = [1, 1]} : vector<16x256xf32> to vector<8x256xf32>
    %1170 = arith.negf %1169 : vector<8x256xf32>
    %1171 = math.exp %1170 : vector<8x256xf32>
    %cst_468 = arith.constant 1.000000e+00 : f32
    %1172 = vector.broadcast %cst_468 : f32 to vector<8x256xf32>
    %1173 = arith.addf %1172, %1171 : vector<8x256xf32>
    %1174 = arith.divf %1172, %1173 : vector<8x256xf32>
    %1175 = vector.extract_strided_slice %1168 {offsets = [8, 0], sizes = [8, 256], strides = [1, 1]} : vector<16x256xf32> to vector<8x256xf32>
    %1176 = arith.negf %1175 : vector<8x256xf32>
    %1177 = math.exp %1176 : vector<8x256xf32>
    %cst_469 = arith.constant 1.000000e+00 : f32
    %1178 = vector.broadcast %cst_469 : f32 to vector<8x256xf32>
    %1179 = arith.addf %1178, %1177 : vector<8x256xf32>
    %1180 = arith.divf %1178, %1179 : vector<8x256xf32>
    %1181 = arith.mulf %682, %1180 : vector<8x256xf32>
    %c17_i32_470 = arith.constant 17 : i32
    %1182 = tpu.dynamic_rotate %1181 by %c17_i32_470 dim 1 : vector<8x256xf32>, i32 -> vector<8x256xf32>
    %cst_471 = arith.constant 0.000000e+00 : f32
    %1183 = vector.shape_cast %3 : vector<1x256xi1> to vector<1x256xi1>
    %1184 = vector.broadcast %1183 : vector<1x256xi1> to vector<8x256xi1>
    %1185 = vector.broadcast %cst_471 : f32 to vector<8x256xf32>
    %1186 = arith.select %1184, %1182, %1185 : vector<8x256xi1>, vector<8x256xf32>
    %c16_i32_472 = arith.constant 16 : i32
    %1187 = tpu.dynamic_rotate %1181 by %c16_i32_472 dim 1 : vector<8x256xf32>, i32 -> vector<8x256xf32>
    %cst_473 = arith.constant 0.000000e+00 : f32
    %1188 = vector.shape_cast %6 : vector<1x256xi1> to vector<1x256xi1>
    %1189 = vector.broadcast %1188 : vector<1x256xi1> to vector<8x256xi1>
    %1190 = vector.broadcast %cst_473 : f32 to vector<8x256xf32>
    %1191 = arith.select %1189, %1187, %1190 : vector<8x256xi1>, vector<8x256xf32>
    %c15_i32_474 = arith.constant 15 : i32
    %1192 = tpu.dynamic_rotate %1181 by %c15_i32_474 dim 1 : vector<8x256xf32>, i32 -> vector<8x256xf32>
    %cst_475 = arith.constant 0.000000e+00 : f32
    %1193 = vector.shape_cast %9 : vector<1x256xi1> to vector<1x256xi1>
    %1194 = vector.broadcast %1193 : vector<1x256xi1> to vector<8x256xi1>
    %1195 = vector.broadcast %cst_475 : f32 to vector<8x256xf32>
    %1196 = arith.select %1194, %1192, %1195 : vector<8x256xi1>, vector<8x256xf32>
    %c1_i32_476 = arith.constant 1 : i32
    %1197 = tpu.dynamic_rotate %1181 by %c1_i32_476 dim 1 : vector<8x256xf32>, i32 -> vector<8x256xf32>
    %cst_477 = arith.constant 0.000000e+00 : f32
    %1198 = vector.shape_cast %12 : vector<1x256xi1> to vector<1x256xi1>
    %1199 = vector.broadcast %1198 : vector<1x256xi1> to vector<8x256xi1>
    %1200 = vector.broadcast %cst_477 : f32 to vector<8x256xf32>
    %1201 = arith.select %1199, %1197, %1200 : vector<8x256xi1>, vector<8x256xf32>
    %c255_i32_478 = arith.constant 255 : i32
    %1202 = tpu.dynamic_rotate %1181 by %c255_i32_478 dim 1 : vector<8x256xf32>, i32 -> vector<8x256xf32>
    %cst_479 = arith.constant 0.000000e+00 : f32
    %1203 = vector.shape_cast %15 : vector<1x256xi1> to vector<1x256xi1>
    %1204 = vector.broadcast %1203 : vector<1x256xi1> to vector<8x256xi1>
    %1205 = vector.broadcast %cst_479 : f32 to vector<8x256xf32>
    %1206 = arith.select %1204, %1202, %1205 : vector<8x256xi1>, vector<8x256xf32>
    %c241_i32_480 = arith.constant 241 : i32
    %1207 = tpu.dynamic_rotate %1181 by %c241_i32_480 dim 1 : vector<8x256xf32>, i32 -> vector<8x256xf32>
    %cst_481 = arith.constant 0.000000e+00 : f32
    %1208 = vector.shape_cast %18 : vector<1x256xi1> to vector<1x256xi1>
    %1209 = vector.broadcast %1208 : vector<1x256xi1> to vector<8x256xi1>
    %1210 = vector.broadcast %cst_481 : f32 to vector<8x256xf32>
    %1211 = arith.select %1209, %1207, %1210 : vector<8x256xi1>, vector<8x256xf32>
    %c240_i32_482 = arith.constant 240 : i32
    %1212 = tpu.dynamic_rotate %1181 by %c240_i32_482 dim 1 : vector<8x256xf32>, i32 -> vector<8x256xf32>
    %cst_483 = arith.constant 0.000000e+00 : f32
    %1213 = vector.shape_cast %21 : vector<1x256xi1> to vector<1x256xi1>
    %1214 = vector.broadcast %1213 : vector<1x256xi1> to vector<8x256xi1>
    %1215 = vector.broadcast %cst_483 : f32 to vector<8x256xf32>
    %1216 = arith.select %1214, %1212, %1215 : vector<8x256xi1>, vector<8x256xf32>
    %c239_i32_484 = arith.constant 239 : i32
    %1217 = tpu.dynamic_rotate %1181 by %c239_i32_484 dim 1 : vector<8x256xf32>, i32 -> vector<8x256xf32>
    %cst_485 = arith.constant 0.000000e+00 : f32
    %1218 = vector.shape_cast %24 : vector<1x256xi1> to vector<1x256xi1>
    %1219 = vector.broadcast %1218 : vector<1x256xi1> to vector<8x256xi1>
    %1220 = vector.broadcast %cst_485 : f32 to vector<8x256xf32>
    %1221 = arith.select %1219, %1217, %1220 : vector<8x256xi1>, vector<8x256xf32>
    %1222 = tpu.concatenate %1079, %1084, %1089, %1094, %1074, %1099, %1104, %1109, %1114, %1186, %1191, %1196, %1201, %1181, %1206, %1211 in 0 : vector<8x256xf32>, vector<8x256xf32>, vector<8x256xf32>, vector<8x256xf32>, vector<8x256xf32>, vector<8x256xf32>, vector<8x256xf32>, vector<8x256xf32>, vector<8x256xf32>, vector<8x256xf32>, vector<8x256xf32>, vector<8x256xf32>, vector<8x256xf32>, vector<8x256xf32>, vector<8x256xf32>, vector<8x256xf32> -> vector<128x256xf32>
    %1223 = tpu.concatenate %1216, %1221 in 0 : vector<8x256xf32>, vector<8x256xf32> -> vector<16x256xf32>
    %1224 = tpu.concatenate %1222, %1223 in 0 : vector<128x256xf32>, vector<16x256xf32> -> vector<144x256xf32>
    %c0_486 = arith.constant 0 : index
    %c0_487 = arith.constant 0 : index
    %1225 = vector.load %arg35[%c0_486, %c0_487] : memref<8x144xbf16, #tpu.memory_space<vmem>>, vector<8x144xbf16>
    %1226 = arith.truncf %1224 : vector<144x256xf32> to vector<144x256xbf16>
    %cst_488 = arith.constant dense<0.000000e+00> : vector<8x256xf32>
    %1227 = tpu.matmul %1225, %1226, %cst_488 {dimension_numbers = #tpu.dot_dimension_numbers<[1], [0], [0], [1], [0, 0, 1, 1], [], []>} : vector<8x144xbf16>, vector<144x256xbf16>, vector<8x256xf32> -> vector<8x256xf32>
    %c0_489 = arith.constant 0 : index
    %c0_490 = arith.constant 0 : index
    %1228 = vector.load %arg36[%c0_489, %c0_490] : memref<8x1xf32, #tpu.memory_space<vmem>>, vector<8x1xf32>
    %1229 = vector.broadcast %1228 : vector<8x1xf32> to vector<8x256xf32>
    %1230 = arith.addf %1227, %1229 : vector<8x256xf32>
    %cst_491 = arith.constant 0.000000e+00 : f32
    %1231 = vector.broadcast %cst_491 : f32 to vector<8x256xf32>
    %1232 = arith.cmpf oge, %1230, %1231 : vector<8x256xf32>
    %cst_492 = arith.constant 4.000000e-02 : f32
    %1233 = vector.broadcast %cst_492 : f32 to vector<8x256xf32>
    %1234 = arith.mulf %1233, %1230 : vector<8x256xf32>
    %1235 = arith.select %1232, %1230, %1234 : vector<8x256xi1>, vector<8x256xf32>
    %1236 = arith.mulf %682, %1174 : vector<8x256xf32>
    %cst_493 = arith.constant 1.000000e+00 : f32
    %1237 = vector.broadcast %cst_493 : f32 to vector<8x256xf32>
    %1238 = arith.subf %1237, %1174 : vector<8x256xf32>
    %1239 = arith.mulf %1235, %1238 : vector<8x256xf32>
    %1240 = arith.addf %1236, %1239 : vector<8x256xf32>
    %c17_i32_494 = arith.constant 17 : i32
    %1241 = tpu.dynamic_rotate %1240 by %c17_i32_494 dim 1 : vector<8x256xf32>, i32 -> vector<8x256xf32>
    %cst_495 = arith.constant 0.000000e+00 : f32
    %1242 = vector.shape_cast %3 : vector<1x256xi1> to vector<1x256xi1>
    %1243 = vector.broadcast %1242 : vector<1x256xi1> to vector<8x256xi1>
    %1244 = vector.broadcast %cst_495 : f32 to vector<8x256xf32>
    %1245 = arith.select %1243, %1241, %1244 : vector<8x256xi1>, vector<8x256xf32>
    %c16_i32_496 = arith.constant 16 : i32
    %1246 = tpu.dynamic_rotate %1240 by %c16_i32_496 dim 1 : vector<8x256xf32>, i32 -> vector<8x256xf32>
    %cst_497 = arith.constant 0.000000e+00 : f32
    %1247 = vector.shape_cast %6 : vector<1x256xi1> to vector<1x256xi1>
    %1248 = vector.broadcast %1247 : vector<1x256xi1> to vector<8x256xi1>
    %1249 = vector.broadcast %cst_497 : f32 to vector<8x256xf32>
    %1250 = arith.select %1248, %1246, %1249 : vector<8x256xi1>, vector<8x256xf32>
    %c15_i32_498 = arith.constant 15 : i32
    %1251 = tpu.dynamic_rotate %1240 by %c15_i32_498 dim 1 : vector<8x256xf32>, i32 -> vector<8x256xf32>
    %cst_499 = arith.constant 0.000000e+00 : f32
    %1252 = vector.shape_cast %9 : vector<1x256xi1> to vector<1x256xi1>
    %1253 = vector.broadcast %1252 : vector<1x256xi1> to vector<8x256xi1>
    %1254 = vector.broadcast %cst_499 : f32 to vector<8x256xf32>
    %1255 = arith.select %1253, %1251, %1254 : vector<8x256xi1>, vector<8x256xf32>
    %c1_i32_500 = arith.constant 1 : i32
    %1256 = tpu.dynamic_rotate %1240 by %c1_i32_500 dim 1 : vector<8x256xf32>, i32 -> vector<8x256xf32>
    %cst_501 = arith.constant 0.000000e+00 : f32
    %1257 = vector.shape_cast %12 : vector<1x256xi1> to vector<1x256xi1>
    %1258 = vector.broadcast %1257 : vector<1x256xi1> to vector<8x256xi1>
    %1259 = vector.broadcast %cst_501 : f32 to vector<8x256xf32>
    %1260 = arith.select %1258, %1256, %1259 : vector<8x256xi1>, vector<8x256xf32>
    %c255_i32_502 = arith.constant 255 : i32
    %1261 = tpu.dynamic_rotate %1240 by %c255_i32_502 dim 1 : vector<8x256xf32>, i32 -> vector<8x256xf32>
    %cst_503 = arith.constant 0.000000e+00 : f32
    %1262 = vector.shape_cast %15 : vector<1x256xi1> to vector<1x256xi1>
    %1263 = vector.broadcast %1262 : vector<1x256xi1> to vector<8x256xi1>
    %1264 = vector.broadcast %cst_503 : f32 to vector<8x256xf32>
    %1265 = arith.select %1263, %1261, %1264 : vector<8x256xi1>, vector<8x256xf32>
    %c241_i32_504 = arith.constant 241 : i32
    %1266 = tpu.dynamic_rotate %1240 by %c241_i32_504 dim 1 : vector<8x256xf32>, i32 -> vector<8x256xf32>
    %cst_505 = arith.constant 0.000000e+00 : f32
    %1267 = vector.shape_cast %18 : vector<1x256xi1> to vector<1x256xi1>
    %1268 = vector.broadcast %1267 : vector<1x256xi1> to vector<8x256xi1>
    %1269 = vector.broadcast %cst_505 : f32 to vector<8x256xf32>
    %1270 = arith.select %1268, %1266, %1269 : vector<8x256xi1>, vector<8x256xf32>
    %c240_i32_506 = arith.constant 240 : i32
    %1271 = tpu.dynamic_rotate %1240 by %c240_i32_506 dim 1 : vector<8x256xf32>, i32 -> vector<8x256xf32>
    %cst_507 = arith.constant 0.000000e+00 : f32
    %1272 = vector.shape_cast %21 : vector<1x256xi1> to vector<1x256xi1>
    %1273 = vector.broadcast %1272 : vector<1x256xi1> to vector<8x256xi1>
    %1274 = vector.broadcast %cst_507 : f32 to vector<8x256xf32>
    %1275 = arith.select %1273, %1271, %1274 : vector<8x256xi1>, vector<8x256xf32>
    %c239_i32_508 = arith.constant 239 : i32
    %1276 = tpu.dynamic_rotate %1240 by %c239_i32_508 dim 1 : vector<8x256xf32>, i32 -> vector<8x256xf32>
    %cst_509 = arith.constant 0.000000e+00 : f32
    %1277 = vector.shape_cast %24 : vector<1x256xi1> to vector<1x256xi1>
    %1278 = vector.broadcast %1277 : vector<1x256xi1> to vector<8x256xi1>
    %1279 = vector.broadcast %cst_509 : f32 to vector<8x256xf32>
    %1280 = arith.select %1278, %1276, %1279 : vector<8x256xi1>, vector<8x256xf32>
    %1281 = tpu.concatenate %1245, %1250, %1255, %1260, %1240, %1265, %1270, %1275, %1280 in 0 : vector<8x256xf32>, vector<8x256xf32>, vector<8x256xf32>, vector<8x256xf32>, vector<8x256xf32>, vector<8x256xf32>, vector<8x256xf32>, vector<8x256xf32>, vector<8x256xf32> -> vector<72x256xf32>
    %c0_510 = arith.constant 0 : index
    %c0_511 = arith.constant 0 : index
    %1282 = vector.load %arg37[%c0_510, %c0_511] : memref<8x72xbf16, #tpu.memory_space<vmem>>, vector<8x72xbf16>
    %1283 = arith.truncf %1281 : vector<72x256xf32> to vector<72x256xbf16>
    %cst_512 = arith.constant dense<0.000000e+00> : vector<8x256xf32>
    %1284 = tpu.matmul %1282, %1283, %cst_512 {dimension_numbers = #tpu.dot_dimension_numbers<[1], [0], [0], [1], [0, 0, 1, 1], [], []>} : vector<8x72xbf16>, vector<72x256xbf16>, vector<8x256xf32> -> vector<8x256xf32>
    %c0_513 = arith.constant 0 : index
    %c0_514 = arith.constant 0 : index
    %1285 = vector.load %arg38[%c0_513, %c0_514] : memref<8x1xf32, #tpu.memory_space<vmem>>, vector<8x1xf32>
    %1286 = vector.broadcast %1285 : vector<8x1xf32> to vector<8x256xf32>
    %1287 = arith.addf %1284, %1286 : vector<8x256xf32>
    %cst_515 = arith.constant 0.000000e+00 : f32
    %1288 = vector.broadcast %cst_515 : f32 to vector<8x256xf32>
    %1289 = arith.cmpf oge, %1287, %1288 : vector<8x256xf32>
    %cst_516 = arith.constant 0.00999999977 : f32
    %1290 = vector.broadcast %cst_516 : f32 to vector<8x256xf32>
    %1291 = arith.mulf %1290, %1287 : vector<8x256xf32>
    %1292 = arith.select %1289, %1287, %1291 : vector<8x256xi1>, vector<8x256xf32>
    %c0_517 = arith.constant 0 : index
    %c0_518 = arith.constant 0 : index
    %1293 = vector.load %arg39[%c0_517, %c0_518] : memref<1x8xbf16, #tpu.memory_space<vmem>>, vector<1x8xbf16>
    %1294 = arith.truncf %1292 : vector<8x256xf32> to vector<8x256xbf16>
    %cst_519 = arith.constant dense<0.000000e+00> : vector<1x256xf32>
    %1295 = tpu.matmul %1293, %1294, %cst_519 {dimension_numbers = #tpu.dot_dimension_numbers<[1], [0], [0], [1], [0, 0, 1, 1], [], []>} : vector<1x8xbf16>, vector<8x256xbf16>, vector<1x256xf32> -> vector<1x256xf32>
    %c0_520 = arith.constant 0 : index
    %c0_521 = arith.constant 0 : index
    %1296 = vector.load %arg40[%c0_520, %c0_521] : memref<1x1xf32, #tpu.memory_space<vmem>>, vector<1x1xf32>
    %1297 = vector.broadcast %1296 : vector<1x1xf32> to vector<1x256xf32>
    %1298 = arith.addf %1295, %1297 : vector<1x256xf32>
    %cst_522 = arith.constant 0.000000e+00 : f32
    %1299 = vector.broadcast %cst_522 : f32 to vector<1x256xf32>
    %1300 = arith.cmpf oge, %1298, %1299 : vector<1x256xf32>
    %cst_523 = arith.constant 0.00999999977 : f32
    %1301 = vector.broadcast %cst_523 : f32 to vector<1x256xf32>
    %1302 = arith.mulf %1301, %1298 : vector<1x256xf32>
    %1303 = arith.select %1300, %1298, %1302 : vector<1x256xi1>, vector<1x256xf32>
    %cst_524 = arith.constant 0.23025851 : f32
    %1304 = vector.broadcast %cst_524 : f32 to vector<1x256xf32>
    %1305 = arith.mulf %1303, %1304 : vector<1x256xf32>
    %cst_525 = arith.constant 5.29831743 : f32
    %1306 = vector.broadcast %cst_525 : f32 to vector<1x256xf32>
    %1307 = arith.subf %1305, %1306 : vector<1x256xf32>
    %cst_526 = arith.constant 6.250000e-01 : f32
    %1308 = vector.broadcast %cst_526 : f32 to vector<1x256xf32>
    %1309 = arith.mulf %1308, %1307 : vector<1x256xf32>
    %1310 = math.exp %1309 : vector<1x256xf32>
    %c0_527 = arith.constant 0 : index
    %c0_528 = arith.constant 0 : index
    %1311 = vector.load %arg55[%c0_527, %c0_528] : memref<2x256xf32, #tpu.memory_space<vmem>>, vector<1x256xf32>
    tpu.vector_store %arg55[%c0_527, %c0_528], %1310 {strides = array<i32>} : memref<2x256xf32, #tpu.memory_space<vmem>>, vector<1x256xf32>,
    %c17_i32_529 = arith.constant 17 : i32
    %1312 = tpu.dynamic_rotate %1022 by %c17_i32_529 dim 1 : vector<8x256xf32>, i32 -> vector<8x256xf32>
    %cst_530 = arith.constant 0.000000e+00 : f32
    %1313 = vector.shape_cast %3 : vector<1x256xi1> to vector<1x256xi1>
    %1314 = vector.broadcast %1313 : vector<1x256xi1> to vector<8x256xi1>
    %1315 = vector.broadcast %cst_530 : f32 to vector<8x256xf32>
    %1316 = arith.select %1314, %1312, %1315 : vector<8x256xi1>, vector<8x256xf32>
    %c16_i32_531 = arith.constant 16 : i32
    %1317 = tpu.dynamic_rotate %1022 by %c16_i32_531 dim 1 : vector<8x256xf32>, i32 -> vector<8x256xf32>
    %cst_532 = arith.constant 0.000000e+00 : f32
    %1318 = vector.shape_cast %6 : vector<1x256xi1> to vector<1x256xi1>
    %1319 = vector.broadcast %1318 : vector<1x256xi1> to vector<8x256xi1>
    %1320 = vector.broadcast %cst_532 : f32 to vector<8x256xf32>
    %1321 = arith.select %1319, %1317, %1320 : vector<8x256xi1>, vector<8x256xf32>
    %c15_i32_533 = arith.constant 15 : i32
    %1322 = tpu.dynamic_rotate %1022 by %c15_i32_533 dim 1 : vector<8x256xf32>, i32 -> vector<8x256xf32>
    %cst_534 = arith.constant 0.000000e+00 : f32
    %1323 = vector.shape_cast %9 : vector<1x256xi1> to vector<1x256xi1>
    %1324 = vector.broadcast %1323 : vector<1x256xi1> to vector<8x256xi1>
    %1325 = vector.broadcast %cst_534 : f32 to vector<8x256xf32>
    %1326 = arith.select %1324, %1322, %1325 : vector<8x256xi1>, vector<8x256xf32>
    %c1_i32_535 = arith.constant 1 : i32
    %1327 = tpu.dynamic_rotate %1022 by %c1_i32_535 dim 1 : vector<8x256xf32>, i32 -> vector<8x256xf32>
    %cst_536 = arith.constant 0.000000e+00 : f32
    %1328 = vector.shape_cast %12 : vector<1x256xi1> to vector<1x256xi1>
    %1329 = vector.broadcast %1328 : vector<1x256xi1> to vector<8x256xi1>
    %1330 = vector.broadcast %cst_536 : f32 to vector<8x256xf32>
    %1331 = arith.select %1329, %1327, %1330 : vector<8x256xi1>, vector<8x256xf32>
    %c255_i32_537 = arith.constant 255 : i32
    %1332 = tpu.dynamic_rotate %1022 by %c255_i32_537 dim 1 : vector<8x256xf32>, i32 -> vector<8x256xf32>
    %cst_538 = arith.constant 0.000000e+00 : f32
    %1333 = vector.shape_cast %15 : vector<1x256xi1> to vector<1x256xi1>
    %1334 = vector.broadcast %1333 : vector<1x256xi1> to vector<8x256xi1>
    %1335 = vector.broadcast %cst_538 : f32 to vector<8x256xf32>
    %1336 = arith.select %1334, %1332, %1335 : vector<8x256xi1>, vector<8x256xf32>
    %c241_i32_539 = arith.constant 241 : i32
    %1337 = tpu.dynamic_rotate %1022 by %c241_i32_539 dim 1 : vector<8x256xf32>, i32 -> vector<8x256xf32>
    %cst_540 = arith.constant 0.000000e+00 : f32
    %1338 = vector.shape_cast %18 : vector<1x256xi1> to vector<1x256xi1>
    %1339 = vector.broadcast %1338 : vector<1x256xi1> to vector<8x256xi1>
    %1340 = vector.broadcast %cst_540 : f32 to vector<8x256xf32>
    %1341 = arith.select %1339, %1337, %1340 : vector<8x256xi1>, vector<8x256xf32>
    %c240_i32_541 = arith.constant 240 : i32
    %1342 = tpu.dynamic_rotate %1022 by %c240_i32_541 dim 1 : vector<8x256xf32>, i32 -> vector<8x256xf32>
    %cst_542 = arith.constant 0.000000e+00 : f32
    %1343 = vector.shape_cast %21 : vector<1x256xi1> to vector<1x256xi1>
    %1344 = vector.broadcast %1343 : vector<1x256xi1> to vector<8x256xi1>
    %1345 = vector.broadcast %cst_542 : f32 to vector<8x256xf32>
    %1346 = arith.select %1344, %1342, %1345 : vector<8x256xi1>, vector<8x256xf32>
    %c239_i32_543 = arith.constant 239 : i32
    %1347 = tpu.dynamic_rotate %1022 by %c239_i32_543 dim 1 : vector<8x256xf32>, i32 -> vector<8x256xf32>
    %cst_544 = arith.constant 0.000000e+00 : f32
    %1348 = vector.shape_cast %24 : vector<1x256xi1> to vector<1x256xi1>
    %1349 = vector.broadcast %1348 : vector<1x256xi1> to vector<8x256xi1>
    %1350 = vector.broadcast %cst_544 : f32 to vector<8x256xf32>
    %1351 = arith.select %1349, %1347, %1350 : vector<8x256xi1>, vector<8x256xf32>
    %1352 = tpu.concatenate %1316, %1321, %1326, %1331, %1022, %1336, %1341, %1346, %1351 in 0 : vector<8x256xf32>, vector<8x256xf32>, vector<8x256xf32>, vector<8x256xf32>, vector<8x256xf32>, vector<8x256xf32>, vector<8x256xf32>, vector<8x256xf32>, vector<8x256xf32> -> vector<72x256xf32>
    %c0_545 = arith.constant 0 : index
    %c0_546 = arith.constant 0 : index
    %1353 = vector.load %arg41[%c0_545, %c0_546] : memref<16x72xbf16, #tpu.memory_space<vmem>>, vector<16x72xbf16>
    %1354 = arith.truncf %1352 : vector<72x256xf32> to vector<72x256xbf16>
    %cst_547 = arith.constant dense<0.000000e+00> : vector<16x256xf32>
    %1355 = tpu.matmul %1353, %1354, %cst_547 {dimension_numbers = #tpu.dot_dimension_numbers<[1], [0], [0], [1], [0, 0, 1, 1], [], []>} : vector<16x72xbf16>, vector<72x256xbf16>, vector<16x256xf32> -> vector<16x256xf32>
    %c0_548 = arith.constant 0 : index
    %c0_549 = arith.constant 0 : index
    %1356 = vector.load %arg42[%c0_548, %c0_549] : memref<16x1xf32, #tpu.memory_space<vmem>>, vector<16x1xf32>
    %1357 = vector.broadcast %1356 : vector<16x1xf32> to vector<16x256xf32>
    %1358 = arith.addf %1355, %1357 : vector<16x256xf32>
    %cst_550 = arith.constant 0.000000e+00 : f32
    %1359 = vector.broadcast %cst_550 : f32 to vector<16x256xf32>
    %1360 = arith.cmpf oge, %1358, %1359 : vector<16x256xf32>
    %cst_551 = arith.constant 0.00999999977 : f32
    %1361 = vector.broadcast %cst_551 : f32 to vector<16x256xf32>
    %1362 = arith.mulf %1361, %1358 : vector<16x256xf32>
    %1363 = arith.select %1360, %1358, %1362 : vector<16x256xi1>, vector<16x256xf32>
    %1364 = vector.extract_strided_slice %1363 {offsets = [0, 0], sizes = [8, 256], strides = [1, 1]} : vector<16x256xf32> to vector<8x256xf32>
    %1365 = arith.negf %1364 : vector<8x256xf32>
    %1366 = math.exp %1365 : vector<8x256xf32>
    %cst_552 = arith.constant 1.000000e+00 : f32
    %1367 = vector.broadcast %cst_552 : f32 to vector<8x256xf32>
    %1368 = arith.addf %1367, %1366 : vector<8x256xf32>
    %1369 = arith.divf %1367, %1368 : vector<8x256xf32>
    %1370 = vector.extract_strided_slice %1363 {offsets = [8, 0], sizes = [8, 256], strides = [1, 1]} : vector<16x256xf32> to vector<8x256xf32>
    %1371 = arith.negf %1370 : vector<8x256xf32>
    %1372 = math.exp %1371 : vector<8x256xf32>
    %cst_553 = arith.constant 1.000000e+00 : f32
    %1373 = vector.broadcast %cst_553 : f32 to vector<8x256xf32>
    %1374 = arith.addf %1373, %1372 : vector<8x256xf32>
    %1375 = arith.divf %1373, %1374 : vector<8x256xf32>
    %1376 = arith.mulf %1022, %1375 : vector<8x256xf32>
    %c17_i32_554 = arith.constant 17 : i32
    %1377 = tpu.dynamic_rotate %1376 by %c17_i32_554 dim 1 : vector<8x256xf32>, i32 -> vector<8x256xf32>
    %cst_555 = arith.constant 0.000000e+00 : f32
    %1378 = vector.shape_cast %3 : vector<1x256xi1> to vector<1x256xi1>
    %1379 = vector.broadcast %1378 : vector<1x256xi1> to vector<8x256xi1>
    %1380 = vector.broadcast %cst_555 : f32 to vector<8x256xf32>
    %1381 = arith.select %1379, %1377, %1380 : vector<8x256xi1>, vector<8x256xf32>
    %c16_i32_556 = arith.constant 16 : i32
    %1382 = tpu.dynamic_rotate %1376 by %c16_i32_556 dim 1 : vector<8x256xf32>, i32 -> vector<8x256xf32>
    %cst_557 = arith.constant 0.000000e+00 : f32
    %1383 = vector.shape_cast %6 : vector<1x256xi1> to vector<1x256xi1>
    %1384 = vector.broadcast %1383 : vector<1x256xi1> to vector<8x256xi1>
    %1385 = vector.broadcast %cst_557 : f32 to vector<8x256xf32>
    %1386 = arith.select %1384, %1382, %1385 : vector<8x256xi1>, vector<8x256xf32>
    %c15_i32_558 = arith.constant 15 : i32
    %1387 = tpu.dynamic_rotate %1376 by %c15_i32_558 dim 1 : vector<8x256xf32>, i32 -> vector<8x256xf32>
    %cst_559 = arith.constant 0.000000e+00 : f32
    %1388 = vector.shape_cast %9 : vector<1x256xi1> to vector<1x256xi1>
    %1389 = vector.broadcast %1388 : vector<1x256xi1> to vector<8x256xi1>
    %1390 = vector.broadcast %cst_559 : f32 to vector<8x256xf32>
    %1391 = arith.select %1389, %1387, %1390 : vector<8x256xi1>, vector<8x256xf32>
    %c1_i32_560 = arith.constant 1 : i32
    %1392 = tpu.dynamic_rotate %1376 by %c1_i32_560 dim 1 : vector<8x256xf32>, i32 -> vector<8x256xf32>
    %cst_561 = arith.constant 0.000000e+00 : f32
    %1393 = vector.shape_cast %12 : vector<1x256xi1> to vector<1x256xi1>
    %1394 = vector.broadcast %1393 : vector<1x256xi1> to vector<8x256xi1>
    %1395 = vector.broadcast %cst_561 : f32 to vector<8x256xf32>
    %1396 = arith.select %1394, %1392, %1395 : vector<8x256xi1>, vector<8x256xf32>
    %c255_i32_562 = arith.constant 255 : i32
    %1397 = tpu.dynamic_rotate %1376 by %c255_i32_562 dim 1 : vector<8x256xf32>, i32 -> vector<8x256xf32>
    %cst_563 = arith.constant 0.000000e+00 : f32
    %1398 = vector.shape_cast %15 : vector<1x256xi1> to vector<1x256xi1>
    %1399 = vector.broadcast %1398 : vector<1x256xi1> to vector<8x256xi1>
    %1400 = vector.broadcast %cst_563 : f32 to vector<8x256xf32>
    %1401 = arith.select %1399, %1397, %1400 : vector<8x256xi1>, vector<8x256xf32>
    %c241_i32_564 = arith.constant 241 : i32
    %1402 = tpu.dynamic_rotate %1376 by %c241_i32_564 dim 1 : vector<8x256xf32>, i32 -> vector<8x256xf32>
    %cst_565 = arith.constant 0.000000e+00 : f32
    %1403 = vector.shape_cast %18 : vector<1x256xi1> to vector<1x256xi1>
    %1404 = vector.broadcast %1403 : vector<1x256xi1> to vector<8x256xi1>
    %1405 = vector.broadcast %cst_565 : f32 to vector<8x256xf32>
    %1406 = arith.select %1404, %1402, %1405 : vector<8x256xi1>, vector<8x256xf32>
    %c240_i32_566 = arith.constant 240 : i32
    %1407 = tpu.dynamic_rotate %1376 by %c240_i32_566 dim 1 : vector<8x256xf32>, i32 -> vector<8x256xf32>
    %cst_567 = arith.constant 0.000000e+00 : f32
    %1408 = vector.shape_cast %21 : vector<1x256xi1> to vector<1x256xi1>
    %1409 = vector.broadcast %1408 : vector<1x256xi1> to vector<8x256xi1>
    %1410 = vector.broadcast %cst_567 : f32 to vector<8x256xf32>
    %1411 = arith.select %1409, %1407, %1410 : vector<8x256xi1>, vector<8x256xf32>
    %c239_i32_568 = arith.constant 239 : i32
    %1412 = tpu.dynamic_rotate %1376 by %c239_i32_568 dim 1 : vector<8x256xf32>, i32 -> vector<8x256xf32>
    %cst_569 = arith.constant 0.000000e+00 : f32
    %1413 = vector.shape_cast %24 : vector<1x256xi1> to vector<1x256xi1>
    %1414 = vector.broadcast %1413 : vector<1x256xi1> to vector<8x256xi1>
    %1415 = vector.broadcast %cst_569 : f32 to vector<8x256xf32>
    %1416 = arith.select %1414, %1412, %1415 : vector<8x256xi1>, vector<8x256xf32>
    %1417 = tpu.concatenate %1381, %1386, %1391, %1396, %1376, %1401, %1406, %1411, %1416 in 0 : vector<8x256xf32>, vector<8x256xf32>, vector<8x256xf32>, vector<8x256xf32>, vector<8x256xf32>, vector<8x256xf32>, vector<8x256xf32>, vector<8x256xf32>, vector<8x256xf32> -> vector<72x256xf32>
    %c0_570 = arith.constant 0 : index
    %c0_571 = arith.constant 0 : index
    %1418 = vector.load %arg43[%c0_570, %c0_571] : memref<8x72xbf16, #tpu.memory_space<vmem>>, vector<8x72xbf16>
    %1419 = arith.truncf %1417 : vector<72x256xf32> to vector<72x256xbf16>
    %cst_572 = arith.constant dense<0.000000e+00> : vector<8x256xf32>
    %1420 = tpu.matmul %1418, %1419, %cst_572 {dimension_numbers = #tpu.dot_dimension_numbers<[1], [0], [0], [1], [0, 0, 1, 1], [], []>} : vector<8x72xbf16>, vector<72x256xbf16>, vector<8x256xf32> -> vector<8x256xf32>
    %c0_573 = arith.constant 0 : index
    %c0_574 = arith.constant 0 : index
    %1421 = vector.load %arg44[%c0_573, %c0_574] : memref<8x1xf32, #tpu.memory_space<vmem>>, vector<8x1xf32>
    %1422 = vector.broadcast %1421 : vector<8x1xf32> to vector<8x256xf32>
    %1423 = arith.addf %1420, %1422 : vector<8x256xf32>
    %cst_575 = arith.constant 0.000000e+00 : f32
    %1424 = vector.broadcast %cst_575 : f32 to vector<8x256xf32>
    %1425 = arith.cmpf oge, %1423, %1424 : vector<8x256xf32>
    %cst_576 = arith.constant 4.000000e-02 : f32
    %1426 = vector.broadcast %cst_576 : f32 to vector<8x256xf32>
    %1427 = arith.mulf %1426, %1423 : vector<8x256xf32>
    %1428 = arith.select %1425, %1423, %1427 : vector<8x256xi1>, vector<8x256xf32>
    %1429 = arith.mulf %1022, %1369 : vector<8x256xf32>
    %cst_577 = arith.constant 1.000000e+00 : f32
    %1430 = vector.broadcast %cst_577 : f32 to vector<8x256xf32>
    %1431 = arith.subf %1430, %1369 : vector<8x256xf32>
    %1432 = arith.mulf %1428, %1431 : vector<8x256xf32>
    %1433 = arith.addf %1429, %1432 : vector<8x256xf32>
    %c17_i32_578 = arith.constant 17 : i32
    %1434 = tpu.dynamic_rotate %1433 by %c17_i32_578 dim 1 : vector<8x256xf32>, i32 -> vector<8x256xf32>
    %cst_579 = arith.constant 0.000000e+00 : f32
    %1435 = vector.shape_cast %3 : vector<1x256xi1> to vector<1x256xi1>
    %1436 = vector.broadcast %1435 : vector<1x256xi1> to vector<8x256xi1>
    %1437 = vector.broadcast %cst_579 : f32 to vector<8x256xf32>
    %1438 = arith.select %1436, %1434, %1437 : vector<8x256xi1>, vector<8x256xf32>
    %c16_i32_580 = arith.constant 16 : i32
    %1439 = tpu.dynamic_rotate %1433 by %c16_i32_580 dim 1 : vector<8x256xf32>, i32 -> vector<8x256xf32>
    %cst_581 = arith.constant 0.000000e+00 : f32
    %1440 = vector.shape_cast %6 : vector<1x256xi1> to vector<1x256xi1>
    %1441 = vector.broadcast %1440 : vector<1x256xi1> to vector<8x256xi1>
    %1442 = vector.broadcast %cst_581 : f32 to vector<8x256xf32>
    %1443 = arith.select %1441, %1439, %1442 : vector<8x256xi1>, vector<8x256xf32>
    %c15_i32_582 = arith.constant 15 : i32
    %1444 = tpu.dynamic_rotate %1433 by %c15_i32_582 dim 1 : vector<8x256xf32>, i32 -> vector<8x256xf32>
    %cst_583 = arith.constant 0.000000e+00 : f32
    %1445 = vector.shape_cast %9 : vector<1x256xi1> to vector<1x256xi1>
    %1446 = vector.broadcast %1445 : vector<1x256xi1> to vector<8x256xi1>
    %1447 = vector.broadcast %cst_583 : f32 to vector<8x256xf32>
    %1448 = arith.select %1446, %1444, %1447 : vector<8x256xi1>, vector<8x256xf32>
    %c1_i32_584 = arith.constant 1 : i32
    %1449 = tpu.dynamic_rotate %1433 by %c1_i32_584 dim 1 : vector<8x256xf32>, i32 -> vector<8x256xf32>
    %cst_585 = arith.constant 0.000000e+00 : f32
    %1450 = vector.shape_cast %12 : vector<1x256xi1> to vector<1x256xi1>
    %1451 = vector.broadcast %1450 : vector<1x256xi1> to vector<8x256xi1>
    %1452 = vector.broadcast %cst_585 : f32 to vector<8x256xf32>
    %1453 = arith.select %1451, %1449, %1452 : vector<8x256xi1>, vector<8x256xf32>
    %c255_i32_586 = arith.constant 255 : i32
    %1454 = tpu.dynamic_rotate %1433 by %c255_i32_586 dim 1 : vector<8x256xf32>, i32 -> vector<8x256xf32>
    %cst_587 = arith.constant 0.000000e+00 : f32
    %1455 = vector.shape_cast %15 : vector<1x256xi1> to vector<1x256xi1>
    %1456 = vector.broadcast %1455 : vector<1x256xi1> to vector<8x256xi1>
    %1457 = vector.broadcast %cst_587 : f32 to vector<8x256xf32>
    %1458 = arith.select %1456, %1454, %1457 : vector<8x256xi1>, vector<8x256xf32>
    %c241_i32_588 = arith.constant 241 : i32
    %1459 = tpu.dynamic_rotate %1433 by %c241_i32_588 dim 1 : vector<8x256xf32>, i32 -> vector<8x256xf32>
    %cst_589 = arith.constant 0.000000e+00 : f32
    %1460 = vector.shape_cast %18 : vector<1x256xi1> to vector<1x256xi1>
    %1461 = vector.broadcast %1460 : vector<1x256xi1> to vector<8x256xi1>
    %1462 = vector.broadcast %cst_589 : f32 to vector<8x256xf32>
    %1463 = arith.select %1461, %1459, %1462 : vector<8x256xi1>, vector<8x256xf32>
    %c240_i32_590 = arith.constant 240 : i32
    %1464 = tpu.dynamic_rotate %1433 by %c240_i32_590 dim 1 : vector<8x256xf32>, i32 -> vector<8x256xf32>
    %cst_591 = arith.constant 0.000000e+00 : f32
    %1465 = vector.shape_cast %21 : vector<1x256xi1> to vector<1x256xi1>
    %1466 = vector.broadcast %1465 : vector<1x256xi1> to vector<8x256xi1>
    %1467 = vector.broadcast %cst_591 : f32 to vector<8x256xf32>
    %1468 = arith.select %1466, %1464, %1467 : vector<8x256xi1>, vector<8x256xf32>
    %c239_i32_592 = arith.constant 239 : i32
    %1469 = tpu.dynamic_rotate %1433 by %c239_i32_592 dim 1 : vector<8x256xf32>, i32 -> vector<8x256xf32>
    %cst_593 = arith.constant 0.000000e+00 : f32
    %1470 = vector.shape_cast %24 : vector<1x256xi1> to vector<1x256xi1>
    %1471 = vector.broadcast %1470 : vector<1x256xi1> to vector<8x256xi1>
    %1472 = vector.broadcast %cst_593 : f32 to vector<8x256xf32>
    %1473 = arith.select %1471, %1469, %1472 : vector<8x256xi1>, vector<8x256xf32>
    %1474 = tpu.concatenate %1438, %1443, %1448, %1453, %1433, %1458, %1463, %1468, %1473 in 0 : vector<8x256xf32>, vector<8x256xf32>, vector<8x256xf32>, vector<8x256xf32>, vector<8x256xf32>, vector<8x256xf32>, vector<8x256xf32>, vector<8x256xf32>, vector<8x256xf32> -> vector<72x256xf32>
    %c0_594 = arith.constant 0 : index
    %c0_595 = arith.constant 0 : index
    %1475 = vector.load %arg45[%c0_594, %c0_595] : memref<8x72xbf16, #tpu.memory_space<vmem>>, vector<8x72xbf16>
    %1476 = arith.truncf %1474 : vector<72x256xf32> to vector<72x256xbf16>
    %cst_596 = arith.constant dense<0.000000e+00> : vector<8x256xf32>
    %1477 = tpu.matmul %1475, %1476, %cst_596 {dimension_numbers = #tpu.dot_dimension_numbers<[1], [0], [0], [1], [0, 0, 1, 1], [], []>} : vector<8x72xbf16>, vector<72x256xbf16>, vector<8x256xf32> -> vector<8x256xf32>
    %c0_597 = arith.constant 0 : index
    %c0_598 = arith.constant 0 : index
    %1478 = vector.load %arg46[%c0_597, %c0_598] : memref<8x1xf32, #tpu.memory_space<vmem>>, vector<8x1xf32>
    %1479 = vector.broadcast %1478 : vector<8x1xf32> to vector<8x256xf32>
    %1480 = arith.addf %1477, %1479 : vector<8x256xf32>
    %cst_599 = arith.constant 0.000000e+00 : f32
    %1481 = vector.broadcast %cst_599 : f32 to vector<8x256xf32>
    %1482 = arith.cmpf oge, %1480, %1481 : vector<8x256xf32>
    %cst_600 = arith.constant 0.00999999977 : f32
    %1483 = vector.broadcast %cst_600 : f32 to vector<8x256xf32>
    %1484 = arith.mulf %1483, %1480 : vector<8x256xf32>
    %1485 = arith.select %1482, %1480, %1484 : vector<8x256xi1>, vector<8x256xf32>
    %c17_i32_601 = arith.constant 17 : i32
    %1486 = tpu.dynamic_rotate %1485 by %c17_i32_601 dim 1 : vector<8x256xf32>, i32 -> vector<8x256xf32>
    %cst_602 = arith.constant 0.000000e+00 : f32
    %1487 = vector.shape_cast %3 : vector<1x256xi1> to vector<1x256xi1>
    %1488 = vector.broadcast %1487 : vector<1x256xi1> to vector<8x256xi1>
    %1489 = vector.broadcast %cst_602 : f32 to vector<8x256xf32>
    %1490 = arith.select %1488, %1486, %1489 : vector<8x256xi1>, vector<8x256xf32>
    %c16_i32_603 = arith.constant 16 : i32
    %1491 = tpu.dynamic_rotate %1485 by %c16_i32_603 dim 1 : vector<8x256xf32>, i32 -> vector<8x256xf32>
    %cst_604 = arith.constant 0.000000e+00 : f32
    %1492 = vector.shape_cast %6 : vector<1x256xi1> to vector<1x256xi1>
    %1493 = vector.broadcast %1492 : vector<1x256xi1> to vector<8x256xi1>
    %1494 = vector.broadcast %cst_604 : f32 to vector<8x256xf32>
    %1495 = arith.select %1493, %1491, %1494 : vector<8x256xi1>, vector<8x256xf32>
    %c15_i32_605 = arith.constant 15 : i32
    %1496 = tpu.dynamic_rotate %1485 by %c15_i32_605 dim 1 : vector<8x256xf32>, i32 -> vector<8x256xf32>
    %cst_606 = arith.constant 0.000000e+00 : f32
    %1497 = vector.shape_cast %9 : vector<1x256xi1> to vector<1x256xi1>
    %1498 = vector.broadcast %1497 : vector<1x256xi1> to vector<8x256xi1>
    %1499 = vector.broadcast %cst_606 : f32 to vector<8x256xf32>
    %1500 = arith.select %1498, %1496, %1499 : vector<8x256xi1>, vector<8x256xf32>
    %c1_i32_607 = arith.constant 1 : i32
    %1501 = tpu.dynamic_rotate %1485 by %c1_i32_607 dim 1 : vector<8x256xf32>, i32 -> vector<8x256xf32>
    %cst_608 = arith.constant 0.000000e+00 : f32
    %1502 = vector.shape_cast %12 : vector<1x256xi1> to vector<1x256xi1>
    %1503 = vector.broadcast %1502 : vector<1x256xi1> to vector<8x256xi1>
    %1504 = vector.broadcast %cst_608 : f32 to vector<8x256xf32>
    %1505 = arith.select %1503, %1501, %1504 : vector<8x256xi1>, vector<8x256xf32>
    %c255_i32_609 = arith.constant 255 : i32
    %1506 = tpu.dynamic_rotate %1485 by %c255_i32_609 dim 1 : vector<8x256xf32>, i32 -> vector<8x256xf32>
    %cst_610 = arith.constant 0.000000e+00 : f32
    %1507 = vector.shape_cast %15 : vector<1x256xi1> to vector<1x256xi1>
    %1508 = vector.broadcast %1507 : vector<1x256xi1> to vector<8x256xi1>
    %1509 = vector.broadcast %cst_610 : f32 to vector<8x256xf32>
    %1510 = arith.select %1508, %1506, %1509 : vector<8x256xi1>, vector<8x256xf32>
    %c241_i32_611 = arith.constant 241 : i32
    %1511 = tpu.dynamic_rotate %1485 by %c241_i32_611 dim 1 : vector<8x256xf32>, i32 -> vector<8x256xf32>
    %cst_612 = arith.constant 0.000000e+00 : f32
    %1512 = vector.shape_cast %18 : vector<1x256xi1> to vector<1x256xi1>
    %1513 = vector.broadcast %1512 : vector<1x256xi1> to vector<8x256xi1>
    %1514 = vector.broadcast %cst_612 : f32 to vector<8x256xf32>
    %1515 = arith.select %1513, %1511, %1514 : vector<8x256xi1>, vector<8x256xf32>
    %c240_i32_613 = arith.constant 240 : i32
    %1516 = tpu.dynamic_rotate %1485 by %c240_i32_613 dim 1 : vector<8x256xf32>, i32 -> vector<8x256xf32>
    %cst_614 = arith.constant 0.000000e+00 : f32
    %1517 = vector.shape_cast %21 : vector<1x256xi1> to vector<1x256xi1>
    %1518 = vector.broadcast %1517 : vector<1x256xi1> to vector<8x256xi1>
    %1519 = vector.broadcast %cst_614 : f32 to vector<8x256xf32>
    %1520 = arith.select %1518, %1516, %1519 : vector<8x256xi1>, vector<8x256xf32>
    %c239_i32_615 = arith.constant 239 : i32
    %1521 = tpu.dynamic_rotate %1485 by %c239_i32_615 dim 1 : vector<8x256xf32>, i32 -> vector<8x256xf32>
    %cst_616 = arith.constant 0.000000e+00 : f32
    %1522 = vector.shape_cast %24 : vector<1x256xi1> to vector<1x256xi1>
    %1523 = vector.broadcast %1522 : vector<1x256xi1> to vector<8x256xi1>
    %1524 = vector.broadcast %cst_616 : f32 to vector<8x256xf32>
    %1525 = arith.select %1523, %1521, %1524 : vector<8x256xi1>, vector<8x256xf32>
    %c17_i32_617 = arith.constant 17 : i32
    %1526 = tpu.dynamic_rotate %1240 by %c17_i32_617 dim 1 : vector<8x256xf32>, i32 -> vector<8x256xf32>
    %cst_618 = arith.constant 0.000000e+00 : f32
    %1527 = vector.shape_cast %3 : vector<1x256xi1> to vector<1x256xi1>
    %1528 = vector.broadcast %1527 : vector<1x256xi1> to vector<8x256xi1>
    %1529 = vector.broadcast %cst_618 : f32 to vector<8x256xf32>
    %1530 = arith.select %1528, %1526, %1529 : vector<8x256xi1>, vector<8x256xf32>
    %c16_i32_619 = arith.constant 16 : i32
    %1531 = tpu.dynamic_rotate %1240 by %c16_i32_619 dim 1 : vector<8x256xf32>, i32 -> vector<8x256xf32>
    %cst_620 = arith.constant 0.000000e+00 : f32
    %1532 = vector.shape_cast %6 : vector<1x256xi1> to vector<1x256xi1>
    %1533 = vector.broadcast %1532 : vector<1x256xi1> to vector<8x256xi1>
    %1534 = vector.broadcast %cst_620 : f32 to vector<8x256xf32>
    %1535 = arith.select %1533, %1531, %1534 : vector<8x256xi1>, vector<8x256xf32>
    %c15_i32_621 = arith.constant 15 : i32
    %1536 = tpu.dynamic_rotate %1240 by %c15_i32_621 dim 1 : vector<8x256xf32>, i32 -> vector<8x256xf32>
    %cst_622 = arith.constant 0.000000e+00 : f32
    %1537 = vector.shape_cast %9 : vector<1x256xi1> to vector<1x256xi1>
    %1538 = vector.broadcast %1537 : vector<1x256xi1> to vector<8x256xi1>
    %1539 = vector.broadcast %cst_622 : f32 to vector<8x256xf32>
    %1540 = arith.select %1538, %1536, %1539 : vector<8x256xi1>, vector<8x256xf32>
    %c1_i32_623 = arith.constant 1 : i32
    %1541 = tpu.dynamic_rotate %1240 by %c1_i32_623 dim 1 : vector<8x256xf32>, i32 -> vector<8x256xf32>
    %cst_624 = arith.constant 0.000000e+00 : f32
    %1542 = vector.shape_cast %12 : vector<1x256xi1> to vector<1x256xi1>
    %1543 = vector.broadcast %1542 : vector<1x256xi1> to vector<8x256xi1>
    %1544 = vector.broadcast %cst_624 : f32 to vector<8x256xf32>
    %1545 = arith.select %1543, %1541, %1544 : vector<8x256xi1>, vector<8x256xf32>
    %c255_i32_625 = arith.constant 255 : i32
    %1546 = tpu.dynamic_rotate %1240 by %c255_i32_625 dim 1 : vector<8x256xf32>, i32 -> vector<8x256xf32>
    %cst_626 = arith.constant 0.000000e+00 : f32
    %1547 = vector.shape_cast %15 : vector<1x256xi1> to vector<1x256xi1>
    %1548 = vector.broadcast %1547 : vector<1x256xi1> to vector<8x256xi1>
    %1549 = vector.broadcast %cst_626 : f32 to vector<8x256xf32>
    %1550 = arith.select %1548, %1546, %1549 : vector<8x256xi1>, vector<8x256xf32>
    %c241_i32_627 = arith.constant 241 : i32
    %1551 = tpu.dynamic_rotate %1240 by %c241_i32_627 dim 1 : vector<8x256xf32>, i32 -> vector<8x256xf32>
    %cst_628 = arith.constant 0.000000e+00 : f32
    %1552 = vector.shape_cast %18 : vector<1x256xi1> to vector<1x256xi1>
    %1553 = vector.broadcast %1552 : vector<1x256xi1> to vector<8x256xi1>
    %1554 = vector.broadcast %cst_628 : f32 to vector<8x256xf32>
    %1555 = arith.select %1553, %1551, %1554 : vector<8x256xi1>, vector<8x256xf32>
    %c240_i32_629 = arith.constant 240 : i32
    %1556 = tpu.dynamic_rotate %1240 by %c240_i32_629 dim 1 : vector<8x256xf32>, i32 -> vector<8x256xf32>
    %cst_630 = arith.constant 0.000000e+00 : f32
    %1557 = vector.shape_cast %21 : vector<1x256xi1> to vector<1x256xi1>
    %1558 = vector.broadcast %1557 : vector<1x256xi1> to vector<8x256xi1>
    %1559 = vector.broadcast %cst_630 : f32 to vector<8x256xf32>
    %1560 = arith.select %1558, %1556, %1559 : vector<8x256xi1>, vector<8x256xf32>
    %c239_i32_631 = arith.constant 239 : i32
    %1561 = tpu.dynamic_rotate %1240 by %c239_i32_631 dim 1 : vector<8x256xf32>, i32 -> vector<8x256xf32>
    %cst_632 = arith.constant 0.000000e+00 : f32
    %1562 = vector.shape_cast %24 : vector<1x256xi1> to vector<1x256xi1>
    %1563 = vector.broadcast %1562 : vector<1x256xi1> to vector<8x256xi1>
    %1564 = vector.broadcast %cst_632 : f32 to vector<8x256xf32>
    %1565 = arith.select %1563, %1561, %1564 : vector<8x256xi1>, vector<8x256xf32>
    %1566 = tpu.concatenate %1490, %1495, %1500, %1505, %1485, %1510, %1515, %1520, %1525, %1530, %1535, %1540, %1545, %1240, %1550, %1555 in 0 : vector<8x256xf32>, vector<8x256xf32>, vector<8x256xf32>, vector<8x256xf32>, vector<8x256xf32>, vector<8x256xf32>, vector<8x256xf32>, vector<8x256xf32>, vector<8x256xf32>, vector<8x256xf32>, vector<8x256xf32>, vector<8x256xf32>, vector<8x256xf32>, vector<8x256xf32>, vector<8x256xf32>, vector<8x256xf32> -> vector<128x256xf32>
    %1567 = tpu.concatenate %1560, %1565 in 0 : vector<8x256xf32>, vector<8x256xf32> -> vector<16x256xf32>
    %1568 = tpu.concatenate %1566, %1567 in 0 : vector<128x256xf32>, vector<16x256xf32> -> vector<144x256xf32>
    %c0_633 = arith.constant 0 : index
    %c0_634 = arith.constant 0 : index
    %1569 = vector.load %arg47[%c0_633, %c0_634] : memref<16x144xbf16, #tpu.memory_space<vmem>>, vector<16x144xbf16>
    %1570 = arith.truncf %1568 : vector<144x256xf32> to vector<144x256xbf16>
    %cst_635 = arith.constant dense<0.000000e+00> : vector<16x256xf32>
    %1571 = tpu.matmul %1569, %1570, %cst_635 {dimension_numbers = #tpu.dot_dimension_numbers<[1], [0], [0], [1], [0, 0, 1, 1], [], []>} : vector<16x144xbf16>, vector<144x256xbf16>, vector<16x256xf32> -> vector<16x256xf32>
    %c0_636 = arith.constant 0 : index
    %c0_637 = arith.constant 0 : index
    %1572 = vector.load %arg48[%c0_636, %c0_637] : memref<16x1xf32, #tpu.memory_space<vmem>>, vector<16x1xf32>
    %1573 = vector.broadcast %1572 : vector<16x1xf32> to vector<16x256xf32>
    %1574 = arith.addf %1571, %1573 : vector<16x256xf32>
    %cst_638 = arith.constant 0.000000e+00 : f32
    %1575 = vector.broadcast %cst_638 : f32 to vector<16x256xf32>
    %1576 = arith.cmpf oge, %1574, %1575 : vector<16x256xf32>
    %cst_639 = arith.constant 0.00999999977 : f32
    %1577 = vector.broadcast %cst_639 : f32 to vector<16x256xf32>
    %1578 = arith.mulf %1577, %1574 : vector<16x256xf32>
    %1579 = arith.select %1576, %1574, %1578 : vector<16x256xi1>, vector<16x256xf32>
    %1580 = vector.extract_strided_slice %1579 {offsets = [0, 0], sizes = [8, 256], strides = [1, 1]} : vector<16x256xf32> to vector<8x256xf32>
    %1581 = arith.negf %1580 : vector<8x256xf32>
    %1582 = math.exp %1581 : vector<8x256xf32>
    %cst_640 = arith.constant 1.000000e+00 : f32
    %1583 = vector.broadcast %cst_640 : f32 to vector<8x256xf32>
    %1584 = arith.addf %1583, %1582 : vector<8x256xf32>
    %1585 = arith.divf %1583, %1584 : vector<8x256xf32>
    %1586 = vector.extract_strided_slice %1579 {offsets = [8, 0], sizes = [8, 256], strides = [1, 1]} : vector<16x256xf32> to vector<8x256xf32>
    %1587 = arith.negf %1586 : vector<8x256xf32>
    %1588 = math.exp %1587 : vector<8x256xf32>
    %cst_641 = arith.constant 1.000000e+00 : f32
    %1589 = vector.broadcast %cst_641 : f32 to vector<8x256xf32>
    %1590 = arith.addf %1589, %1588 : vector<8x256xf32>
    %1591 = arith.divf %1589, %1590 : vector<8x256xf32>
    %1592 = arith.mulf %1240, %1591 : vector<8x256xf32>
    %c17_i32_642 = arith.constant 17 : i32
    %1593 = tpu.dynamic_rotate %1592 by %c17_i32_642 dim 1 : vector<8x256xf32>, i32 -> vector<8x256xf32>
    %cst_643 = arith.constant 0.000000e+00 : f32
    %1594 = vector.shape_cast %3 : vector<1x256xi1> to vector<1x256xi1>
    %1595 = vector.broadcast %1594 : vector<1x256xi1> to vector<8x256xi1>
    %1596 = vector.broadcast %cst_643 : f32 to vector<8x256xf32>
    %1597 = arith.select %1595, %1593, %1596 : vector<8x256xi1>, vector<8x256xf32>
    %c16_i32_644 = arith.constant 16 : i32
    %1598 = tpu.dynamic_rotate %1592 by %c16_i32_644 dim 1 : vector<8x256xf32>, i32 -> vector<8x256xf32>
    %cst_645 = arith.constant 0.000000e+00 : f32
    %1599 = vector.shape_cast %6 : vector<1x256xi1> to vector<1x256xi1>
    %1600 = vector.broadcast %1599 : vector<1x256xi1> to vector<8x256xi1>
    %1601 = vector.broadcast %cst_645 : f32 to vector<8x256xf32>
    %1602 = arith.select %1600, %1598, %1601 : vector<8x256xi1>, vector<8x256xf32>
    %c15_i32_646 = arith.constant 15 : i32
    %1603 = tpu.dynamic_rotate %1592 by %c15_i32_646 dim 1 : vector<8x256xf32>, i32 -> vector<8x256xf32>
    %cst_647 = arith.constant 0.000000e+00 : f32
    %1604 = vector.shape_cast %9 : vector<1x256xi1> to vector<1x256xi1>
    %1605 = vector.broadcast %1604 : vector<1x256xi1> to vector<8x256xi1>
    %1606 = vector.broadcast %cst_647 : f32 to vector<8x256xf32>
    %1607 = arith.select %1605, %1603, %1606 : vector<8x256xi1>, vector<8x256xf32>
    %c1_i32_648 = arith.constant 1 : i32
    %1608 = tpu.dynamic_rotate %1592 by %c1_i32_648 dim 1 : vector<8x256xf32>, i32 -> vector<8x256xf32>
    %cst_649 = arith.constant 0.000000e+00 : f32
    %1609 = vector.shape_cast %12 : vector<1x256xi1> to vector<1x256xi1>
    %1610 = vector.broadcast %1609 : vector<1x256xi1> to vector<8x256xi1>
    %1611 = vector.broadcast %cst_649 : f32 to vector<8x256xf32>
    %1612 = arith.select %1610, %1608, %1611 : vector<8x256xi1>, vector<8x256xf32>
    %c255_i32_650 = arith.constant 255 : i32
    %1613 = tpu.dynamic_rotate %1592 by %c255_i32_650 dim 1 : vector<8x256xf32>, i32 -> vector<8x256xf32>
    %cst_651 = arith.constant 0.000000e+00 : f32
    %1614 = vector.shape_cast %15 : vector<1x256xi1> to vector<1x256xi1>
    %1615 = vector.broadcast %1614 : vector<1x256xi1> to vector<8x256xi1>
    %1616 = vector.broadcast %cst_651 : f32 to vector<8x256xf32>
    %1617 = arith.select %1615, %1613, %1616 : vector<8x256xi1>, vector<8x256xf32>
    %c241_i32_652 = arith.constant 241 : i32
    %1618 = tpu.dynamic_rotate %1592 by %c241_i32_652 dim 1 : vector<8x256xf32>, i32 -> vector<8x256xf32>
    %cst_653 = arith.constant 0.000000e+00 : f32
    %1619 = vector.shape_cast %18 : vector<1x256xi1> to vector<1x256xi1>
    %1620 = vector.broadcast %1619 : vector<1x256xi1> to vector<8x256xi1>
    %1621 = vector.broadcast %cst_653 : f32 to vector<8x256xf32>
    %1622 = arith.select %1620, %1618, %1621 : vector<8x256xi1>, vector<8x256xf32>
    %c240_i32_654 = arith.constant 240 : i32
    %1623 = tpu.dynamic_rotate %1592 by %c240_i32_654 dim 1 : vector<8x256xf32>, i32 -> vector<8x256xf32>
    %cst_655 = arith.constant 0.000000e+00 : f32
    %1624 = vector.shape_cast %21 : vector<1x256xi1> to vector<1x256xi1>
    %1625 = vector.broadcast %1624 : vector<1x256xi1> to vector<8x256xi1>
    %1626 = vector.broadcast %cst_655 : f32 to vector<8x256xf32>
    %1627 = arith.select %1625, %1623, %1626 : vector<8x256xi1>, vector<8x256xf32>
    %c239_i32_656 = arith.constant 239 : i32
    %1628 = tpu.dynamic_rotate %1592 by %c239_i32_656 dim 1 : vector<8x256xf32>, i32 -> vector<8x256xf32>
    %cst_657 = arith.constant 0.000000e+00 : f32
    %1629 = vector.shape_cast %24 : vector<1x256xi1> to vector<1x256xi1>
    %1630 = vector.broadcast %1629 : vector<1x256xi1> to vector<8x256xi1>
    %1631 = vector.broadcast %cst_657 : f32 to vector<8x256xf32>
    %1632 = arith.select %1630, %1628, %1631 : vector<8x256xi1>, vector<8x256xf32>
    %1633 = tpu.concatenate %1490, %1495, %1500, %1505, %1485, %1510, %1515, %1520, %1525, %1597, %1602, %1607, %1612, %1592, %1617, %1622 in 0 : vector<8x256xf32>, vector<8x256xf32>, vector<8x256xf32>, vector<8x256xf32>, vector<8x256xf32>, vector<8x256xf32>, vector<8x256xf32>, vector<8x256xf32>, vector<8x256xf32>, vector<8x256xf32>, vector<8x256xf32>, vector<8x256xf32>, vector<8x256xf32>, vector<8x256xf32>, vector<8x256xf32>, vector<8x256xf32> -> vector<128x256xf32>
    %1634 = tpu.concatenate %1627, %1632 in 0 : vector<8x256xf32>, vector<8x256xf32> -> vector<16x256xf32>
    %1635 = tpu.concatenate %1633, %1634 in 0 : vector<128x256xf32>, vector<16x256xf32> -> vector<144x256xf32>
    %c0_658 = arith.constant 0 : index
    %c0_659 = arith.constant 0 : index
    %1636 = vector.load %arg49[%c0_658, %c0_659] : memref<8x144xbf16, #tpu.memory_space<vmem>>, vector<8x144xbf16>
    %1637 = arith.truncf %1635 : vector<144x256xf32> to vector<144x256xbf16>
    %cst_660 = arith.constant dense<0.000000e+00> : vector<8x256xf32>
    %1638 = tpu.matmul %1636, %1637, %cst_660 {dimension_numbers = #tpu.dot_dimension_numbers<[1], [0], [0], [1], [0, 0, 1, 1], [], []>} : vector<8x144xbf16>, vector<144x256xbf16>, vector<8x256xf32> -> vector<8x256xf32>
    %c0_661 = arith.constant 0 : index
    %c0_662 = arith.constant 0 : index
    %1639 = vector.load %arg50[%c0_661, %c0_662] : memref<8x1xf32, #tpu.memory_space<vmem>>, vector<8x1xf32>
    %1640 = vector.broadcast %1639 : vector<8x1xf32> to vector<8x256xf32>
    %1641 = arith.addf %1638, %1640 : vector<8x256xf32>
    %cst_663 = arith.constant 0.000000e+00 : f32
    %1642 = vector.broadcast %cst_663 : f32 to vector<8x256xf32>
    %1643 = arith.cmpf oge, %1641, %1642 : vector<8x256xf32>
    %cst_664 = arith.constant 4.000000e-02 : f32
    %1644 = vector.broadcast %cst_664 : f32 to vector<8x256xf32>
    %1645 = arith.mulf %1644, %1641 : vector<8x256xf32>
    %1646 = arith.select %1643, %1641, %1645 : vector<8x256xi1>, vector<8x256xf32>
    %1647 = arith.mulf %1240, %1585 : vector<8x256xf32>
    %cst_665 = arith.constant 1.000000e+00 : f32
    %1648 = vector.broadcast %cst_665 : f32 to vector<8x256xf32>
    %1649 = arith.subf %1648, %1585 : vector<8x256xf32>
    %1650 = arith.mulf %1646, %1649 : vector<8x256xf32>
    %1651 = arith.addf %1647, %1650 : vector<8x256xf32>
    %c17_i32_666 = arith.constant 17 : i32
    %1652 = tpu.dynamic_rotate %1651 by %c17_i32_666 dim 1 : vector<8x256xf32>, i32 -> vector<8x256xf32>
    %cst_667 = arith.constant 0.000000e+00 : f32
    %1653 = vector.shape_cast %3 : vector<1x256xi1> to vector<1x256xi1>
    %1654 = vector.broadcast %1653 : vector<1x256xi1> to vector<8x256xi1>
    %1655 = vector.broadcast %cst_667 : f32 to vector<8x256xf32>
    %1656 = arith.select %1654, %1652, %1655 : vector<8x256xi1>, vector<8x256xf32>
    %c16_i32_668 = arith.constant 16 : i32
    %1657 = tpu.dynamic_rotate %1651 by %c16_i32_668 dim 1 : vector<8x256xf32>, i32 -> vector<8x256xf32>
    %cst_669 = arith.constant 0.000000e+00 : f32
    %1658 = vector.shape_cast %6 : vector<1x256xi1> to vector<1x256xi1>
    %1659 = vector.broadcast %1658 : vector<1x256xi1> to vector<8x256xi1>
    %1660 = vector.broadcast %cst_669 : f32 to vector<8x256xf32>
    %1661 = arith.select %1659, %1657, %1660 : vector<8x256xi1>, vector<8x256xf32>
    %c15_i32_670 = arith.constant 15 : i32
    %1662 = tpu.dynamic_rotate %1651 by %c15_i32_670 dim 1 : vector<8x256xf32>, i32 -> vector<8x256xf32>
    %cst_671 = arith.constant 0.000000e+00 : f32
    %1663 = vector.shape_cast %9 : vector<1x256xi1> to vector<1x256xi1>
    %1664 = vector.broadcast %1663 : vector<1x256xi1> to vector<8x256xi1>
    %1665 = vector.broadcast %cst_671 : f32 to vector<8x256xf32>
    %1666 = arith.select %1664, %1662, %1665 : vector<8x256xi1>, vector<8x256xf32>
    %c1_i32_672 = arith.constant 1 : i32
    %1667 = tpu.dynamic_rotate %1651 by %c1_i32_672 dim 1 : vector<8x256xf32>, i32 -> vector<8x256xf32>
    %cst_673 = arith.constant 0.000000e+00 : f32
    %1668 = vector.shape_cast %12 : vector<1x256xi1> to vector<1x256xi1>
    %1669 = vector.broadcast %1668 : vector<1x256xi1> to vector<8x256xi1>
    %1670 = vector.broadcast %cst_673 : f32 to vector<8x256xf32>
    %1671 = arith.select %1669, %1667, %1670 : vector<8x256xi1>, vector<8x256xf32>
    %c255_i32_674 = arith.constant 255 : i32
    %1672 = tpu.dynamic_rotate %1651 by %c255_i32_674 dim 1 : vector<8x256xf32>, i32 -> vector<8x256xf32>
    %cst_675 = arith.constant 0.000000e+00 : f32
    %1673 = vector.shape_cast %15 : vector<1x256xi1> to vector<1x256xi1>
    %1674 = vector.broadcast %1673 : vector<1x256xi1> to vector<8x256xi1>
    %1675 = vector.broadcast %cst_675 : f32 to vector<8x256xf32>
    %1676 = arith.select %1674, %1672, %1675 : vector<8x256xi1>, vector<8x256xf32>
    %c241_i32_676 = arith.constant 241 : i32
    %1677 = tpu.dynamic_rotate %1651 by %c241_i32_676 dim 1 : vector<8x256xf32>, i32 -> vector<8x256xf32>
    %cst_677 = arith.constant 0.000000e+00 : f32
    %1678 = vector.shape_cast %18 : vector<1x256xi1> to vector<1x256xi1>
    %1679 = vector.broadcast %1678 : vector<1x256xi1> to vector<8x256xi1>
    %1680 = vector.broadcast %cst_677 : f32 to vector<8x256xf32>
    %1681 = arith.select %1679, %1677, %1680 : vector<8x256xi1>, vector<8x256xf32>
    %c240_i32_678 = arith.constant 240 : i32
    %1682 = tpu.dynamic_rotate %1651 by %c240_i32_678 dim 1 : vector<8x256xf32>, i32 -> vector<8x256xf32>
    %cst_679 = arith.constant 0.000000e+00 : f32
    %1683 = vector.shape_cast %21 : vector<1x256xi1> to vector<1x256xi1>
    %1684 = vector.broadcast %1683 : vector<1x256xi1> to vector<8x256xi1>
    %1685 = vector.broadcast %cst_679 : f32 to vector<8x256xf32>
    %1686 = arith.select %1684, %1682, %1685 : vector<8x256xi1>, vector<8x256xf32>
    %c239_i32_680 = arith.constant 239 : i32
    %1687 = tpu.dynamic_rotate %1651 by %c239_i32_680 dim 1 : vector<8x256xf32>, i32 -> vector<8x256xf32>
    %cst_681 = arith.constant 0.000000e+00 : f32
    %1688 = vector.shape_cast %24 : vector<1x256xi1> to vector<1x256xi1>
    %1689 = vector.broadcast %1688 : vector<1x256xi1> to vector<8x256xi1>
    %1690 = vector.broadcast %cst_681 : f32 to vector<8x256xf32>
    %1691 = arith.select %1689, %1687, %1690 : vector<8x256xi1>, vector<8x256xf32>
    %1692 = tpu.concatenate %1656, %1661, %1666, %1671, %1651, %1676, %1681, %1686, %1691 in 0 : vector<8x256xf32>, vector<8x256xf32>, vector<8x256xf32>, vector<8x256xf32>, vector<8x256xf32>, vector<8x256xf32>, vector<8x256xf32>, vector<8x256xf32>, vector<8x256xf32> -> vector<72x256xf32>
    %c0_682 = arith.constant 0 : index
    %c0_683 = arith.constant 0 : index
    %1693 = vector.load %arg51[%c0_682, %c0_683] : memref<8x72xbf16, #tpu.memory_space<vmem>>, vector<8x72xbf16>
    %1694 = arith.truncf %1692 : vector<72x256xf32> to vector<72x256xbf16>
    %cst_684 = arith.constant dense<0.000000e+00> : vector<8x256xf32>
    %1695 = tpu.matmul %1693, %1694, %cst_684 {dimension_numbers = #tpu.dot_dimension_numbers<[1], [0], [0], [1], [0, 0, 1, 1], [], []>} : vector<8x72xbf16>, vector<72x256xbf16>, vector<8x256xf32> -> vector<8x256xf32>
    %c0_685 = arith.constant 0 : index
    %c0_686 = arith.constant 0 : index
    %1696 = vector.load %arg52[%c0_685, %c0_686] : memref<8x1xf32, #tpu.memory_space<vmem>>, vector<8x1xf32>
    %1697 = vector.broadcast %1696 : vector<8x1xf32> to vector<8x256xf32>
    %1698 = arith.addf %1695, %1697 : vector<8x256xf32>
    %cst_687 = arith.constant 0.000000e+00 : f32
    %1699 = vector.broadcast %cst_687 : f32 to vector<8x256xf32>
    %1700 = arith.cmpf oge, %1698, %1699 : vector<8x256xf32>
    %cst_688 = arith.constant 0.00999999977 : f32
    %1701 = vector.broadcast %cst_688 : f32 to vector<8x256xf32>
    %1702 = arith.mulf %1701, %1698 : vector<8x256xf32>
    %1703 = arith.select %1700, %1698, %1702 : vector<8x256xi1>, vector<8x256xf32>
    %c0_689 = arith.constant 0 : index
    %c0_690 = arith.constant 0 : index
    %1704 = vector.load %arg53[%c0_689, %c0_690] : memref<1x8xbf16, #tpu.memory_space<vmem>>, vector<1x8xbf16>
    %1705 = arith.truncf %1703 : vector<8x256xf32> to vector<8x256xbf16>
    %cst_691 = arith.constant dense<0.000000e+00> : vector<1x256xf32>
    %1706 = tpu.matmul %1704, %1705, %cst_691 {dimension_numbers = #tpu.dot_dimension_numbers<[1], [0], [0], [1], [0, 0, 1, 1], [], []>} : vector<1x8xbf16>, vector<8x256xbf16>, vector<1x256xf32> -> vector<1x256xf32>
    %c0_692 = arith.constant 0 : index
    %c0_693 = arith.constant 0 : index
    %1707 = vector.load %arg54[%c0_692, %c0_693] : memref<1x1xf32, #tpu.memory_space<vmem>>, vector<1x1xf32>
    %1708 = vector.broadcast %1707 : vector<1x1xf32> to vector<1x256xf32>
    %1709 = arith.addf %1706, %1708 : vector<1x256xf32>
    %cst_694 = arith.constant 0.000000e+00 : f32
    %1710 = vector.broadcast %cst_694 : f32 to vector<1x256xf32>
    %1711 = arith.cmpf oge, %1709, %1710 : vector<1x256xf32>
    %cst_695 = arith.constant 0.00999999977 : f32
    %1712 = vector.broadcast %cst_695 : f32 to vector<1x256xf32>
    %1713 = arith.mulf %1712, %1709 : vector<1x256xf32>
    %1714 = arith.select %1711, %1709, %1713 : vector<1x256xi1>, vector<1x256xf32>
    %cst_696 = arith.constant 0.23025851 : f32
    %1715 = vector.broadcast %cst_696 : f32 to vector<1x256xf32>
    %1716 = arith.mulf %1714, %1715 : vector<1x256xf32>
    %cst_697 = arith.constant 5.29831743 : f32
    %1717 = vector.broadcast %cst_697 : f32 to vector<1x256xf32>
    %1718 = arith.subf %1716, %1717 : vector<1x256xf32>
    %cst_698 = arith.constant 6.250000e-01 : f32
    %1719 = vector.broadcast %cst_698 : f32 to vector<1x256xf32>
    %1720 = arith.mulf %1719, %1718 : vector<1x256xf32>
    %1721 = math.exp %1720 : vector<1x256xf32>
    %c1 = arith.constant 1 : index
    %c0_699 = arith.constant 0 : index
    %1722 = vector.load %arg55[%c1, %c0_699] : memref<2x256xf32, #tpu.memory_space<vmem>>, vector<1x256xf32>
    tpu.vector_store %arg55[%c1, %c0_699], %1721 {strides = array<i32>} : memref<2x256xf32, #tpu.memory_space<vmem>>, vector<1x256xf32>,
    return
  }
  func.func @transform_0(%arg0: i32) -> (i32, i32) {
    %c0_i32 = arith.constant 0 : i32
    %c0_i32_0 = arith.constant 0 : i32
    %c0_i32_1 = arith.constant 0 : i32
    return %c0_i32, %c0_i32_0 : i32, i32
  }
  func.func @transform_1(%arg0: i32) -> (i32, i32) {
    %c0_i32 = arith.constant 0 : i32
    %c0_i32_0 = arith.constant 0 : i32
    return %c0_i32, %arg0 : i32, i32
  }
  func.func @transform_2(%arg0: i32) -> (i32, i32) {
    %c0_i32 = arith.constant 0 : i32
    %c0_i32_0 = arith.constant 0 : i32
    %c0_i32_1 = arith.constant 0 : i32
    return %c0_i32, %c0_i32_0 : i32, i32
  }
  func.func @transform_3(%arg0: i32) -> (i32, i32) {
    %c0_i32 = arith.constant 0 : i32
    %c0_i32_0 = arith.constant 0 : i32
    %c0_i32_1 = arith.constant 0 : i32
    return %c0_i32, %c0_i32_0 : i32, i32
  }
  func.func @transform_4(%arg0: i32) -> (i32, i32) {
    %c0_i32 = arith.constant 0 : i32
    %c0_i32_0 = arith.constant 0 : i32
    %c0_i32_1 = arith.constant 0 : i32
    return %c0_i32, %c0_i32_0 : i32, i32
  }
  func.func @transform_5(%arg0: i32) -> (i32, i32) {
    %c0_i32 = arith.constant 0 : i32
    %c0_i32_0 = arith.constant 0 : i32
    %c0_i32_1 = arith.constant 0 : i32
    return %c0_i32, %c0_i32_0 : i32, i32
  }
  func.func @transform_6(%arg0: i32) -> (i32, i32) {
    %c0_i32 = arith.constant 0 : i32
    %c0_i32_0 = arith.constant 0 : i32
    %c0_i32_1 = arith.constant 0 : i32
    return %c0_i32, %c0_i32_0 : i32, i32
  }
  func.func @transform_7(%arg0: i32) -> (i32, i32) {
    %c0_i32 = arith.constant 0 : i32
    %c0_i32_0 = arith.constant 0 : i32
    %c0_i32_1 = arith.constant 0 : i32
    return %c0_i32, %c0_i32_0 : i32, i32
  }
  func.func @transform_8(%arg0: i32) -> (i32, i32) {
    %c0_i32 = arith.constant 0 : i32
    %c0_i32_0 = arith.constant 0 : i32
    %c0_i32_1 = arith.constant 0 : i32
    return %c0_i32, %c0_i32_0 : i32, i32
  }
  func.func @transform_9(%arg0: i32) -> (i32, i32) {
    %c0_i32 = arith.constant 0 : i32
    %c0_i32_0 = arith.constant 0 : i32
    %c0_i32_1 = arith.constant 0 : i32
    return %c0_i32, %c0_i32_0 : i32, i32
  }
  func.func @transform_10(%arg0: i32) -> (i32, i32) {
    %c0_i32 = arith.constant 0 : i32
    %c0_i32_0 = arith.constant 0 : i32
    %c0_i32_1 = arith.constant 0 : i32
    return %c0_i32, %c0_i32_0 : i32, i32
  }
  func.func @transform_11(%arg0: i32) -> (i32, i32) {
    %c0_i32 = arith.constant 0 : i32
    %c0_i32_0 = arith.constant 0 : i32
    %c0_i32_1 = arith.constant 0 : i32
    return %c0_i32, %c0_i32_0 : i32, i32
  }
  func.func @transform_12(%arg0: i32) -> (i32, i32) {
    %c0_i32 = arith.constant 0 : i32
    %c0_i32_0 = arith.constant 0 : i32
    %c0_i32_1 = arith.constant 0 : i32
    return %c0_i32, %c0_i32_0 : i32, i32
  }
  func.func @transform_13(%arg0: i32) -> (i32, i32) {
    %c0_i32 = arith.constant 0 : i32
    %c0_i32_0 = arith.constant 0 : i32
    %c0_i32_1 = arith.constant 0 : i32
    return %c0_i32, %c0_i32_0 : i32, i32
  }
  func.func @transform_14(%arg0: i32) -> (i32, i32) {
    %c0_i32 = arith.constant 0 : i32
    %c0_i32_0 = arith.constant 0 : i32
    %c0_i32_1 = arith.constant 0 : i32
    return %c0_i32, %c0_i32_0 : i32, i32
  }
  func.func @transform_15(%arg0: i32) -> (i32, i32) {
    %c0_i32 = arith.constant 0 : i32
    %c0_i32_0 = arith.constant 0 : i32
    %c0_i32_1 = arith.constant 0 : i32
    return %c0_i32, %c0_i32_0 : i32, i32
  }
  func.func @transform_16(%arg0: i32) -> (i32, i32) {
    %c0_i32 = arith.constant 0 : i32
    %c0_i32_0 = arith.constant 0 : i32
    %c0_i32_1 = arith.constant 0 : i32
    return %c0_i32, %c0_i32_0 : i32, i32
  }
  func.func @transform_17(%arg0: i32) -> (i32, i32) {
    %c0_i32 = arith.constant 0 : i32
    %c0_i32_0 = arith.constant 0 : i32
    %c0_i32_1 = arith.constant 0 : i32
    return %c0_i32, %c0_i32_0 : i32, i32
  }
  func.func @transform_18(%arg0: i32) -> (i32, i32) {
    %c0_i32 = arith.constant 0 : i32
    %c0_i32_0 = arith.constant 0 : i32
    %c0_i32_1 = arith.constant 0 : i32
    return %c0_i32, %c0_i32_0 : i32, i32
  }
  func.func @transform_19(%arg0: i32) -> (i32, i32) {
    %c0_i32 = arith.constant 0 : i32
    %c0_i32_0 = arith.constant 0 : i32
    %c0_i32_1 = arith.constant 0 : i32
    return %c0_i32, %c0_i32_0 : i32, i32
  }
  func.func @transform_20(%arg0: i32) -> (i32, i32) {
    %c0_i32 = arith.constant 0 : i32
    %c0_i32_0 = arith.constant 0 : i32
    %c0_i32_1 = arith.constant 0 : i32
    return %c0_i32, %c0_i32_0 : i32, i32
  }
  func.func @transform_21(%arg0: i32) -> (i32, i32) {
    %c0_i32 = arith.constant 0 : i32
    %c0_i32_0 = arith.constant 0 : i32
    %c0_i32_1 = arith.constant 0 : i32
    return %c0_i32, %c0_i32_0 : i32, i32
  }
  func.func @transform_22(%arg0: i32) -> (i32, i32) {
    %c0_i32 = arith.constant 0 : i32
    %c0_i32_0 = arith.constant 0 : i32
    %c0_i32_1 = arith.constant 0 : i32
    return %c0_i32, %c0_i32_0 : i32, i32
  }
  func.func @transform_23(%arg0: i32) -> (i32, i32) {
    %c0_i32 = arith.constant 0 : i32
    %c0_i32_0 = arith.constant 0 : i32
    %c0_i32_1 = arith.constant 0 : i32
    return %c0_i32, %c0_i32_0 : i32, i32
  }
  func.func @transform_24(%arg0: i32) -> (i32, i32) {
    %c0_i32 = arith.constant 0 : i32
    %c0_i32_0 = arith.constant 0 : i32
    %c0_i32_1 = arith.constant 0 : i32
    return %c0_i32, %c0_i32_0 : i32, i32
  }
  func.func @transform_25(%arg0: i32) -> (i32, i32) {
    %c0_i32 = arith.constant 0 : i32
    %c0_i32_0 = arith.constant 0 : i32
    %c0_i32_1 = arith.constant 0 : i32
    return %c0_i32, %c0_i32_0 : i32, i32
  }
  func.func @transform_26(%arg0: i32) -> (i32, i32) {
    %c0_i32 = arith.constant 0 : i32
    %c0_i32_0 = arith.constant 0 : i32
    %c0_i32_1 = arith.constant 0 : i32
    return %c0_i32, %c0_i32_0 : i32, i32
  }
  func.func @transform_27(%arg0: i32) -> (i32, i32) {
    %c0_i32 = arith.constant 0 : i32
    %c0_i32_0 = arith.constant 0 : i32
    %c0_i32_1 = arith.constant 0 : i32
    return %c0_i32, %c0_i32_0 : i32, i32
  }
  func.func @transform_28(%arg0: i32) -> (i32, i32) {
    %c0_i32 = arith.constant 0 : i32
    %c0_i32_0 = arith.constant 0 : i32
    %c0_i32_1 = arith.constant 0 : i32
    return %c0_i32, %c0_i32_0 : i32, i32
  }
  func.func @transform_29(%arg0: i32) -> (i32, i32) {
    %c0_i32 = arith.constant 0 : i32
    %c0_i32_0 = arith.constant 0 : i32
    %c0_i32_1 = arith.constant 0 : i32
    return %c0_i32, %c0_i32_0 : i32, i32
  }
  func.func @transform_30(%arg0: i32) -> (i32, i32) {
    %c0_i32 = arith.constant 0 : i32
    %c0_i32_0 = arith.constant 0 : i32
    %c0_i32_1 = arith.constant 0 : i32
    return %c0_i32, %c0_i32_0 : i32, i32
  }
  func.func @transform_31(%arg0: i32) -> (i32, i32) {
    %c0_i32 = arith.constant 0 : i32
    %c0_i32_0 = arith.constant 0 : i32
    %c0_i32_1 = arith.constant 0 : i32
    return %c0_i32, %c0_i32_0 : i32, i32
  }
  func.func @transform_32(%arg0: i32) -> (i32, i32) {
    %c0_i32 = arith.constant 0 : i32
    %c0_i32_0 = arith.constant 0 : i32
    %c0_i32_1 = arith.constant 0 : i32
    return %c0_i32, %c0_i32_0 : i32, i32
  }
  func.func @transform_33(%arg0: i32) -> (i32, i32) {
    %c0_i32 = arith.constant 0 : i32
    %c0_i32_0 = arith.constant 0 : i32
    %c0_i32_1 = arith.constant 0 : i32
    return %c0_i32, %c0_i32_0 : i32, i32
  }
  func.func @transform_34(%arg0: i32) -> (i32, i32) {
    %c0_i32 = arith.constant 0 : i32
    %c0_i32_0 = arith.constant 0 : i32
    %c0_i32_1 = arith.constant 0 : i32
    return %c0_i32, %c0_i32_0 : i32, i32
  }
  func.func @transform_35(%arg0: i32) -> (i32, i32) {
    %c0_i32 = arith.constant 0 : i32
    %c0_i32_0 = arith.constant 0 : i32
    %c0_i32_1 = arith.constant 0 : i32
    return %c0_i32, %c0_i32_0 : i32, i32
  }
  func.func @transform_36(%arg0: i32) -> (i32, i32) {
    %c0_i32 = arith.constant 0 : i32
    %c0_i32_0 = arith.constant 0 : i32
    %c0_i32_1 = arith.constant 0 : i32
    return %c0_i32, %c0_i32_0 : i32, i32
  }
  func.func @transform_37(%arg0: i32) -> (i32, i32) {
    %c0_i32 = arith.constant 0 : i32
    %c0_i32_0 = arith.constant 0 : i32
    %c0_i32_1 = arith.constant 0 : i32
    return %c0_i32, %c0_i32_0 : i32, i32
  }
  func.func @transform_38(%arg0: i32) -> (i32, i32) {
    %c0_i32 = arith.constant 0 : i32
    %c0_i32_0 = arith.constant 0 : i32
    %c0_i32_1 = arith.constant 0 : i32
    return %c0_i32, %c0_i32_0 : i32, i32
  }
  func.func @transform_39(%arg0: i32) -> (i32, i32) {
    %c0_i32 = arith.constant 0 : i32
    %c0_i32_0 = arith.constant 0 : i32
    %c0_i32_1 = arith.constant 0 : i32
    return %c0_i32, %c0_i32_0 : i32, i32
  }
  func.func @transform_40(%arg0: i32) -> (i32, i32) {
    %c0_i32 = arith.constant 0 : i32
    %c0_i32_0 = arith.constant 0 : i32
    %c0_i32_1 = arith.constant 0 : i32
    return %c0_i32, %c0_i32_0 : i32, i32
  }
  func.func @transform_41(%arg0: i32) -> (i32, i32) {
    %c0_i32 = arith.constant 0 : i32
    %c0_i32_0 = arith.constant 0 : i32
    %c0_i32_1 = arith.constant 0 : i32
    return %c0_i32, %c0_i32_0 : i32, i32
  }
  func.func @transform_42(%arg0: i32) -> (i32, i32) {
    %c0_i32 = arith.constant 0 : i32
    %c0_i32_0 = arith.constant 0 : i32
    %c0_i32_1 = arith.constant 0 : i32
    return %c0_i32, %c0_i32_0 : i32, i32
  }
  func.func @transform_43(%arg0: i32) -> (i32, i32) {
    %c0_i32 = arith.constant 0 : i32
    %c0_i32_0 = arith.constant 0 : i32
    %c0_i32_1 = arith.constant 0 : i32
    return %c0_i32, %c0_i32_0 : i32, i32
  }
  func.func @transform_44(%arg0: i32) -> (i32, i32) {
    %c0_i32 = arith.constant 0 : i32
    %c0_i32_0 = arith.constant 0 : i32
    %c0_i32_1 = arith.constant 0 : i32
    return %c0_i32, %c0_i32_0 : i32, i32
  }
  func.func @transform_45(%arg0: i32) -> (i32, i32) {
    %c0_i32 = arith.constant 0 : i32
    %c0_i32_0 = arith.constant 0 : i32
    %c0_i32_1 = arith.constant 0 : i32
    return %c0_i32, %c0_i32_0 : i32, i32
  }
  func.func @transform_46(%arg0: i32) -> (i32, i32) {
    %c0_i32 = arith.constant 0 : i32
    %c0_i32_0 = arith.constant 0 : i32
    %c0_i32_1 = arith.constant 0 : i32
    return %c0_i32, %c0_i32_0 : i32, i32
  }
  func.func @transform_47(%arg0: i32) -> (i32, i32) {
    %c0_i32 = arith.constant 0 : i32
    %c0_i32_0 = arith.constant 0 : i32
    %c0_i32_1 = arith.constant 0 : i32
    return %c0_i32, %c0_i32_0 : i32, i32
  }
  func.func @transform_48(%arg0: i32) -> (i32, i32) {
    %c0_i32 = arith.constant 0 : i32
    %c0_i32_0 = arith.constant 0 : i32
    %c0_i32_1 = arith.constant 0 : i32
    return %c0_i32, %c0_i32_0 : i32, i32
  }
  func.func @transform_49(%arg0: i32) -> (i32, i32) {
    %c0_i32 = arith.constant 0 : i32
    %c0_i32_0 = arith.constant 0 : i32
    %c0_i32_1 = arith.constant 0 : i32
    return %c0_i32, %c0_i32_0 : i32, i32
  }
  func.func @transform_50(%arg0: i32) -> (i32, i32) {
    %c0_i32 = arith.constant 0 : i32
    %c0_i32_0 = arith.constant 0 : i32
    %c0_i32_1 = arith.constant 0 : i32
    return %c0_i32, %c0_i32_0 : i32, i32
  }
  func.func @transform_51(%arg0: i32) -> (i32, i32) {
    %c0_i32 = arith.constant 0 : i32
    %c0_i32_0 = arith.constant 0 : i32
    %c0_i32_1 = arith.constant 0 : i32
    return %c0_i32, %c0_i32_0 : i32, i32
  }
  func.func @transform_52(%arg0: i32) -> (i32, i32) {
    %c0_i32 = arith.constant 0 : i32
    %c0_i32_0 = arith.constant 0 : i32
    %c0_i32_1 = arith.constant 0 : i32
    return %c0_i32, %c0_i32_0 : i32, i32
  }
  func.func @transform_53(%arg0: i32) -> (i32, i32) {
    %c0_i32 = arith.constant 0 : i32
    %c0_i32_0 = arith.constant 0 : i32
    %c0_i32_1 = arith.constant 0 : i32
    return %c0_i32, %c0_i32_0 : i32, i32
  }
  func.func @transform_54(%arg0: i32) -> (i32, i32) {
    %c0_i32 = arith.constant 0 : i32
    %c0_i32_0 = arith.constant 0 : i32
    return %c0_i32, %arg0 : i32, i32
  }
}

</mosaic_0001>

<llo_original>
// kernel: multi_unit_forward.1
$region0: #{multi_unit_forward.1}
  #allocation0 [shape = 'u32[]', space=smem, size = 0x4, offset = 0x4, fixed_abs, tag = 'smem constant byte address 0x4 - core index']
  #allocation1 [shape = 'u32[72,128]{1,0:T(1,128)}', space=vmem, size = 0x9000, scoped, tag = 'internal scratch']
  #allocation2 [shape = 'f32[1,1]{1,0:T(1,128)S(1)}', space=vmem, size = 0x200, scoped, tag = 'scoped memory for multi_unit_forward.1']
  #allocation3 [shape = 'f32[1,1]{1,0:T(1,128)S(1)}', space=vmem, size = 0x200, scoped, tag = 'scoped memory for multi_unit_forward.1']
  %s0 = inlined_call_operand.smem [shape: u32[55], index: -1, kind: input, shape index: {}]
  %s1 = sld [smem:[%s0]]
  %s2 = scalar_lea.smem %s0, 1
  %s3 = sld [smem:[%s2]]
  %s4 = scalar_lea.smem %s0, 2
  %s5 = sld [smem:[%s4]]
  %s6 = scalar_lea.smem %s0, 3
  %s7 = sld [smem:[%s6]]
  %s8 = scalar_lea.smem %s0, 4
  %s9 = sld [smem:[%s8]]
  %s10 = scalar_lea.smem %s0, 5
  %s11 = sld [smem:[%s10]]
  %s12 = scalar_lea.smem %s0, 6
  %s13 = sld [smem:[%s12]]
  %s14 = scalar_lea.smem %s0, 7
  %s15 = sld [smem:[%s14]]
  %s16 = scalar_lea.smem %s0, 8
  %s17 = sld [smem:[%s16]]
  %s18 = scalar_lea.smem %s0, 9
  %s19 = sld [smem:[%s18]]
  %s20 = scalar_lea.smem %s0, 10
  %s21 = sld [smem:[%s20]]
  %s22 = scalar_lea.smem %s0, 11
  %s23 = sld [smem:[%s22]]
  %s24 = scalar_lea.smem %s0, 12
  %s25 = sld [smem:[%s24]]
  %s26 = scalar_lea.smem %s0, 13
  %s27 = sld [smem:[%s26]]
  %s28 = scalar_lea.smem %s0, 14
  %s29 = sld [smem:[%s28]]
  %s30 = scalar_lea.smem %s0, 15
  %s31 = sld [smem:[%s30]]
  %s32 = scalar_lea.smem %s0, 16
  %s33 = sld [smem:[%s32]]
  %s34 = scalar_lea.smem %s0, 17
  %s35 = sld [smem:[%s34]]
  %s36 = scalar_lea.smem %s0, 18
  %s37 = sld [smem:[%s36]]
  %s38 = scalar_lea.smem %s0, 19
  %s39 = sld [smem:[%s38]]
  %s40 = scalar_lea.smem %s0, 20
  %s41 = sld [smem:[%s40]]
  %s42 = scalar_lea.smem %s0, 21
  %s43 = sld [smem:[%s42]]
  %s44 = scalar_lea.smem %s0, 22
  %s45 = sld [smem:[%s44]]
  %s46 = scalar_lea.smem %s0, 23
  %s47 = sld [smem:[%s46]]
  %s48 = scalar_lea.smem %s0, 24
  %s49 = sld [smem:[%s48]]
  %s50 = scalar_lea.smem %s0, 25
  %s51 = sld [smem:[%s50]]
  %s52 = scalar_lea.smem %s0, 26
  %s53 = sld [smem:[%s52]]
  %s54 = scalar_lea.smem %s0, 27
  %s55 = sld [smem:[%s54]]
  %s56 = scalar_lea.smem %s0, 28
  %s57 = sld [smem:[%s56]]
  %s58 = scalar_lea.smem %s0, 29
  %s59 = sld [smem:[%s58]]
  %s60 = scalar_lea.smem %s0, 30
  %s61 = sld [smem:[%s60]]
  %s62 = scalar_lea.smem %s0, 31
  %s63 = sld [smem:[%s62]]
  %s64 = scalar_lea.smem %s0, 32
  %s65 = sld [smem:[%s64]]
  %s66 = scalar_lea.smem %s0, 33
  %s67 = sld [smem:[%s66]]
  %s68 = scalar_lea.smem %s0, 34
  %s69 = sld [smem:[%s68]]
  %s70 = scalar_lea.smem %s0, 35
  %s71 = sld [smem:[%s70]]
  %s72 = scalar_lea.smem %s0, 36
  %s73 = sld [smem:[%s72]]
  %s74 = scalar_lea.smem %s0, 37
  %s75 = sld [smem:[%s74]]
  %s76 = scalar_lea.smem %s0, 38
  %s77 = sld [smem:[%s76]]
  %s78 = scalar_lea.smem %s0, 39
  %s79 = sld [smem:[%s78]]
  %s80 = scalar_lea.smem %s0, 40
  %s81 = sld [smem:[%s80]]
  %s82 = scalar_lea.smem %s0, 41
  %s83 = sld [smem:[%s82]]
  %s84 = scalar_lea.smem %s0, 42
  %s85 = sld [smem:[%s84]]
  %s86 = scalar_lea.smem %s0, 43
  %s87 = sld [smem:[%s86]]
  %s88 = scalar_lea.smem %s0, 44
  %s89 = sld [smem:[%s88]]
  %s90 = scalar_lea.smem %s0, 45
  %s91 = sld [smem:[%s90]]
  %s92 = scalar_lea.smem %s0, 46
  %s93 = sld [smem:[%s92]]
  %s94 = scalar_lea.smem %s0, 47
  %s95 = sld [smem:[%s94]]
  %s96 = scalar_lea.smem %s0, 48
  %s97 = sld [smem:[%s96]]
  %s98 = scalar_lea.smem %s0, 49
  %s99 = sld [smem:[%s98]]
  %s100 = scalar_lea.smem %s0, 50
  %s101 = sld [smem:[%s100]]
  %s102 = scalar_lea.smem %s0, 51
  %s103 = sld [smem:[%s102]]
  %s104 = scalar_lea.smem %s0, 52
  %s105 = sld [smem:[%s104]]
  %s106 = scalar_lea.smem %s0, 53
  %s107 = sld [smem:[%s106]]
  %s108 = scalar_lea.smem %s0, 54
  %s109 = sld [smem:[%s108]]
  %s110 = sld [smem:[#allocation0]]
  $region296: #{multi_unit_forward.1} parent=0
    _
  %s112 = ssub.s32 1, %s110
  %s113 = scalar_select 0, %s112, %s110
  %v114 = vstv %s79
  %115 = vst [vmem:[#allocation2] sm:$0x1] %v114
  %v116 = vstv %s107
  %117 = vst [vmem:[#allocation3] sm:$0x1] %v116
  $region1: #{multi_unit_forward.1} parent=0
    #allocation4 [shape = 'u8[32768]{0}', space=vmem, size = 0x8000, scoped, tag = 'input window, operand 1']
    #allocation5 [shape = 'u8[2048]{0}', space=vmem, size = 0x800, scoped, tag = 'input window, operand 28, single buffered']
    #allocation6 [shape = 's32[2]{0}', space=sflag, size = 0x8, scoped, tag = 'scoped memory for multi_unit_forward.1']
    #allocation7 [shape = 'u8[2048]{0}', space=vmem, size = 0x800, scoped, tag = 'input window, operand 30, single buffered']
    #allocation8 [shape = 's32[1]{0}', space=sflag, size = 0x4, scoped, tag = 'scoped memory for multi_unit_forward.1']
    #allocation9 [shape = 'u8[2048]{0}', space=vmem, size = 0x800, scoped, tag = 'input window, operand 36, single buffered']
    #allocation10 [shape = 'u8[2048]{0}', space=vmem, size = 0x800, scoped, tag = 'input window, operand 42, single buffered']
    #allocation11 [shape = 's32[1]{0}', space=sflag, size = 0x4, scoped, tag = 'scoped memory for multi_unit_forward.1']
    #allocation12 [shape = 'u8[2048]{0}', space=vmem, size = 0x800, scoped, tag = 'input window, operand 44, single buffered']
    #allocation13 [shape = 'u8[2048]{0}', space=vmem, size = 0x800, scoped, tag = 'input window, operand 50, single buffered']
    #allocation14 [shape = 's32[1]{0}', space=sflag, size = 0x4, scoped, tag = 'scoped memory for multi_unit_forward.1']
    %118 = vsyncpa [#allocation6], 0
    %119 = vsyncpa [#allocation8], 0
    %120 = vsyncpa [#allocation11], 0
    %121 = vsyncpa [#allocation14], 0
    loop: start=0, step=1, limit=4
    $region2: #{multi_unit_forward.1} parent=1 // loop_pre_header
      _
    $region3: #{multi_unit_forward.1} parent=1 // loop_header
      %s123 = sphi 0, %s127
      %p124 = scmp.ge.s32.totalorder %s123, 4
      %s131 = sphi 0, %s131
      %s133 = sphi 0, %s131
      %s134 = sphi 0, %s133
      %s148 = sphi 0, %s134
      %s154 = sphi 0, %s156
      %s157 = sphi 0, %s154
      %s158 = sphi 0, %s157
      %s174 = sphi 0, %s158
      %s178 = sphi 0, %s178
      %s180 = sphi 0, %s178
      %s181 = sphi 0, %s180
      %s195 = sphi 0, %s181
      %s199 = sphi 0, %s199
      %s201 = sphi 0, %s199
      %s202 = sphi 0, %s201
      %s216 = sphi 0, %s202
      %s220 = sphi 0, %s220
      %s222 = sphi 0, %s220
      %s223 = sphi 0, %s222
      %s237 = sphi 0, %s223
      %s241 = sphi 0, %s241
      %s243 = sphi 0, %s241
      %s244 = sphi 0, %s243
      %s258 = sphi 0, %s244
      %s262 = sphi 0, %s262
      %s264 = sphi 0, %s262
      %s265 = sphi 0, %s264
      %s279 = sphi 0, %s265
      %s283 = sphi 0, %s283
      %s285 = sphi 0, %s283
      %s286 = sphi 0, %s285
      %s300 = sphi 0, %s286
      %s304 = sphi 0, %s304
      %s306 = sphi 0, %s304
      %s307 = sphi 0, %s306
      %s321 = sphi 0, %s307
      %s325 = sphi 0, %s325
      %s327 = sphi 0, %s325
      %s328 = sphi 0, %s327
      %s342 = sphi 0, %s328
      %s346 = sphi 0, %s346
      %s348 = sphi 0, %s346
      %s349 = sphi 0, %s348
      %s363 = sphi 0, %s349
      %s367 = sphi 0, %s367
      %s369 = sphi 0, %s367
      %s370 = sphi 0, %s369
      %s384 = sphi 0, %s370
      %s388 = sphi 0, %s388
      %s390 = sphi 0, %s388
      %s391 = sphi 0, %s390
      %s405 = sphi 0, %s391
      %s409 = sphi 0, %s409
      %s411 = sphi 0, %s409
      %s412 = sphi 0, %s411
      %s426 = sphi 0, %s412
      %s430 = sphi 0, %s430
      %s432 = sphi 0, %s430
      %s433 = sphi 0, %s432
      %s447 = sphi 0, %s433
      %s451 = sphi 0, %s451
      %s453 = sphi 0, %s451
      %s454 = sphi 0, %s453
      %s468 = sphi 0, %s454
      %s472 = sphi 0, %s472
      %s474 = sphi 0, %s472
      %s475 = sphi 0, %s474
      %s489 = sphi 0, %s475
      %s493 = sphi 0, %s493
      %s495 = sphi 0, %s493
      %s496 = sphi 0, %s495
      %s510 = sphi 0, %s496
      %s514 = sphi 0, %s514
      %s516 = sphi 0, %s514
      %s517 = sphi 0, %s516
      %s531 = sphi 0, %s517
      %s535 = sphi 0, %s535
      %s537 = sphi 0, %s535
      %s538 = sphi 0, %s537
      %s552 = sphi 0, %s538
      %s556 = sphi 0, %s556
      %s558 = sphi 0, %s556
      %s559 = sphi 0, %s558
      %s573 = sphi 0, %s559
      %s577 = sphi 0, %s577
      %s579 = sphi 0, %s577
      %s580 = sphi 0, %s579
      %s594 = sphi 0, %s580
      %s598 = sphi 0, %s598
      %s600 = sphi 0, %s598
      %s601 = sphi 0, %s600
      %s615 = sphi 0, %s601
      %s619 = sphi 0, %s619
      %s621 = sphi 0, %s619
      %s622 = sphi 0, %s621
      %s636 = sphi 0, %s622
      %s640 = sphi 0, %s640
      %s642 = sphi 0, %s640
      %s643 = sphi 0, %s642
      %s657 = sphi 0, %s643
      %s661 = sphi 0, %s661
      %s663 = sphi 0, %s661
      %s664 = sphi 0, %s663
      %s678 = sphi 0, %s664
      %s682 = sphi 0, %s682
      %s684 = sphi 0, %s682
      %s685 = sphi 0, %s684
      %s699 = sphi 0, %s685
      %s703 = sphi 0, %s703
      %s705 = sphi 0, %s703
      %s706 = sphi 0, %s705
      %s720 = sphi 0, %s706
      %s724 = sphi 0, %s724
      %s726 = sphi 0, %s724
      %s727 = sphi 0, %s726
      %s741 = sphi 0, %s727
      %s745 = sphi 0, %s745
      %s747 = sphi 0, %s745
      %s748 = sphi 0, %s747
      %s762 = sphi 0, %s748
      %s766 = sphi 0, %s766
      %s768 = sphi 0, %s766
      %s769 = sphi 0, %s768
      %s783 = sphi 0, %s769
      %s787 = sphi 0, %s787
      %s789 = sphi 0, %s787
      %s790 = sphi 0, %s789
      %s804 = sphi 0, %s790
      %s808 = sphi 0, %s808
      %s810 = sphi 0, %s808
      %s811 = sphi 0, %s810
      %s825 = sphi 0, %s811
      %s829 = sphi 0, %s829
      %s831 = sphi 0, %s829
      %s832 = sphi 0, %s831
      %s846 = sphi 0, %s832
      %s850 = sphi 0, %s850
      %s852 = sphi 0, %s850
      %s853 = sphi 0, %s852
      %s867 = sphi 0, %s853
      %s871 = sphi 0, %s871
      %s873 = sphi 0, %s871
      %s874 = sphi 0, %s873
      %s888 = sphi 0, %s874
      %s892 = sphi 0, %s892
      %s894 = sphi 0, %s892
      %s895 = sphi 0, %s894
      %s909 = sphi 0, %s895
      %s913 = sphi 0, %s913
      %s915 = sphi 0, %s913
      %s916 = sphi 0, %s915
      %s930 = sphi 0, %s916
      %s934 = sphi 0, %s934
      %s936 = sphi 0, %s934
      %s937 = sphi 0, %s936
      %s951 = sphi 0, %s937
      %s955 = sphi 0, %s955
      %s957 = sphi 0, %s955
      %s958 = sphi 0, %s957
      %s972 = sphi 0, %s958
      %s976 = sphi 0, %s976
      %s978 = sphi 0, %s976
      %s979 = sphi 0, %s978
      %s993 = sphi 0, %s979
      %s997 = sphi 0, %s997
      %s999 = sphi 0, %s997
      %s1000 = sphi 0, %s999
      %s1014 = sphi 0, %s1000
      %s1018 = sphi 0, %s1018
      %s1020 = sphi 0, %s1018
      %s1021 = sphi 0, %s1020
      %s1035 = sphi 0, %s1021
      %s1039 = sphi 0, %s1039
      %s1041 = sphi 0, %s1039
      %s1042 = sphi 0, %s1041
      %s1056 = sphi 0, %s1042
      %s1060 = sphi 0, %s1060
      %s1062 = sphi 0, %s1060
      %s1063 = sphi 0, %s1062
      %s1077 = sphi 0, %s1063
      %s1081 = sphi 0, %s1081
      %s1083 = sphi 0, %s1081
      %s1084 = sphi 0, %s1083
      %s1098 = sphi 0, %s1084
      %s1102 = sphi 0, %s1102
      %s1104 = sphi 0, %s1102
      %s1105 = sphi 0, %s1104
      %s1119 = sphi 0, %s1105
      %s1123 = sphi 0, %s1123
      %s1125 = sphi 0, %s1123
      %s1126 = sphi 0, %s1125
      %s1140 = sphi 0, %s1126
      %s1144 = sphi 0, %s1144
      %s1146 = sphi 0, %s1144
      %s1147 = sphi 0, %s1146
      %s1161 = sphi 0, %s1147
      %s1165 = sphi 0, %s1165
      %s1167 = sphi 0, %s1165
      %s1168 = sphi 0, %s1167
      %s1182 = sphi 0, %s1168
      %s1186 = sphi 0, %s1186
      %s1188 = sphi 0, %s1186
      %s1189 = sphi 0, %s1188
      %s1203 = sphi 0, %s1189
      %s1207 = sphi 0, %s1207
      %s1209 = sphi 0, %s1207
      %s1210 = sphi 0, %s1209
      %s1224 = sphi 0, %s1210
      %s1228 = sphi 0, %s1228
      %s1230 = sphi 0, %s1228
      %s1231 = sphi 0, %s1230
      %s1245 = sphi 0, %s1231
      %s1249 = sphi 0, %s1249
      %s1251 = sphi 0, %s1249
      %s1252 = sphi 0, %s1251
      %s1266 = sphi 0, %s1252
      %s1272 = sphi 0, %s1274
      %s1275 = sphi 0, %s1272
      %s1276 = sphi 0, %s1275
      %s1292 = sphi 0, %s1276
    $region4: #{multi_unit_forward.1} parent=1 // loop_header_branch
      %126 = sbr.rel (%p124) target = $region8
    $region5: #{multi_unit_forward.1} parent=1 // loop_body
      %s128 = ssub.s32 %s123, 1
      %s129 = ssub.s32 %s123, 2
      %s130 = sadd.s32 %s123, 1
      %s132 = sadd.s32 %s131, 1
      %p135 = scmp.eq.s32.totalorder %s123, 1
      %p136 = scmp.ne.s32.totalorder %s131, %s133
      %p137 = scmp.eq.s32.totalorder %s123, 0
      %p138 = por %p136, %p137
      %p139 = scmp.ne.s32.totalorder %s131, %s133
      %p140 = scmp.eq.s32.totalorder %s128, 1
      %p141 = por %p139, %p140
      %p142 = scmp.ne.s32.totalorder %s133, %s134
      %p143 = scmp.eq.s32.totalorder %s128, 0
      %p144 = por %p142, %p143
      %p145 = scmp.ne.s32.totalorder %s133, %s134
      %p146 = scmp.eq.s32.totalorder %s129, 1
      %p147 = por %p145, %p146
      %p149 = scmp.ne.s32.totalorder %s134, %s148
      %p150 = scmp.eq.s32.totalorder %s129, 0
      %p151 = por %p149, %p150
      %s152 = ssub.s32 %s123, %s130
      %p153 = scmp.eq.s32.totalorder %s152, 0
      %s155 = sadd.s32 %s154, 1
      %s156 = scalar_select %p153, %s154, %s155
      %p159 = pneg %p153
      %p160 = scmp.eq.s32.totalorder %s123, 1
      %p161 = por %p159, %p160
      %p162 = scmp.ne.s32.totalorder %s154, %s157
      %p163 = scmp.eq.s32.totalorder %s123, 0
      %p164 = por %p162, %p163
      %p165 = scmp.ne.s32.totalorder %s154, %s157
      %p166 = scmp.eq.s32.totalorder %s128, 1
      %p167 = por %p165, %p166
      %p168 = scmp.ne.s32.totalorder %s157, %s158
      %p169 = scmp.eq.s32.totalorder %s128, 0
      %p170 = por %p168, %p169
      %p171 = scmp.ne.s32.totalorder %s157, %s158
      %p172 = scmp.eq.s32.totalorder %s129, 1
      %p173 = por %p171, %p172
      %p175 = scmp.ne.s32.totalorder %s158, %s174
      %p176 = scmp.eq.s32.totalorder %s129, 0
      %p177 = por %p175, %p176
      %s179 = sadd.s32 %s178, 1
      %p182 = scmp.eq.s32.totalorder %s123, 1
      %p183 = scmp.ne.s32.totalorder %s178, %s180
      %p184 = scmp.eq.s32.totalorder %s123, 0
      %p185 = por %p183, %p184
      %p186 = scmp.ne.s32.totalorder %s178, %s180
      %p187 = scmp.eq.s32.totalorder %s128, 1
      %p188 = por %p186, %p187
      %p189 = scmp.ne.s32.totalorder %s180, %s181
      %p190 = scmp.eq.s32.totalorder %s128, 0
      %p191 = por %p189, %p190
      %p192 = scmp.ne.s32.totalorder %s180, %s181
      %p193 = scmp.eq.s32.totalorder %s129, 1
      %p194 = por %p192, %p193
      %p196 = scmp.ne.s32.totalorder %s181, %s195
      %p197 = scmp.eq.s32.totalorder %s129, 0
      %p198 = por %p196, %p197
      %s200 = sadd.s32 %s199, 1
      %p203 = scmp.eq.s32.totalorder %s123, 1
      %p204 = scmp.ne.s32.totalorder %s199, %s201
      %p205 = scmp.eq.s32.totalorder %s123, 0
      %p206 = por %p204, %p205
      %p207 = scmp.ne.s32.totalorder %s199, %s201
      %p208 = scmp.eq.s32.totalorder %s128, 1
      %p209 = por %p207, %p208
      %p210 = scmp.ne.s32.totalorder %s201, %s202
      %p211 = scmp.eq.s32.totalorder %s128, 0
      %p212 = por %p210, %p211
      %p213 = scmp.ne.s32.totalorder %s201, %s202
      %p214 = scmp.eq.s32.totalorder %s129, 1
      %p215 = por %p213, %p214
      %p217 = scmp.ne.s32.totalorder %s202, %s216
      %p218 = scmp.eq.s32.totalorder %s129, 0
      %p219 = por %p217, %p218
      %s221 = sadd.s32 %s220, 1
      %p224 = scmp.eq.s32.totalorder %s123, 1
      %p225 = scmp.ne.s32.totalorder %s220, %s222
      %p226 = scmp.eq.s32.totalorder %s123, 0
      %p227 = por %p225, %p226
      %p228 = scmp.ne.s32.totalorder %s220, %s222
      %p229 = scmp.eq.s32.totalorder %s128, 1
      %p230 = por %p228, %p229
      %p231 = scmp.ne.s32.totalorder %s222, %s223
      %p232 = scmp.eq.s32.totalorder %s128, 0
      %p233 = por %p231, %p232
      %p234 = scmp.ne.s32.totalorder %s222, %s223
      %p235 = scmp.eq.s32.totalorder %s129, 1
      %p236 = por %p234, %p235
      %p238 = scmp.ne.s32.totalorder %s223, %s237
      %p239 = scmp.eq.s32.totalorder %s129, 0
      %p240 = por %p238, %p239
      %s242 = sadd.s32 %s241, 1
      %p245 = scmp.eq.s32.totalorder %s123, 1
      %p246 = scmp.ne.s32.totalorder %s241, %s243
      %p247 = scmp.eq.s32.totalorder %s123, 0
      %p248 = por %p246, %p247
      %p249 = scmp.ne.s32.totalorder %s241, %s243
      %p250 = scmp.eq.s32.totalorder %s128, 1
      %p251 = por %p249, %p250
      %p252 = scmp.ne.s32.totalorder %s243, %s244
      %p253 = scmp.eq.s32.totalorder %s128, 0
      %p254 = por %p252, %p253
      %p255 = scmp.ne.s32.totalorder %s243, %s244
      %p256 = scmp.eq.s32.totalorder %s129, 1
      %p257 = por %p255, %p256
      %p259 = scmp.ne.s32.totalorder %s244, %s258
      %p260 = scmp.eq.s32.totalorder %s129, 0
      %p261 = por %p259, %p260
      %s263 = sadd.s32 %s262, 1
      %p266 = scmp.eq.s32.totalorder %s123, 1
      %p267 = scmp.ne.s32.totalorder %s262, %s264
      %p268 = scmp.eq.s32.totalorder %s123, 0
      %p269 = por %p267, %p268
      %p270 = scmp.ne.s32.totalorder %s262, %s264
      %p271 = scmp.eq.s32.totalorder %s128, 1
      %p272 = por %p270, %p271
      %p273 = scmp.ne.s32.totalorder %s264, %s265
      %p274 = scmp.eq.s32.totalorder %s128, 0
      %p275 = por %p273, %p274
      %p276 = scmp.ne.s32.totalorder %s264, %s265
      %p277 = scmp.eq.s32.totalorder %s129, 1
      %p278 = por %p276, %p277
      %p280 = scmp.ne.s32.totalorder %s265, %s279
      %p281 = scmp.eq.s32.totalorder %s129, 0
      %p282 = por %p280, %p281
      %s284 = sadd.s32 %s283, 1
      %p287 = scmp.eq.s32.totalorder %s123, 1
      %p288 = scmp.ne.s32.totalorder %s283, %s285
      %p289 = scmp.eq.s32.totalorder %s123, 0
      %p290 = por %p288, %p289
      %p291 = scmp.ne.s32.totalorder %s283, %s285
      %p292 = scmp.eq.s32.totalorder %s128, 1
      %p293 = por %p291, %p292
      %p294 = scmp.ne.s32.totalorder %s285, %s286
      %p295 = scmp.eq.s32.totalorder %s128, 0
      %p296 = por %p294, %p295
      %p297 = scmp.ne.s32.totalorder %s285, %s286
      %p298 = scmp.eq.s32.totalorder %s129, 1
      %p299 = por %p297, %p298
      %p301 = scmp.ne.s32.totalorder %s286, %s300
      %p302 = scmp.eq.s32.totalorder %s129, 0
      %p303 = por %p301, %p302
      %s305 = sadd.s32 %s304, 1
      %p308 = scmp.eq.s32.totalorder %s123, 1
      %p309 = scmp.ne.s32.totalorder %s304, %s306
      %p310 = scmp.eq.s32.totalorder %s123, 0
      %p311 = por %p309, %p310
      %p312 = scmp.ne.s32.totalorder %s304, %s306
      %p313 = scmp.eq.s32.totalorder %s128, 1
      %p314 = por %p312, %p313
      %p315 = scmp.ne.s32.totalorder %s306, %s307
      %p316 = scmp.eq.s32.totalorder %s128, 0
      %p317 = por %p315, %p316
      %p318 = scmp.ne.s32.totalorder %s306, %s307
      %p319 = scmp.eq.s32.totalorder %s129, 1
      %p320 = por %p318, %p319
      %p322 = scmp.ne.s32.totalorder %s307, %s321
      %p323 = scmp.eq.s32.totalorder %s129, 0
      %p324 = por %p322, %p323
      %s326 = sadd.s32 %s325, 1
      %p329 = scmp.eq.s32.totalorder %s123, 1
      %p330 = scmp.ne.s32.totalorder %s325, %s327
      %p331 = scmp.eq.s32.totalorder %s123, 0
      %p332 = por %p330, %p331
      %p333 = scmp.ne.s32.totalorder %s325, %s327
      %p334 = scmp.eq.s32.totalorder %s128, 1
      %p335 = por %p333, %p334
      %p336 = scmp.ne.s32.totalorder %s327, %s328
      %p337 = scmp.eq.s32.totalorder %s128, 0
      %p338 = por %p336, %p337
      %p339 = scmp.ne.s32.totalorder %s327, %s328
      %p340 = scmp.eq.s32.totalorder %s129, 1
      %p341 = por %p339, %p340
      %p343 = scmp.ne.s32.totalorder %s328, %s342
      %p344 = scmp.eq.s32.totalorder %s129, 0
      %p345 = por %p343, %p344
      %s347 = sadd.s32 %s346, 1
      %p350 = scmp.eq.s32.totalorder %s123, 1
      %p351 = scmp.ne.s32.totalorder %s346, %s348
      %p352 = scmp.eq.s32.totalorder %s123, 0
      %p353 = por %p351, %p352
      %p354 = scmp.ne.s32.totalorder %s346, %s348
      %p355 = scmp.eq.s32.totalorder %s128, 1
      %p356 = por %p354, %p355
      %p357 = scmp.ne.s32.totalorder %s348, %s349
      %p358 = scmp.eq.s32.totalorder %s128, 0
      %p359 = por %p357, %p358
      %p360 = scmp.ne.s32.totalorder %s348, %s349
      %p361 = scmp.eq.s32.totalorder %s129, 1
      %p362 = por %p360, %p361
      %p364 = scmp.ne.s32.totalorder %s349, %s363
      %p365 = scmp.eq.s32.totalorder %s129, 0
      %p366 = por %p364, %p365
      %s368 = sadd.s32 %s367, 1
      %p371 = scmp.eq.s32.totalorder %s123, 1
      %p372 = scmp.ne.s32.totalorder %s367, %s369
      %p373 = scmp.eq.s32.totalorder %s123, 0
      %p374 = por %p372, %p373
      %p375 = scmp.ne.s32.totalorder %s367, %s369
      %p376 = scmp.eq.s32.totalorder %s128, 1
      %p377 = por %p375, %p376
      %p378 = scmp.ne.s32.totalorder %s369, %s370
      %p379 = scmp.eq.s32.totalorder %s128, 0
      %p380 = por %p378, %p379
      %p381 = scmp.ne.s32.totalorder %s369, %s370
      %p382 = scmp.eq.s32.totalorder %s129, 1
      %p383 = por %p381, %p382
      %p385 = scmp.ne.s32.totalorder %s370, %s384
      %p386 = scmp.eq.s32.totalorder %s129, 0
      %p387 = por %p385, %p386
      %s389 = sadd.s32 %s388, 1
      %p392 = scmp.eq.s32.totalorder %s123, 1
      %p393 = scmp.ne.s32.totalorder %s388, %s390
      %p394 = scmp.eq.s32.totalorder %s123, 0
      %p395 = por %p393, %p394
      %p396 = scmp.ne.s32.totalorder %s388, %s390
      %p397 = scmp.eq.s32.totalorder %s128, 1
      %p398 = por %p396, %p397
      %p399 = scmp.ne.s32.totalorder %s390, %s391
      %p400 = scmp.eq.s32.totalorder %s128, 0
      %p401 = por %p399, %p400
      %p402 = scmp.ne.s32.totalorder %s390, %s391
      %p403 = scmp.eq.s32.totalorder %s129, 1
      %p404 = por %p402, %p403
      %p406 = scmp.ne.s32.totalorder %s391, %s405
      %p407 = scmp.eq.s32.totalorder %s129, 0
      %p408 = por %p406, %p407
      %s410 = sadd.s32 %s409, 1
      %p413 = scmp.eq.s32.totalorder %s123, 1
      %p414 = scmp.ne.s32.totalorder %s409, %s411
      %p415 = scmp.eq.s32.totalorder %s123, 0
      %p416 = por %p414, %p415
      %p417 = scmp.ne.s32.totalorder %s409, %s411
      %p418 = scmp.eq.s32.totalorder %s128, 1
      %p419 = por %p417, %p418
      %p420 = scmp.ne.s32.totalorder %s411, %s412
      %p421 = scmp.eq.s32.totalorder %s128, 0
      %p422 = por %p420, %p421
      %p423 = scmp.ne.s32.totalorder %s411, %s412
      %p424 = scmp.eq.s32.totalorder %s129, 1
      %p425 = por %p423, %p424
      %p427 = scmp.ne.s32.totalorder %s412, %s426
      %p428 = scmp.eq.s32.totalorder %s129, 0
      %p429 = por %p427, %p428
      %s431 = sadd.s32 %s430, 1
      %p434 = scmp.eq.s32.totalorder %s123, 1
      %p435 = scmp.ne.s32.totalorder %s430, %s432
      %p436 = scmp.eq.s32.totalorder %s123, 0
      %p437 = por %p435, %p436
      %p438 = scmp.ne.s32.totalorder %s430, %s432
      %p439 = scmp.eq.s32.totalorder %s128, 1
      %p440 = por %p438, %p439
      %p441 = scmp.ne.s32.totalorder %s432, %s433
      %p442 = scmp.eq.s32.totalorder %s128, 0
      %p443 = por %p441, %p442
      %p444 = scmp.ne.s32.totalorder %s432, %s433
      %p445 = scmp.eq.s32.totalorder %s129, 1
      %p446 = por %p444, %p445
      %p448 = scmp.ne.s32.totalorder %s433, %s447
      %p449 = scmp.eq.s32.totalorder %s129, 0
      %p450 = por %p448, %p449
      %s452 = sadd.s32 %s451, 1
      %p455 = scmp.eq.s32.totalorder %s123, 1
      %p456 = scmp.ne.s32.totalorder %s451, %s453
      %p457 = scmp.eq.s32.totalorder %s123, 0
      %p458 = por %p456, %p457
      %p459 = scmp.ne.s32.totalorder %s451, %s453
      %p460 = scmp.eq.s32.totalorder %s128, 1
      %p461 = por %p459, %p460
      %p462 = scmp.ne.s32.totalorder %s453, %s454
      %p463 = scmp.eq.s32.totalorder %s128, 0
      %p464 = por %p462, %p463
      %p465 = scmp.ne.s32.totalorder %s453, %s454
      %p466 = scmp.eq.s32.totalorder %s129, 1
      %p467 = por %p465, %p466
      %p469 = scmp.ne.s32.totalorder %s454, %s468
      %p470 = scmp.eq.s32.totalorder %s129, 0
      %p471 = por %p469, %p470
      %s473 = sadd.s32 %s472, 1
      %p476 = scmp.eq.s32.totalorder %s123, 1
      %p477 = scmp.ne.s32.totalorder %s472, %s474
      %p478 = scmp.eq.s32.totalorder %s123, 0
      %p479 = por %p477, %p478
      %p480 = scmp.ne.s32.totalorder %s472, %s474
      %p481 = scmp.eq.s32.totalorder %s128, 1
      %p482 = por %p480, %p481
      %p483 = scmp.ne.s32.totalorder %s474, %s475
      %p484 = scmp.eq.s32.totalorder %s128, 0
      %p485 = por %p483, %p484
      %p486 = scmp.ne.s32.totalorder %s474, %s475
      %p487 = scmp.eq.s32.totalorder %s129, 1
      %p488 = por %p486, %p487
      %p490 = scmp.ne.s32.totalorder %s475, %s489
      %p491 = scmp.eq.s32.totalorder %s129, 0
      %p492 = por %p490, %p491
      %s494 = sadd.s32 %s493, 1
      %p497 = scmp.eq.s32.totalorder %s123, 1
      %p498 = scmp.ne.s32.totalorder %s493, %s495
      %p499 = scmp.eq.s32.totalorder %s123, 0
      %p500 = por %p498, %p499
      %p501 = scmp.ne.s32.totalorder %s493, %s495
      %p502 = scmp.eq.s32.totalorder %s128, 1
      %p503 = por %p501, %p502
      %p504 = scmp.ne.s32.totalorder %s495, %s496
      %p505 = scmp.eq.s32.totalorder %s128, 0
      %p506 = por %p504, %p505
      %p507 = scmp.ne.s32.totalorder %s495, %s496
      %p508 = scmp.eq.s32.totalorder %s129, 1
      %p509 = por %p507, %p508
      %p511 = scmp.ne.s32.totalorder %s496, %s510
      %p512 = scmp.eq.s32.totalorder %s129, 0
      %p513 = por %p511, %p512
      %s515 = sadd.s32 %s514, 1
      %p518 = scmp.eq.s32.totalorder %s123, 1
      %p519 = scmp.ne.s32.totalorder %s514, %s516
      %p520 = scmp.eq.s32.totalorder %s123, 0
      %p521 = por %p519, %p520
      %p522 = scmp.ne.s32.totalorder %s514, %s516
      %p523 = scmp.eq.s32.totalorder %s128, 1
      %p524 = por %p522, %p523
      %p525 = scmp.ne.s32.totalorder %s516, %s517
      %p526 = scmp.eq.s32.totalorder %s128, 0
      %p527 = por %p525, %p526
      %p528 = scmp.ne.s32.totalorder %s516, %s517
      %p529 = scmp.eq.s32.totalorder %s129, 1
      %p530 = por %p528, %p529
      %p532 = scmp.ne.s32.totalorder %s517, %s531
      %p533 = scmp.eq.s32.totalorder %s129, 0
      %p534 = por %p532, %p533
      %s536 = sadd.s32 %s535, 1
      %p539 = scmp.eq.s32.totalorder %s123, 1
      %p540 = scmp.ne.s32.totalorder %s535, %s537
      %p541 = scmp.eq.s32.totalorder %s123, 0
      %p542 = por %p540, %p541
      %p543 = scmp.ne.s32.totalorder %s535, %s537
      %p544 = scmp.eq.s32.totalorder %s128, 1
      %p545 = por %p543, %p544
      %p546 = scmp.ne.s32.totalorder %s537, %s538
      %p547 = scmp.eq.s32.totalorder %s128, 0
      %p548 = por %p546, %p547
      %p549 = scmp.ne.s32.totalorder %s537, %s538
      %p550 = scmp.eq.s32.totalorder %s129, 1
      %p551 = por %p549, %p550
      %p553 = scmp.ne.s32.totalorder %s538, %s552
      %p554 = scmp.eq.s32.totalorder %s129, 0
      %p555 = por %p553, %p554
      %s557 = sadd.s32 %s556, 1
      %p560 = scmp.eq.s32.totalorder %s123, 1
      %p561 = scmp.ne.s32.totalorder %s556, %s558
      %p562 = scmp.eq.s32.totalorder %s123, 0
      %p563 = por %p561, %p562
      %p564 = scmp.ne.s32.totalorder %s556, %s558
      %p565 = scmp.eq.s32.totalorder %s128, 1
      %p566 = por %p564, %p565
      %p567 = scmp.ne.s32.totalorder %s558, %s559
      %p568 = scmp.eq.s32.totalorder %s128, 0
      %p569 = por %p567, %p568
      %p570 = scmp.ne.s32.totalorder %s558, %s559
      %p571 = scmp.eq.s32.totalorder %s129, 1
      %p572 = por %p570, %p571
      %p574 = scmp.ne.s32.totalorder %s559, %s573
      %p575 = scmp.eq.s32.totalorder %s129, 0
      %p576 = por %p574, %p575
      %s578 = sadd.s32 %s577, 1
      %p581 = scmp.eq.s32.totalorder %s123, 1
      %p582 = scmp.ne.s32.totalorder %s577, %s579
      %p583 = scmp.eq.s32.totalorder %s123, 0
      %p584 = por %p582, %p583
      %p585 = scmp.ne.s32.totalorder %s577, %s579
      %p586 = scmp.eq.s32.totalorder %s128, 1
      %p587 = por %p585, %p586
      %p588 = scmp.ne.s32.totalorder %s579, %s580
      %p589 = scmp.eq.s32.totalorder %s128, 0
      %p590 = por %p588, %p589
      %p591 = scmp.ne.s32.totalorder %s579, %s580
      %p592 = scmp.eq.s32.totalorder %s129, 1
      %p593 = por %p591, %p592
      %p595 = scmp.ne.s32.totalorder %s580, %s594
      %p596 = scmp.eq.s32.totalorder %s129, 0
      %p597 = por %p595, %p596
      %s599 = sadd.s32 %s598, 1
      %p602 = scmp.eq.s32.totalorder %s123, 1
      %p603 = scmp.ne.s32.totalorder %s598, %s600
      %p604 = scmp.eq.s32.totalorder %s123, 0
      %p605 = por %p603, %p604
      %p606 = scmp.ne.s32.totalorder %s598, %s600
      %p607 = scmp.eq.s32.totalorder %s128, 1
      %p608 = por %p606, %p607
      %p609 = scmp.ne.s32.totalorder %s600, %s601
      %p610 = scmp.eq.s32.totalorder %s128, 0
      %p611 = por %p609, %p610
      %p612 = scmp.ne.s32.totalorder %s600, %s601
      %p613 = scmp.eq.s32.totalorder %s129, 1
      %p614 = por %p612, %p613
      %p616 = scmp.ne.s32.totalorder %s601, %s615
      %p617 = scmp.eq.s32.totalorder %s129, 0
      %p618 = por %p616, %p617
      %s620 = sadd.s32 %s619, 1
      %p623 = scmp.eq.s32.totalorder %s123, 1
      %p624 = scmp.ne.s32.totalorder %s619, %s621
      %p625 = scmp.eq.s32.totalorder %s123, 0
      %p626 = por %p624, %p625
      %p627 = scmp.ne.s32.totalorder %s619, %s621
      %p628 = scmp.eq.s32.totalorder %s128, 1
      %p629 = por %p627, %p628
      %p630 = scmp.ne.s32.totalorder %s621, %s622
      %p631 = scmp.eq.s32.totalorder %s128, 0
      %p632 = por %p630, %p631
      %p633 = scmp.ne.s32.totalorder %s621, %s622
      %p634 = scmp.eq.s32.totalorder %s129, 1
      %p635 = por %p633, %p634
      %p637 = scmp.ne.s32.totalorder %s622, %s636
      %p638 = scmp.eq.s32.totalorder %s129, 0
      %p639 = por %p637, %p638
      %s641 = sadd.s32 %s640, 1
      %p644 = scmp.eq.s32.totalorder %s123, 1
      %p645 = scmp.ne.s32.totalorder %s640, %s642
      %p646 = scmp.eq.s32.totalorder %s123, 0
      %p647 = por %p645, %p646
      %p648 = scmp.ne.s32.totalorder %s640, %s642
      %p649 = scmp.eq.s32.totalorder %s128, 1
      %p650 = por %p648, %p649
      %p651 = scmp.ne.s32.totalorder %s642, %s643
      %p652 = scmp.eq.s32.totalorder %s128, 0
      %p653 = por %p651, %p652
      %p654 = scmp.ne.s32.totalorder %s642, %s643
      %p655 = scmp.eq.s32.totalorder %s129, 1
      %p656 = por %p654, %p655
      %p658 = scmp.ne.s32.totalorder %s643, %s657
      %p659 = scmp.eq.s32.totalorder %s129, 0
      %p660 = por %p658, %p659
      %s662 = sadd.s32 %s661, 1
      %p665 = scmp.eq.s32.totalorder %s123, 1
      %p666 = scmp.ne.s32.totalorder %s661, %s663
      %p667 = scmp.eq.s32.totalorder %s123, 0
      %p668 = por %p666, %p667
      %p669 = scmp.ne.s32.totalorder %s661, %s663
      %p670 = scmp.eq.s32.totalorder %s128, 1
      %p671 = por %p669, %p670
      %p672 = scmp.ne.s32.totalorder %s663, %s664
      %p673 = scmp.eq.s32.totalorder %s128, 0
      %p674 = por %p672, %p673
      %p675 = scmp.ne.s32.totalorder %s663, %s664
      %p676 = scmp.eq.s32.totalorder %s129, 1
      %p677 = por %p675, %p676
      %p679 = scmp.ne.s32.totalorder %s664, %s678
      %p680 = scmp.eq.s32.totalorder %s129, 0
      %p681 = por %p679, %p680
      %s683 = sadd.s32 %s682, 1
      %p686 = scmp.eq.s32.totalorder %s123, 1
      %p687 = scmp.ne.s32.totalorder %s682, %s684
      %p688 = scmp.eq.s32.totalorder %s123, 0
      %p689 = por %p687, %p688
      %p690 = scmp.ne.s32.totalorder %s682, %s684
      %p691 = scmp.eq.s32.totalorder %s128, 1
      %p692 = por %p690, %p691
      %p693 = scmp.ne.s32.totalorder %s684, %s685
      %p694 = scmp.eq.s32.totalorder %s128, 0
      %p695 = por %p693, %p694
      %p696 = scmp.ne.s32.totalorder %s684, %s685
      %p697 = scmp.eq.s32.totalorder %s129, 1
      %p698 = por %p696, %p697
      %p700 = scmp.ne.s32.totalorder %s685, %s699
      %p701 = scmp.eq.s32.totalorder %s129, 0
      %p702 = por %p700, %p701
      %s704 = sadd.s32 %s703, 1
      %p707 = scmp.eq.s32.totalorder %s123, 1
      %p708 = scmp.ne.s32.totalorder %s703, %s705
      %p709 = scmp.eq.s32.totalorder %s123, 0
      %p710 = por %p708, %p709
      %p711 = scmp.ne.s32.totalorder %s703, %s705
      %p712 = scmp.eq.s32.totalorder %s128, 1
      %p713 = por %p711, %p712
      %p714 = scmp.ne.s32.totalorder %s705, %s706
      %p715 = scmp.eq.s32.totalorder %s128, 0
      %p716 = por %p714, %p715
      %p717 = scmp.ne.s32.totalorder %s705, %s706
      %p718 = scmp.eq.s32.totalorder %s129, 1
      %p719 = por %p717, %p718
      %p721 = scmp.ne.s32.totalorder %s706, %s720
      %p722 = scmp.eq.s32.totalorder %s129, 0
      %p723 = por %p721, %p722
      %s725 = sadd.s32 %s724, 1
      %p728 = scmp.eq.s32.totalorder %s123, 1
      %p729 = scmp.ne.s32.totalorder %s724, %s726
      %p730 = scmp.eq.s32.totalorder %s123, 0
      %p731 = por %p729, %p730
      %p732 = scmp.ne.s32.totalorder %s724, %s726
      %p733 = scmp.eq.s32.totalorder %s128, 1
      %p734 = por %p732, %p733
      %p735 = scmp.ne.s32.totalorder %s726, %s727
      %p736 = scmp.eq.s32.totalorder %s128, 0
      %p737 = por %p735, %p736
      %p738 = scmp.ne.s32.totalorder %s726, %s727
      %p739 = scmp.eq.s32.totalorder %s129, 1
      %p740 = por %p738, %p739
      %p742 = scmp.ne.s32.totalorder %s727, %s741
      %p743 = scmp.eq.s32.totalorder %s129, 0
      %p744 = por %p742, %p743
      %s746 = sadd.s32 %s745, 1
      %p749 = scmp.eq.s32.totalorder %s123, 1
      %p750 = scmp.ne.s32.totalorder %s745, %s747
      %p751 = scmp.eq.s32.totalorder %s123, 0
      %p752 = por %p750, %p751
      %p753 = scmp.ne.s32.totalorder %s745, %s747
      %p754 = scmp.eq.s32.totalorder %s128, 1
      %p755 = por %p753, %p754
      %p756 = scmp.ne.s32.totalorder %s747, %s748
      %p757 = scmp.eq.s32.totalorder %s128, 0
      %p758 = por %p756, %p757
      %p759 = scmp.ne.s32.totalorder %s747, %s748
      %p760 = scmp.eq.s32.totalorder %s129, 1
      %p761 = por %p759, %p760
      %p763 = scmp.ne.s32.totalorder %s748, %s762
      %p764 = scmp.eq.s32.totalorder %s129, 0
      %p765 = por %p763, %p764
      %s767 = sadd.s32 %s766, 1
      %p770 = scmp.eq.s32.totalorder %s123, 1
      %p771 = scmp.ne.s32.totalorder %s766, %s768
      %p772 = scmp.eq.s32.totalorder %s123, 0
      %p773 = por %p771, %p772
      %p774 = scmp.ne.s32.totalorder %s766, %s768
      %p775 = scmp.eq.s32.totalorder %s128, 1
      %p776 = por %p774, %p775
      %p777 = scmp.ne.s32.totalorder %s768, %s769
      %p778 = scmp.eq.s32.totalorder %s128, 0
      %p779 = por %p777, %p778
      %p780 = scmp.ne.s32.totalorder %s768, %s769
      %p781 = scmp.eq.s32.totalorder %s129, 1
      %p782 = por %p780, %p781
      %p784 = scmp.ne.s32.totalorder %s769, %s783
      %p785 = scmp.eq.s32.totalorder %s129, 0
      %p786 = por %p784, %p785
      %s788 = sadd.s32 %s787, 1
      %p791 = scmp.eq.s32.totalorder %s123, 1
      %p792 = scmp.ne.s32.totalorder %s787, %s789
      %p793 = scmp.eq.s32.totalorder %s123, 0
      %p794 = por %p792, %p793
      %p795 = scmp.ne.s32.totalorder %s787, %s789
      %p796 = scmp.eq.s32.totalorder %s128, 1
      %p797 = por %p795, %p796
      %p798 = scmp.ne.s32.totalorder %s789, %s790
      %p799 = scmp.eq.s32.totalorder %s128, 0
      %p800 = por %p798, %p799
      %p801 = scmp.ne.s32.totalorder %s789, %s790
      %p802 = scmp.eq.s32.totalorder %s129, 1
      %p803 = por %p801, %p802
      %p805 = scmp.ne.s32.totalorder %s790, %s804
      %p806 = scmp.eq.s32.totalorder %s129, 0
      %p807 = por %p805, %p806
      %s809 = sadd.s32 %s808, 1
      %p812 = scmp.eq.s32.totalorder %s123, 1
      %p813 = scmp.ne.s32.totalorder %s808, %s810
      %p814 = scmp.eq.s32.totalorder %s123, 0
      %p815 = por %p813, %p814
      %p816 = scmp.ne.s32.totalorder %s808, %s810
      %p817 = scmp.eq.s32.totalorder %s128, 1
      %p818 = por %p816, %p817
      %p819 = scmp.ne.s32.totalorder %s810, %s811
      %p820 = scmp.eq.s32.totalorder %s128, 0
      %p821 = por %p819, %p820
      %p822 = scmp.ne.s32.totalorder %s810, %s811
      %p823 = scmp.eq.s32.totalorder %s129, 1
      %p824 = por %p822, %p823
      %p826 = scmp.ne.s32.totalorder %s811, %s825
      %p827 = scmp.eq.s32.totalorder %s129, 0
      %p828 = por %p826, %p827
      %s830 = sadd.s32 %s829, 1
      %p833 = scmp.eq.s32.totalorder %s123, 1
      %p834 = scmp.ne.s32.totalorder %s829, %s831
      %p835 = scmp.eq.s32.totalorder %s123, 0
      %p836 = por %p834, %p835
      %p837 = scmp.ne.s32.totalorder %s829, %s831
      %p838 = scmp.eq.s32.totalorder %s128, 1
      %p839 = por %p837, %p838
      %p840 = scmp.ne.s32.totalorder %s831, %s832
      %p841 = scmp.eq.s32.totalorder %s128, 0
      %p842 = por %p840, %p841
      %p843 = scmp.ne.s32.totalorder %s831, %s832
      %p844 = scmp.eq.s32.totalorder %s129, 1
      %p845 = por %p843, %p844
      %p847 = scmp.ne.s32.totalorder %s832, %s846
      %p848 = scmp.eq.s32.totalorder %s129, 0
      %p849 = por %p847, %p848
      %s851 = sadd.s32 %s850, 1
      %p854 = scmp.eq.s32.totalorder %s123, 1
      %p855 = scmp.ne.s32.totalorder %s850, %s852
      %p856 = scmp.eq.s32.totalorder %s123, 0
      %p857 = por %p855, %p856
      %p858 = scmp.ne.s32.totalorder %s850, %s852
      %p859 = scmp.eq.s32.totalorder %s128, 1
      %p860 = por %p858, %p859
      %p861 = scmp.ne.s32.totalorder %s852, %s853
      %p862 = scmp.eq.s32.totalorder %s128, 0
      %p863 = por %p861, %p862
      %p864 = scmp.ne.s32.totalorder %s852, %s853
      %p865 = scmp.eq.s32.totalorder %s129, 1
      %p866 = por %p864, %p865
      %p868 = scmp.ne.s32.totalorder %s853, %s867
      %p869 = scmp.eq.s32.totalorder %s129, 0
      %p870 = por %p868, %p869
      %s872 = sadd.s32 %s871, 1
      %p875 = scmp.eq.s32.totalorder %s123, 1
      %p876 = scmp.ne.s32.totalorder %s871, %s873
      %p877 = scmp.eq.s32.totalorder %s123, 0
      %p878 = por %p876, %p877
      %p879 = scmp.ne.s32.totalorder %s871, %s873
      %p880 = scmp.eq.s32.totalorder %s128, 1
      %p881 = por %p879, %p880
      %p882 = scmp.ne.s32.totalorder %s873, %s874
      %p883 = scmp.eq.s32.totalorder %s128, 0
      %p884 = por %p882, %p883
      %p885 = scmp.ne.s32.totalorder %s873, %s874
      %p886 = scmp.eq.s32.totalorder %s129, 1
      %p887 = por %p885, %p886
      %p889 = scmp.ne.s32.totalorder %s874, %s888
      %p890 = scmp.eq.s32.totalorder %s129, 0
      %p891 = por %p889, %p890
      %s893 = sadd.s32 %s892, 1
      %p896 = scmp.eq.s32.totalorder %s123, 1
      %p897 = scmp.ne.s32.totalorder %s892, %s894
      %p898 = scmp.eq.s32.totalorder %s123, 0
      %p899 = por %p897, %p898
      %p900 = scmp.ne.s32.totalorder %s892, %s894
      %p901 = scmp.eq.s32.totalorder %s128, 1
      %p902 = por %p900, %p901
      %p903 = scmp.ne.s32.totalorder %s894, %s895
      %p904 = scmp.eq.s32.totalorder %s128, 0
      %p905 = por %p903, %p904
      %p906 = scmp.ne.s32.totalorder %s894, %s895
      %p907 = scmp.eq.s32.totalorder %s129, 1
      %p908 = por %p906, %p907
      %p910 = scmp.ne.s32.totalorder %s895, %s909
      %p911 = scmp.eq.s32.totalorder %s129, 0
      %p912 = por %p910, %p911
      %s914 = sadd.s32 %s913, 1
      %p917 = scmp.eq.s32.totalorder %s123, 1
      %p918 = scmp.ne.s32.totalorder %s913, %s915
      %p919 = scmp.eq.s32.totalorder %s123, 0
      %p920 = por %p918, %p919
      %p921 = scmp.ne.s32.totalorder %s913, %s915
      %p922 = scmp.eq.s32.totalorder %s128, 1
      %p923 = por %p921, %p922
      %p924 = scmp.ne.s32.totalorder %s915, %s916
      %p925 = scmp.eq.s32.totalorder %s128, 0
      %p926 = por %p924, %p925
      %p927 = scmp.ne.s32.totalorder %s915, %s916
      %p928 = scmp.eq.s32.totalorder %s129, 1
      %p929 = por %p927, %p928
      %p931 = scmp.ne.s32.totalorder %s916, %s930
      %p932 = scmp.eq.s32.totalorder %s129, 0
      %p933 = por %p931, %p932
      %s935 = sadd.s32 %s934, 1
      %p938 = scmp.eq.s32.totalorder %s123, 1
      %p939 = scmp.ne.s32.totalorder %s934, %s936
      %p940 = scmp.eq.s32.totalorder %s123, 0
      %p941 = por %p939, %p940
      %p942 = scmp.ne.s32.totalorder %s934, %s936
      %p943 = scmp.eq.s32.totalorder %s128, 1
      %p944 = por %p942, %p943
      %p945 = scmp.ne.s32.totalorder %s936, %s937
      %p946 = scmp.eq.s32.totalorder %s128, 0
      %p947 = por %p945, %p946
      %p948 = scmp.ne.s32.totalorder %s936, %s937
      %p949 = scmp.eq.s32.totalorder %s129, 1
      %p950 = por %p948, %p949
      %p952 = scmp.ne.s32.totalorder %s937, %s951
      %p953 = scmp.eq.s32.totalorder %s129, 0
      %p954 = por %p952, %p953
      %s956 = sadd.s32 %s955, 1
      %p959 = scmp.eq.s32.totalorder %s123, 1
      %p960 = scmp.ne.s32.totalorder %s955, %s957
      %p961 = scmp.eq.s32.totalorder %s123, 0
      %p962 = por %p960, %p961
      %p963 = scmp.ne.s32.totalorder %s955, %s957
      %p964 = scmp.eq.s32.totalorder %s128, 1
      %p965 = por %p963, %p964
      %p966 = scmp.ne.s32.totalorder %s957, %s958
      %p967 = scmp.eq.s32.totalorder %s128, 0
      %p968 = por %p966, %p967
      %p969 = scmp.ne.s32.totalorder %s957, %s958
      %p970 = scmp.eq.s32.totalorder %s129, 1
      %p971 = por %p969, %p970
      %p973 = scmp.ne.s32.totalorder %s958, %s972
      %p974 = scmp.eq.s32.totalorder %s129, 0
      %p975 = por %p973, %p974
      %s977 = sadd.s32 %s976, 1
      %p980 = scmp.eq.s32.totalorder %s123, 1
      %p981 = scmp.ne.s32.totalorder %s976, %s978
      %p982 = scmp.eq.s32.totalorder %s123, 0
      %p983 = por %p981, %p982
      %p984 = scmp.ne.s32.totalorder %s976, %s978
      %p985 = scmp.eq.s32.totalorder %s128, 1
      %p986 = por %p984, %p985
      %p987 = scmp.ne.s32.totalorder %s978, %s979
      %p988 = scmp.eq.s32.totalorder %s128, 0
      %p989 = por %p987, %p988
      %p990 = scmp.ne.s32.totalorder %s978, %s979
      %p991 = scmp.eq.s32.totalorder %s129, 1
      %p992 = por %p990, %p991
      %p994 = scmp.ne.s32.totalorder %s979, %s993
      %p995 = scmp.eq.s32.totalorder %s129, 0
      %p996 = por %p994, %p995
      %s998 = sadd.s32 %s997, 1
      %p1001 = scmp.eq.s32.totalorder %s123, 1
      %p1002 = scmp.ne.s32.totalorder %s997, %s999
      %p1003 = scmp.eq.s32.totalorder %s123, 0
      %p1004 = por %p1002, %p1003
      %p1005 = scmp.ne.s32.totalorder %s997, %s999
      %p1006 = scmp.eq.s32.totalorder %s128, 1
      %p1007 = por %p1005, %p1006
      %p1008 = scmp.ne.s32.totalorder %s999, %s1000
      %p1009 = scmp.eq.s32.totalorder %s128, 0
      %p1010 = por %p1008, %p1009
      %p1011 = scmp.ne.s32.totalorder %s999, %s1000
      %p1012 = scmp.eq.s32.totalorder %s129, 1
      %p1013 = por %p1011, %p1012
      %p1015 = scmp.ne.s32.totalorder %s1000, %s1014
      %p1016 = scmp.eq.s32.totalorder %s129, 0
      %p1017 = por %p1015, %p1016
      %s1019 = sadd.s32 %s1018, 1
      %p1022 = scmp.eq.s32.totalorder %s123, 1
      %p1023 = scmp.ne.s32.totalorder %s1018, %s1020
      %p1024 = scmp.eq.s32.totalorder %s123, 0
      %p1025 = por %p1023, %p1024
      %p1026 = scmp.ne.s32.totalorder %s1018, %s1020
      %p1027 = scmp.eq.s32.totalorder %s128, 1
      %p1028 = por %p1026, %p1027
      %p1029 = scmp.ne.s32.totalorder %s1020, %s1021
      %p1030 = scmp.eq.s32.totalorder %s128, 0
      %p1031 = por %p1029, %p1030
      %p1032 = scmp.ne.s32.totalorder %s1020, %s1021
      %p1033 = scmp.eq.s32.totalorder %s129, 1
      %p1034 = por %p1032, %p1033
      %p1036 = scmp.ne.s32.totalorder %s1021, %s1035
      %p1037 = scmp.eq.s32.totalorder %s129, 0
      %p1038 = por %p1036, %p1037
      %s1040 = sadd.s32 %s1039, 1
      %p1043 = scmp.eq.s32.totalorder %s123, 1
      %p1044 = scmp.ne.s32.totalorder %s1039, %s1041
      %p1045 = scmp.eq.s32.totalorder %s123, 0
      %p1046 = por %p1044, %p1045
      %p1047 = scmp.ne.s32.totalorder %s1039, %s1041
      %p1048 = scmp.eq.s32.totalorder %s128, 1
      %p1049 = por %p1047, %p1048
      %p1050 = scmp.ne.s32.totalorder %s1041, %s1042
      %p1051 = scmp.eq.s32.totalorder %s128, 0
      %p1052 = por %p1050, %p1051
      %p1053 = scmp.ne.s32.totalorder %s1041, %s1042
      %p1054 = scmp.eq.s32.totalorder %s129, 1
      %p1055 = por %p1053, %p1054
      %p1057 = scmp.ne.s32.totalorder %s1042, %s1056
      %p1058 = scmp.eq.s32.totalorder %s129, 0
      %p1059 = por %p1057, %p1058
      %s1061 = sadd.s32 %s1060, 1
      %p1064 = scmp.eq.s32.totalorder %s123, 1
      %p1065 = scmp.ne.s32.totalorder %s1060, %s1062
      %p1066 = scmp.eq.s32.totalorder %s123, 0
      %p1067 = por %p1065, %p1066
      %p1068 = scmp.ne.s32.totalorder %s1060, %s1062
      %p1069 = scmp.eq.s32.totalorder %s128, 1
      %p1070 = por %p1068, %p1069
      %p1071 = scmp.ne.s32.totalorder %s1062, %s1063
      %p1072 = scmp.eq.s32.totalorder %s128, 0
      %p1073 = por %p1071, %p1072
      %p1074 = scmp.ne.s32.totalorder %s1062, %s1063
      %p1075 = scmp.eq.s32.totalorder %s129, 1
      %p1076 = por %p1074, %p1075
      %p1078 = scmp.ne.s32.totalorder %s1063, %s1077
      %p1079 = scmp.eq.s32.totalorder %s129, 0
      %p1080 = por %p1078, %p1079
      %s1082 = sadd.s32 %s1081, 1
      %p1085 = scmp.eq.s32.totalorder %s123, 1
      %p1086 = scmp.ne.s32.totalorder %s1081, %s1083
      %p1087 = scmp.eq.s32.totalorder %s123, 0
      %p1088 = por %p1086, %p1087
      %p1089 = scmp.ne.s32.totalorder %s1081, %s1083
      %p1090 = scmp.eq.s32.totalorder %s128, 1
      %p1091 = por %p1089, %p1090
      %p1092 = scmp.ne.s32.totalorder %s1083, %s1084
      %p1093 = scmp.eq.s32.totalorder %s128, 0
      %p1094 = por %p1092, %p1093
      %p1095 = scmp.ne.s32.totalorder %s1083, %s1084
      %p1096 = scmp.eq.s32.totalorder %s129, 1
      %p1097 = por %p1095, %p1096
      %p1099 = scmp.ne.s32.totalorder %s1084, %s1098
      %p1100 = scmp.eq.s32.totalorder %s129, 0
      %p1101 = por %p1099, %p1100
      %s1103 = sadd.s32 %s1102, 1
      %p1106 = scmp.eq.s32.totalorder %s123, 1
      %p1107 = scmp.ne.s32.totalorder %s1102, %s1104
      %p1108 = scmp.eq.s32.totalorder %s123, 0
      %p1109 = por %p1107, %p1108
      %p1110 = scmp.ne.s32.totalorder %s1102, %s1104
      %p1111 = scmp.eq.s32.totalorder %s128, 1
      %p1112 = por %p1110, %p1111
      %p1113 = scmp.ne.s32.totalorder %s1104, %s1105
      %p1114 = scmp.eq.s32.totalorder %s128, 0
      %p1115 = por %p1113, %p1114
      %p1116 = scmp.ne.s32.totalorder %s1104, %s1105
      %p1117 = scmp.eq.s32.totalorder %s129, 1
      %p1118 = por %p1116, %p1117
      %p1120 = scmp.ne.s32.totalorder %s1105, %s1119
      %p1121 = scmp.eq.s32.totalorder %s129, 0
      %p1122 = por %p1120, %p1121
      %s1124 = sadd.s32 %s1123, 1
      %p1127 = scmp.eq.s32.totalorder %s123, 1
      %p1128 = scmp.ne.s32.totalorder %s1123, %s1125
      %p1129 = scmp.eq.s32.totalorder %s123, 0
      %p1130 = por %p1128, %p1129
      %p1131 = scmp.ne.s32.totalorder %s1123, %s1125
      %p1132 = scmp.eq.s32.totalorder %s128, 1
      %p1133 = por %p1131, %p1132
      %p1134 = scmp.ne.s32.totalorder %s1125, %s1126
      %p1135 = scmp.eq.s32.totalorder %s128, 0
      %p1136 = por %p1134, %p1135
      %p1137 = scmp.ne.s32.totalorder %s1125, %s1126
      %p1138 = scmp.eq.s32.totalorder %s129, 1
      %p1139 = por %p1137, %p1138
      %p1141 = scmp.ne.s32.totalorder %s1126, %s1140
      %p1142 = scmp.eq.s32.totalorder %s129, 0
      %p1143 = por %p1141, %p1142
      %s1145 = sadd.s32 %s1144, 1
      %p1148 = scmp.eq.s32.totalorder %s123, 1
      %p1149 = scmp.ne.s32.totalorder %s1144, %s1146
      %p1150 = scmp.eq.s32.totalorder %s123, 0
      %p1151 = por %p1149, %p1150
      %p1152 = scmp.ne.s32.totalorder %s1144, %s1146
      %p1153 = scmp.eq.s32.totalorder %s128, 1
      %p1154 = por %p1152, %p1153
      %p1155 = scmp.ne.s32.totalorder %s1146, %s1147
      %p1156 = scmp.eq.s32.totalorder %s128, 0
      %p1157 = por %p1155, %p1156
      %p1158 = scmp.ne.s32.totalorder %s1146, %s1147
      %p1159 = scmp.eq.s32.totalorder %s129, 1
      %p1160 = por %p1158, %p1159
      %p1162 = scmp.ne.s32.totalorder %s1147, %s1161
      %p1163 = scmp.eq.s32.totalorder %s129, 0
      %p1164 = por %p1162, %p1163
      %s1166 = sadd.s32 %s1165, 1
      %p1169 = scmp.eq.s32.totalorder %s123, 1
      %p1170 = scmp.ne.s32.totalorder %s1165, %s1167
      %p1171 = scmp.eq.s32.totalorder %s123, 0
      %p1172 = por %p1170, %p1171
      %p1173 = scmp.ne.s32.totalorder %s1165, %s1167
      %p1174 = scmp.eq.s32.totalorder %s128, 1
      %p1175 = por %p1173, %p1174
      %p1176 = scmp.ne.s32.totalorder %s1167, %s1168
      %p1177 = scmp.eq.s32.totalorder %s128, 0
      %p1178 = por %p1176, %p1177
      %p1179 = scmp.ne.s32.totalorder %s1167, %s1168
      %p1180 = scmp.eq.s32.totalorder %s129, 1
      %p1181 = por %p1179, %p1180
      %p1183 = scmp.ne.s32.totalorder %s1168, %s1182
      %p1184 = scmp.eq.s32.totalorder %s129, 0
      %p1185 = por %p1183, %p1184
      %s1187 = sadd.s32 %s1186, 1
      %p1190 = scmp.eq.s32.totalorder %s123, 1
      %p1191 = scmp.ne.s32.totalorder %s1186, %s1188
      %p1192 = scmp.eq.s32.totalorder %s123, 0
      %p1193 = por %p1191, %p1192
      %p1194 = scmp.ne.s32.totalorder %s1186, %s1188
      %p1195 = scmp.eq.s32.totalorder %s128, 1
      %p1196 = por %p1194, %p1195
      %p1197 = scmp.ne.s32.totalorder %s1188, %s1189
      %p1198 = scmp.eq.s32.totalorder %s128, 0
      %p1199 = por %p1197, %p1198
      %p1200 = scmp.ne.s32.totalorder %s1188, %s1189
      %p1201 = scmp.eq.s32.totalorder %s129, 1
      %p1202 = por %p1200, %p1201
      %p1204 = scmp.ne.s32.totalorder %s1189, %s1203
      %p1205 = scmp.eq.s32.totalorder %s129, 0
      %p1206 = por %p1204, %p1205
      %s1208 = sadd.s32 %s1207, 1
      %p1211 = scmp.eq.s32.totalorder %s123, 1
      %p1212 = scmp.ne.s32.totalorder %s1207, %s1209
      %p1213 = scmp.eq.s32.totalorder %s123, 0
      %p1214 = por %p1212, %p1213
      %p1215 = scmp.ne.s32.totalorder %s1207, %s1209
      %p1216 = scmp.eq.s32.totalorder %s128, 1
      %p1217 = por %p1215, %p1216
      %p1218 = scmp.ne.s32.totalorder %s1209, %s1210
      %p1219 = scmp.eq.s32.totalorder %s128, 0
      %p1220 = por %p1218, %p1219
      %p1221 = scmp.ne.s32.totalorder %s1209, %s1210
      %p1222 = scmp.eq.s32.totalorder %s129, 1
      %p1223 = por %p1221, %p1222
      %p1225 = scmp.ne.s32.totalorder %s1210, %s1224
      %p1226 = scmp.eq.s32.totalorder %s129, 0
      %p1227 = por %p1225, %p1226
      %s1229 = sadd.s32 %s1228, 1
      %p1232 = scmp.eq.s32.totalorder %s123, 1
      %p1233 = scmp.ne.s32.totalorder %s1228, %s1230
      %p1234 = scmp.eq.s32.totalorder %s123, 0
      %p1235 = por %p1233, %p1234
      %p1236 = scmp.ne.s32.totalorder %s1228, %s1230
      %p1237 = scmp.eq.s32.totalorder %s128, 1
      %p1238 = por %p1236, %p1237
      %p1239 = scmp.ne.s32.totalorder %s1230, %s1231
      %p1240 = scmp.eq.s32.totalorder %s128, 0
      %p1241 = por %p1239, %p1240
      %p1242 = scmp.ne.s32.totalorder %s1230, %s1231
      %p1243 = scmp.eq.s32.totalorder %s129, 1
      %p1244 = por %p1242, %p1243
      %p1246 = scmp.ne.s32.totalorder %s1231, %s1245
      %p1247 = scmp.eq.s32.totalorder %s129, 0
      %p1248 = por %p1246, %p1247
      %s1250 = sadd.s32 %s1249, 1
      %p1253 = scmp.eq.s32.totalorder %s123, 1
      %p1254 = scmp.ne.s32.totalorder %s1249, %s1251
      %p1255 = scmp.eq.s32.totalorder %s123, 0
      %p1256 = por %p1254, %p1255
      %p1257 = scmp.ne.s32.totalorder %s1249, %s1251
      %p1258 = scmp.eq.s32.totalorder %s128, 1
      %p1259 = por %p1257, %p1258
      %p1260 = scmp.ne.s32.totalorder %s1251, %s1252
      %p1261 = scmp.eq.s32.totalorder %s128, 0
      %p1262 = por %p1260, %p1261
      %p1263 = scmp.ne.s32.totalorder %s1251, %s1252
      %p1264 = scmp.eq.s32.totalorder %s129, 1
      %p1265 = por %p1263, %p1264
      %p1267 = scmp.ne.s32.totalorder %s1252, %s1266
      %p1268 = scmp.eq.s32.totalorder %s129, 0
      %p1269 = por %p1267, %p1268
      %s1270 = ssub.s32 %s123, %s130
      %p1271 = scmp.eq.s32.totalorder %s1270, 0
      %s1273 = sadd.s32 %s1272, 1
      %s1274 = scalar_select %p1271, %s1272, %s1273
      %p1277 = pneg %p1271
      %p1278 = scmp.eq.s32.totalorder %s123, 1
      %p1279 = por %p1277, %p1278
      %p1280 = scmp.ne.s32.totalorder %s1272, %s1275
      %p1281 = scmp.eq.s32.totalorder %s123, 0
      %p1282 = por %p1280, %p1281
      %p1283 = scmp.ne.s32.totalorder %s1272, %s1275
      %p1284 = scmp.eq.s32.totalorder %s128, 1
      %p1285 = por %p1283, %p1284
      %p1286 = scmp.ne.s32.totalorder %s1275, %s1276
      %p1287 = scmp.eq.s32.totalorder %s128, 0
      %p1288 = por %p1286, %p1287
      %p1289 = scmp.ne.s32.totalorder %s1275, %s1276
      %p1290 = scmp.eq.s32.totalorder %s129, 1
      %p1291 = por %p1289, %p1290
      %p1293 = scmp.ne.s32.totalorder %s1276, %s1292
      %p1294 = scmp.eq.s32.totalorder %s129, 0
      %p1295 = por %p1293, %p1294
      %p1296 = scmp.le.s32.totalorder 1, %s123
      %p1297 = scmp.lt.s32.totalorder %s123, 3
      %p1298 = pnand %p1296, %p1297
      %p1299 = pneg %p1298
      // Predicated region
      $region9: #{multi_unit_forward.1} parent=5 // pred_check
        _
      $region10: #{multi_unit_forward.1} parent=5 // pred_check_branch
        %1301 = sbr.rel (%p1298) target = $region12
      $region11: #{multi_unit_forward.1} parent=5 // pred_region
        %s1302 = ssub.s32 %s123, 1
        // Predicated region
        $region13: #{multi_unit_forward.1} parent=11 // pred_check
          %p1303 = pneg %p144
        $region14: #{multi_unit_forward.1} parent=11 // pred_check_branch
          %1305 = sbr.rel (%p1303) target = $region16
        $region15: #{multi_unit_forward.1} parent=11 // pred_region
          _
        $region16: #{multi_unit_forward.1} parent=11 // pred_fallthru
          _
        // Predicated region
        $region17: #{multi_unit_forward.1} parent=11 // pred_check
          %p1306 = pneg %p191
        $region18: #{multi_unit_forward.1} parent=11 // pred_check_branch
          %1308 = sbr.rel (%p1306) target = $region20
        $region19: #{multi_unit_forward.1} parent=11 // pred_region
          _
        $region20: #{multi_unit_forward.1} parent=11 // pred_fallthru
          _
        // Predicated region
        $region21: #{multi_unit_forward.1} parent=11 // pred_check
          %p1309 = pneg %p212
        $region22: #{multi_unit_forward.1} parent=11 // pred_check_branch
          %1311 = sbr.rel (%p1309) target = $region24
        $region23: #{multi_unit_forward.1} parent=11 // pred_region
          _
        $region24: #{multi_unit_forward.1} parent=11 // pred_fallthru
          _
        // Predicated region
        $region25: #{multi_unit_forward.1} parent=11 // pred_check
          %p1312 = pneg %p233
        $region26: #{multi_unit_forward.1} parent=11 // pred_check_branch
          %1314 = sbr.rel (%p1312) target = $region28
        $region27: #{multi_unit_forward.1} parent=11 // pred_region
          _
        $region28: #{multi_unit_forward.1} parent=11 // pred_fallthru
          _
        // Predicated region
        $region29: #{multi_unit_forward.1} parent=11 // pred_check
          %p1315 = pneg %p254
        $region30: #{multi_unit_forward.1} parent=11 // pred_check_branch
          %1317 = sbr.rel (%p1315) target = $region32
        $region31: #{multi_unit_forward.1} parent=11 // pred_region
          _
        $region32: #{multi_unit_forward.1} parent=11 // pred_fallthru
          _
        // Predicated region
        $region33: #{multi_unit_forward.1} parent=11 // pred_check
          %p1318 = pneg %p275
        $region34: #{multi_unit_forward.1} parent=11 // pred_check_branch
          %1320 = sbr.rel (%p1318) target = $region36
        $region35: #{multi_unit_forward.1} parent=11 // pred_region
          _
        $region36: #{multi_unit_forward.1} parent=11 // pred_fallthru
          _
        // Predicated region
        $region37: #{multi_unit_forward.1} parent=11 // pred_check
          %p1321 = pneg %p296
        $region38: #{multi_unit_forward.1} parent=11 // pred_check_branch
          %1323 = sbr.rel (%p1321) target = $region40
        $region39: #{multi_unit_forward.1} parent=11 // pred_region
          _
        $region40: #{multi_unit_forward.1} parent=11 // pred_fallthru
          _
        // Predicated region
        $region41: #{multi_unit_forward.1} parent=11 // pred_check
          %p1324 = pneg %p317
        $region42: #{multi_unit_forward.1} parent=11 // pred_check_branch
          %1326 = sbr.rel (%p1324) target = $region44
        $region43: #{multi_unit_forward.1} parent=11 // pred_region
          _
        $region44: #{multi_unit_forward.1} parent=11 // pred_fallthru
          _
        // Predicated region
        $region45: #{multi_unit_forward.1} parent=11 // pred_check
          %p1327 = pneg %p338
        $region46: #{multi_unit_forward.1} parent=11 // pred_check_branch
          %1329 = sbr.rel (%p1327) target = $region48
        $region47: #{multi_unit_forward.1} parent=11 // pred_region
          _
        $region48: #{multi_unit_forward.1} parent=11 // pred_fallthru
          _
        // Predicated region
        $region49: #{multi_unit_forward.1} parent=11 // pred_check
          %p1330 = pneg %p359
        $region50: #{multi_unit_forward.1} parent=11 // pred_check_branch
          %1332 = sbr.rel (%p1330) target = $region52
        $region51: #{multi_unit_forward.1} parent=11 // pred_region
          _
        $region52: #{multi_unit_forward.1} parent=11 // pred_fallthru
          _
        // Predicated region
        $region53: #{multi_unit_forward.1} parent=11 // pred_check
          %p1333 = pneg %p380
        $region54: #{multi_unit_forward.1} parent=11 // pred_check_branch
          %1335 = sbr.rel (%p1333) target = $region56
        $region55: #{multi_unit_forward.1} parent=11 // pred_region
          _
        $region56: #{multi_unit_forward.1} parent=11 // pred_fallthru
          _
        // Predicated region
        $region57: #{multi_unit_forward.1} parent=11 // pred_check
          %p1336 = pneg %p401
        $region58: #{multi_unit_forward.1} parent=11 // pred_check_branch
          %1338 = sbr.rel (%p1336) target = $region60
        $region59: #{multi_unit_forward.1} parent=11 // pred_region
          _
        $region60: #{multi_unit_forward.1} parent=11 // pred_fallthru
          _
        // Predicated region
        $region61: #{multi_unit_forward.1} parent=11 // pred_check
          %p1339 = pneg %p422
        $region62: #{multi_unit_forward.1} parent=11 // pred_check_branch
          %1341 = sbr.rel (%p1339) target = $region64
        $region63: #{multi_unit_forward.1} parent=11 // pred_region
          _
        $region64: #{multi_unit_forward.1} parent=11 // pred_fallthru
          _
        // Predicated region
        $region65: #{multi_unit_forward.1} parent=11 // pred_check
          %p1342 = pneg %p443
        $region66: #{multi_unit_forward.1} parent=11 // pred_check_branch
          %1344 = sbr.rel (%p1342) target = $region68
        $region67: #{multi_unit_forward.1} parent=11 // pred_region
          _
        $region68: #{multi_unit_forward.1} parent=11 // pred_fallthru
          _
        // Predicated region
        $region69: #{multi_unit_forward.1} parent=11 // pred_check
          %p1345 = pneg %p464
        $region70: #{multi_unit_forward.1} parent=11 // pred_check_branch
          %1347 = sbr.rel (%p1345) target = $region72
        $region71: #{multi_unit_forward.1} parent=11 // pred_region
          _
        $region72: #{multi_unit_forward.1} parent=11 // pred_fallthru
          _
        // Predicated region
        $region73: #{multi_unit_forward.1} parent=11 // pred_check
          %p1348 = pneg %p485
        $region74: #{multi_unit_forward.1} parent=11 // pred_check_branch
          %1350 = sbr.rel (%p1348) target = $region76
        $region75: #{multi_unit_forward.1} parent=11 // pred_region
          _
        $region76: #{multi_unit_forward.1} parent=11 // pred_fallthru
          _
        // Predicated region
        $region77: #{multi_unit_forward.1} parent=11 // pred_check
          %p1351 = pneg %p506
        $region78: #{multi_unit_forward.1} parent=11 // pred_check_branch
          %1353 = sbr.rel (%p1351) target = $region80
        $region79: #{multi_unit_forward.1} parent=11 // pred_region
          _
        $region80: #{multi_unit_forward.1} parent=11 // pred_fallthru
          _
        // Predicated region
        $region81: #{multi_unit_forward.1} parent=11 // pred_check
          %p1354 = pneg %p527
        $region82: #{multi_unit_forward.1} parent=11 // pred_check_branch
          %1356 = sbr.rel (%p1354) target = $region84
        $region83: #{multi_unit_forward.1} parent=11 // pred_region
          _
        $region84: #{multi_unit_forward.1} parent=11 // pred_fallthru
          _
        // Predicated region
        $region85: #{multi_unit_forward.1} parent=11 // pred_check
          %p1357 = pneg %p548
        $region86: #{multi_unit_forward.1} parent=11 // pred_check_branch
          %1359 = sbr.rel (%p1357) target = $region88
        $region87: #{multi_unit_forward.1} parent=11 // pred_region
          _
        $region88: #{multi_unit_forward.1} parent=11 // pred_fallthru
          _
        // Predicated region
        $region89: #{multi_unit_forward.1} parent=11 // pred_check
          %p1360 = pneg %p569
        $region90: #{multi_unit_forward.1} parent=11 // pred_check_branch
          %1362 = sbr.rel (%p1360) target = $region92
        $region91: #{multi_unit_forward.1} parent=11 // pred_region
          _
        $region92: #{multi_unit_forward.1} parent=11 // pred_fallthru
          _
        // Predicated region
        $region93: #{multi_unit_forward.1} parent=11 // pred_check
          %p1363 = pneg %p590
        $region94: #{multi_unit_forward.1} parent=11 // pred_check_branch
          %1365 = sbr.rel (%p1363) target = $region96
        $region95: #{multi_unit_forward.1} parent=11 // pred_region
          _
        $region96: #{multi_unit_forward.1} parent=11 // pred_fallthru
          _
        // Predicated region
        $region97: #{multi_unit_forward.1} parent=11 // pred_check
          %p1366 = pneg %p611
        $region98: #{multi_unit_forward.1} parent=11 // pred_check_branch
          %1368 = sbr.rel (%p1366) target = $region100
        $region99: #{multi_unit_forward.1} parent=11 // pred_region
          _
        $region100: #{multi_unit_forward.1} parent=11 // pred_fallthru
          _
        // Predicated region
        $region101: #{multi_unit_forward.1} parent=11 // pred_check
          %p1369 = pneg %p632
        $region102: #{multi_unit_forward.1} parent=11 // pred_check_branch
          %1371 = sbr.rel (%p1369) target = $region104
        $region103: #{multi_unit_forward.1} parent=11 // pred_region
          _
        $region104: #{multi_unit_forward.1} parent=11 // pred_fallthru
          _
        // Predicated region
        $region105: #{multi_unit_forward.1} parent=11 // pred_check
          %p1372 = pneg %p653
        $region106: #{multi_unit_forward.1} parent=11 // pred_check_branch
          %1374 = sbr.rel (%p1372) target = $region108
        $region107: #{multi_unit_forward.1} parent=11 // pred_region
          _
        $region108: #{multi_unit_forward.1} parent=11 // pred_fallthru
          _
        // Predicated region
        $region109: #{multi_unit_forward.1} parent=11 // pred_check
          %p1375 = pneg %p674
        $region110: #{multi_unit_forward.1} parent=11 // pred_check_branch
          %1377 = sbr.rel (%p1375) target = $region112
        $region111: #{multi_unit_forward.1} parent=11 // pred_region
          _
        $region112: #{multi_unit_forward.1} parent=11 // pred_fallthru
          _
        // Predicated region
        $region113: #{multi_unit_forward.1} parent=11 // pred_check
          %p1378 = pneg %p695
        $region114: #{multi_unit_forward.1} parent=11 // pred_check_branch
          %1380 = sbr.rel (%p1378) target = $region116
        $region115: #{multi_unit_forward.1} parent=11 // pred_region
          _
        $region116: #{multi_unit_forward.1} parent=11 // pred_fallthru
          _
        // Predicated region
        $region117: #{multi_unit_forward.1} parent=11 // pred_check
          %p1381 = pneg %p716
        $region118: #{multi_unit_forward.1} parent=11 // pred_check_branch
          %1383 = sbr.rel (%p1381) target = $region120
        $region119: #{multi_unit_forward.1} parent=11 // pred_region
          _
        $region120: #{multi_unit_forward.1} parent=11 // pred_fallthru
          _
        // Predicated region
        $region121: #{multi_unit_forward.1} parent=11 // pred_check
          %p1384 = pneg %p737
        $region122: #{multi_unit_forward.1} parent=11 // pred_check_branch
          %1386 = sbr.rel (%p1384) target = $region124
        $region123: #{multi_unit_forward.1} parent=11 // pred_region
          %1388 = vsyncadd [#allocation6], 0
          %s1390 = sshll.u32 %s57, 4
          %s1391 = int_to_ptr.hbm [resolvable:$true] %s1390
          %s1392 = sshll.u32 [#allocation5], 4
          %s1393 = int_to_ptr.vmem [resolvable:$true] %s1392
          %1395 = dma.hbm_to_vmem [thread:$0]  %s1391, 64, %s1393, [#allocation6]
        $region124: #{multi_unit_forward.1} parent=11 // pred_fallthru
          _
        // Predicated region
        $region125: #{multi_unit_forward.1} parent=11 // pred_check
          %p1396 = pneg %p758
        $region126: #{multi_unit_forward.1} parent=11 // pred_check_branch
          %1398 = sbr.rel (%p1396) target = $region128
        $region127: #{multi_unit_forward.1} parent=11 // pred_region
          _
        $region128: #{multi_unit_forward.1} parent=11 // pred_fallthru
          _
        // Predicated region
        $region129: #{multi_unit_forward.1} parent=11 // pred_check
          %p1399 = pneg %p779
        $region130: #{multi_unit_forward.1} parent=11 // pred_check_branch
          %1401 = sbr.rel (%p1399) target = $region132
        $region131: #{multi_unit_forward.1} parent=11 // pred_region
          %1403 = vsyncadd [#allocation8], 0
          %s1405 = sshll.u32 %s61, 4
          %s1406 = int_to_ptr.hbm [resolvable:$true] %s1405
          %s1407 = sshll.u32 [#allocation7], 4
          %s1408 = int_to_ptr.vmem [resolvable:$true] %s1407
          %1410 = dma.hbm_to_vmem [thread:$0]  %s1406, 64, %s1408, [#allocation8]
        $region132: #{multi_unit_forward.1} parent=11 // pred_fallthru
          _
        // Predicated region
        $region133: #{multi_unit_forward.1} parent=11 // pred_check
          %p1411 = pneg %p800
        $region134: #{multi_unit_forward.1} parent=11 // pred_check_branch
          %1413 = sbr.rel (%p1411) target = $region136
        $region135: #{multi_unit_forward.1} parent=11 // pred_region
          _
        $region136: #{multi_unit_forward.1} parent=11 // pred_fallthru
          _
        // Predicated region
        $region137: #{multi_unit_forward.1} parent=11 // pred_check
          %p1414 = pneg %p821
        $region138: #{multi_unit_forward.1} parent=11 // pred_check_branch
          %1416 = sbr.rel (%p1414) target = $region140
        $region139: #{multi_unit_forward.1} parent=11 // pred_region
          _
        $region140: #{multi_unit_forward.1} parent=11 // pred_fallthru
          _
        // Predicated region
        $region141: #{multi_unit_forward.1} parent=11 // pred_check
          %p1417 = pneg %p842
        $region142: #{multi_unit_forward.1} parent=11 // pred_check_branch
          %1419 = sbr.rel (%p1417) target = $region144
        $region143: #{multi_unit_forward.1} parent=11 // pred_region
          _
        $region144: #{multi_unit_forward.1} parent=11 // pred_fallthru
          _
        // Predicated region
        $region145: #{multi_unit_forward.1} parent=11 // pred_check
          %p1420 = pneg %p863
        $region146: #{multi_unit_forward.1} parent=11 // pred_check_branch
          %1422 = sbr.rel (%p1420) target = $region148
        $region147: #{multi_unit_forward.1} parent=11 // pred_region
          _
        $region148: #{multi_unit_forward.1} parent=11 // pred_fallthru
          _
        // Predicated region
        $region149: #{multi_unit_forward.1} parent=11 // pred_check
          %p1423 = pneg %p884
        $region150: #{multi_unit_forward.1} parent=11 // pred_check_branch
          %1425 = sbr.rel (%p1423) target = $region152
        $region151: #{multi_unit_forward.1} parent=11 // pred_region
          _
        $region152: #{multi_unit_forward.1} parent=11 // pred_fallthru
          _
        // Predicated region
        $region153: #{multi_unit_forward.1} parent=11 // pred_check
          %p1426 = pneg %p905
        $region154: #{multi_unit_forward.1} parent=11 // pred_check_branch
          %1428 = sbr.rel (%p1426) target = $region156
        $region155: #{multi_unit_forward.1} parent=11 // pred_region
          %1430 = vsyncadd [#allocation8], 0
          %s1432 = sshll.u32 %s73, 4
          %s1433 = int_to_ptr.hbm [resolvable:$true] %s1432
          %s1434 = sshll.u32 [#allocation9], 4
          %s1435 = int_to_ptr.vmem [resolvable:$true] %s1434
          %1437 = dma.hbm_to_vmem [thread:$0]  %s1433, 64, %s1435, [#allocation8]
        $region156: #{multi_unit_forward.1} parent=11 // pred_fallthru
          _
        // Predicated region
        $region157: #{multi_unit_forward.1} parent=11 // pred_check
          %p1438 = pneg %p926
        $region158: #{multi_unit_forward.1} parent=11 // pred_check_branch
          %1440 = sbr.rel (%p1438) target = $region160
        $region159: #{multi_unit_forward.1} parent=11 // pred_region
          _
        $region160: #{multi_unit_forward.1} parent=11 // pred_fallthru
          _
        // Predicated region
        $region161: #{multi_unit_forward.1} parent=11 // pred_check
          %p1441 = pneg %p947
        $region162: #{multi_unit_forward.1} parent=11 // pred_check_branch
          %1443 = sbr.rel (%p1441) target = $region164
        $region163: #{multi_unit_forward.1} parent=11 // pred_region
          _
        $region164: #{multi_unit_forward.1} parent=11 // pred_fallthru
          _
        // Predicated region
        $region165: #{multi_unit_forward.1} parent=11 // pred_check
          %p1444 = pneg %p968
        $region166: #{multi_unit_forward.1} parent=11 // pred_check_branch
          %1446 = sbr.rel (%p1444) target = $region168
        $region167: #{multi_unit_forward.1} parent=11 // pred_region
          _
        $region168: #{multi_unit_forward.1} parent=11 // pred_fallthru
          _
        // Predicated region
        $region169: #{multi_unit_forward.1} parent=11 // pred_check
          %p1447 = pneg %p989
        $region170: #{multi_unit_forward.1} parent=11 // pred_check_branch
          %1449 = sbr.rel (%p1447) target = $region172
        $region171: #{multi_unit_forward.1} parent=11 // pred_region
          _
        $region172: #{multi_unit_forward.1} parent=11 // pred_fallthru
          _
        // Predicated region
        $region173: #{multi_unit_forward.1} parent=11 // pred_check
          %p1450 = pneg %p1010
        $region174: #{multi_unit_forward.1} parent=11 // pred_check_branch
          %1452 = sbr.rel (%p1450) target = $region176
        $region175: #{multi_unit_forward.1} parent=11 // pred_region
          _
        $region176: #{multi_unit_forward.1} parent=11 // pred_fallthru
          _
        // Predicated region
        $region177: #{multi_unit_forward.1} parent=11 // pred_check
          %p1453 = pneg %p1031
        $region178: #{multi_unit_forward.1} parent=11 // pred_check_branch
          %1455 = sbr.rel (%p1453) target = $region180
        $region179: #{multi_unit_forward.1} parent=11 // pred_region
          %1457 = vsyncadd [#allocation11], 0
          %s1459 = sshll.u32 %s85, 4
          %s1460 = int_to_ptr.hbm [resolvable:$true] %s1459
          %s1461 = sshll.u32 [#allocation10], 4
          %s1462 = int_to_ptr.vmem [resolvable:$true] %s1461
          %1464 = dma.hbm_to_vmem [thread:$0]  %s1460, 64, %s1462, [#allocation11]
        $region180: #{multi_unit_forward.1} parent=11 // pred_fallthru
          _
        // Predicated region
        $region181: #{multi_unit_forward.1} parent=11 // pred_check
          %p1465 = pneg %p1052
        $region182: #{multi_unit_forward.1} parent=11 // pred_check_branch
          %1467 = sbr.rel (%p1465) target = $region184
        $region183: #{multi_unit_forward.1} parent=11 // pred_region
          _
        $region184: #{multi_unit_forward.1} parent=11 // pred_fallthru
          _
        // Predicated region
        $region185: #{multi_unit_forward.1} parent=11 // pred_check
          %p1468 = pneg %p1073
        $region186: #{multi_unit_forward.1} parent=11 // pred_check_branch
          %1470 = sbr.rel (%p1468) target = $region188
        $region187: #{multi_unit_forward.1} parent=11 // pred_region
          %1472 = vsyncadd [#allocation11], 0
          %s1474 = sshll.u32 %s89, 4
          %s1475 = int_to_ptr.hbm [resolvable:$true] %s1474
          %s1476 = sshll.u32 [#allocation12], 4
          %s1477 = int_to_ptr.vmem [resolvable:$true] %s1476
          %1479 = dma.hbm_to_vmem [thread:$0]  %s1475, 64, %s1477, [#allocation11]
        $region188: #{multi_unit_forward.1} parent=11 // pred_fallthru
          _
        // Predicated region
        $region189: #{multi_unit_forward.1} parent=11 // pred_check
          %p1480 = pneg %p1094
        $region190: #{multi_unit_forward.1} parent=11 // pred_check_branch
          %1482 = sbr.rel (%p1480) target = $region192
        $region191: #{multi_unit_forward.1} parent=11 // pred_region
          _
        $region192: #{multi_unit_forward.1} parent=11 // pred_fallthru
          _
        // Predicated region
        $region193: #{multi_unit_forward.1} parent=11 // pred_check
          %p1483 = pneg %p1115
        $region194: #{multi_unit_forward.1} parent=11 // pred_check_branch
          %1485 = sbr.rel (%p1483) target = $region196
        $region195: #{multi_unit_forward.1} parent=11 // pred_region
          _
        $region196: #{multi_unit_forward.1} parent=11 // pred_fallthru
          _
        // Predicated region
        $region197: #{multi_unit_forward.1} parent=11 // pred_check
          %p1486 = pneg %p1136
        $region198: #{multi_unit_forward.1} parent=11 // pred_check_branch
          %1488 = sbr.rel (%p1486) target = $region200
        $region199: #{multi_unit_forward.1} parent=11 // pred_region
          _
        $region200: #{multi_unit_forward.1} parent=11 // pred_fallthru
          _
        // Predicated region
        $region201: #{multi_unit_forward.1} parent=11 // pred_check
          %p1489 = pneg %p1157
        $region202: #{multi_unit_forward.1} parent=11 // pred_check_branch
          %1491 = sbr.rel (%p1489) target = $region204
        $region203: #{multi_unit_forward.1} parent=11 // pred_region
          _
        $region204: #{multi_unit_forward.1} parent=11 // pred_fallthru
          _
        // Predicated region
        $region205: #{multi_unit_forward.1} parent=11 // pred_check
          %p1492 = pneg %p1178
        $region206: #{multi_unit_forward.1} parent=11 // pred_check_branch
          %1494 = sbr.rel (%p1492) target = $region208
        $region207: #{multi_unit_forward.1} parent=11 // pred_region
          _
        $region208: #{multi_unit_forward.1} parent=11 // pred_fallthru
          _
        // Predicated region
        $region209: #{multi_unit_forward.1} parent=11 // pred_check
          %p1495 = pneg %p1199
        $region210: #{multi_unit_forward.1} parent=11 // pred_check_branch
          %1497 = sbr.rel (%p1495) target = $region212
        $region211: #{multi_unit_forward.1} parent=11 // pred_region
          %1499 = vsyncadd [#allocation14], 0
          %s1501 = sshll.u32 %s101, 4
          %s1502 = int_to_ptr.hbm [resolvable:$true] %s1501
          %s1503 = sshll.u32 [#allocation13], 4
          %s1504 = int_to_ptr.vmem [resolvable:$true] %s1503
          %1506 = dma.hbm_to_vmem [thread:$0]  %s1502, 64, %s1504, [#allocation14]
        $region212: #{multi_unit_forward.1} parent=11 // pred_fallthru
          _
        // Predicated region
        $region213: #{multi_unit_forward.1} parent=11 // pred_check
          %p1507 = pneg %p1220
        $region214: #{multi_unit_forward.1} parent=11 // pred_check_branch
          %1509 = sbr.rel (%p1507) target = $region216
        $region215: #{multi_unit_forward.1} parent=11 // pred_region
          _
        $region216: #{multi_unit_forward.1} parent=11 // pred_fallthru
          _
        // Predicated region
        $region217: #{multi_unit_forward.1} parent=11 // pred_check
          %p1510 = pneg %p1241
        $region218: #{multi_unit_forward.1} parent=11 // pred_check_branch
          %1512 = sbr.rel (%p1510) target = $region220
        $region219: #{multi_unit_forward.1} parent=11 // pred_region
          _
        $region220: #{multi_unit_forward.1} parent=11 // pred_fallthru
          _
        // Predicated region
        $region221: #{multi_unit_forward.1} parent=11 // pred_check
          %p1513 = pneg %p1262
        $region222: #{multi_unit_forward.1} parent=11 // pred_check_branch
          %1515 = sbr.rel (%p1513) target = $region224
        $region223: #{multi_unit_forward.1} parent=11 // pred_region
          _
        $region224: #{multi_unit_forward.1} parent=11 // pred_fallthru
          _
      $region12: #{multi_unit_forward.1} parent=5 // pred_fallthru
        _
      %p1516 = scmp.lt.s32.totalorder %s123, 2
      // Predicated region
      $region225: #{multi_unit_forward.1} parent=5 // pred_check
        %p1517 = pneg %p1516
      $region226: #{multi_unit_forward.1} parent=5 // pred_check_branch
        %1519 = sbr.rel (%p1517) target = $region228
      $region227: #{multi_unit_forward.1} parent=5 // pred_region
        // Predicated region
        $region229: #{multi_unit_forward.1} parent=227 // pred_check
          %p1520 = pneg %p164
        $region230: #{multi_unit_forward.1} parent=227 // pred_check_branch
          %1522 = sbr.rel (%p1520) target = $region232
        $region231: #{multi_unit_forward.1} parent=227 // pred_region
          %s1523 = sand.u32 %s154, 1
          %s1524 = sand.u32 %s154, 1
          %s1525 = smul.addr %s1524, 32
          %s1526 = scalar_lea.vmem [#allocation4], %s1525
          %s1527 = smul.u32 2, %s123
          %s1528 = smul.addr %s1527, 8
          %s1529 = scalar_lea.vmem %s3, %s1528
          // Predicated region
          $region233: #{multi_unit_forward.1} parent=231 // pred_check
            _
          $region234: #{multi_unit_forward.1} parent=231 // pred_check_branch
            %1531 = sbr.rel (0) target = $region236
          $region235: #{multi_unit_forward.1} parent=231 // pred_region
            // Predicated region
            $region237: #{multi_unit_forward.1} parent=235 // pred_check
              _
            $region238: #{multi_unit_forward.1} parent=235 // pred_check_branch
              %1533 = sbr.rel (0) target = $region240
            $region239: #{multi_unit_forward.1} parent=235 // pred_region
              loop: start=0, step=1, limit=1
              $region241: #{multi_unit_forward.1} parent=239 // loop_pre_header
                _
              $region242: #{multi_unit_forward.1} parent=239 // loop_header
                %s1535 = sphi 0, %s1539
                %p1536 = scmp.ge.s32.totalorder %s1535, 1
                %s1540 = sphi %s1529, %s1529
                %s1541 = sphi %s1526, %s1526
              $region243: #{multi_unit_forward.1} parent=239 // loop_header_branch
                %1538 = sbr.rel (%p1536) target = $region247
              $region244: #{multi_unit_forward.1} parent=239 // loop_body
                %v1542 = vld [vmem:[%s1540] sm:$0xff]
                %1543 = vst [vmem:[%s1541] sm:$0xff] %v1542
                %v1544 = vld [vmem:[%s1540 + $0x8] sm:$0xff]
                %1545 = vst [vmem:[%s1541 + $0x8] sm:$0xff] %v1544
                %v1546 = vld [vmem:[%s1540 + $0x20] sm:$0xff]
                %1547 = vst [vmem:[%s1541 + $0x10] sm:$0xff] %v1546
                %v1548 = vld [vmem:[%s1540 + $0x28] sm:$0xff]
                %1549 = vst [vmem:[%s1541 + $0x18] sm:$0xff] %v1548
              $region245: #{multi_unit_forward.1} parent=239 // loop_footer
                %s1539 = sadd.s32 1, %s1535
              $region246: #{multi_unit_forward.1} parent=239 // loop_footer_branch
                %1534 = sbr.rel target = $region242
              $region247: #{multi_unit_forward.1} parent=239 // loop_exit
                _
            $region240: #{multi_unit_forward.1} parent=235 // pred_fallthru
              _
            // Predicated region
            $region248: #{multi_unit_forward.1} parent=235 // pred_check
              _
            $region249: #{multi_unit_forward.1} parent=235 // pred_check_branch
              %1551 = sbr.rel target = $region251
            $region250: #{multi_unit_forward.1} parent=235 // pred_region
              _
            $region251: #{multi_unit_forward.1} parent=235 // pred_fallthru
              _
          $region236: #{multi_unit_forward.1} parent=231 // pred_fallthru
            _
          %1552 = vnop
        $region232: #{multi_unit_forward.1} parent=227 // pred_fallthru
          _
      $region228: #{multi_unit_forward.1} parent=5 // pred_fallthru
        _
      %p1553 = scmp.le.s32.totalorder 1, %s123
      %p1554 = scmp.lt.s32.totalorder %s123, 3
      %p1555 = pnand %p1553, %p1554
      %p1556 = pneg %p1555
      // Predicated region
      $region252: #{multi_unit_forward.1} parent=5 // pred_check
        _
      $region253: #{multi_unit_forward.1} parent=5 // pred_check_branch
        %1558 = sbr.rel (%p1555) target = $region255
      $region254: #{multi_unit_forward.1} parent=5 // pred_region
        %s1559 = ssub.s32 %s123, 1
        %s1560 = sand.u32 %s157, 1
        %s1561 = sand.u32 %s157, 1
        %s1562 = smul.addr %s1561, 32
        %s1563 = scalar_lea.vmem [#allocation4], %s1562
        // Predicated region
        $region256: #{multi_unit_forward.1} parent=254 // pred_check
          %p1564 = pneg %p170
        $region257: #{multi_unit_forward.1} parent=254 // pred_check_branch
          %1566 = sbr.rel (%p1564) target = $region259
        $region258: #{multi_unit_forward.1} parent=254 // pred_region
          _
        $region259: #{multi_unit_forward.1} parent=254 // pred_fallthru
          _
        // Predicated region
        $region260: #{multi_unit_forward.1} parent=254 // pred_check
          %p1567 = pneg %p737
        $region261: #{multi_unit_forward.1} parent=254 // pred_check_branch
          %1569 = sbr.rel (%p1567) target = $region263
        $region262: #{multi_unit_forward.1} parent=254 // pred_region
          %1571 = dma.done [#allocation6], 64
        $region263: #{multi_unit_forward.1} parent=254 // pred_fallthru
          _
        // Predicated region
        $region264: #{multi_unit_forward.1} parent=254 // pred_check
          %p1572 = pneg %p779
        $region265: #{multi_unit_forward.1} parent=254 // pred_check_branch
          %1574 = sbr.rel (%p1572) target = $region267
        $region266: #{multi_unit_forward.1} parent=254 // pred_region
          %1576 = dma.done [#allocation8], 64
        $region267: #{multi_unit_forward.1} parent=254 // pred_fallthru
          _
        // Predicated region
        $region268: #{multi_unit_forward.1} parent=254 // pred_check
          %p1577 = pneg %p905
        $region269: #{multi_unit_forward.1} parent=254 // pred_check_branch
          %1579 = sbr.rel (%p1577) target = $region271
        $region270: #{multi_unit_forward.1} parent=254 // pred_region
          %1581 = dma.done [#allocation8], 64
        $region271: #{multi_unit_forward.1} parent=254 // pred_fallthru
          _
        // Predicated region
        $region272: #{multi_unit_forward.1} parent=254 // pred_check
          %p1582 = pneg %p1031
        $region273: #{multi_unit_forward.1} parent=254 // pred_check_branch
          %1584 = sbr.rel (%p1582) target = $region275
        $region274: #{multi_unit_forward.1} parent=254 // pred_region
          %1586 = dma.done [#allocation11], 64
        $region275: #{multi_unit_forward.1} parent=254 // pred_fallthru
          _
        // Predicated region
        $region276: #{multi_unit_forward.1} parent=254 // pred_check
          %p1587 = pneg %p1073
        $region277: #{multi_unit_forward.1} parent=254 // pred_check_branch
          %1589 = sbr.rel (%p1587) target = $region279
        $region278: #{multi_unit_forward.1} parent=254 // pred_region
          %1591 = dma.done [#allocation11], 64
        $region279: #{multi_unit_forward.1} parent=254 // pred_fallthru
          _
        // Predicated region
        $region280: #{multi_unit_forward.1} parent=254 // pred_check
          %p1592 = pneg %p1199
        $region281: #{multi_unit_forward.1} parent=254 // pred_check_branch
          %1594 = sbr.rel (%p1592) target = $region283
        $region282: #{multi_unit_forward.1} parent=254 // pred_region
          %1596 = dma.done [#allocation14], 64
        $region283: #{multi_unit_forward.1} parent=254 // pred_fallthru
          _
        %p1597 = pneg %p144
        %p1598 = pneg %p141
        %s1599 = sand.u32 %s157, 1
        %s1600 = sand.u32 %s157, 1
        %s1601 = smul.addr %s1600, 32
        %s1602 = scalar_lea.vmem [#allocation4], %s1601
        %p1603 = pneg %p170
        %p1604 = pneg %p167
        %p1605 = pneg %p191
        %p1606 = pneg %p188
        %p1607 = pneg %p212
        %p1608 = pneg %p209
        %p1609 = pneg %p233
        %p1610 = pneg %p230
        %p1611 = pneg %p254
        %p1612 = pneg %p251
        %p1613 = pneg %p275
        %p1614 = pneg %p272
        %p1615 = pneg %p296
        %p1616 = pneg %p293
        %p1617 = pneg %p317
        %p1618 = pneg %p314
        %p1619 = pneg %p338
        %p1620 = pneg %p335
        %p1621 = pneg %p359
        %p1622 = pneg %p356
        %p1623 = pneg %p380
        %p1624 = pneg %p377
        %p1625 = pneg %p401
        %p1626 = pneg %p398
        %p1627 = pneg %p422
        %p1628 = pneg %p419
        %p1629 = pneg %p443
        %p1630 = pneg %p440
        %p1631 = pneg %p464
        %p1632 = pneg %p461
        %p1633 = pneg %p485
        %p1634 = pneg %p482
        %p1635 = pneg %p506
        %p1636 = pneg %p503
        %p1637 = pneg %p527
        %p1638 = pneg %p524
        %p1639 = pneg %p548
        %p1640 = pneg %p545
        %p1641 = pneg %p569
        %p1642 = pneg %p566
        %p1643 = pneg %p590
        %p1644 = pneg %p587
        %p1645 = pneg %p611
        %p1646 = pneg %p608
        %p1647 = pneg %p632
        %p1648 = pneg %p629
        %p1649 = pneg %p653
        %p1650 = pneg %p650
        %p1651 = pneg %p674
        %p1652 = pneg %p671
        %p1653 = pneg %p695
        %p1654 = pneg %p692
        %p1655 = pneg %p716
        %p1656 = pneg %p713
        %p1657 = pneg %p737
        %p1658 = pneg %p734
        %p1659 = pneg %p758
        %p1660 = pneg %p755
        %p1661 = pneg %p779
        %p1662 = pneg %p776
        %p1663 = pneg %p800
        %p1664 = pneg %p797
        %p1665 = pneg %p821
        %p1666 = pneg %p818
        %p1667 = pneg %p842
        %p1668 = pneg %p839
        %p1669 = pneg %p863
        %p1670 = pneg %p860
        %p1671 = pneg %p884
        %p1672 = pneg %p881
        %p1673 = pneg %p905
        %p1674 = pneg %p902
        %p1675 = pneg %p926
        %p1676 = pneg %p923
        %p1677 = pneg %p947
        %p1678 = pneg %p944
        %p1679 = pneg %p968
        %p1680 = pneg %p965
        %p1681 = pneg %p989
        %p1682 = pneg %p986
        %p1683 = pneg %p1010
        %p1684 = pneg %p1007
        %p1685 = pneg %p1031
        %p1686 = pneg %p1028
        %p1687 = pneg %p1052
        %p1688 = pneg %p1049
        %p1689 = pneg %p1073
        %p1690 = pneg %p1070
        %p1691 = pneg %p1094
        %p1692 = pneg %p1091
        %p1693 = pneg %p1115
        %p1694 = pneg %p1112
        %p1695 = pneg %p1136
        %p1696 = pneg %p1133
        %p1697 = pneg %p1157
        %p1698 = pneg %p1154
        %p1699 = pneg %p1178
        %p1700 = pneg %p1175
        %p1701 = pneg %p1199
        %p1702 = pneg %p1196
        %p1703 = pneg %p1220
        %p1704 = pneg %p1217
        %p1705 = pneg %p1241
        %p1706 = pneg %p1238
        %p1707 = pneg %p1262
        %p1708 = pneg %p1259
        %p1709 = pneg %p1288
        %p1710 = pneg %p1285
        %s1711 = smul.u32 2, %s128
        %p1712 = scmp.lt.s32.totalorder %s1711, 3
        %s1713 = scalar_select %p1712, %s1711, 3
        %s1714 = smul.addr %s1713, 2
        %s1715 = scalar_lea.vmem %s109, %s1714
        %s1716 = smul.u32 2, %s128
        %s1717 = smul.u32 2, %s128
        %p1718 = scmp.lt.s32.totalorder %s1717, 3
        %s1719 = scalar_select %p1718, %s1717, 3
        %s1720 = smul.addr %s1719, 2
        %s1721 = scalar_lea.vmem %s109, %s1720
        %s1722 = smul.u32 2, %s128
        %v1724 = vld [vmem:[%s1] sm:$0xff]
        %v1725 = vld [vmem:[%s1 + $0x8] sm:$0xff]
        %v1726 = vld [vmem:[%s1 + $0x10] sm:$0x1]
        %v1727 = vld [vmem:[%s1 + $0x18] sm:$0x1]
        %vm1728 = vcmp.ne.f32.partialorder %v1724, 0.0
        %vm1729 = vcmp.ne.f32.partialorder %v1725, 0.0
        %vm1730 = vcmp.ne.f32.partialorder %v1726, 0.0
        %vm1731 = vcmp.ne.f32.partialorder %v1727, 0.0
        %v1732 = vld [vmem:[%s1563] sm:$0xff]
        %v1733 = vld [vmem:[%s1563 + $0x8] sm:$0xff]
        %1734 = vrot.lane.b32.xlu0 %v1732, 17
        %v1735 = vpop.permute.xlu0 %1734
        %1736 = vrot.lane.b32.xlu0 %v1733, 17
        %v1737 = vpop.permute.xlu0 %1736
        %v1738 = vlaneseq
        %v1739 = vand.u32 %v1738, 127
        %vm1740 = vcmp.lt.s32.totalorder %v1739, 17
        %v1741 = vsel %vm1740, %v1735, %v1737
        %v1742 = vsel %vm1740, %v1737, %v1735
        %v1743 = vsel %vm1728, 1, 0
        %v1744 = vsel %vm1729, 1, 0
        %v1745 = vperm.slane %v1743, 0
        %v1746 = vperm.slane %v1744, 0
        %vm1747 = vcmp.eq.s32.totalorder %v1745, 1
        %vm1748 = vcmp.eq.s32.totalorder %v1746, 1
        %v1749 = vsel %vm1747, %v1742, 0.0
        %v1750 = vsel %vm1748, %v1741, 0.0
        %1751 = vrot.lane.b32.xlu0 %v1732, 16
        %v1752 = vpop.permute.xlu0 %1751
        %1753 = vrot.lane.b32.xlu0 %v1733, 16
        %v1754 = vpop.permute.xlu0 %1753
        %vm1755 = vcmp.lt.s32.totalorder %v1739, 16
        %v1756 = vsel %vm1755, %v1752, %v1754
        %v1757 = vsel %vm1755, %v1754, %v1752
        %v1758 = vperm.slane %v1743, 1
        %v1759 = vperm.slane %v1744, 1
        %vm1760 = vcmp.eq.s32.totalorder %v1758, 1
        %vm1761 = vcmp.eq.s32.totalorder %v1759, 1
        %v1762 = vsel %vm1760, %v1757, 0.0
        %v1763 = vsel %vm1761, %v1756, 0.0
        %1764 = vrot.lane.b32.xlu0 %v1732, 15
        %v1765 = vpop.permute.xlu0 %1764
        %1766 = vrot.lane.b32.xlu0 %v1733, 15
        %v1767 = vpop.permute.xlu0 %1766
        %vm1768 = vcmp.lt.s32.totalorder %v1739, 15
        %v1769 = vsel %vm1768, %v1765, %v1767
        %v1770 = vsel %vm1768, %v1767, %v1765
        %v1771 = vperm.slane %v1743, 2
        %v1772 = vperm.slane %v1744, 2
        %vm1773 = vcmp.eq.s32.totalorder %v1771, 1
        %vm1774 = vcmp.eq.s32.totalorder %v1772, 1
        %v1775 = vsel %vm1773, %v1770, 0.0
        %v1776 = vsel %vm1774, %v1769, 0.0
        %1777 = vrot.lane.b32.xlu0 %v1732, 1
        %v1778 = vpop.permute.xlu0 %1777
        %1779 = vrot.lane.b32.xlu0 %v1733, 1
        %v1780 = vpop.permute.xlu0 %1779
        %vm1781 = vcmp.lt.s32.totalorder %v1739, 1
        %v1782 = vsel %vm1781, %v1778, %v1780
        %v1783 = vsel %vm1781, %v1780, %v1778
        %v1784 = vperm.slane %v1743, 3
        %v1785 = vperm.slane %v1744, 3
        %vm1786 = vcmp.eq.s32.totalorder %v1784, 1
        %vm1787 = vcmp.eq.s32.totalorder %v1785, 1
        %v1788 = vsel %vm1786, %v1783, 0.0
        %v1789 = vsel %vm1787, %v1782, 0.0
        %1790 = vrot.lane.b32.xlu0 %v1732, 127
        %v1791 = vpop.permute.xlu0 %1790
        %1792 = vrot.lane.b32.xlu0 %v1733, 127
        %v1793 = vpop.permute.xlu0 %1792
        %vm1794 = vcmp.lt.s32.totalorder %v1739, 127
        %v1795 = vsel %vm1794, %v1791, %v1793
        %v1796 = vsel %vm1794, %v1793, %v1791
        %v1797 = vperm.slane %v1743, 5
        %v1798 = vperm.slane %v1744, 5
        %vm1799 = vcmp.eq.s32.totalorder %v1797, 1
        %vm1800 = vcmp.eq.s32.totalorder %v1798, 1
        %v1801 = vsel %vm1799, %v1795, 0.0
        %v1802 = vsel %vm1800, %v1796, 0.0
        %1803 = vrot.lane.b32.xlu0 %v1732, 113
        %v1804 = vpop.permute.xlu0 %1803
        %1805 = vrot.lane.b32.xlu0 %v1733, 113
        %v1806 = vpop.permute.xlu0 %1805
        %vm1807 = vcmp.lt.s32.totalorder %v1739, 113
        %v1808 = vsel %vm1807, %v1804, %v1806
        %v1809 = vsel %vm1807, %v1806, %v1804
        %v1810 = vperm.slane %v1743, 6
        %v1811 = vperm.slane %v1744, 6
        %vm1812 = vcmp.eq.s32.totalorder %v1810, 1
        %vm1813 = vcmp.eq.s32.totalorder %v1811, 1
        %v1814 = vsel %vm1812, %v1808, 0.0
        %v1815 = vsel %vm1813, %v1809, 0.0
        %1816 = vrot.lane.b32.xlu0 %v1732, 112
        %v1817 = vpop.permute.xlu0 %1816
        %1818 = vrot.lane.b32.xlu0 %v1733, 112
        %v1819 = vpop.permute.xlu0 %1818
        %vm1820 = vcmp.lt.s32.totalorder %v1739, 112
        %v1821 = vsel %vm1820, %v1817, %v1819
        %v1822 = vsel %vm1820, %v1819, %v1817
        %v1823 = vperm.slane %v1743, 7
        %v1824 = vperm.slane %v1744, 7
        %vm1825 = vcmp.eq.s32.totalorder %v1823, 1
        %vm1826 = vcmp.eq.s32.totalorder %v1824, 1
        %v1827 = vsel %vm1825, %v1821, 0.0
        %v1828 = vsel %vm1826, %v1822, 0.0
        %1829 = vrot.lane.b32.xlu0 %v1732, 111
        %v1830 = vpop.permute.xlu0 %1829
        %1831 = vrot.lane.b32.xlu0 %v1733, 111
        %v1832 = vpop.permute.xlu0 %1831
        %vm1833 = vcmp.lt.s32.totalorder %v1739, 111
        %v1834 = vsel %vm1833, %v1830, %v1832
        %v1835 = vsel %vm1833, %v1832, %v1830
        %v1836 = vsel %vm1730, 1, 0
        %v1837 = vsel %vm1731, 1, 0
        %v1838 = vperm.slane %v1836, 0
        %v1839 = vperm.slane %v1837, 0
        %vm1840 = vcmp.eq.s32.totalorder %v1838, 1
        %vm1841 = vcmp.eq.s32.totalorder %v1839, 1
        %v1842 = vsel %vm1840, %v1834, 0.0
        %v1843 = vsel %vm1841, %v1835, 0.0
        %v1844 = vld [vmem:[%s5] sm:$0xf]
        %v1845 = vpack.c.bf16 %v1762, %v1749
        %v1846 = vpack.c.bf16 %v1763, %v1750
        %v1847 = vpack.c.bf16 %v1788, %v1775
        %v1848 = vpack.c.bf16 %v1789, %v1776
        %v1849 = vpack.c.bf16 %v1801, %v1732
        %v1850 = vpack.c.bf16 %v1802, %v1733
        %v1851 = vpack.c.bf16 %v1827, %v1814
        %v1852 = vpack.c.bf16 %v1828, %v1815
        %v1853 = vpack.c.bf16 %v1842, %v1842
        %v1854 = vpack.c.bf16 %v1843, %v1843
        %v1855 = vld [vmem:[%s7] sm:$0xff]
        %1857 = vset.pattern.permute.xlu0 0
        %1858 = vperm.xlu0 %1857, %v1855
        %v1859 = vpop.permute.xlu0 %1858
        %vm1861 = vcmask 588800
        %v1863 = vsel %vm1861, %v1844, 0
        %vm1865 = vcmask 1043456
        %v1867 = vsel %vm1865, %v1853, 0
        %v1870 = vsel %vm1865, %v1854, 0
        %1872 = vmatpush.bf16.msra.mxu0 0
        %1873 = vmatpush.bf16.msra.mxu0 0
        %1874 = vmatpush.bf16.msra.mxu0 0
        %1875 = vmatpush.bf16.msra.mxu0 %v1867
        %1876 = vmatpush.bf16.msra.mxu0 %v1851
        %1877 = vmatpush.bf16.msra.mxu0 %v1849
        %1878 = vmatpush.bf16.msra.mxu0 %v1847
        %1879 = vmatpush.bf16.msra.mxu0 %v1845
        %1880 = vmatmul.bf16.gmra.mxu0 %v1863
        %v1881 = vpop.f32.mrf.mxu0
        %v1882 = vadd.f32 %v1859, %v1881
        %v1883 = vpop.f32.mrf.mxu0
        %1884 = vdwg.mxu0
        %1885 = vmatpush.bf16.msra.mxu0 0
        %1886 = vmatpush.bf16.msra.mxu0 0
        %1887 = vmatpush.bf16.msra.mxu0 0
        %1888 = vmatpush.bf16.msra.mxu0 %v1870
        %1889 = vmatpush.bf16.msra.mxu0 %v1852
        %1890 = vmatpush.bf16.msra.mxu0 %v1850
        %1891 = vmatpush.bf16.msra.mxu0 %v1848
        %1892 = vmatpush.bf16.msra.mxu0 %v1846
        %1893 = vmatmul.bf16.gmra.mxu0 %v1863
        %v1894 = vpop.f32.mrf.mxu0
        %v1895 = vadd.f32 %v1859, %v1894
        %v1896 = vpop.f32.mrf.mxu0
        %1897 = vdwg.mxu0
        %vm1898 = vcmp.ge.f32.partialorder %v1882, 0.0
        %vm1899 = vcmp.ge.f32.partialorder %v1895, 0.0
        %v1900 = vmul.f32 %v1882, 0.01
        %v1901 = vmul.f32 %v1895, 0.01
        %v1902 = vsel %vm1898, %v1882, %v1900
        %v1903 = vsel %vm1899, %v1895, %v1901
        %1904 = vrot.lane.b32.xlu0 %v1902, 17
        %v1905 = vpop.permute.xlu0 %1904
        %1906 = vrot.lane.b32.xlu0 %v1903, 17
        %v1907 = vpop.permute.xlu0 %1906
        %v1908 = vsel %vm1740, %v1905, %v1907
        %v1909 = vsel %vm1740, %v1907, %v1905
        %v1910 = vsel %vm1747, %v1909, 0.0
        %v1911 = vsel %vm1748, %v1908, 0.0
        %1912 = vrot.lane.b32.xlu0 %v1902, 16
        %v1913 = vpop.permute.xlu0 %1912
        %1914 = vrot.lane.b32.xlu0 %v1903, 16
        %v1915 = vpop.permute.xlu0 %1914
        %v1916 = vsel %vm1755, %v1913, %v1915
        %v1917 = vsel %vm1755, %v1915, %v1913
        %v1918 = vsel %vm1760, %v1917, 0.0
        %v1919 = vsel %vm1761, %v1916, 0.0
        %1920 = vrot.lane.b32.xlu0 %v1902, 15
        %v1921 = vpop.permute.xlu0 %1920
        %1922 = vrot.lane.b32.xlu0 %v1903, 15
        %v1923 = vpop.permute.xlu0 %1922
        %v1924 = vsel %vm1768, %v1921, %v1923
        %v1925 = vsel %vm1768, %v1923, %v1921
        %v1926 = vsel %vm1773, %v1925, 0.0
        %v1927 = vsel %vm1774, %v1924, 0.0
        %1928 = vrot.lane.b32.xlu0 %v1902, 1
        %v1929 = vpop.permute.xlu0 %1928
        %1930 = vrot.lane.b32.xlu0 %v1903, 1
        %v1931 = vpop.permute.xlu0 %1930
        %v1932 = vsel %vm1781, %v1929, %v1931
        %v1933 = vsel %vm1781, %v1931, %v1929
        %v1934 = vsel %vm1786, %v1933, 0.0
        %v1935 = vsel %vm1787, %v1932, 0.0
        %1936 = vrot.lane.b32.xlu0 %v1902, 127
        %v1937 = vpop.permute.xlu0 %1936
        %1938 = vrot.lane.b32.xlu0 %v1903, 127
        %v1939 = vpop.permute.xlu0 %1938
        %v1940 = vsel %vm1794, %v1937, %v1939
        %v1941 = vsel %vm1794, %v1939, %v1937
        %v1942 = vsel %vm1799, %v1940, 0.0
        %v1943 = vsel %vm1800, %v1941, 0.0
        %1944 = vrot.lane.b32.xlu0 %v1902, 113
        %v1945 = vpop.permute.xlu0 %1944
        %1946 = vrot.lane.b32.xlu0 %v1903, 113
        %v1947 = vpop.permute.xlu0 %1946
        %v1948 = vsel %vm1807, %v1945, %v1947
        %v1949 = vsel %vm1807, %v1947, %v1945
        %v1950 = vsel %vm1812, %v1948, 0.0
        %v1951 = vsel %vm1813, %v1949, 0.0
        %1952 = vrot.lane.b32.xlu0 %v1902, 112
        %v1953 = vpop.permute.xlu0 %1952
        %1954 = vrot.lane.b32.xlu0 %v1903, 112
        %v1955 = vpop.permute.xlu0 %1954
        %v1956 = vsel %vm1820, %v1953, %v1955
        %v1957 = vsel %vm1820, %v1955, %v1953
        %v1958 = vsel %vm1825, %v1956, 0.0
        %v1959 = vsel %vm1826, %v1957, 0.0
        %1960 = vrot.lane.b32.xlu0 %v1902, 111
        %v1961 = vpop.permute.xlu0 %1960
        %1962 = vrot.lane.b32.xlu0 %v1903, 111
        %v1963 = vpop.permute.xlu0 %1962
        %v1964 = vsel %vm1833, %v1961, %v1963
        %v1965 = vsel %vm1833, %v1963, %v1961
        %v1966 = vsel %vm1840, %v1964, 0.0
        %v1967 = vsel %vm1841, %v1965, 0.0
        %1968 = vrot.lane.b32.xlu0 0.0, 17
        %v1969 = vpop.permute.xlu0 %1968
        %v1970 = vsel %vm1747, %v1969, 0.0
        %v1971 = vsel %vm1748, %v1969, 0.0
        %1972 = vrot.lane.b32.xlu0 0.0, 16
        %v1973 = vpop.permute.xlu0 %1972
        %v1974 = vsel %vm1760, %v1973, 0.0
        %v1975 = vsel %vm1761, %v1973, 0.0
        %1976 = vrot.lane.b32.xlu0 0.0, 15
        %v1977 = vpop.permute.xlu0 %1976
        %v1978 = vsel %vm1773, %v1977, 0.0
        %v1979 = vsel %vm1774, %v1977, 0.0
        %1980 = vrot.lane.b32.xlu0 0.0, 1
        %v1981 = vpop.permute.xlu0 %1980
        %v1982 = vsel %vm1786, %v1981, 0.0
        %v1983 = vsel %vm1787, %v1981, 0.0
        %1984 = vrot.lane.b32.xlu0 0.0, 127
        %v1985 = vpop.permute.xlu0 %1984
        %v1986 = vsel %vm1799, %v1985, 0.0
        %v1987 = vsel %vm1800, %v1985, 0.0
        %1988 = vrot.lane.b32.xlu0 0.0, 113
        %v1989 = vpop.permute.xlu0 %1988
        %v1990 = vsel %vm1812, %v1989, 0.0
        %v1991 = vsel %vm1813, %v1989, 0.0
        %1992 = vrot.lane.b32.xlu0 0.0, 112
        %v1993 = vpop.permute.xlu0 %1992
        %v1994 = vsel %vm1825, %v1993, 0.0
        %v1995 = vsel %vm1826, %v1993, 0.0
        %1996 = vrot.lane.b32.xlu0 0.0, 111
        %v1997 = vpop.permute.xlu0 %1996
        %v1998 = vsel %vm1840, %v1997, 0.0
        %v1999 = vsel %vm1841, %v1997, 0.0
        %v2000 = vld [vmem:[%s9] sm:$0xff]
        %v2001 = vld [vmem:[%s9 + $0x8] sm:$0xff]
        %v2002 = vpack.c.bf16 %v1918, %v1910
        %v2003 = vpack.c.bf16 %v1919, %v1911
        %v2004 = vpack.c.bf16 %v1934, %v1926
        %v2005 = vpack.c.bf16 %v1935, %v1927
        %v2006 = vpack.c.bf16 %v1942, %v1902
        %v2007 = vpack.c.bf16 %v1943, %v1903
        %v2008 = vpack.c.bf16 %v1958, %v1950
        %v2009 = vpack.c.bf16 %v1959, %v1951
        %v2010 = vpack.c.bf16 %v1970, %v1966
        %v2011 = vpack.c.bf16 %v1971, %v1967
        %v2012 = vpack.c.bf16 %v1978, %v1974
        %v2013 = vpack.c.bf16 %v1979, %v1975
        %v2014 = vpack.c.bf16 0.0, %v1982
        %v2015 = vpack.c.bf16 0.0, %v1983
        %v2016 = vpack.c.bf16 %v1990, %v1986
        %v2017 = vpack.c.bf16 %v1991, %v1987
        %v2018 = vpack.c.bf16 %v1998, %v1994
        %v2019 = vpack.c.bf16 %v1999, %v1995
        %v2020 = vld [vmem:[%s11] sm:$0xff]
        %v2021 = vld [vmem:[%s11 + $0x8] sm:$0xff]
        %2023 = vset.pattern.permute.xlu0 0
        %2024 = vperm.xlu0 %2023, %v2020
        %v2025 = vpop.permute.xlu0 %2024
        %2028 = vset.pattern.permute.xlu0 0
        %2029 = vperm.xlu0 %2028, %v2021
        %v2030 = vpop.permute.xlu0 %2029
        %v2034 = vunpack.c.l.b16 %v2000
        %v2035 = vunpack.c.h.b16 %v2000
        %v2036 = vunpack.c.l.b16 %v2001
        %v2037 = vunpack.c.h.b16 %v2001
        %v2038 = vpack.c.b16 %v2036, %v2034
        %v2039 = vpack.c.b16 %v2037, %v2035
        %vm2041 = vcmask 130048
        %v2043 = vsel %vm2041, %v2039, 0
        %2045 = vmatpush.bf16.msra.mxu0 %v2016
        %2046 = vmatpush.bf16.msra.mxu0 %v2014
        %2047 = vmatpush.bf16.msra.mxu0 %v2012
        %2048 = vmatpush.bf16.msra.mxu0 %v2010
        %2049 = vmatpush.bf16.msra.mxu0 %v2008
        %2050 = vmatpush.bf16.msra.mxu0 %v2006
        %2051 = vmatpush.bf16.msra.mxu0 %v2004
        %2052 = vmatpush.bf16.msra.mxu0 %v2002
        %2053 = vmatmul.bf16.gmra.mxu0 %v2038
        %v2054 = vpop.f32.mrf.mxu0
        %v2055 = vadd.f32 %v2025, %v2054
        %v2056 = vpop.f32.mrf.mxu0
        %v2057 = vadd.f32 %v2030, %v2056
        %2058 = vdwg.mxu0
        %2059 = vmatpush.bf16.msra.mxu0 0
        %2060 = vmatpush.bf16.msra.mxu0 0
        %2061 = vmatpush.bf16.msra.mxu0 0
        %2062 = vmatpush.bf16.msra.mxu0 0
        %2063 = vmatpush.bf16.msra.mxu0 0
        %2064 = vmatpush.bf16.msra.mxu0 0
        %2065 = vmatpush.bf16.msra.mxu0 0
        %2066 = vmatpush.bf16.msra.mxu0 %v2018
        %2067 = vmatmul.bf16.gmra.mxu0 %v2043
        %v2068 = vpop.f32.mrf.mxu0
        %v2069 = vadd.f32 %v2055, %v2068
        %v2070 = vpop.f32.mrf.mxu0
        %v2071 = vadd.f32 %v2057, %v2070
        %2072 = vdwg.mxu0
        %2073 = vmatpush.bf16.msra.mxu0 %v2017
        %2074 = vmatpush.bf16.msra.mxu0 %v2015
        %2075 = vmatpush.bf16.msra.mxu0 %v2013
        %2076 = vmatpush.bf16.msra.mxu0 %v2011
        %2077 = vmatpush.bf16.msra.mxu0 %v2009
        %2078 = vmatpush.bf16.msra.mxu0 %v2007
        %2079 = vmatpush.bf16.msra.mxu0 %v2005
        %2080 = vmatpush.bf16.msra.mxu0 %v2003
        %2081 = vmatmul.bf16.gmra.mxu0 %v2038
        %v2082 = vpop.f32.mrf.mxu0
        %v2083 = vadd.f32 %v2025, %v2082
        %v2084 = vpop.f32.mrf.mxu0
        %v2085 = vadd.f32 %v2030, %v2084
        %2086 = vdwg.mxu0
        %2087 = vmatpush.bf16.msra.mxu0 0
        %2088 = vmatpush.bf16.msra.mxu0 0
        %2089 = vmatpush.bf16.msra.mxu0 0
        %2090 = vmatpush.bf16.msra.mxu0 0
        %2091 = vmatpush.bf16.msra.mxu0 0
        %2092 = vmatpush.bf16.msra.mxu0 0
        %2093 = vmatpush.bf16.msra.mxu0 0
        %2094 = vmatpush.bf16.msra.mxu0 %v2019
        %2095 = vmatmul.bf16.gmra.mxu0 %v2043
        %v2096 = vpop.f32.mrf.mxu0
        %v2097 = vadd.f32 %v2083, %v2096
        %v2098 = vpop.f32.mrf.mxu0
        %v2099 = vadd.f32 %v2085, %v2098
        %2100 = vdwg.mxu0
        %vm2101 = vcmp.ge.f32.partialorder %v2069, 0.0
        %vm2102 = vcmp.ge.f32.partialorder %v2097, 0.0
        %vm2103 = vcmp.ge.f32.partialorder %v2071, 0.0
        %vm2104 = vcmp.ge.f32.partialorder %v2099, 0.0
        %v2105 = vmul.f32 %v2069, 0.01
        %v2106 = vmul.f32 %v2097, 0.01
        %v2107 = vmul.f32 %v2071, 0.01
        %v2108 = vmul.f32 %v2099, 0.01
        %v2109 = vsel %vm2101, %v2069, %v2105
        %v2110 = vsel %vm2102, %v2097, %v2106
        %v2111 = vsel %vm2103, %v2071, %v2107
        %v2112 = vsel %vm2104, %v2099, %v2108
        %v2113 = vxor.u32 %v2109, 2147483648
        %v2114 = vxor.u32 %v2110, 2147483648
        %v2115 = vmul.f32 %v2113, 1.442695
        %v2116 = vpow.pop %v2115
        %v2117 = vmul.f32 %v2114, 1.442695
        %v2118 = vpow.pop %v2117
        %v2119 = vadd.f32 %v2116, 1.0
        %v2120 = vadd.f32 %v2118, 1.0
        %v2121 = vrcp.pop %v2119
        %v2122 = vmul.f32 %v2119, %v2121
        %v2123 = vsub.f32 1.0, %v2122
        %v2124 = vmul.f32 %v2121, %v2123
        %v2125 = vadd.f32 %v2121, %v2124
        %vm2126 = vweird.f32 %v2119
        %vm2127 = vweird.f32 %v2121
        %vm2128 = vmor %vm2126, %vm2127
        %v2129 = vsel %vm2128, %v2121, %v2125
        %v2130 = vand.u32 2147483647, %v2119
        %vm2131 = vcmp.eq.f32.partialorder %v2130, 8.507059e+37
        %v2132 = vand.u32 %v2119, 2147483648
        %v2133 = vor.u32 1.1754944e-38, %v2132
        %v2134 = vsel %vm2131, %v2133, %v2129
        %v2135 = vmul.f32 1.0, %v2134
        %v2136 = vrcp.pop %v2120
        %v2137 = vmul.f32 %v2120, %v2136
        %v2138 = vsub.f32 1.0, %v2137
        %v2139 = vmul.f32 %v2136, %v2138
        %v2140 = vadd.f32 %v2136, %v2139
        %vm2141 = vweird.f32 %v2120
        %vm2142 = vweird.f32 %v2136
        %vm2143 = vmor %vm2141, %vm2142
        %v2144 = vsel %vm2143, %v2136, %v2140
        %v2145 = vand.u32 2147483647, %v2120
        %vm2146 = vcmp.eq.f32.partialorder %v2145, 8.507059e+37
        %v2147 = vand.u32 %v2120, 2147483648
        %v2148 = vor.u32 1.1754944e-38, %v2147
        %v2149 = vsel %vm2146, %v2148, %v2144
        %v2150 = vmul.f32 1.0, %v2149
        %v2151 = vxor.u32 %v2111, 2147483648
        %v2152 = vxor.u32 %v2112, 2147483648
        %v2153 = vmul.f32 %v2151, 1.442695
        %v2154 = vpow.pop %v2153
        %v2155 = vmul.f32 %v2152, 1.442695
        %v2156 = vpow.pop %v2155
        %v2157 = vadd.f32 %v2154, 1.0
        %v2158 = vadd.f32 %v2156, 1.0
        %v2159 = vrcp.pop %v2157
        %v2160 = vmul.f32 %v2157, %v2159
        %v2161 = vsub.f32 1.0, %v2160
        %v2162 = vmul.f32 %v2159, %v2161
        %v2163 = vadd.f32 %v2159, %v2162
        %vm2164 = vweird.f32 %v2157
        %vm2165 = vweird.f32 %v2159
        %vm2166 = vmor %vm2164, %vm2165
        %v2167 = vsel %vm2166, %v2159, %v2163
        %v2168 = vand.u32 2147483647, %v2157
        %vm2169 = vcmp.eq.f32.partialorder %v2168, 8.507059e+37
        %v2170 = vand.u32 %v2157, 2147483648
        %v2171 = vor.u32 1.1754944e-38, %v2170
        %v2172 = vsel %vm2169, %v2171, %v2167
        %v2173 = vmul.f32 1.0, %v2172
        %v2174 = vrcp.pop %v2158
        %v2175 = vmul.f32 %v2158, %v2174
        %v2176 = vsub.f32 1.0, %v2175
        %v2177 = vmul.f32 %v2174, %v2176
        %v2178 = vadd.f32 %v2174, %v2177
        %vm2179 = vweird.f32 %v2158
        %vm2180 = vweird.f32 %v2174
        %vm2181 = vmor %vm2179, %vm2180
        %v2182 = vsel %vm2181, %v2174, %v2178
        %v2183 = vand.u32 2147483647, %v2158
        %vm2184 = vcmp.eq.f32.partialorder %v2183, 8.507059e+37
        %v2185 = vand.u32 %v2158, 2147483648
        %v2186 = vor.u32 1.1754944e-38, %v2185
        %v2187 = vsel %vm2184, %v2186, %v2182
        %v2188 = vmul.f32 1.0, %v2187
        %v2189 = vmul.f32 %v2173, 0.0
        %v2190 = vmul.f32 %v2188, 0.0
        %2191 = vrot.lane.b32.xlu0 %v2189, 17
        %v2192 = vpop.permute.xlu0 %2191
        %2193 = vrot.lane.b32.xlu0 %v2190, 17
        %v2194 = vpop.permute.xlu0 %2193
        %v2195 = vsel %vm1740, %v2192, %v2194
        %v2196 = vsel %vm1740, %v2194, %v2192
        %v2197 = vsel %vm1747, %v2196, 0.0
        %v2198 = vsel %vm1748, %v2195, 0.0
        %2199 = vrot.lane.b32.xlu0 %v2189, 16
        %v2200 = vpop.permute.xlu0 %2199
        %2201 = vrot.lane.b32.xlu0 %v2190, 16
        %v2202 = vpop.permute.xlu0 %2201
        %v2203 = vsel %vm1755, %v2200, %v2202
        %v2204 = vsel %vm1755, %v2202, %v2200
        %v2205 = vsel %vm1760, %v2204, 0.0
        %v2206 = vsel %vm1761, %v2203, 0.0
        %2207 = vrot.lane.b32.xlu0 %v2189, 15
        %v2208 = vpop.permute.xlu0 %2207
        %2209 = vrot.lane.b32.xlu0 %v2190, 15
        %v2210 = vpop.permute.xlu0 %2209
        %v2211 = vsel %vm1768, %v2208, %v2210
        %v2212 = vsel %vm1768, %v2210, %v2208
        %v2213 = vsel %vm1773, %v2212, 0.0
        %v2214 = vsel %vm1774, %v2211, 0.0
        %2215 = vrot.lane.b32.xlu0 %v2189, 1
        %v2216 = vpop.permute.xlu0 %2215
        %2217 = vrot.lane.b32.xlu0 %v2190, 1
        %v2218 = vpop.permute.xlu0 %2217
        %v2219 = vsel %vm1781, %v2216, %v2218
        %v2220 = vsel %vm1781, %v2218, %v2216
        %v2221 = vsel %vm1786, %v2220, 0.0
        %v2222 = vsel %vm1787, %v2219, 0.0
        %2223 = vrot.lane.b32.xlu0 %v2189, 127
        %v2224 = vpop.permute.xlu0 %2223
        %2225 = vrot.lane.b32.xlu0 %v2190, 127
        %v2226 = vpop.permute.xlu0 %2225
        %v2227 = vsel %vm1794, %v2224, %v2226
        %v2228 = vsel %vm1794, %v2226, %v2224
        %v2229 = vsel %vm1799, %v2227, 0.0
        %v2230 = vsel %vm1800, %v2228, 0.0
        %2231 = vrot.lane.b32.xlu0 %v2189, 113
        %v2232 = vpop.permute.xlu0 %2231
        %2233 = vrot.lane.b32.xlu0 %v2190, 113
        %v2234 = vpop.permute.xlu0 %2233
        %v2235 = vsel %vm1807, %v2232, %v2234
        %v2236 = vsel %vm1807, %v2234, %v2232
        %v2237 = vsel %vm1812, %v2235, 0.0
        %v2238 = vsel %vm1813, %v2236, 0.0
        %2239 = vrot.lane.b32.xlu0 %v2189, 112
        %v2240 = vpop.permute.xlu0 %2239
        %2241 = vrot.lane.b32.xlu0 %v2190, 112
        %v2242 = vpop.permute.xlu0 %2241
        %v2243 = vsel %vm1820, %v2240, %v2242
        %v2244 = vsel %vm1820, %v2242, %v2240
        %v2245 = vsel %vm1825, %v2243, 0.0
        %v2246 = vsel %vm1826, %v2244, 0.0
        %2247 = vrot.lane.b32.xlu0 %v2189, 111
        %v2248 = vpop.permute.xlu0 %2247
        %2249 = vrot.lane.b32.xlu0 %v2190, 111
        %v2250 = vpop.permute.xlu0 %2249
        %v2251 = vsel %vm1833, %v2248, %v2250
        %v2252 = vsel %vm1833, %v2250, %v2248
        %v2253 = vsel %vm1840, %v2251, 0.0
        %v2254 = vsel %vm1841, %v2252, 0.0
        %v2255 = vld [vmem:[%s13] sm:$0xff]
        %v2256 = vpack.c.bf16 %v2197, %v1966
        %v2257 = vpack.c.bf16 %v2198, %v1967
        %v2258 = vpack.c.bf16 %v2213, %v2205
        %v2259 = vpack.c.bf16 %v2214, %v2206
        %v2260 = vpack.c.bf16 %v2189, %v2221
        %v2261 = vpack.c.bf16 %v2190, %v2222
        %v2262 = vpack.c.bf16 %v2237, %v2229
        %v2263 = vpack.c.bf16 %v2238, %v2230
        %v2264 = vpack.c.bf16 %v2253, %v2245
        %v2265 = vpack.c.bf16 %v2254, %v2246
        %v2266 = vld [vmem:[%s15] sm:$0xff]
        %2268 = vset.pattern.permute.xlu0 0
        %2269 = vperm.xlu0 %2268, %v2266
        %v2270 = vpop.permute.xlu0 %2269
        %v2273 = vunpack.c.l.b16 %v2255
        %v2274 = vunpack.c.h.b16 %v2255
        %v2275 = vpack.c.b16 %v2273, %v2273
        %v2276 = vpack.c.b16 %v2274, %v2274
        %v2279 = vsel %vm2041, %v2276, 0
        %2281 = vmatpush.bf16.msra.mxu0 %v2262
        %2282 = vmatpush.bf16.msra.mxu0 %v2260
        %2283 = vmatpush.bf16.msra.mxu0 %v2258
        %2284 = vmatpush.bf16.msra.mxu0 %v2256
        %2285 = vmatpush.bf16.msra.mxu0 %v2008
        %2286 = vmatpush.bf16.msra.mxu0 %v2006
        %2287 = vmatpush.bf16.msra.mxu0 %v2004
        %2288 = vmatpush.bf16.msra.mxu0 %v2002
        %2289 = vmatmul.bf16.gmra.mxu0 %v2275
        %v2290 = vpop.f32.mrf.mxu0
        %v2291 = vadd.f32 %v2270, %v2290
        %v2292 = vpop.f32.mrf.mxu0
        %2293 = vdwg.mxu0
        %2294 = vmatpush.bf16.msra.mxu0 0
        %2295 = vmatpush.bf16.msra.mxu0 0
        %2296 = vmatpush.bf16.msra.mxu0 0
        %2297 = vmatpush.bf16.msra.mxu0 0
        %2298 = vmatpush.bf16.msra.mxu0 0
        %2299 = vmatpush.bf16.msra.mxu0 0
        %2300 = vmatpush.bf16.msra.mxu0 0
        %2301 = vmatpush.bf16.msra.mxu0 %v2264
        %2302 = vmatmul.bf16.gmra.mxu0 %v2279
        %v2303 = vpop.f32.mrf.mxu0
        %v2304 = vadd.f32 %v2291, %v2303
        %v2305 = vpop.f32.mrf.mxu0
        %2306 = vdwg.mxu0
        %2307 = vmatpush.bf16.msra.mxu0 %v2263
        %2308 = vmatpush.bf16.msra.mxu0 %v2261
        %2309 = vmatpush.bf16.msra.mxu0 %v2259
        %2310 = vmatpush.bf16.msra.mxu0 %v2257
        %2311 = vmatpush.bf16.msra.mxu0 %v2009
        %2312 = vmatpush.bf16.msra.mxu0 %v2007
        %2313 = vmatpush.bf16.msra.mxu0 %v2005
        %2314 = vmatpush.bf16.msra.mxu0 %v2003
        %2315 = vmatmul.bf16.gmra.mxu0 %v2275
        %v2316 = vpop.f32.mrf.mxu0
        %v2317 = vadd.f32 %v2270, %v2316
        %v2318 = vpop.f32.mrf.mxu0
        %2319 = vdwg.mxu0
        %2320 = vmatpush.bf16.msra.mxu0 0
        %2321 = vmatpush.bf16.msra.mxu0 0
        %2322 = vmatpush.bf16.msra.mxu0 0
        %2323 = vmatpush.bf16.msra.mxu0 0
        %2324 = vmatpush.bf16.msra.mxu0 0
        %2325 = vmatpush.bf16.msra.mxu0 0
        %2326 = vmatpush.bf16.msra.mxu0 0
        %2327 = vmatpush.bf16.msra.mxu0 %v2265
        %2328 = vmatmul.bf16.gmra.mxu0 %v2279
        %v2329 = vpop.f32.mrf.mxu0
        %v2330 = vadd.f32 %v2317, %v2329
        %v2331 = vpop.f32.mrf.mxu0
        %2332 = vdwg.mxu0
        %vm2333 = vcmp.ge.f32.partialorder %v2304, 0.0
        %vm2334 = vcmp.ge.f32.partialorder %v2330, 0.0
        %v2335 = vmul.f32 %v2304, 0.04
        %v2336 = vmul.f32 %v2330, 0.04
        %v2337 = vsel %vm2333, %v2304, %v2335
        %v2338 = vsel %vm2334, %v2330, %v2336
        %v2339 = vmul.f32 %v2135, 0.0
        %v2340 = vmul.f32 %v2150, 0.0
        %v2341 = vsub.f32 1.0, %v2135
        %v2342 = vsub.f32 1.0, %v2150
        %v2343 = vmul.f32 %v2337, %v2341
        %v2344 = vmul.f32 %v2338, %v2342
        %v2345 = vadd.f32 %v2339, %v2343
        %v2346 = vadd.f32 %v2340, %v2344
        %2347 = vrot.lane.b32.xlu0 %v2345, 17
        %v2348 = vpop.permute.xlu0 %2347
        %2349 = vrot.lane.b32.xlu0 %v2346, 17
        %v2350 = vpop.permute.xlu0 %2349
        %v2351 = vsel %vm1740, %v2348, %v2350
        %v2352 = vsel %vm1740, %v2350, %v2348
        %v2353 = vsel %vm1747, %v2352, 0.0
        %v2354 = vsel %vm1748, %v2351, 0.0
        %2355 = vrot.lane.b32.xlu0 %v2345, 16
        %v2356 = vpop.permute.xlu0 %2355
        %2357 = vrot.lane.b32.xlu0 %v2346, 16
        %v2358 = vpop.permute.xlu0 %2357
        %v2359 = vsel %vm1755, %v2356, %v2358
        %v2360 = vsel %vm1755, %v2358, %v2356
        %v2361 = vsel %vm1760, %v2360, 0.0
        %v2362 = vsel %vm1761, %v2359, 0.0
        %2363 = vrot.lane.b32.xlu0 %v2345, 15
        %v2364 = vpop.permute.xlu0 %2363
        %2365 = vrot.lane.b32.xlu0 %v2346, 15
        %v2366 = vpop.permute.xlu0 %2365
        %v2367 = vsel %vm1768, %v2364, %v2366
        %v2368 = vsel %vm1768, %v2366, %v2364
        %v2369 = vsel %vm1773, %v2368, 0.0
        %v2370 = vsel %vm1774, %v2367, 0.0
        %2371 = vrot.lane.b32.xlu0 %v2345, 1
        %v2372 = vpop.permute.xlu0 %2371
        %2373 = vrot.lane.b32.xlu0 %v2346, 1
        %v2374 = vpop.permute.xlu0 %2373
        %v2375 = vsel %vm1781, %v2372, %v2374
        %v2376 = vsel %vm1781, %v2374, %v2372
        %v2377 = vsel %vm1786, %v2376, 0.0
        %v2378 = vsel %vm1787, %v2375, 0.0
        %2379 = vrot.lane.b32.xlu0 %v2345, 127
        %v2380 = vpop.permute.xlu0 %2379
        %2381 = vrot.lane.b32.xlu0 %v2346, 127
        %v2382 = vpop.permute.xlu0 %2381
        %v2383 = vsel %vm1794, %v2380, %v2382
        %v2384 = vsel %vm1794, %v2382, %v2380
        %v2385 = vsel %vm1799, %v2383, 0.0
        %v2386 = vsel %vm1800, %v2384, 0.0
        %2387 = vrot.lane.b32.xlu0 %v2345, 113
        %v2388 = vpop.permute.xlu0 %2387
        %2389 = vrot.lane.b32.xlu0 %v2346, 113
        %v2390 = vpop.permute.xlu0 %2389
        %v2391 = vsel %vm1807, %v2388, %v2390
        %v2392 = vsel %vm1807, %v2390, %v2388
        %v2393 = vsel %vm1812, %v2391, 0.0
        %v2394 = vsel %vm1813, %v2392, 0.0
        %2395 = vrot.lane.b32.xlu0 %v2345, 112
        %v2396 = vpop.permute.xlu0 %2395
        %2397 = vrot.lane.b32.xlu0 %v2346, 112
        %v2398 = vpop.permute.xlu0 %2397
        %v2399 = vsel %vm1820, %v2396, %v2398
        %v2400 = vsel %vm1820, %v2398, %v2396
        %v2401 = vsel %vm1825, %v2399, 0.0
        %v2402 = vsel %vm1826, %v2400, 0.0
        %2403 = vrot.lane.b32.xlu0 %v2345, 111
        %v2404 = vpop.permute.xlu0 %2403
        %2405 = vrot.lane.b32.xlu0 %v2346, 111
        %v2406 = vpop.permute.xlu0 %2405
        %v2407 = vsel %vm1833, %v2404, %v2406
        %v2408 = vsel %vm1833, %v2406, %v2404
        %v2409 = vsel %vm1840, %v2407, 0.0
        %v2410 = vsel %vm1841, %v2408, 0.0
        %v2411 = vld [vmem:[%s17] sm:$0xf]
        %v2412 = vpack.c.bf16 %v2361, %v2353
        %v2413 = vpack.c.bf16 %v2362, %v2354
        %v2414 = vpack.c.bf16 %v2377, %v2369
        %v2415 = vpack.c.bf16 %v2378, %v2370
        %v2416 = vpack.c.bf16 %v2385, %v2345
        %v2417 = vpack.c.bf16 %v2386, %v2346
        %v2418 = vpack.c.bf16 %v2401, %v2393
        %v2419 = vpack.c.bf16 %v2402, %v2394
        %v2420 = vpack.c.bf16 %v2409, %v2409
        %v2421 = vpack.c.bf16 %v2410, %v2410
        %v2422 = vld [vmem:[%s19] sm:$0xff]
        %2424 = vset.pattern.permute.xlu0 0
        %2425 = vperm.xlu0 %2424, %v2422
        %v2426 = vpop.permute.xlu0 %2425
        %v2429 = vsel %vm1861, %v2411, 0
        %v2432 = vsel %vm1865, %v2420, 0
        %v2435 = vsel %vm1865, %v2421, 0
        %2437 = vmatpush.bf16.msra.mxu0 0
        %2438 = vmatpush.bf16.msra.mxu0 0
        %2439 = vmatpush.bf16.msra.mxu0 0
        %2440 = vmatpush.bf16.msra.mxu0 %v2432
        %2441 = vmatpush.bf16.msra.mxu0 %v2418
        %2442 = vmatpush.bf16.msra.mxu0 %v2416
        %2443 = vmatpush.bf16.msra.mxu0 %v2414
        %2444 = vmatpush.bf16.msra.mxu0 %v2412
        %2445 = vmatmul.bf16.gmra.mxu0 %v2429
        %v2446 = vpop.f32.mrf.mxu0
        %v2447 = vadd.f32 %v2426, %v2446
        %v2448 = vpop.f32.mrf.mxu0
        %2449 = vdwg.mxu0
        %2450 = vmatpush.bf16.msra.mxu0 0
        %2451 = vmatpush.bf16.msra.mxu0 0
        %2452 = vmatpush.bf16.msra.mxu0 0
        %2453 = vmatpush.bf16.msra.mxu0 %v2435
        %2454 = vmatpush.bf16.msra.mxu0 %v2419
        %2455 = vmatpush.bf16.msra.mxu0 %v2417
        %2456 = vmatpush.bf16.msra.mxu0 %v2415
        %2457 = vmatpush.bf16.msra.mxu0 %v2413
        %2458 = vmatmul.bf16.gmra.mxu0 %v2429
        %v2459 = vpop.f32.mrf.mxu0
        %v2460 = vadd.f32 %v2426, %v2459
        %v2461 = vpop.f32.mrf.mxu0
        %2462 = vdwg.mxu0
        %vm2463 = vcmp.ge.f32.partialorder %v2447, 0.0
        %vm2464 = vcmp.ge.f32.partialorder %v2460, 0.0
        %v2465 = vmul.f32 %v2447, 0.01
        %v2466 = vmul.f32 %v2460, 0.01
        %v2467 = vsel %vm2463, %v2447, %v2465
        %v2468 = vsel %vm2464, %v2460, %v2466
        %2469 = vrot.lane.b32.xlu0 %v2467, 17
        %v2470 = vpop.permute.xlu0 %2469
        %2471 = vrot.lane.b32.xlu0 %v2468, 17
        %v2472 = vpop.permute.xlu0 %2471
        %v2473 = vsel %vm1740, %v2470, %v2472
        %v2474 = vsel %vm1740, %v2472, %v2470
        %v2475 = vsel %vm1747, %v2474, 0.0
        %v2476 = vsel %vm1748, %v2473, 0.0
        %2477 = vrot.lane.b32.xlu0 %v2467, 16
        %v2478 = vpop.permute.xlu0 %2477
        %2479 = vrot.lane.b32.xlu0 %v2468, 16
        %v2480 = vpop.permute.xlu0 %2479
        %v2481 = vsel %vm1755, %v2478, %v2480
        %v2482 = vsel %vm1755, %v2480, %v2478
        %v2483 = vsel %vm1760, %v2482, 0.0
        %v2484 = vsel %vm1761, %v2481, 0.0
        %2485 = vrot.lane.b32.xlu0 %v2467, 15
        %v2486 = vpop.permute.xlu0 %2485
        %2487 = vrot.lane.b32.xlu0 %v2468, 15
        %v2488 = vpop.permute.xlu0 %2487
        %v2489 = vsel %vm1768, %v2486, %v2488
        %v2490 = vsel %vm1768, %v2488, %v2486
        %v2491 = vsel %vm1773, %v2490, 0.0
        %v2492 = vsel %vm1774, %v2489, 0.0
        %2493 = vrot.lane.b32.xlu0 %v2467, 1
        %v2494 = vpop.permute.xlu0 %2493
        %2495 = vrot.lane.b32.xlu0 %v2468, 1
        %v2496 = vpop.permute.xlu0 %2495
        %v2497 = vsel %vm1781, %v2494, %v2496
        %v2498 = vsel %vm1781, %v2496, %v2494
        %v2499 = vsel %vm1786, %v2498, 0.0
        %v2500 = vsel %vm1787, %v2497, 0.0
        %2501 = vrot.lane.b32.xlu0 %v2467, 127
        %v2502 = vpop.permute.xlu0 %2501
        %2503 = vrot.lane.b32.xlu0 %v2468, 127
        %v2504 = vpop.permute.xlu0 %2503
        %v2505 = vsel %vm1794, %v2502, %v2504
        %v2506 = vsel %vm1794, %v2504, %v2502
        %v2507 = vsel %vm1799, %v2505, 0.0
        %v2508 = vsel %vm1800, %v2506, 0.0
        %2509 = vrot.lane.b32.xlu0 %v2467, 113
        %v2510 = vpop.permute.xlu0 %2509
        %2511 = vrot.lane.b32.xlu0 %v2468, 113
        %v2512 = vpop.permute.xlu0 %2511
        %v2513 = vsel %vm1807, %v2510, %v2512
        %v2514 = vsel %vm1807, %v2512, %v2510
        %v2515 = vsel %vm1812, %v2513, 0.0
        %v2516 = vsel %vm1813, %v2514, 0.0
        %2517 = vrot.lane.b32.xlu0 %v2467, 112
        %v2518 = vpop.permute.xlu0 %2517
        %2519 = vrot.lane.b32.xlu0 %v2468, 112
        %v2520 = vpop.permute.xlu0 %2519
        %v2521 = vsel %vm1820, %v2518, %v2520
        %v2522 = vsel %vm1820, %v2520, %v2518
        %v2523 = vsel %vm1825, %v2521, 0.0
        %v2524 = vsel %vm1826, %v2522, 0.0
        %2525 = vrot.lane.b32.xlu0 %v2467, 111
        %v2526 = vpop.permute.xlu0 %2525
        %2527 = vrot.lane.b32.xlu0 %v2468, 111
        %v2528 = vpop.permute.xlu0 %2527
        %v2529 = vsel %vm1833, %v2526, %v2528
        %v2530 = vsel %vm1833, %v2528, %v2526
        %v2531 = vsel %vm1840, %v2529, 0.0
        %v2532 = vsel %vm1841, %v2530, 0.0
        %v2533 = vld [vmem:[%s21] sm:$0xff]
        %v2534 = vld [vmem:[%s21 + $0x8] sm:$0xff]
        %v2535 = vpack.c.bf16 %v2483, %v2475
        %v2536 = vpack.c.bf16 %v2484, %v2476
        %v2537 = vpack.c.bf16 %v2499, %v2491
        %v2538 = vpack.c.bf16 %v2500, %v2492
        %v2539 = vpack.c.bf16 %v2507, %v2467
        %v2540 = vpack.c.bf16 %v2508, %v2468
        %v2541 = vpack.c.bf16 %v2523, %v2515
        %v2542 = vpack.c.bf16 %v2524, %v2516
        %v2543 = vpack.c.bf16 %v1970, %v2531
        %v2544 = vpack.c.bf16 %v1971, %v2532
        %v2545 = vld [vmem:[%s23] sm:$0xff]
        %v2546 = vld [vmem:[%s23 + $0x8] sm:$0xff]
        %2548 = vset.pattern.permute.xlu0 0
        %2549 = vperm.xlu0 %2548, %v2545
        %v2550 = vpop.permute.xlu0 %2549
        %2553 = vset.pattern.permute.xlu0 0
        %2554 = vperm.xlu0 %2553, %v2546
        %v2555 = vpop.permute.xlu0 %2554
        %v2559 = vunpack.c.l.b16 %v2533
        %v2560 = vunpack.c.h.b16 %v2533
        %v2561 = vunpack.c.l.b16 %v2534
        %v2562 = vunpack.c.h.b16 %v2534
        %v2563 = vpack.c.b16 %v2561, %v2559
        %v2564 = vpack.c.b16 %v2562, %v2560
        %v2567 = vsel %vm2041, %v2564, 0
        %2569 = vmatpush.bf16.msra.mxu0 %v2016
        %2570 = vmatpush.bf16.msra.mxu0 %v2014
        %2571 = vmatpush.bf16.msra.mxu0 %v2012
        %2572 = vmatpush.bf16.msra.mxu0 %v2543
        %2573 = vmatpush.bf16.msra.mxu0 %v2541
        %2574 = vmatpush.bf16.msra.mxu0 %v2539
        %2575 = vmatpush.bf16.msra.mxu0 %v2537
        %2576 = vmatpush.bf16.msra.mxu0 %v2535
        %2577 = vmatmul.bf16.gmra.mxu0 %v2563
        %v2578 = vpop.f32.mrf.mxu0
        %v2579 = vadd.f32 %v2550, %v2578
        %v2580 = vpop.f32.mrf.mxu0
        %v2581 = vadd.f32 %v2555, %v2580
        %2582 = vdwg.mxu0
        %2583 = vmatpush.bf16.msra.mxu0 0
        %2584 = vmatpush.bf16.msra.mxu0 0
        %2585 = vmatpush.bf16.msra.mxu0 0
        %2586 = vmatpush.bf16.msra.mxu0 0
        %2587 = vmatpush.bf16.msra.mxu0 0
        %2588 = vmatpush.bf16.msra.mxu0 0
        %2589 = vmatpush.bf16.msra.mxu0 0
        %2590 = vmatpush.bf16.msra.mxu0 %v2018
        %2591 = vmatmul.bf16.gmra.mxu0 %v2567
        %v2592 = vpop.f32.mrf.mxu0
        %v2593 = vadd.f32 %v2579, %v2592
        %v2594 = vpop.f32.mrf.mxu0
        %v2595 = vadd.f32 %v2581, %v2594
        %2596 = vdwg.mxu0
        %2597 = vmatpush.bf16.msra.mxu0 %v2017
        %2598 = vmatpush.bf16.msra.mxu0 %v2015
        %2599 = vmatpush.bf16.msra.mxu0 %v2013
        %2600 = vmatpush.bf16.msra.mxu0 %v2544
        %2601 = vmatpush.bf16.msra.mxu0 %v2542
        %2602 = vmatpush.bf16.msra.mxu0 %v2540
        %2603 = vmatpush.bf16.msra.mxu0 %v2538
        %2604 = vmatpush.bf16.msra.mxu0 %v2536
        %2605 = vmatmul.bf16.gmra.mxu0 %v2563
        %v2606 = vpop.f32.mrf.mxu0
        %v2607 = vadd.f32 %v2550, %v2606
        %v2608 = vpop.f32.mrf.mxu0
        %v2609 = vadd.f32 %v2555, %v2608
        %2610 = vdwg.mxu0
        %2611 = vmatpush.bf16.msra.mxu0 0
        %2612 = vmatpush.bf16.msra.mxu0 0
        %2613 = vmatpush.bf16.msra.mxu0 0
        %2614 = vmatpush.bf16.msra.mxu0 0
        %2615 = vmatpush.bf16.msra.mxu0 0
        %2616 = vmatpush.bf16.msra.mxu0 0
        %2617 = vmatpush.bf16.msra.mxu0 0
        %2618 = vmatpush.bf16.msra.mxu0 %v2019
        %2619 = vmatmul.bf16.gmra.mxu0 %v2567
        %v2620 = vpop.f32.mrf.mxu0
        %v2621 = vadd.f32 %v2607, %v2620
        %v2622 = vpop.f32.mrf.mxu0
        %v2623 = vadd.f32 %v2609, %v2622
        %2624 = vdwg.mxu0
        %vm2625 = vcmp.ge.f32.partialorder %v2593, 0.0
        %vm2626 = vcmp.ge.f32.partialorder %v2621, 0.0
        %vm2627 = vcmp.ge.f32.partialorder %v2595, 0.0
        %vm2628 = vcmp.ge.f32.partialorder %v2623, 0.0
        %v2629 = vmul.f32 %v2593, 0.01
        %v2630 = vmul.f32 %v2621, 0.01
        %v2631 = vmul.f32 %v2595, 0.01
        %v2632 = vmul.f32 %v2623, 0.01
        %v2633 = vsel %vm2625, %v2593, %v2629
        %v2634 = vsel %vm2626, %v2621, %v2630
        %v2635 = vsel %vm2627, %v2595, %v2631
        %v2636 = vsel %vm2628, %v2623, %v2632
        %v2637 = vxor.u32 %v2633, 2147483648
        %v2638 = vxor.u32 %v2634, 2147483648
        %v2639 = vmul.f32 %v2637, 1.442695
        %v2640 = vpow.pop %v2639
        %v2641 = vmul.f32 %v2638, 1.442695
        %v2642 = vpow.pop %v2641
        %v2643 = vadd.f32 %v2640, 1.0
        %v2644 = vadd.f32 %v2642, 1.0
        %v2645 = vrcp.pop %v2643
        %v2646 = vmul.f32 %v2643, %v2645
        %v2647 = vsub.f32 1.0, %v2646
        %v2648 = vmul.f32 %v2645, %v2647
        %v2649 = vadd.f32 %v2645, %v2648
        %vm2650 = vweird.f32 %v2643
        %vm2651 = vweird.f32 %v2645
        %vm2652 = vmor %vm2650, %vm2651
        %v2653 = vsel %vm2652, %v2645, %v2649
        %v2654 = vand.u32 2147483647, %v2643
        %vm2655 = vcmp.eq.f32.partialorder %v2654, 8.507059e+37
        %v2656 = vand.u32 %v2643, 2147483648
        %v2657 = vor.u32 1.1754944e-38, %v2656
        %v2658 = vsel %vm2655, %v2657, %v2653
        %v2659 = vmul.f32 1.0, %v2658
        %v2660 = vrcp.pop %v2644
        %v2661 = vmul.f32 %v2644, %v2660
        %v2662 = vsub.f32 1.0, %v2661
        %v2663 = vmul.f32 %v2660, %v2662
        %v2664 = vadd.f32 %v2660, %v2663
        %vm2665 = vweird.f32 %v2644
        %vm2666 = vweird.f32 %v2660
        %vm2667 = vmor %vm2665, %vm2666
        %v2668 = vsel %vm2667, %v2660, %v2664
        %v2669 = vand.u32 2147483647, %v2644
        %vm2670 = vcmp.eq.f32.partialorder %v2669, 8.507059e+37
        %v2671 = vand.u32 %v2644, 2147483648
        %v2672 = vor.u32 1.1754944e-38, %v2671
        %v2673 = vsel %vm2670, %v2672, %v2668
        %v2674 = vmul.f32 1.0, %v2673
        %v2675 = vxor.u32 %v2635, 2147483648
        %v2676 = vxor.u32 %v2636, 2147483648
        %v2677 = vmul.f32 %v2675, 1.442695
        %v2678 = vpow.pop %v2677
        %v2679 = vmul.f32 %v2676, 1.442695
        %v2680 = vpow.pop %v2679
        %v2681 = vadd.f32 %v2678, 1.0
        %v2682 = vadd.f32 %v2680, 1.0
        %v2683 = vrcp.pop %v2681
        %v2684 = vmul.f32 %v2681, %v2683
        %v2685 = vsub.f32 1.0, %v2684
        %v2686 = vmul.f32 %v2683, %v2685
        %v2687 = vadd.f32 %v2683, %v2686
        %vm2688 = vweird.f32 %v2681
        %vm2689 = vweird.f32 %v2683
        %vm2690 = vmor %vm2688, %vm2689
        %v2691 = vsel %vm2690, %v2683, %v2687
        %v2692 = vand.u32 2147483647, %v2681
        %vm2693 = vcmp.eq.f32.partialorder %v2692, 8.507059e+37
        %v2694 = vand.u32 %v2681, 2147483648
        %v2695 = vor.u32 1.1754944e-38, %v2694
        %v2696 = vsel %vm2693, %v2695, %v2691
        %v2697 = vmul.f32 1.0, %v2696
        %v2698 = vrcp.pop %v2682
        %v2699 = vmul.f32 %v2682, %v2698
        %v2700 = vsub.f32 1.0, %v2699
        %v2701 = vmul.f32 %v2698, %v2700
        %v2702 = vadd.f32 %v2698, %v2701
        %vm2703 = vweird.f32 %v2682
        %vm2704 = vweird.f32 %v2698
        %vm2705 = vmor %vm2703, %vm2704
        %v2706 = vsel %vm2705, %v2698, %v2702
        %v2707 = vand.u32 2147483647, %v2682
        %vm2708 = vcmp.eq.f32.partialorder %v2707, 8.507059e+37
        %v2709 = vand.u32 %v2682, 2147483648
        %v2710 = vor.u32 1.1754944e-38, %v2709
        %v2711 = vsel %vm2708, %v2710, %v2706
        %v2712 = vmul.f32 1.0, %v2711
        %v2713 = vmul.f32 %v2697, 0.0
        %v2714 = vmul.f32 %v2712, 0.0
        %2715 = vrot.lane.b32.xlu0 %v2713, 17
        %v2716 = vpop.permute.xlu0 %2715
        %2717 = vrot.lane.b32.xlu0 %v2714, 17
        %v2718 = vpop.permute.xlu0 %2717
        %v2719 = vsel %vm1740, %v2716, %v2718
        %v2720 = vsel %vm1740, %v2718, %v2716
        %v2721 = vsel %vm1747, %v2720, 0.0
        %v2722 = vsel %vm1748, %v2719, 0.0
        %2723 = vrot.lane.b32.xlu0 %v2713, 16
        %v2724 = vpop.permute.xlu0 %2723
        %2725 = vrot.lane.b32.xlu0 %v2714, 16
        %v2726 = vpop.permute.xlu0 %2725
        %v2727 = vsel %vm1755, %v2724, %v2726
        %v2728 = vsel %vm1755, %v2726, %v2724
        %v2729 = vsel %vm1760, %v2728, 0.0
        %v2730 = vsel %vm1761, %v2727, 0.0
        %2731 = vrot.lane.b32.xlu0 %v2713, 15
        %v2732 = vpop.permute.xlu0 %2731
        %2733 = vrot.lane.b32.xlu0 %v2714, 15
        %v2734 = vpop.permute.xlu0 %2733
        %v2735 = vsel %vm1768, %v2732, %v2734
        %v2736 = vsel %vm1768, %v2734, %v2732
        %v2737 = vsel %vm1773, %v2736, 0.0
        %v2738 = vsel %vm1774, %v2735, 0.0
        %2739 = vrot.lane.b32.xlu0 %v2713, 1
        %v2740 = vpop.permute.xlu0 %2739
        %2741 = vrot.lane.b32.xlu0 %v2714, 1
        %v2742 = vpop.permute.xlu0 %2741
        %v2743 = vsel %vm1781, %v2740, %v2742
        %v2744 = vsel %vm1781, %v2742, %v2740
        %v2745 = vsel %vm1786, %v2744, 0.0
        %v2746 = vsel %vm1787, %v2743, 0.0
        %2747 = vrot.lane.b32.xlu0 %v2713, 127
        %v2748 = vpop.permute.xlu0 %2747
        %2749 = vrot.lane.b32.xlu0 %v2714, 127
        %v2750 = vpop.permute.xlu0 %2749
        %v2751 = vsel %vm1794, %v2748, %v2750
        %v2752 = vsel %vm1794, %v2750, %v2748
        %v2753 = vsel %vm1799, %v2751, 0.0
        %v2754 = vsel %vm1800, %v2752, 0.0
        %2755 = vrot.lane.b32.xlu0 %v2713, 113
        %v2756 = vpop.permute.xlu0 %2755
        %2757 = vrot.lane.b32.xlu0 %v2714, 113
        %v2758 = vpop.permute.xlu0 %2757
        %v2759 = vsel %vm1807, %v2756, %v2758
        %v2760 = vsel %vm1807, %v2758, %v2756
        %v2761 = vsel %vm1812, %v2759, 0.0
        %v2762 = vsel %vm1813, %v2760, 0.0
        %2763 = vrot.lane.b32.xlu0 %v2713, 112
        %v2764 = vpop.permute.xlu0 %2763
        %2765 = vrot.lane.b32.xlu0 %v2714, 112
        %v2766 = vpop.permute.xlu0 %2765
        %v2767 = vsel %vm1820, %v2764, %v2766
        %v2768 = vsel %vm1820, %v2766, %v2764
        %v2769 = vsel %vm1825, %v2767, 0.0
        %v2770 = vsel %vm1826, %v2768, 0.0
        %2771 = vrot.lane.b32.xlu0 %v2713, 111
        %v2772 = vpop.permute.xlu0 %2771
        %2773 = vrot.lane.b32.xlu0 %v2714, 111
        %v2774 = vpop.permute.xlu0 %2773
        %v2775 = vsel %vm1833, %v2772, %v2774
        %v2776 = vsel %vm1833, %v2774, %v2772
        %v2777 = vsel %vm1840, %v2775, 0.0
        %v2778 = vsel %vm1841, %v2776, 0.0
        %v2779 = vld [vmem:[%s25] sm:$0xff]
        %v2780 = vpack.c.bf16 %v2721, %v2531
        %v2781 = vpack.c.bf16 %v2722, %v2532
        %v2782 = vpack.c.bf16 %v2737, %v2729
        %v2783 = vpack.c.bf16 %v2738, %v2730
        %v2784 = vpack.c.bf16 %v2713, %v2745
        %v2785 = vpack.c.bf16 %v2714, %v2746
        %v2786 = vpack.c.bf16 %v2761, %v2753
        %v2787 = vpack.c.bf16 %v2762, %v2754
        %v2788 = vpack.c.bf16 %v2777, %v2769
        %v2789 = vpack.c.bf16 %v2778, %v2770
        %v2790 = vld [vmem:[%s27] sm:$0xff]
        %2792 = vset.pattern.permute.xlu0 0
        %2793 = vperm.xlu0 %2792, %v2790
        %v2794 = vpop.permute.xlu0 %2793
        %v2797 = vunpack.c.l.b16 %v2779
        %v2798 = vunpack.c.h.b16 %v2779
        %v2799 = vpack.c.b16 %v2797, %v2797
        %v2800 = vpack.c.b16 %v2798, %v2798
        %v2803 = vsel %vm2041, %v2800, 0
        %2805 = vmatpush.bf16.msra.mxu0 %v2786
        %2806 = vmatpush.bf16.msra.mxu0 %v2784
        %2807 = vmatpush.bf16.msra.mxu0 %v2782
        %2808 = vmatpush.bf16.msra.mxu0 %v2780
        %2809 = vmatpush.bf16.msra.mxu0 %v2541
        %2810 = vmatpush.bf16.msra.mxu0 %v2539
        %2811 = vmatpush.bf16.msra.mxu0 %v2537
        %2812 = vmatpush.bf16.msra.mxu0 %v2535
        %2813 = vmatmul.bf16.gmra.mxu0 %v2799
        %v2814 = vpop.f32.mrf.mxu0
        %v2815 = vadd.f32 %v2794, %v2814
        %v2816 = vpop.f32.mrf.mxu0
        %2817 = vdwg.mxu0
        %2818 = vmatpush.bf16.msra.mxu0 0
        %2819 = vmatpush.bf16.msra.mxu0 0
        %2820 = vmatpush.bf16.msra.mxu0 0
        %2821 = vmatpush.bf16.msra.mxu0 0
        %2822 = vmatpush.bf16.msra.mxu0 0
        %2823 = vmatpush.bf16.msra.mxu0 0
        %2824 = vmatpush.bf16.msra.mxu0 0
        %2825 = vmatpush.bf16.msra.mxu0 %v2788
        %2826 = vmatmul.bf16.gmra.mxu0 %v2803
        %v2827 = vpop.f32.mrf.mxu0
        %v2828 = vadd.f32 %v2815, %v2827
        %v2829 = vpop.f32.mrf.mxu0
        %2830 = vdwg.mxu0
        %2831 = vmatpush.bf16.msra.mxu0 %v2787
        %2832 = vmatpush.bf16.msra.mxu0 %v2785
        %2833 = vmatpush.bf16.msra.mxu0 %v2783
        %2834 = vmatpush.bf16.msra.mxu0 %v2781
        %2835 = vmatpush.bf16.msra.mxu0 %v2542
        %2836 = vmatpush.bf16.msra.mxu0 %v2540
        %2837 = vmatpush.bf16.msra.mxu0 %v2538
        %2838 = vmatpush.bf16.msra.mxu0 %v2536
        %2839 = vmatmul.bf16.gmra.mxu0 %v2799
        %v2840 = vpop.f32.mrf.mxu0
        %v2841 = vadd.f32 %v2794, %v2840
        %v2842 = vpop.f32.mrf.mxu0
        %2843 = vdwg.mxu0
        %2844 = vmatpush.bf16.msra.mxu0 0
        %2845 = vmatpush.bf16.msra.mxu0 0
        %2846 = vmatpush.bf16.msra.mxu0 0
        %2847 = vmatpush.bf16.msra.mxu0 0
        %2848 = vmatpush.bf16.msra.mxu0 0
        %2849 = vmatpush.bf16.msra.mxu0 0
        %2850 = vmatpush.bf16.msra.mxu0 0
        %2851 = vmatpush.bf16.msra.mxu0 %v2789
        %2852 = vmatmul.bf16.gmra.mxu0 %v2803
        %v2853 = vpop.f32.mrf.mxu0
        %v2854 = vadd.f32 %v2841, %v2853
        %v2855 = vpop.f32.mrf.mxu0
        %2856 = vdwg.mxu0
        %vm2857 = vcmp.ge.f32.partialorder %v2828, 0.0
        %vm2858 = vcmp.ge.f32.partialorder %v2854, 0.0
        %v2859 = vmul.f32 %v2828, 0.04
        %v2860 = vmul.f32 %v2854, 0.04
        %v2861 = vsel %vm2857, %v2828, %v2859
        %v2862 = vsel %vm2858, %v2854, %v2860
        %v2863 = vmul.f32 %v2659, 0.0
        %v2864 = vmul.f32 %v2674, 0.0
        %v2865 = vsub.f32 1.0, %v2659
        %v2866 = vsub.f32 1.0, %v2674
        %v2867 = vmul.f32 %v2861, %v2865
        %v2868 = vmul.f32 %v2862, %v2866
        %v2869 = vadd.f32 %v2863, %v2867
        %v2870 = vadd.f32 %v2864, %v2868
        %v2871 = vld [vmem:[%s1563 + $0x10] sm:$0xff]
        %v2872 = vld [vmem:[%s1563 + $0x18] sm:$0xff]
        %2873 = vrot.lane.b32.xlu0 %v2871, 17
        %v2874 = vpop.permute.xlu0 %2873
        %2875 = vrot.lane.b32.xlu0 %v2872, 17
        %v2876 = vpop.permute.xlu0 %2875
        %v2877 = vsel %vm1740, %v2874, %v2876
        %v2878 = vsel %vm1740, %v2876, %v2874
        %v2879 = vsel %vm1747, %v2878, 0.0
        %v2880 = vsel %vm1748, %v2877, 0.0
        %2881 = vrot.lane.b32.xlu0 %v2871, 16
        %v2882 = vpop.permute.xlu0 %2881
        %2883 = vrot.lane.b32.xlu0 %v2872, 16
        %v2884 = vpop.permute.xlu0 %2883
        %v2885 = vsel %vm1755, %v2882, %v2884
        %v2886 = vsel %vm1755, %v2884, %v2882
        %v2887 = vsel %vm1760, %v2886, 0.0
        %v2888 = vsel %vm1761, %v2885, 0.0
        %2889 = vrot.lane.b32.xlu0 %v2871, 15
        %v2890 = vpop.permute.xlu0 %2889
        %2891 = vrot.lane.b32.xlu0 %v2872, 15
        %v2892 = vpop.permute.xlu0 %2891
        %v2893 = vsel %vm1768, %v2890, %v2892
        %v2894 = vsel %vm1768, %v2892, %v2890
        %v2895 = vsel %vm1773, %v2894, 0.0
        %v2896 = vsel %vm1774, %v2893, 0.0
        %2897 = vrot.lane.b32.xlu0 %v2871, 1
        %v2898 = vpop.permute.xlu0 %2897
        %2899 = vrot.lane.b32.xlu0 %v2872, 1
        %v2900 = vpop.permute.xlu0 %2899
        %v2901 = vsel %vm1781, %v2898, %v2900
        %v2902 = vsel %vm1781, %v2900, %v2898
        %v2903 = vsel %vm1786, %v2902, 0.0
        %v2904 = vsel %vm1787, %v2901, 0.0
        %2905 = vrot.lane.b32.xlu0 %v2871, 127
        %v2906 = vpop.permute.xlu0 %2905
        %2907 = vrot.lane.b32.xlu0 %v2872, 127
        %v2908 = vpop.permute.xlu0 %2907
        %v2909 = vsel %vm1794, %v2906, %v2908
        %v2910 = vsel %vm1794, %v2908, %v2906
        %v2911 = vsel %vm1799, %v2909, 0.0
        %v2912 = vsel %vm1800, %v2910, 0.0
        %2913 = vrot.lane.b32.xlu0 %v2871, 113
        %v2914 = vpop.permute.xlu0 %2913
        %2915 = vrot.lane.b32.xlu0 %v2872, 113
        %v2916 = vpop.permute.xlu0 %2915
        %v2917 = vsel %vm1807, %v2914, %v2916
        %v2918 = vsel %vm1807, %v2916, %v2914
        %v2919 = vsel %vm1812, %v2917, 0.0
        %v2920 = vsel %vm1813, %v2918, 0.0
        %2921 = vrot.lane.b32.xlu0 %v2871, 112
        %v2922 = vpop.permute.xlu0 %2921
        %2923 = vrot.lane.b32.xlu0 %v2872, 112
        %v2924 = vpop.permute.xlu0 %2923
        %v2925 = vsel %vm1820, %v2922, %v2924
        %v2926 = vsel %vm1820, %v2924, %v2922
        %v2927 = vsel %vm1825, %v2925, 0.0
        %v2928 = vsel %vm1826, %v2926, 0.0
        %2929 = vrot.lane.b32.xlu0 %v2871, 111
        %v2930 = vpop.permute.xlu0 %2929
        %2931 = vrot.lane.b32.xlu0 %v2872, 111
        %v2932 = vpop.permute.xlu0 %2931
        %v2933 = vsel %vm1833, %v2930, %v2932
        %v2934 = vsel %vm1833, %v2932, %v2930
        %v2935 = vsel %vm1840, %v2933, 0.0
        %v2936 = vsel %vm1841, %v2934, 0.0
        %v2937 = vld [vmem:[%s29] sm:$0xf]
        %v2938 = vpack.c.bf16 %v2887, %v2879
        %v2939 = vpack.c.bf16 %v2888, %v2880
        %v2940 = vpack.c.bf16 %v2903, %v2895
        %v2941 = vpack.c.bf16 %v2904, %v2896
        %v2942 = vpack.c.bf16 %v2911, %v2871
        %v2943 = vpack.c.bf16 %v2912, %v2872
        %v2944 = vpack.c.bf16 %v2927, %v2919
        %v2945 = vpack.c.bf16 %v2928, %v2920
        %v2946 = vpack.c.bf16 %v2935, %v2935
        %v2947 = vpack.c.bf16 %v2936, %v2936
        %v2948 = vld [vmem:[%s31] sm:$0xff]
        %2950 = vset.pattern.permute.xlu0 0
        %2951 = vperm.xlu0 %2950, %v2948
        %v2952 = vpop.permute.xlu0 %2951
        %v2955 = vsel %vm1861, %v2937, 0
        %v2958 = vsel %vm1865, %v2946, 0
        %v2961 = vsel %vm1865, %v2947, 0
        %2963 = vmatpush.bf16.msra.mxu0 0
        %2964 = vmatpush.bf16.msra.mxu0 0
        %2965 = vmatpush.bf16.msra.mxu0 0
        %2966 = vmatpush.bf16.msra.mxu0 %v2958
        %2967 = vmatpush.bf16.msra.mxu0 %v2944
        %2968 = vmatpush.bf16.msra.mxu0 %v2942
        %2969 = vmatpush.bf16.msra.mxu0 %v2940
        %2970 = vmatpush.bf16.msra.mxu0 %v2938
        %2971 = vmatmul.bf16.gmra.mxu0 %v2955
        %v2972 = vpop.f32.mrf.mxu0
        %v2973 = vadd.f32 %v2952, %v2972
        %v2974 = vpop.f32.mrf.mxu0
        %2975 = vdwg.mxu0
        %2976 = vmatpush.bf16.msra.mxu0 0
        %2977 = vmatpush.bf16.msra.mxu0 0
        %2978 = vmatpush.bf16.msra.mxu0 0
        %2979 = vmatpush.bf16.msra.mxu0 %v2961
        %2980 = vmatpush.bf16.msra.mxu0 %v2945
        %2981 = vmatpush.bf16.msra.mxu0 %v2943
        %2982 = vmatpush.bf16.msra.mxu0 %v2941
        %2983 = vmatpush.bf16.msra.mxu0 %v2939
        %2984 = vmatmul.bf16.gmra.mxu0 %v2955
        %v2985 = vpop.f32.mrf.mxu0
        %v2986 = vadd.f32 %v2952, %v2985
        %v2987 = vpop.f32.mrf.mxu0
        %2988 = vdwg.mxu0
        %vm2989 = vcmp.ge.f32.partialorder %v2973, 0.0
        %vm2990 = vcmp.ge.f32.partialorder %v2986, 0.0
        %v2991 = vmul.f32 %v2973, 0.01
        %v2992 = vmul.f32 %v2986, 0.01
        %v2993 = vsel %vm2989, %v2973, %v2991
        %v2994 = vsel %vm2990, %v2986, %v2992
        %2995 = vrot.lane.b32.xlu0 %v2993, 17
        %v2996 = vpop.permute.xlu0 %2995
        %2997 = vrot.lane.b32.xlu0 %v2994, 17
        %v2998 = vpop.permute.xlu0 %2997
        %v2999 = vsel %vm1740, %v2996, %v2998
        %v3000 = vsel %vm1740, %v2998, %v2996
        %v3001 = vsel %vm1747, %v3000, 0.0
        %v3002 = vsel %vm1748, %v2999, 0.0
        %3003 = vrot.lane.b32.xlu0 %v2993, 16
        %v3004 = vpop.permute.xlu0 %3003
        %3005 = vrot.lane.b32.xlu0 %v2994, 16
        %v3006 = vpop.permute.xlu0 %3005
        %v3007 = vsel %vm1755, %v3004, %v3006
        %v3008 = vsel %vm1755, %v3006, %v3004
        %v3009 = vsel %vm1760, %v3008, 0.0
        %v3010 = vsel %vm1761, %v3007, 0.0
        %3011 = vrot.lane.b32.xlu0 %v2993, 15
        %v3012 = vpop.permute.xlu0 %3011
        %3013 = vrot.lane.b32.xlu0 %v2994, 15
        %v3014 = vpop.permute.xlu0 %3013
        %v3015 = vsel %vm1768, %v3012, %v3014
        %v3016 = vsel %vm1768, %v3014, %v3012
        %v3017 = vsel %vm1773, %v3016, 0.0
        %v3018 = vsel %vm1774, %v3015, 0.0
        %3019 = vrot.lane.b32.xlu0 %v2993, 1
        %v3020 = vpop.permute.xlu0 %3019
        %3021 = vrot.lane.b32.xlu0 %v2994, 1
        %v3022 = vpop.permute.xlu0 %3021
        %v3023 = vsel %vm1781, %v3020, %v3022
        %v3024 = vsel %vm1781, %v3022, %v3020
        %v3025 = vsel %vm1786, %v3024, 0.0
        %v3026 = vsel %vm1787, %v3023, 0.0
        %3027 = vrot.lane.b32.xlu0 %v2993, 127
        %v3028 = vpop.permute.xlu0 %3027
        %3029 = vrot.lane.b32.xlu0 %v2994, 127
        %v3030 = vpop.permute.xlu0 %3029
        %v3031 = vsel %vm1794, %v3028, %v3030
        %v3032 = vsel %vm1794, %v3030, %v3028
        %v3033 = vsel %vm1799, %v3031, 0.0
        %v3034 = vsel %vm1800, %v3032, 0.0
        %3035 = vrot.lane.b32.xlu0 %v2993, 113
        %v3036 = vpop.permute.xlu0 %3035
        %3037 = vrot.lane.b32.xlu0 %v2994, 113
        %v3038 = vpop.permute.xlu0 %3037
        %v3039 = vsel %vm1807, %v3036, %v3038
        %v3040 = vsel %vm1807, %v3038, %v3036
        %v3041 = vsel %vm1812, %v3039, 0.0
        %v3042 = vsel %vm1813, %v3040, 0.0
        %3043 = vrot.lane.b32.xlu0 %v2993, 112
        %v3044 = vpop.permute.xlu0 %3043
        %3045 = vrot.lane.b32.xlu0 %v2994, 112
        %v3046 = vpop.permute.xlu0 %3045
        %v3047 = vsel %vm1820, %v3044, %v3046
        %v3048 = vsel %vm1820, %v3046, %v3044
        %v3049 = vsel %vm1825, %v3047, 0.0
        %v3050 = vsel %vm1826, %v3048, 0.0
        %3051 = vrot.lane.b32.xlu0 %v2993, 111
        %v3052 = vpop.permute.xlu0 %3051
        %3053 = vrot.lane.b32.xlu0 %v2994, 111
        %v3054 = vpop.permute.xlu0 %3053
        %v3055 = vsel %vm1833, %v3052, %v3054
        %v3056 = vsel %vm1833, %v3054, %v3052
        %v3057 = vsel %vm1840, %v3055, 0.0
        %v3058 = vsel %vm1841, %v3056, 0.0
        %v3059 = vld [vmem:[%s33] sm:$0xff]
        %v3060 = vld [vmem:[%s33 + $0x8] sm:$0xff]
        %v3061 = vpack.c.bf16 %v3009, %v3001
        %v3062 = vpack.c.bf16 %v3010, %v3002
        %v3063 = vpack.c.bf16 %v3025, %v3017
        %v3064 = vpack.c.bf16 %v3026, %v3018
        %v3065 = vpack.c.bf16 %v3033, %v2993
        %v3066 = vpack.c.bf16 %v3034, %v2994
        %v3067 = vpack.c.bf16 %v3049, %v3041
        %v3068 = vpack.c.bf16 %v3050, %v3042
        %v3069 = vpack.c.bf16 %v2353, %v3057
        %v3070 = vpack.c.bf16 %v2354, %v3058
        %v3071 = vpack.c.bf16 %v2369, %v2361
        %v3072 = vpack.c.bf16 %v2370, %v2362
        %v3073 = vpack.c.bf16 %v2345, %v2377
        %v3074 = vpack.c.bf16 %v2346, %v2378
        %v3075 = vpack.c.bf16 %v2393, %v2385
        %v3076 = vpack.c.bf16 %v2394, %v2386
        %v3077 = vpack.c.bf16 %v2409, %v2401
        %v3078 = vpack.c.bf16 %v2410, %v2402
        %v3079 = vld [vmem:[%s35] sm:$0xff]
        %v3080 = vld [vmem:[%s35 + $0x8] sm:$0xff]
        %3082 = vset.pattern.permute.xlu0 0
        %3083 = vperm.xlu0 %3082, %v3079
        %v3084 = vpop.permute.xlu0 %3083
        %3087 = vset.pattern.permute.xlu0 0
        %3088 = vperm.xlu0 %3087, %v3080
        %v3089 = vpop.permute.xlu0 %3088
        %v3093 = vunpack.c.l.b16 %v3059
        %v3094 = vunpack.c.h.b16 %v3059
        %v3095 = vunpack.c.l.b16 %v3060
        %v3096 = vunpack.c.h.b16 %v3060
        %v3097 = vpack.c.b16 %v3095, %v3093
        %v3098 = vpack.c.b16 %v3096, %v3094
        %v3101 = vsel %vm2041, %v3098, 0
        %3103 = vmatpush.bf16.msra.mxu0 %v3075
        %3104 = vmatpush.bf16.msra.mxu0 %v3073
        %3105 = vmatpush.bf16.msra.mxu0 %v3071
        %3106 = vmatpush.bf16.msra.mxu0 %v3069
        %3107 = vmatpush.bf16.msra.mxu0 %v3067
        %3108 = vmatpush.bf16.msra.mxu0 %v3065
        %3109 = vmatpush.bf16.msra.mxu0 %v3063
        %3110 = vmatpush.bf16.msra.mxu0 %v3061
        %3111 = vmatmul.bf16.gmra.mxu0 %v3097
        %v3112 = vpop.f32.mrf.mxu0
        %v3113 = vadd.f32 %v3084, %v3112
        %v3114 = vpop.f32.mrf.mxu0
        %v3115 = vadd.f32 %v3089, %v3114
        %3116 = vdwg.mxu0
        %3117 = vmatpush.bf16.msra.mxu0 0
        %3118 = vmatpush.bf16.msra.mxu0 0
        %3119 = vmatpush.bf16.msra.mxu0 0
        %3120 = vmatpush.bf16.msra.mxu0 0
        %3121 = vmatpush.bf16.msra.mxu0 0
        %3122 = vmatpush.bf16.msra.mxu0 0
        %3123 = vmatpush.bf16.msra.mxu0 0
        %3124 = vmatpush.bf16.msra.mxu0 %v3077
        %3125 = vmatmul.bf16.gmra.mxu0 %v3101
        %v3126 = vpop.f32.mrf.mxu0
        %v3127 = vadd.f32 %v3113, %v3126
        %v3128 = vpop.f32.mrf.mxu0
        %v3129 = vadd.f32 %v3115, %v3128
        %3130 = vdwg.mxu0
        %3131 = vmatpush.bf16.msra.mxu0 %v3076
        %3132 = vmatpush.bf16.msra.mxu0 %v3074
        %3133 = vmatpush.bf16.msra.mxu0 %v3072
        %3134 = vmatpush.bf16.msra.mxu0 %v3070
        %3135 = vmatpush.bf16.msra.mxu0 %v3068
        %3136 = vmatpush.bf16.msra.mxu0 %v3066
        %3137 = vmatpush.bf16.msra.mxu0 %v3064
        %3138 = vmatpush.bf16.msra.mxu0 %v3062
        %3139 = vmatmul.bf16.gmra.mxu0 %v3097
        %v3140 = vpop.f32.mrf.mxu0
        %v3141 = vadd.f32 %v3084, %v3140
        %v3142 = vpop.f32.mrf.mxu0
        %v3143 = vadd.f32 %v3089, %v3142
        %3144 = vdwg.mxu0
        %3145 = vmatpush.bf16.msra.mxu0 0
        %3146 = vmatpush.bf16.msra.mxu0 0
        %3147 = vmatpush.bf16.msra.mxu0 0
        %3148 = vmatpush.bf16.msra.mxu0 0
        %3149 = vmatpush.bf16.msra.mxu0 0
        %3150 = vmatpush.bf16.msra.mxu0 0
        %3151 = vmatpush.bf16.msra.mxu0 0
        %3152 = vmatpush.bf16.msra.mxu0 %v3078
        %3153 = vmatmul.bf16.gmra.mxu0 %v3101
        %v3154 = vpop.f32.mrf.mxu0
        %v3155 = vadd.f32 %v3141, %v3154
        %v3156 = vpop.f32.mrf.mxu0
        %v3157 = vadd.f32 %v3143, %v3156
        %3158 = vdwg.mxu0
        %vm3159 = vcmp.ge.f32.partialorder %v3127, 0.0
        %vm3160 = vcmp.ge.f32.partialorder %v3155, 0.0
        %vm3161 = vcmp.ge.f32.partialorder %v3129, 0.0
        %vm3162 = vcmp.ge.f32.partialorder %v3157, 0.0
        %v3163 = vmul.f32 %v3127, 0.01
        %v3164 = vmul.f32 %v3155, 0.01
        %v3165 = vmul.f32 %v3129, 0.01
        %v3166 = vmul.f32 %v3157, 0.01
        %v3167 = vsel %vm3159, %v3127, %v3163
        %v3168 = vsel %vm3160, %v3155, %v3164
        %v3169 = vsel %vm3161, %v3129, %v3165
        %v3170 = vsel %vm3162, %v3157, %v3166
        %v3171 = vxor.u32 %v3167, 2147483648
        %v3172 = vxor.u32 %v3168, 2147483648
        %v3173 = vmul.f32 %v3171, 1.442695
        %v3174 = vpow.pop %v3173
        %v3175 = vmul.f32 %v3172, 1.442695
        %v3176 = vpow.pop %v3175
        %v3177 = vadd.f32 %v3174, 1.0
        %v3178 = vadd.f32 %v3176, 1.0
        %v3179 = vrcp.pop %v3177
        %v3180 = vmul.f32 %v3177, %v3179
        %v3181 = vsub.f32 1.0, %v3180
        %v3182 = vmul.f32 %v3179, %v3181
        %v3183 = vadd.f32 %v3179, %v3182
        %vm3184 = vweird.f32 %v3177
        %vm3185 = vweird.f32 %v3179
        %vm3186 = vmor %vm3184, %vm3185
        %v3187 = vsel %vm3186, %v3179, %v3183
        %v3188 = vand.u32 2147483647, %v3177
        %vm3189 = vcmp.eq.f32.partialorder %v3188, 8.507059e+37
        %v3190 = vand.u32 %v3177, 2147483648
        %v3191 = vor.u32 1.1754944e-38, %v3190
        %v3192 = vsel %vm3189, %v3191, %v3187
        %v3193 = vmul.f32 1.0, %v3192
        %v3194 = vrcp.pop %v3178
        %v3195 = vmul.f32 %v3178, %v3194
        %v3196 = vsub.f32 1.0, %v3195
        %v3197 = vmul.f32 %v3194, %v3196
        %v3198 = vadd.f32 %v3194, %v3197
        %vm3199 = vweird.f32 %v3178
        %vm3200 = vweird.f32 %v3194
        %vm3201 = vmor %vm3199, %vm3200
        %v3202 = vsel %vm3201, %v3194, %v3198
        %v3203 = vand.u32 2147483647, %v3178
        %vm3204 = vcmp.eq.f32.partialorder %v3203, 8.507059e+37
        %v3205 = vand.u32 %v3178, 2147483648
        %v3206 = vor.u32 1.1754944e-38, %v3205
        %v3207 = vsel %vm3204, %v3206, %v3202
        %v3208 = vmul.f32 1.0, %v3207
        %v3209 = vxor.u32 %v3169, 2147483648
        %v3210 = vxor.u32 %v3170, 2147483648
        %v3211 = vmul.f32 %v3209, 1.442695
        %v3212 = vpow.pop %v3211
        %v3213 = vmul.f32 %v3210, 1.442695
        %v3214 = vpow.pop %v3213
        %v3215 = vadd.f32 %v3212, 1.0
        %v3216 = vadd.f32 %v3214, 1.0
        %v3217 = vrcp.pop %v3215
        %v3218 = vmul.f32 %v3215, %v3217
        %v3219 = vsub.f32 1.0, %v3218
        %v3220 = vmul.f32 %v3217, %v3219
        %v3221 = vadd.f32 %v3217, %v3220
        %vm3222 = vweird.f32 %v3215
        %vm3223 = vweird.f32 %v3217
        %vm3224 = vmor %vm3222, %vm3223
        %v3225 = vsel %vm3224, %v3217, %v3221
        %v3226 = vand.u32 2147483647, %v3215
        %vm3227 = vcmp.eq.f32.partialorder %v3226, 8.507059e+37
        %v3228 = vand.u32 %v3215, 2147483648
        %v3229 = vor.u32 1.1754944e-38, %v3228
        %v3230 = vsel %vm3227, %v3229, %v3225
        %v3231 = vmul.f32 1.0, %v3230
        %v3232 = vrcp.pop %v3216
        %v3233 = vmul.f32 %v3216, %v3232
        %v3234 = vsub.f32 1.0, %v3233
        %v3235 = vmul.f32 %v3232, %v3234
        %v3236 = vadd.f32 %v3232, %v3235
        %vm3237 = vweird.f32 %v3216
        %vm3238 = vweird.f32 %v3232
        %vm3239 = vmor %vm3237, %vm3238
        %v3240 = vsel %vm3239, %v3232, %v3236
        %v3241 = vand.u32 2147483647, %v3216
        %vm3242 = vcmp.eq.f32.partialorder %v3241, 8.507059e+37
        %v3243 = vand.u32 %v3216, 2147483648
        %v3244 = vor.u32 1.1754944e-38, %v3243
        %v3245 = vsel %vm3242, %v3244, %v3240
        %v3246 = vmul.f32 1.0, %v3245
        %v3247 = vmul.f32 %v2345, %v3231
        %v3248 = vmul.f32 %v2346, %v3246
        %3249 = vrot.lane.b32.xlu0 %v3247, 17
        %v3250 = vpop.permute.xlu0 %3249
        %3251 = vrot.lane.b32.xlu0 %v3248, 17
        %v3252 = vpop.permute.xlu0 %3251
        %v3253 = vsel %vm1740, %v3250, %v3252
        %v3254 = vsel %vm1740, %v3252, %v3250
        %v3255 = vsel %vm1747, %v3254, 0.0
        %v3256 = vsel %vm1748, %v3253, 0.0
        %3257 = vrot.lane.b32.xlu0 %v3247, 16
        %v3258 = vpop.permute.xlu0 %3257
        %3259 = vrot.lane.b32.xlu0 %v3248, 16
        %v3260 = vpop.permute.xlu0 %3259
        %v3261 = vsel %vm1755, %v3258, %v3260
        %v3262 = vsel %vm1755, %v3260, %v3258
        %v3263 = vsel %vm1760, %v3262, 0.0
        %v3264 = vsel %vm1761, %v3261, 0.0
        %3265 = vrot.lane.b32.xlu0 %v3247, 15
        %v3266 = vpop.permute.xlu0 %3265
        %3267 = vrot.lane.b32.xlu0 %v3248, 15
        %v3268 = vpop.permute.xlu0 %3267
        %v3269 = vsel %vm1768, %v3266, %v3268
        %v3270 = vsel %vm1768, %v3268, %v3266
        %v3271 = vsel %vm1773, %v3270, 0.0
        %v3272 = vsel %vm1774, %v3269, 0.0
        %3273 = vrot.lane.b32.xlu0 %v3247, 1
        %v3274 = vpop.permute.xlu0 %3273
        %3275 = vrot.lane.b32.xlu0 %v3248, 1
        %v3276 = vpop.permute.xlu0 %3275
        %v3277 = vsel %vm1781, %v3274, %v3276
        %v3278 = vsel %vm1781, %v3276, %v3274
        %v3279 = vsel %vm1786, %v3278, 0.0
        %v3280 = vsel %vm1787, %v3277, 0.0
        %3281 = vrot.lane.b32.xlu0 %v3247, 127
        %v3282 = vpop.permute.xlu0 %3281
        %3283 = vrot.lane.b32.xlu0 %v3248, 127
        %v3284 = vpop.permute.xlu0 %3283
        %v3285 = vsel %vm1794, %v3282, %v3284
        %v3286 = vsel %vm1794, %v3284, %v3282
        %v3287 = vsel %vm1799, %v3285, 0.0
        %v3288 = vsel %vm1800, %v3286, 0.0
        %3289 = vrot.lane.b32.xlu0 %v3247, 113
        %v3290 = vpop.permute.xlu0 %3289
        %3291 = vrot.lane.b32.xlu0 %v3248, 113
        %v3292 = vpop.permute.xlu0 %3291
        %v3293 = vsel %vm1807, %v3290, %v3292
        %v3294 = vsel %vm1807, %v3292, %v3290
        %v3295 = vsel %vm1812, %v3293, 0.0
        %v3296 = vsel %vm1813, %v3294, 0.0
        %3297 = vrot.lane.b32.xlu0 %v3247, 112
        %v3298 = vpop.permute.xlu0 %3297
        %3299 = vrot.lane.b32.xlu0 %v3248, 112
        %v3300 = vpop.permute.xlu0 %3299
        %v3301 = vsel %vm1820, %v3298, %v3300
        %v3302 = vsel %vm1820, %v3300, %v3298
        %v3303 = vsel %vm1825, %v3301, 0.0
        %v3304 = vsel %vm1826, %v3302, 0.0
        %3305 = vrot.lane.b32.xlu0 %v3247, 111
        %v3306 = vpop.permute.xlu0 %3305
        %3307 = vrot.lane.b32.xlu0 %v3248, 111
        %v3308 = vpop.permute.xlu0 %3307
        %v3309 = vsel %vm1833, %v3306, %v3308
        %v3310 = vsel %vm1833, %v3308, %v3306
        %v3311 = vsel %vm1840, %v3309, 0.0
        %v3312 = vsel %vm1841, %v3310, 0.0
        %v3313 = vld [vmem:[%s37] sm:$0xff]
        %v3314 = vpack.c.bf16 %v3255, %v3057
        %v3315 = vpack.c.bf16 %v3256, %v3058
        %v3316 = vpack.c.bf16 %v3271, %v3263
        %v3317 = vpack.c.bf16 %v3272, %v3264
        %v3318 = vpack.c.bf16 %v3247, %v3279
        %v3319 = vpack.c.bf16 %v3248, %v3280
        %v3320 = vpack.c.bf16 %v3295, %v3287
        %v3321 = vpack.c.bf16 %v3296, %v3288
        %v3322 = vpack.c.bf16 %v3311, %v3303
        %v3323 = vpack.c.bf16 %v3312, %v3304
        %v3324 = vld [vmem:[%s39] sm:$0xff]
        %3326 = vset.pattern.permute.xlu0 0
        %3327 = vperm.xlu0 %3326, %v3324
        %v3328 = vpop.permute.xlu0 %3327
        %v3331 = vunpack.c.l.b16 %v3313
        %v3332 = vunpack.c.h.b16 %v3313
        %v3333 = vpack.c.b16 %v3331, %v3331
        %v3334 = vpack.c.b16 %v3332, %v3332
        %v3337 = vsel %vm2041, %v3334, 0
        %3339 = vmatpush.bf16.msra.mxu0 %v3320
        %3340 = vmatpush.bf16.msra.mxu0 %v3318
        %3341 = vmatpush.bf16.msra.mxu0 %v3316
        %3342 = vmatpush.bf16.msra.mxu0 %v3314
        %3343 = vmatpush.bf16.msra.mxu0 %v3067
        %3344 = vmatpush.bf16.msra.mxu0 %v3065
        %3345 = vmatpush.bf16.msra.mxu0 %v3063
        %3346 = vmatpush.bf16.msra.mxu0 %v3061
        %3347 = vmatmul.bf16.gmra.mxu0 %v3333
        %v3348 = vpop.f32.mrf.mxu0
        %v3349 = vadd.f32 %v3328, %v3348
        %v3350 = vpop.f32.mrf.mxu0
        %3351 = vdwg.mxu0
        %3352 = vmatpush.bf16.msra.mxu0 0
        %3353 = vmatpush.bf16.msra.mxu0 0
        %3354 = vmatpush.bf16.msra.mxu0 0
        %3355 = vmatpush.bf16.msra.mxu0 0
        %3356 = vmatpush.bf16.msra.mxu0 0
        %3357 = vmatpush.bf16.msra.mxu0 0
        %3358 = vmatpush.bf16.msra.mxu0 0
        %3359 = vmatpush.bf16.msra.mxu0 %v3322
        %3360 = vmatmul.bf16.gmra.mxu0 %v3337
        %v3361 = vpop.f32.mrf.mxu0
        %v3362 = vadd.f32 %v3349, %v3361
        %v3363 = vpop.f32.mrf.mxu0
        %3364 = vdwg.mxu0
        %3365 = vmatpush.bf16.msra.mxu0 %v3321
        %3366 = vmatpush.bf16.msra.mxu0 %v3319
        %3367 = vmatpush.bf16.msra.mxu0 %v3317
        %3368 = vmatpush.bf16.msra.mxu0 %v3315
        %3369 = vmatpush.bf16.msra.mxu0 %v3068
        %3370 = vmatpush.bf16.msra.mxu0 %v3066
        %3371 = vmatpush.bf16.msra.mxu0 %v3064
        %3372 = vmatpush.bf16.msra.mxu0 %v3062
        %3373 = vmatmul.bf16.gmra.mxu0 %v3333
        %v3374 = vpop.f32.mrf.mxu0
        %v3375 = vadd.f32 %v3328, %v3374
        %v3376 = vpop.f32.mrf.mxu0
        %3377 = vdwg.mxu0
        %3378 = vmatpush.bf16.msra.mxu0 0
        %3379 = vmatpush.bf16.msra.mxu0 0
        %3380 = vmatpush.bf16.msra.mxu0 0
        %3381 = vmatpush.bf16.msra.mxu0 0
        %3382 = vmatpush.bf16.msra.mxu0 0
        %3383 = vmatpush.bf16.msra.mxu0 0
        %3384 = vmatpush.bf16.msra.mxu0 0
        %3385 = vmatpush.bf16.msra.mxu0 %v3323
        %3386 = vmatmul.bf16.gmra.mxu0 %v3337
        %v3387 = vpop.f32.mrf.mxu0
        %v3388 = vadd.f32 %v3375, %v3387
        %v3389 = vpop.f32.mrf.mxu0
        %3390 = vdwg.mxu0
        %vm3391 = vcmp.ge.f32.partialorder %v3362, 0.0
        %vm3392 = vcmp.ge.f32.partialorder %v3388, 0.0
        %v3393 = vmul.f32 %v3362, 0.04
        %v3394 = vmul.f32 %v3388, 0.04
        %v3395 = vsel %vm3391, %v3362, %v3393
        %v3396 = vsel %vm3392, %v3388, %v3394
        %v3397 = vmul.f32 %v2345, %v3193
        %v3398 = vmul.f32 %v2346, %v3208
        %v3399 = vsub.f32 1.0, %v3193
        %v3400 = vsub.f32 1.0, %v3208
        %v3401 = vmul.f32 %v3395, %v3399
        %v3402 = vmul.f32 %v3396, %v3400
        %v3403 = vadd.f32 %v3397, %v3401
        %v3404 = vadd.f32 %v3398, %v3402
        %3405 = vrot.lane.b32.xlu0 %v3403, 17
        %v3406 = vpop.permute.xlu0 %3405
        %3407 = vrot.lane.b32.xlu0 %v3404, 17
        %v3408 = vpop.permute.xlu0 %3407
        %v3409 = vsel %vm1740, %v3406, %v3408
        %v3410 = vsel %vm1740, %v3408, %v3406
        %v3411 = vsel %vm1747, %v3410, 0.0
        %v3412 = vsel %vm1748, %v3409, 0.0
        %3413 = vrot.lane.b32.xlu0 %v3403, 16
        %v3414 = vpop.permute.xlu0 %3413
        %3415 = vrot.lane.b32.xlu0 %v3404, 16
        %v3416 = vpop.permute.xlu0 %3415
        %v3417 = vsel %vm1755, %v3414, %v3416
        %v3418 = vsel %vm1755, %v3416, %v3414
        %v3419 = vsel %vm1760, %v3418, 0.0
        %v3420 = vsel %vm1761, %v3417, 0.0
        %3421 = vrot.lane.b32.xlu0 %v3403, 15
        %v3422 = vpop.permute.xlu0 %3421
        %3423 = vrot.lane.b32.xlu0 %v3404, 15
        %v3424 = vpop.permute.xlu0 %3423
        %v3425 = vsel %vm1768, %v3422, %v3424
        %v3426 = vsel %vm1768, %v3424, %v3422
        %v3427 = vsel %vm1773, %v3426, 0.0
        %v3428 = vsel %vm1774, %v3425, 0.0
        %3429 = vrot.lane.b32.xlu0 %v3403, 1
        %v3430 = vpop.permute.xlu0 %3429
        %3431 = vrot.lane.b32.xlu0 %v3404, 1
        %v3432 = vpop.permute.xlu0 %3431
        %v3433 = vsel %vm1781, %v3430, %v3432
        %v3434 = vsel %vm1781, %v3432, %v3430
        %v3435 = vsel %vm1786, %v3434, 0.0
        %v3436 = vsel %vm1787, %v3433, 0.0
        %3437 = vrot.lane.b32.xlu0 %v3403, 127
        %v3438 = vpop.permute.xlu0 %3437
        %3439 = vrot.lane.b32.xlu0 %v3404, 127
        %v3440 = vpop.permute.xlu0 %3439
        %v3441 = vsel %vm1794, %v3438, %v3440
        %v3442 = vsel %vm1794, %v3440, %v3438
        %v3443 = vsel %vm1799, %v3441, 0.0
        %v3444 = vsel %vm1800, %v3442, 0.0
        %3445 = vrot.lane.b32.xlu0 %v3403, 113
        %v3446 = vpop.permute.xlu0 %3445
        %3447 = vrot.lane.b32.xlu0 %v3404, 113
        %v3448 = vpop.permute.xlu0 %3447
        %v3449 = vsel %vm1807, %v3446, %v3448
        %v3450 = vsel %vm1807, %v3448, %v3446
        %v3451 = vsel %vm1812, %v3449, 0.0
        %v3452 = vsel %vm1813, %v3450, 0.0
        %3453 = vrot.lane.b32.xlu0 %v3403, 112
        %v3454 = vpop.permute.xlu0 %3453
        %3455 = vrot.lane.b32.xlu0 %v3404, 112
        %v3456 = vpop.permute.xlu0 %3455
        %v3457 = vsel %vm1820, %v3454, %v3456
        %v3458 = vsel %vm1820, %v3456, %v3454
        %v3459 = vsel %vm1825, %v3457, 0.0
        %v3460 = vsel %vm1826, %v3458, 0.0
        %3461 = vrot.lane.b32.xlu0 %v3403, 111
        %v3462 = vpop.permute.xlu0 %3461
        %3463 = vrot.lane.b32.xlu0 %v3404, 111
        %v3464 = vpop.permute.xlu0 %3463
        %v3465 = vsel %vm1833, %v3462, %v3464
        %v3466 = vsel %vm1833, %v3464, %v3462
        %v3467 = vsel %vm1840, %v3465, 0.0
        %v3468 = vsel %vm1841, %v3466, 0.0
        %v3469 = vld [vmem:[%s41] sm:$0xf]
        %v3470 = vpack.c.bf16 %v3419, %v3411
        %v3471 = vpack.c.bf16 %v3420, %v3412
        %v3472 = vpack.c.bf16 %v3435, %v3427
        %v3473 = vpack.c.bf16 %v3436, %v3428
        %v3474 = vpack.c.bf16 %v3443, %v3403
        %v3475 = vpack.c.bf16 %v3444, %v3404
        %v3476 = vpack.c.bf16 %v3459, %v3451
        %v3477 = vpack.c.bf16 %v3460, %v3452
        %v3478 = vpack.c.bf16 %v3467, %v3467
        %v3479 = vpack.c.bf16 %v3468, %v3468
        %v3480 = vld [vmem:[%s43] sm:$0xff]
        %3482 = vset.pattern.permute.xlu0 0
        %3483 = vperm.xlu0 %3482, %v3480
        %v3484 = vpop.permute.xlu0 %3483
        %v3487 = vsel %vm1861, %v3469, 0
        %v3490 = vsel %vm1865, %v3478, 0
        %v3493 = vsel %vm1865, %v3479, 0
        %3495 = vmatpush.bf16.msra.mxu0 0
        %3496 = vmatpush.bf16.msra.mxu0 0
        %3497 = vmatpush.bf16.msra.mxu0 0
        %3498 = vmatpush.bf16.msra.mxu0 %v3490
        %3499 = vmatpush.bf16.msra.mxu0 %v3476
        %3500 = vmatpush.bf16.msra.mxu0 %v3474
        %3501 = vmatpush.bf16.msra.mxu0 %v3472
        %3502 = vmatpush.bf16.msra.mxu0 %v3470
        %3503 = vmatmul.bf16.gmra.mxu0 %v3487
        %v3504 = vpop.f32.mrf.mxu0
        %v3505 = vadd.f32 %v3484, %v3504
        %v3506 = vpop.f32.mrf.mxu0
        %3507 = vdwg.mxu0
        %3508 = vmatpush.bf16.msra.mxu0 0
        %3509 = vmatpush.bf16.msra.mxu0 0
        %3510 = vmatpush.bf16.msra.mxu0 0
        %3511 = vmatpush.bf16.msra.mxu0 %v3493
        %3512 = vmatpush.bf16.msra.mxu0 %v3477
        %3513 = vmatpush.bf16.msra.mxu0 %v3475
        %3514 = vmatpush.bf16.msra.mxu0 %v3473
        %3515 = vmatpush.bf16.msra.mxu0 %v3471
        %3516 = vmatmul.bf16.gmra.mxu0 %v3487
        %v3517 = vpop.f32.mrf.mxu0
        %v3518 = vadd.f32 %v3484, %v3517
        %v3519 = vpop.f32.mrf.mxu0
        %3520 = vdwg.mxu0
        %vm3521 = vcmp.ge.f32.partialorder %v3505, 0.0
        %vm3522 = vcmp.ge.f32.partialorder %v3518, 0.0
        %v3523 = vmul.f32 %v3505, 0.01
        %v3524 = vmul.f32 %v3518, 0.01
        %v3525 = vsel %vm3521, %v3505, %v3523
        %v3526 = vsel %vm3522, %v3518, %v3524
        %3527 = vrot.lane.b32.xlu0 %v3525, 17
        %v3528 = vpop.permute.xlu0 %3527
        %3529 = vrot.lane.b32.xlu0 %v3526, 17
        %v3530 = vpop.permute.xlu0 %3529
        %v3531 = vsel %vm1740, %v3528, %v3530
        %v3532 = vsel %vm1740, %v3530, %v3528
        %v3533 = vsel %vm1747, %v3532, 0.0
        %v3534 = vsel %vm1748, %v3531, 0.0
        %3535 = vrot.lane.b32.xlu0 %v3525, 16
        %v3536 = vpop.permute.xlu0 %3535
        %3537 = vrot.lane.b32.xlu0 %v3526, 16
        %v3538 = vpop.permute.xlu0 %3537
        %v3539 = vsel %vm1755, %v3536, %v3538
        %v3540 = vsel %vm1755, %v3538, %v3536
        %v3541 = vsel %vm1760, %v3540, 0.0
        %v3542 = vsel %vm1761, %v3539, 0.0
        %3543 = vrot.lane.b32.xlu0 %v3525, 15
        %v3544 = vpop.permute.xlu0 %3543
        %3545 = vrot.lane.b32.xlu0 %v3526, 15
        %v3546 = vpop.permute.xlu0 %3545
        %v3547 = vsel %vm1768, %v3544, %v3546
        %v3548 = vsel %vm1768, %v3546, %v3544
        %v3549 = vsel %vm1773, %v3548, 0.0
        %v3550 = vsel %vm1774, %v3547, 0.0
        %3551 = vrot.lane.b32.xlu0 %v3525, 1
        %v3552 = vpop.permute.xlu0 %3551
        %3553 = vrot.lane.b32.xlu0 %v3526, 1
        %v3554 = vpop.permute.xlu0 %3553
        %v3555 = vsel %vm1781, %v3552, %v3554
        %v3556 = vsel %vm1781, %v3554, %v3552
        %v3557 = vsel %vm1786, %v3556, 0.0
        %v3558 = vsel %vm1787, %v3555, 0.0
        %3559 = vrot.lane.b32.xlu0 %v3525, 127
        %v3560 = vpop.permute.xlu0 %3559
        %3561 = vrot.lane.b32.xlu0 %v3526, 127
        %v3562 = vpop.permute.xlu0 %3561
        %v3563 = vsel %vm1794, %v3560, %v3562
        %v3564 = vsel %vm1794, %v3562, %v3560
        %v3565 = vsel %vm1799, %v3563, 0.0
        %v3566 = vsel %vm1800, %v3564, 0.0
        %3567 = vrot.lane.b32.xlu0 %v3525, 113
        %v3568 = vpop.permute.xlu0 %3567
        %3569 = vrot.lane.b32.xlu0 %v3526, 113
        %v3570 = vpop.permute.xlu0 %3569
        %v3571 = vsel %vm1807, %v3568, %v3570
        %v3572 = vsel %vm1807, %v3570, %v3568
        %v3573 = vsel %vm1812, %v3571, 0.0
        %v3574 = vsel %vm1813, %v3572, 0.0
        %3575 = vrot.lane.b32.xlu0 %v3525, 112
        %v3576 = vpop.permute.xlu0 %3575
        %3577 = vrot.lane.b32.xlu0 %v3526, 112
        %v3578 = vpop.permute.xlu0 %3577
        %v3579 = vsel %vm1820, %v3576, %v3578
        %v3580 = vsel %vm1820, %v3578, %v3576
        %v3581 = vsel %vm1825, %v3579, 0.0
        %v3582 = vsel %vm1826, %v3580, 0.0
        %3583 = vrot.lane.b32.xlu0 %v3525, 111
        %v3584 = vpop.permute.xlu0 %3583
        %3585 = vrot.lane.b32.xlu0 %v3526, 111
        %v3586 = vpop.permute.xlu0 %3585
        %v3587 = vsel %vm1833, %v3584, %v3586
        %v3588 = vsel %vm1833, %v3586, %v3584
        %v3589 = vsel %vm1840, %v3587, 0.0
        %v3590 = vsel %vm1841, %v3588, 0.0
        %3591 = vrot.lane.b32.xlu0 %v2869, 17
        %v3592 = vpop.permute.xlu0 %3591
        %3593 = vrot.lane.b32.xlu0 %v2870, 17
        %v3594 = vpop.permute.xlu0 %3593
        %v3595 = vsel %vm1740, %v3592, %v3594
        %v3596 = vsel %vm1740, %v3594, %v3592
        %v3597 = vsel %vm1747, %v3596, 0.0
        %v3598 = vsel %vm1748, %v3595, 0.0
        %3599 = vrot.lane.b32.xlu0 %v2869, 16
        %v3600 = vpop.permute.xlu0 %3599
        %3601 = vrot.lane.b32.xlu0 %v2870, 16
        %v3602 = vpop.permute.xlu0 %3601
        %v3603 = vsel %vm1755, %v3600, %v3602
        %v3604 = vsel %vm1755, %v3602, %v3600
        %v3605 = vsel %vm1760, %v3604, 0.0
        %v3606 = vsel %vm1761, %v3603, 0.0
        %3607 = vrot.lane.b32.xlu0 %v2869, 15
        %v3608 = vpop.permute.xlu0 %3607
        %3609 = vrot.lane.b32.xlu0 %v2870, 15
        %v3610 = vpop.permute.xlu0 %3609
        %v3611 = vsel %vm1768, %v3608, %v3610
        %v3612 = vsel %vm1768, %v3610, %v3608
        %v3613 = vsel %vm1773, %v3612, 0.0
        %v3614 = vsel %vm1774, %v3611, 0.0
        %3615 = vrot.lane.b32.xlu0 %v2869, 1
        %v3616 = vpop.permute.xlu0 %3615
        %3617 = vrot.lane.b32.xlu0 %v2870, 1
        %v3618 = vpop.permute.xlu0 %3617
        %v3619 = vsel %vm1781, %v3616, %v3618
        %v3620 = vsel %vm1781, %v3618, %v3616
        %v3621 = vsel %vm1786, %v3620, 0.0
        %v3622 = vsel %vm1787, %v3619, 0.0
        %3623 = vrot.lane.b32.xlu0 %v2869, 127
        %v3624 = vpop.permute.xlu0 %3623
        %3625 = vrot.lane.b32.xlu0 %v2870, 127
        %v3626 = vpop.permute.xlu0 %3625
        %v3627 = vsel %vm1794, %v3624, %v3626
        %v3628 = vsel %vm1794, %v3626, %v3624
        %v3629 = vsel %vm1799, %v3627, 0.0
        %v3630 = vsel %vm1800, %v3628, 0.0
        %3631 = vrot.lane.b32.xlu0 %v2869, 113
        %v3632 = vpop.permute.xlu0 %3631
        %3633 = vrot.lane.b32.xlu0 %v2870, 113
        %v3634 = vpop.permute.xlu0 %3633
        %v3635 = vsel %vm1807, %v3632, %v3634
        %v3636 = vsel %vm1807, %v3634, %v3632
        %v3637 = vsel %vm1812, %v3635, 0.0
        %v3638 = vsel %vm1813, %v3636, 0.0
        %3639 = vrot.lane.b32.xlu0 %v2869, 112
        %v3640 = vpop.permute.xlu0 %3639
        %3641 = vrot.lane.b32.xlu0 %v2870, 112
        %v3642 = vpop.permute.xlu0 %3641
        %v3643 = vsel %vm1820, %v3640, %v3642
        %v3644 = vsel %vm1820, %v3642, %v3640
        %v3645 = vsel %vm1825, %v3643, 0.0
        %v3646 = vsel %vm1826, %v3644, 0.0
        %3647 = vrot.lane.b32.xlu0 %v2869, 111
        %v3648 = vpop.permute.xlu0 %3647
        %3649 = vrot.lane.b32.xlu0 %v2870, 111
        %v3650 = vpop.permute.xlu0 %3649
        %v3651 = vsel %vm1833, %v3648, %v3650
        %v3652 = vsel %vm1833, %v3650, %v3648
        %v3653 = vsel %vm1840, %v3651, 0.0
        %v3654 = vsel %vm1841, %v3652, 0.0
        %v3655 = vld [vmem:[%s45] sm:$0xff]
        %v3656 = vld [vmem:[%s45 + $0x8] sm:$0xff]
        %v3657 = vpack.c.bf16 %v3541, %v3533
        %v3658 = vpack.c.bf16 %v3542, %v3534
        %v3659 = vpack.c.bf16 %v3557, %v3549
        %v3660 = vpack.c.bf16 %v3558, %v3550
        %v3661 = vpack.c.bf16 %v3565, %v3525
        %v3662 = vpack.c.bf16 %v3566, %v3526
        %v3663 = vpack.c.bf16 %v3581, %v3573
        %v3664 = vpack.c.bf16 %v3582, %v3574
        %v3665 = vpack.c.bf16 %v3597, %v3589
        %v3666 = vpack.c.bf16 %v3598, %v3590
        %v3667 = vpack.c.bf16 %v3613, %v3605
        %v3668 = vpack.c.bf16 %v3614, %v3606
        %v3669 = vpack.c.bf16 %v2869, %v3621
        %v3670 = vpack.c.bf16 %v2870, %v3622
        %v3671 = vpack.c.bf16 %v3637, %v3629
        %v3672 = vpack.c.bf16 %v3638, %v3630
        %v3673 = vpack.c.bf16 %v3653, %v3645
        %v3674 = vpack.c.bf16 %v3654, %v3646
        %v3675 = vld [vmem:[%s47] sm:$0xff]
        %v3676 = vld [vmem:[%s47 + $0x8] sm:$0xff]
        %3678 = vset.pattern.permute.xlu0 0
        %3679 = vperm.xlu0 %3678, %v3675
        %v3680 = vpop.permute.xlu0 %3679
        %3683 = vset.pattern.permute.xlu0 0
        %3684 = vperm.xlu0 %3683, %v3676
        %v3685 = vpop.permute.xlu0 %3684
        %v3689 = vunpack.c.l.b16 %v3655
        %v3690 = vunpack.c.h.b16 %v3655
        %v3691 = vunpack.c.l.b16 %v3656
        %v3692 = vunpack.c.h.b16 %v3656
        %v3693 = vpack.c.b16 %v3691, %v3689
        %v3694 = vpack.c.b16 %v3692, %v3690
        %v3697 = vsel %vm2041, %v3694, 0
        %3699 = vmatpush.bf16.msra.mxu0 %v3671
        %3700 = vmatpush.bf16.msra.mxu0 %v3669
        %3701 = vmatpush.bf16.msra.mxu0 %v3667
        %3702 = vmatpush.bf16.msra.mxu0 %v3665
        %3703 = vmatpush.bf16.msra.mxu0 %v3663
        %3704 = vmatpush.bf16.msra.mxu0 %v3661
        %3705 = vmatpush.bf16.msra.mxu0 %v3659
        %3706 = vmatpush.bf16.msra.mxu0 %v3657
        %3707 = vmatmul.bf16.gmra.mxu0 %v3693
        %v3708 = vpop.f32.mrf.mxu0
        %v3709 = vadd.f32 %v3680, %v3708
        %v3710 = vpop.f32.mrf.mxu0
        %v3711 = vadd.f32 %v3685, %v3710
        %3712 = vdwg.mxu0
        %3713 = vmatpush.bf16.msra.mxu0 0
        %3714 = vmatpush.bf16.msra.mxu0 0
        %3715 = vmatpush.bf16.msra.mxu0 0
        %3716 = vmatpush.bf16.msra.mxu0 0
        %3717 = vmatpush.bf16.msra.mxu0 0
        %3718 = vmatpush.bf16.msra.mxu0 0
        %3719 = vmatpush.bf16.msra.mxu0 0
        %3720 = vmatpush.bf16.msra.mxu0 %v3673
        %3721 = vmatmul.bf16.gmra.mxu0 %v3697
        %v3722 = vpop.f32.mrf.mxu0
        %v3723 = vadd.f32 %v3709, %v3722
        %v3724 = vpop.f32.mrf.mxu0
        %v3725 = vadd.f32 %v3711, %v3724
        %3726 = vdwg.mxu0
        %3727 = vmatpush.bf16.msra.mxu0 %v3672
        %3728 = vmatpush.bf16.msra.mxu0 %v3670
        %3729 = vmatpush.bf16.msra.mxu0 %v3668
        %3730 = vmatpush.bf16.msra.mxu0 %v3666
        %3731 = vmatpush.bf16.msra.mxu0 %v3664
        %3732 = vmatpush.bf16.msra.mxu0 %v3662
        %3733 = vmatpush.bf16.msra.mxu0 %v3660
        %3734 = vmatpush.bf16.msra.mxu0 %v3658
        %3735 = vmatmul.bf16.gmra.mxu0 %v3693
        %v3736 = vpop.f32.mrf.mxu0
        %v3737 = vadd.f32 %v3680, %v3736
        %v3738 = vpop.f32.mrf.mxu0
        %v3739 = vadd.f32 %v3685, %v3738
        %3740 = vdwg.mxu0
        %3741 = vmatpush.bf16.msra.mxu0 0
        %3742 = vmatpush.bf16.msra.mxu0 0
        %3743 = vmatpush.bf16.msra.mxu0 0
        %3744 = vmatpush.bf16.msra.mxu0 0
        %3745 = vmatpush.bf16.msra.mxu0 0
        %3746 = vmatpush.bf16.msra.mxu0 0
        %3747 = vmatpush.bf16.msra.mxu0 0
        %3748 = vmatpush.bf16.msra.mxu0 %v3674
        %3749 = vmatmul.bf16.gmra.mxu0 %v3697
        %v3750 = vpop.f32.mrf.mxu0
        %v3751 = vadd.f32 %v3737, %v3750
        %v3752 = vpop.f32.mrf.mxu0
        %v3753 = vadd.f32 %v3739, %v3752
        %3754 = vdwg.mxu0
        %vm3755 = vcmp.ge.f32.partialorder %v3723, 0.0
        %vm3756 = vcmp.ge.f32.partialorder %v3751, 0.0
        %vm3757 = vcmp.ge.f32.partialorder %v3725, 0.0
        %vm3758 = vcmp.ge.f32.partialorder %v3753, 0.0
        %v3759 = vmul.f32 %v3723, 0.01
        %v3760 = vmul.f32 %v3751, 0.01
        %v3761 = vmul.f32 %v3725, 0.01
        %v3762 = vmul.f32 %v3753, 0.01
        %v3763 = vsel %vm3755, %v3723, %v3759
        %v3764 = vsel %vm3756, %v3751, %v3760
        %v3765 = vsel %vm3757, %v3725, %v3761
        %v3766 = vsel %vm3758, %v3753, %v3762
        %v3767 = vxor.u32 %v3763, 2147483648
        %v3768 = vxor.u32 %v3764, 2147483648
        %v3769 = vmul.f32 %v3767, 1.442695
        %v3770 = vpow.pop %v3769
        %v3771 = vmul.f32 %v3768, 1.442695
        %v3772 = vpow.pop %v3771
        %v3773 = vadd.f32 %v3770, 1.0
        %v3774 = vadd.f32 %v3772, 1.0
        %v3775 = vrcp.pop %v3773
        %v3776 = vmul.f32 %v3773, %v3775
        %v3777 = vsub.f32 1.0, %v3776
        %v3778 = vmul.f32 %v3775, %v3777
        %v3779 = vadd.f32 %v3775, %v3778
        %vm3780 = vweird.f32 %v3773
        %vm3781 = vweird.f32 %v3775
        %vm3782 = vmor %vm3780, %vm3781
        %v3783 = vsel %vm3782, %v3775, %v3779
        %v3784 = vand.u32 2147483647, %v3773
        %vm3785 = vcmp.eq.f32.partialorder %v3784, 8.507059e+37
        %v3786 = vand.u32 %v3773, 2147483648
        %v3787 = vor.u32 1.1754944e-38, %v3786
        %v3788 = vsel %vm3785, %v3787, %v3783
        %v3789 = vmul.f32 1.0, %v3788
        %v3790 = vrcp.pop %v3774
        %v3791 = vmul.f32 %v3774, %v3790
        %v3792 = vsub.f32 1.0, %v3791
        %v3793 = vmul.f32 %v3790, %v3792
        %v3794 = vadd.f32 %v3790, %v3793
        %vm3795 = vweird.f32 %v3774
        %vm3796 = vweird.f32 %v3790
        %vm3797 = vmor %vm3795, %vm3796
        %v3798 = vsel %vm3797, %v3790, %v3794
        %v3799 = vand.u32 2147483647, %v3774
        %vm3800 = vcmp.eq.f32.partialorder %v3799, 8.507059e+37
        %v3801 = vand.u32 %v3774, 2147483648
        %v3802 = vor.u32 1.1754944e-38, %v3801
        %v3803 = vsel %vm3800, %v3802, %v3798
        %v3804 = vmul.f32 1.0, %v3803
        %v3805 = vxor.u32 %v3765, 2147483648
        %v3806 = vxor.u32 %v3766, 2147483648
        %v3807 = vmul.f32 %v3805, 1.442695
        %v3808 = vpow.pop %v3807
        %v3809 = vmul.f32 %v3806, 1.442695
        %v3810 = vpow.pop %v3809
        %v3811 = vadd.f32 %v3808, 1.0
        %v3812 = vadd.f32 %v3810, 1.0
        %v3813 = vrcp.pop %v3811
        %v3814 = vmul.f32 %v3811, %v3813
        %v3815 = vsub.f32 1.0, %v3814
        %v3816 = vmul.f32 %v3813, %v3815
        %v3817 = vadd.f32 %v3813, %v3816
        %vm3818 = vweird.f32 %v3811
        %vm3819 = vweird.f32 %v3813
        %vm3820 = vmor %vm3818, %vm3819
        %v3821 = vsel %vm3820, %v3813, %v3817
        %v3822 = vand.u32 2147483647, %v3811
        %vm3823 = vcmp.eq.f32.partialorder %v3822, 8.507059e+37
        %v3824 = vand.u32 %v3811, 2147483648
        %v3825 = vor.u32 1.1754944e-38, %v3824
        %v3826 = vsel %vm3823, %v3825, %v3821
        %v3827 = vmul.f32 1.0, %v3826
        %v3828 = vrcp.pop %v3812
        %v3829 = vmul.f32 %v3812, %v3828
        %v3830 = vsub.f32 1.0, %v3829
        %v3831 = vmul.f32 %v3828, %v3830
        %v3832 = vadd.f32 %v3828, %v3831
        %vm3833 = vweird.f32 %v3812
        %vm3834 = vweird.f32 %v3828
        %vm3835 = vmor %vm3833, %vm3834
        %v3836 = vsel %vm3835, %v3828, %v3832
        %v3837 = vand.u32 2147483647, %v3812
        %vm3838 = vcmp.eq.f32.partialorder %v3837, 8.507059e+37
        %v3839 = vand.u32 %v3812, 2147483648
        %v3840 = vor.u32 1.1754944e-38, %v3839
        %v3841 = vsel %vm3838, %v3840, %v3836
        %v3842 = vmul.f32 1.0, %v3841
        %v3843 = vmul.f32 %v2869, %v3827
        %v3844 = vmul.f32 %v2870, %v3842
        %3845 = vrot.lane.b32.xlu0 %v3843, 17
        %v3846 = vpop.permute.xlu0 %3845
        %3847 = vrot.lane.b32.xlu0 %v3844, 17
        %v3848 = vpop.permute.xlu0 %3847
        %v3849 = vsel %vm1740, %v3846, %v3848
        %v3850 = vsel %vm1740, %v3848, %v3846
        %v3851 = vsel %vm1747, %v3850, 0.0
        %v3852 = vsel %vm1748, %v3849, 0.0
        %3853 = vrot.lane.b32.xlu0 %v3843, 16
        %v3854 = vpop.permute.xlu0 %3853
        %3855 = vrot.lane.b32.xlu0 %v3844, 16
        %v3856 = vpop.permute.xlu0 %3855
        %v3857 = vsel %vm1755, %v3854, %v3856
        %v3858 = vsel %vm1755, %v3856, %v3854
        %v3859 = vsel %vm1760, %v3858, 0.0
        %v3860 = vsel %vm1761, %v3857, 0.0
        %3861 = vrot.lane.b32.xlu0 %v3843, 15
        %v3862 = vpop.permute.xlu0 %3861
        %3863 = vrot.lane.b32.xlu0 %v3844, 15
        %v3864 = vpop.permute.xlu0 %3863
        %v3865 = vsel %vm1768, %v3862, %v3864
        %v3866 = vsel %vm1768, %v3864, %v3862
        %v3867 = vsel %vm1773, %v3866, 0.0
        %v3868 = vsel %vm1774, %v3865, 0.0
        %3869 = vrot.lane.b32.xlu0 %v3843, 1
        %v3870 = vpop.permute.xlu0 %3869
        %3871 = vrot.lane.b32.xlu0 %v3844, 1
        %v3872 = vpop.permute.xlu0 %3871
        %v3873 = vsel %vm1781, %v3870, %v3872
        %v3874 = vsel %vm1781, %v3872, %v3870
        %v3875 = vsel %vm1786, %v3874, 0.0
        %v3876 = vsel %vm1787, %v3873, 0.0
        %3877 = vrot.lane.b32.xlu0 %v3843, 127
        %v3878 = vpop.permute.xlu0 %3877
        %3879 = vrot.lane.b32.xlu0 %v3844, 127
        %v3880 = vpop.permute.xlu0 %3879
        %v3881 = vsel %vm1794, %v3878, %v3880
        %v3882 = vsel %vm1794, %v3880, %v3878
        %v3883 = vsel %vm1799, %v3881, 0.0
        %v3884 = vsel %vm1800, %v3882, 0.0
        %3885 = vrot.lane.b32.xlu0 %v3843, 113
        %v3886 = vpop.permute.xlu0 %3885
        %3887 = vrot.lane.b32.xlu0 %v3844, 113
        %v3888 = vpop.permute.xlu0 %3887
        %v3889 = vsel %vm1807, %v3886, %v3888
        %v3890 = vsel %vm1807, %v3888, %v3886
        %v3891 = vsel %vm1812, %v3889, 0.0
        %v3892 = vsel %vm1813, %v3890, 0.0
        %3893 = vrot.lane.b32.xlu0 %v3843, 112
        %v3894 = vpop.permute.xlu0 %3893
        %3895 = vrot.lane.b32.xlu0 %v3844, 112
        %v3896 = vpop.permute.xlu0 %3895
        %v3897 = vsel %vm1820, %v3894, %v3896
        %v3898 = vsel %vm1820, %v3896, %v3894
        %v3899 = vsel %vm1825, %v3897, 0.0
        %v3900 = vsel %vm1826, %v3898, 0.0
        %3901 = vrot.lane.b32.xlu0 %v3843, 111
        %v3902 = vpop.permute.xlu0 %3901
        %3903 = vrot.lane.b32.xlu0 %v3844, 111
        %v3904 = vpop.permute.xlu0 %3903
        %v3905 = vsel %vm1833, %v3902, %v3904
        %v3906 = vsel %vm1833, %v3904, %v3902
        %v3907 = vsel %vm1840, %v3905, 0.0
        %v3908 = vsel %vm1841, %v3906, 0.0
        %v3909 = vld [vmem:[%s49] sm:$0xff]
        %v3910 = vpack.c.bf16 %v3851, %v3589
        %v3911 = vpack.c.bf16 %v3852, %v3590
        %v3912 = vpack.c.bf16 %v3867, %v3859
        %v3913 = vpack.c.bf16 %v3868, %v3860
        %v3914 = vpack.c.bf16 %v3843, %v3875
        %v3915 = vpack.c.bf16 %v3844, %v3876
        %v3916 = vpack.c.bf16 %v3891, %v3883
        %v3917 = vpack.c.bf16 %v3892, %v3884
        %v3918 = vpack.c.bf16 %v3907, %v3899
        %v3919 = vpack.c.bf16 %v3908, %v3900
        %v3920 = vld [vmem:[%s51] sm:$0xff]
        %3922 = vset.pattern.permute.xlu0 0
        %3923 = vperm.xlu0 %3922, %v3920
        %v3924 = vpop.permute.xlu0 %3923
        %v3927 = vunpack.c.l.b16 %v3909
        %v3928 = vunpack.c.h.b16 %v3909
        %v3929 = vpack.c.b16 %v3927, %v3927
        %v3930 = vpack.c.b16 %v3928, %v3928
        %v3933 = vsel %vm2041, %v3930, 0
        %3935 = vmatpush.bf16.msra.mxu0 %v3916
        %3936 = vmatpush.bf16.msra.mxu0 %v3914
        %3937 = vmatpush.bf16.msra.mxu0 %v3912
        %3938 = vmatpush.bf16.msra.mxu0 %v3910
        %3939 = vmatpush.bf16.msra.mxu0 %v3663
        %3940 = vmatpush.bf16.msra.mxu0 %v3661
        %3941 = vmatpush.bf16.msra.mxu0 %v3659
        %3942 = vmatpush.bf16.msra.mxu0 %v3657
        %3943 = vmatmul.bf16.gmra.mxu0 %v3929
        %v3944 = vpop.f32.mrf.mxu0
        %v3945 = vadd.f32 %v3924, %v3944
        %v3946 = vpop.f32.mrf.mxu0
        %3947 = vdwg.mxu0
        %3948 = vmatpush.bf16.msra.mxu0 0
        %3949 = vmatpush.bf16.msra.mxu0 0
        %3950 = vmatpush.bf16.msra.mxu0 0
        %3951 = vmatpush.bf16.msra.mxu0 0
        %3952 = vmatpush.bf16.msra.mxu0 0
        %3953 = vmatpush.bf16.msra.mxu0 0
        %3954 = vmatpush.bf16.msra.mxu0 0
        %3955 = vmatpush.bf16.msra.mxu0 %v3918
        %3956 = vmatmul.bf16.gmra.mxu0 %v3933
        %v3957 = vpop.f32.mrf.mxu0
        %v3958 = vadd.f32 %v3945, %v3957
        %v3959 = vpop.f32.mrf.mxu0
        %3960 = vdwg.mxu0
        %3961 = vmatpush.bf16.msra.mxu0 %v3917
        %3962 = vmatpush.bf16.msra.mxu0 %v3915
        %3963 = vmatpush.bf16.msra.mxu0 %v3913
        %3964 = vmatpush.bf16.msra.mxu0 %v3911
        %3965 = vmatpush.bf16.msra.mxu0 %v3664
        %3966 = vmatpush.bf16.msra.mxu0 %v3662
        %3967 = vmatpush.bf16.msra.mxu0 %v3660
        %3968 = vmatpush.bf16.msra.mxu0 %v3658
        %3969 = vmatmul.bf16.gmra.mxu0 %v3929
        %v3970 = vpop.f32.mrf.mxu0
        %v3971 = vadd.f32 %v3924, %v3970
        %v3972 = vpop.f32.mrf.mxu0
        %3973 = vdwg.mxu0
        %3974 = vmatpush.bf16.msra.mxu0 0
        %3975 = vmatpush.bf16.msra.mxu0 0
        %3976 = vmatpush.bf16.msra.mxu0 0
        %3977 = vmatpush.bf16.msra.mxu0 0
        %3978 = vmatpush.bf16.msra.mxu0 0
        %3979 = vmatpush.bf16.msra.mxu0 0
        %3980 = vmatpush.bf16.msra.mxu0 0
        %3981 = vmatpush.bf16.msra.mxu0 %v3919
        %3982 = vmatmul.bf16.gmra.mxu0 %v3933
        %v3983 = vpop.f32.mrf.mxu0
        %v3984 = vadd.f32 %v3971, %v3983
        %v3985 = vpop.f32.mrf.mxu0
        %3986 = vdwg.mxu0
        %vm3987 = vcmp.ge.f32.partialorder %v3958, 0.0
        %vm3988 = vcmp.ge.f32.partialorder %v3984, 0.0
        %v3989 = vmul.f32 %v3958, 0.04
        %v3990 = vmul.f32 %v3984, 0.04
        %v3991 = vsel %vm3987, %v3958, %v3989
        %v3992 = vsel %vm3988, %v3984, %v3990
        %v3993 = vmul.f32 %v2869, %v3789
        %v3994 = vmul.f32 %v2870, %v3804
        %v3995 = vsub.f32 1.0, %v3789
        %v3996 = vsub.f32 1.0, %v3804
        %v3997 = vmul.f32 %v3991, %v3995
        %v3998 = vmul.f32 %v3992, %v3996
        %v3999 = vadd.f32 %v3993, %v3997
        %v4000 = vadd.f32 %v3994, %v3998
        %4001 = vrot.lane.b32.xlu0 %v3999, 17
        %v4002 = vpop.permute.xlu0 %4001
        %4003 = vrot.lane.b32.xlu0 %v4000, 17
        %v4004 = vpop.permute.xlu0 %4003
        %v4005 = vsel %vm1740, %v4002, %v4004
        %v4006 = vsel %vm1740, %v4004, %v4002
        %v4007 = vsel %vm1747, %v4006, 0.0
        %v4008 = vsel %vm1748, %v4005, 0.0
        %4009 = vrot.lane.b32.xlu0 %v3999, 16
        %v4010 = vpop.permute.xlu0 %4009
        %4011 = vrot.lane.b32.xlu0 %v4000, 16
        %v4012 = vpop.permute.xlu0 %4011
        %v4013 = vsel %vm1755, %v4010, %v4012
        %v4014 = vsel %vm1755, %v4012, %v4010
        %v4015 = vsel %vm1760, %v4014, 0.0
        %v4016 = vsel %vm1761, %v4013, 0.0
        %4017 = vrot.lane.b32.xlu0 %v3999, 15
        %v4018 = vpop.permute.xlu0 %4017
        %4019 = vrot.lane.b32.xlu0 %v4000, 15
        %v4020 = vpop.permute.xlu0 %4019
        %v4021 = vsel %vm1768, %v4018, %v4020
        %v4022 = vsel %vm1768, %v4020, %v4018
        %v4023 = vsel %vm1773, %v4022, 0.0
        %v4024 = vsel %vm1774, %v4021, 0.0
        %4025 = vrot.lane.b32.xlu0 %v3999, 1
        %v4026 = vpop.permute.xlu0 %4025
        %4027 = vrot.lane.b32.xlu0 %v4000, 1
        %v4028 = vpop.permute.xlu0 %4027
        %v4029 = vsel %vm1781, %v4026, %v4028
        %v4030 = vsel %vm1781, %v4028, %v4026
        %v4031 = vsel %vm1786, %v4030, 0.0
        %v4032 = vsel %vm1787, %v4029, 0.0
        %4033 = vrot.lane.b32.xlu0 %v3999, 127
        %v4034 = vpop.permute.xlu0 %4033
        %4035 = vrot.lane.b32.xlu0 %v4000, 127
        %v4036 = vpop.permute.xlu0 %4035
        %v4037 = vsel %vm1794, %v4034, %v4036
        %v4038 = vsel %vm1794, %v4036, %v4034
        %v4039 = vsel %vm1799, %v4037, 0.0
        %v4040 = vsel %vm1800, %v4038, 0.0
        %4041 = vrot.lane.b32.xlu0 %v3999, 113
        %v4042 = vpop.permute.xlu0 %4041
        %4043 = vrot.lane.b32.xlu0 %v4000, 113
        %v4044 = vpop.permute.xlu0 %4043
        %v4045 = vsel %vm1807, %v4042, %v4044
        %v4046 = vsel %vm1807, %v4044, %v4042
        %v4047 = vsel %vm1812, %v4045, 0.0
        %v4048 = vsel %vm1813, %v4046, 0.0
        %4049 = vrot.lane.b32.xlu0 %v3999, 112
        %v4050 = vpop.permute.xlu0 %4049
        %4051 = vrot.lane.b32.xlu0 %v4000, 112
        %v4052 = vpop.permute.xlu0 %4051
        %v4053 = vsel %vm1820, %v4050, %v4052
        %v4054 = vsel %vm1820, %v4052, %v4050
        %v4055 = vsel %vm1825, %v4053, 0.0
        %v4056 = vsel %vm1826, %v4054, 0.0
        %4057 = vrot.lane.b32.xlu0 %v3999, 111
        %v4058 = vpop.permute.xlu0 %4057
        %4059 = vrot.lane.b32.xlu0 %v4000, 111
        %v4060 = vpop.permute.xlu0 %4059
        %v4061 = vsel %vm1833, %v4058, %v4060
        %v4062 = vsel %vm1833, %v4060, %v4058
        %v4063 = vsel %vm1840, %v4061, 0.0
        %v4064 = vsel %vm1841, %v4062, 0.0
        %v4065 = vld [vmem:[%s53] sm:$0xf]
        %v4066 = vld [vmem:[%s53 + $0x4] sm:$0xf]
        %v4067 = vpack.c.bf16 %v4015, %v4007
        %v4068 = vpack.c.bf16 %v4016, %v4008
        %v4069 = vpack.c.bf16 %v4031, %v4023
        %v4070 = vpack.c.bf16 %v4032, %v4024
        %v4071 = vpack.c.bf16 %v4039, %v3999
        %v4072 = vpack.c.bf16 %v4040, %v4000
        %v4073 = vpack.c.bf16 %v4055, %v4047
        %v4074 = vpack.c.bf16 %v4056, %v4048
        %v4075 = vpack.c.bf16 %v4063, %v4063
        %v4076 = vpack.c.bf16 %v4064, %v4064
        %v4077 = vld [vmem:[%s55] sm:$0xff]
        %v4078 = vld [vmem:[%s55 + $0x8] sm:$0xff]
        %4080 = vset.pattern.permute.xlu0 0
        %4081 = vperm.xlu0 %4080, %v4077
        %v4082 = vpop.permute.xlu0 %4081
        %4085 = vset.pattern.permute.xlu0 0
        %4086 = vperm.xlu0 %4085, %v4078
        %v4087 = vpop.permute.xlu0 %4086
        %v4091 = vunpack.c.l.b16 %v4065
        %v4092 = vunpack.c.l.b16 %v4066
        %v4093 = vpack.c.b16 %v4092, %v4091
        %v4095 = vsel %vm1861, %v4093, 0
        %v4098 = vsel %vm1865, %v4075, 0
        %v4101 = vsel %vm1865, %v4076, 0
        %4103 = vmatpush.bf16.msra.mxu0 0
        %4104 = vmatpush.bf16.msra.mxu0 0
        %4105 = vmatpush.bf16.msra.mxu0 0
        %4106 = vmatpush.bf16.msra.mxu0 %v4098
        %4107 = vmatpush.bf16.msra.mxu0 %v4073
        %4108 = vmatpush.bf16.msra.mxu0 %v4071
        %4109 = vmatpush.bf16.msra.mxu0 %v4069
        %4110 = vmatpush.bf16.msra.mxu0 %v4067
        %4111 = vmatmul.bf16.gmra.mxu0 %v4095
        %v4112 = vpop.f32.mrf.mxu0
        %v4113 = vadd.f32 %v4082, %v4112
        %v4114 = vpop.f32.mrf.mxu0
        %v4115 = vadd.f32 %v4087, %v4114
        %4116 = vdwg.mxu0
        %4117 = vmatpush.bf16.msra.mxu0 0
        %4118 = vmatpush.bf16.msra.mxu0 0
        %4119 = vmatpush.bf16.msra.mxu0 0
        %4120 = vmatpush.bf16.msra.mxu0 %v4101
        %4121 = vmatpush.bf16.msra.mxu0 %v4074
        %4122 = vmatpush.bf16.msra.mxu0 %v4072
        %4123 = vmatpush.bf16.msra.mxu0 %v4070
        %4124 = vmatpush.bf16.msra.mxu0 %v4068
        %4125 = vmatmul.bf16.gmra.mxu0 %v4095
        %v4126 = vpop.f32.mrf.mxu0
        %v4127 = vadd.f32 %v4082, %v4126
        %v4128 = vpop.f32.mrf.mxu0
        %v4129 = vadd.f32 %v4087, %v4128
        %4130 = vdwg.mxu0
        %vm4131 = vcmp.ge.f32.partialorder %v4113, 0.0
        %vm4132 = vcmp.ge.f32.partialorder %v4127, 0.0
        %vm4133 = vcmp.ge.f32.partialorder %v4115, 0.0
        %vm4134 = vcmp.ge.f32.partialorder %v4129, 0.0
        %v4135 = vmul.f32 %v4113, 0.01
        %v4136 = vmul.f32 %v4127, 0.01
        %v4137 = vmul.f32 %v4115, 0.01
        %v4138 = vmul.f32 %v4129, 0.01
        %v4139 = vsel %vm4131, %v4113, %v4135
        %v4140 = vsel %vm4132, %v4127, %v4136
        %v4141 = vsel %vm4133, %v4115, %v4137
        %v4142 = vsel %vm4134, %v4129, %v4138
        %v4143 = vxor.u32 %v4139, 2147483648
        %v4144 = vxor.u32 %v4140, 2147483648
        %v4145 = vmul.f32 %v4143, 1.442695
        %v4146 = vpow.pop %v4145
        %v4147 = vmul.f32 %v4144, 1.442695
        %v4148 = vpow.pop %v4147
        %v4149 = vadd.f32 %v4146, 1.0
        %v4150 = vadd.f32 %v4148, 1.0
        %v4151 = vrcp.pop %v4149
        %v4152 = vmul.f32 %v4149, %v4151
        %v4153 = vsub.f32 1.0, %v4152
        %v4154 = vmul.f32 %v4151, %v4153
        %v4155 = vadd.f32 %v4151, %v4154
        %vm4156 = vweird.f32 %v4149
        %vm4157 = vweird.f32 %v4151
        %vm4158 = vmor %vm4156, %vm4157
        %v4159 = vsel %vm4158, %v4151, %v4155
        %v4160 = vand.u32 2147483647, %v4149
        %vm4161 = vcmp.eq.f32.partialorder %v4160, 8.507059e+37
        %v4162 = vand.u32 %v4149, 2147483648
        %v4163 = vor.u32 1.1754944e-38, %v4162
        %v4164 = vsel %vm4161, %v4163, %v4159
        %v4165 = vmul.f32 1.0, %v4164
        %v4166 = vrcp.pop %v4150
        %v4167 = vmul.f32 %v4150, %v4166
        %v4168 = vsub.f32 1.0, %v4167
        %v4169 = vmul.f32 %v4166, %v4168
        %v4170 = vadd.f32 %v4166, %v4169
        %vm4171 = vweird.f32 %v4150
        %vm4172 = vweird.f32 %v4166
        %vm4173 = vmor %vm4171, %vm4172
        %v4174 = vsel %vm4173, %v4166, %v4170
        %v4175 = vand.u32 2147483647, %v4150
        %vm4176 = vcmp.eq.f32.partialorder %v4175, 8.507059e+37
        %v4177 = vand.u32 %v4150, 2147483648
        %v4178 = vor.u32 1.1754944e-38, %v4177
        %v4179 = vsel %vm4176, %v4178, %v4174
        %v4180 = vmul.f32 1.0, %v4179
        %v4181 = vxor.u32 %v4141, 2147483648
        %v4182 = vxor.u32 %v4142, 2147483648
        %v4183 = vmul.f32 %v4181, 1.442695
        %v4184 = vpow.pop %v4183
        %v4185 = vmul.f32 %v4182, 1.442695
        %v4186 = vpow.pop %v4185
        %v4187 = vadd.f32 %v4184, 1.0
        %v4188 = vadd.f32 %v4186, 1.0
        %v4189 = vrcp.pop %v4187
        %v4190 = vmul.f32 %v4187, %v4189
        %v4191 = vsub.f32 1.0, %v4190
        %v4192 = vmul.f32 %v4189, %v4191
        %v4193 = vadd.f32 %v4189, %v4192
        %vm4194 = vweird.f32 %v4187
        %vm4195 = vweird.f32 %v4189
        %vm4196 = vmor %vm4194, %vm4195
        %v4197 = vsel %vm4196, %v4189, %v4193
        %v4198 = vand.u32 2147483647, %v4187
        %vm4199 = vcmp.eq.f32.partialorder %v4198, 8.507059e+37
        %v4200 = vand.u32 %v4187, 2147483648
        %v4201 = vor.u32 1.1754944e-38, %v4200
        %v4202 = vsel %vm4199, %v4201, %v4197
        %v4203 = vmul.f32 1.0, %v4202
        %v4204 = vrcp.pop %v4188
        %v4205 = vmul.f32 %v4188, %v4204
        %v4206 = vsub.f32 1.0, %v4205
        %v4207 = vmul.f32 %v4204, %v4206
        %v4208 = vadd.f32 %v4204, %v4207
        %vm4209 = vweird.f32 %v4188
        %vm4210 = vweird.f32 %v4204
        %vm4211 = vmor %vm4209, %vm4210
        %v4212 = vsel %vm4211, %v4204, %v4208
        %v4213 = vand.u32 2147483647, %v4188
        %vm4214 = vcmp.eq.f32.partialorder %v4213, 8.507059e+37
        %v4215 = vand.u32 %v4188, 2147483648
        %v4216 = vor.u32 1.1754944e-38, %v4215
        %v4217 = vsel %vm4214, %v4216, %v4212
        %v4218 = vmul.f32 1.0, %v4217
        %v4219 = vmul.f32 %v3999, %v4203
        %v4220 = vmul.f32 %v4000, %v4218
        %4221 = vrot.lane.b32.xlu0 %v4219, 17
        %v4222 = vpop.permute.xlu0 %4221
        %4223 = vrot.lane.b32.xlu0 %v4220, 17
        %v4224 = vpop.permute.xlu0 %4223
        %v4225 = vsel %vm1740, %v4222, %v4224
        %v4226 = vsel %vm1740, %v4224, %v4222
        %v4227 = vsel %vm1747, %v4226, 0.0
        %v4228 = vsel %vm1748, %v4225, 0.0
        %4229 = vrot.lane.b32.xlu0 %v4219, 16
        %v4230 = vpop.permute.xlu0 %4229
        %4231 = vrot.lane.b32.xlu0 %v4220, 16
        %v4232 = vpop.permute.xlu0 %4231
        %v4233 = vsel %vm1755, %v4230, %v4232
        %v4234 = vsel %vm1755, %v4232, %v4230
        %v4235 = vsel %vm1760, %v4234, 0.0
        %v4236 = vsel %vm1761, %v4233, 0.0
        %4237 = vrot.lane.b32.xlu0 %v4219, 15
        %v4238 = vpop.permute.xlu0 %4237
        %4239 = vrot.lane.b32.xlu0 %v4220, 15
        %v4240 = vpop.permute.xlu0 %4239
        %v4241 = vsel %vm1768, %v4238, %v4240
        %v4242 = vsel %vm1768, %v4240, %v4238
        %v4243 = vsel %vm1773, %v4242, 0.0
        %v4244 = vsel %vm1774, %v4241, 0.0
        %4245 = vrot.lane.b32.xlu0 %v4219, 1
        %v4246 = vpop.permute.xlu0 %4245
        %4247 = vrot.lane.b32.xlu0 %v4220, 1
        %v4248 = vpop.permute.xlu0 %4247
        %v4249 = vsel %vm1781, %v4246, %v4248
        %v4250 = vsel %vm1781, %v4248, %v4246
        %v4251 = vsel %vm1786, %v4250, 0.0
        %v4252 = vsel %vm1787, %v4249, 0.0
        %4253 = vrot.lane.b32.xlu0 %v4219, 127
        %v4254 = vpop.permute.xlu0 %4253
        %4255 = vrot.lane.b32.xlu0 %v4220, 127
        %v4256 = vpop.permute.xlu0 %4255
        %v4257 = vsel %vm1794, %v4254, %v4256
        %v4258 = vsel %vm1794, %v4256, %v4254
        %v4259 = vsel %vm1799, %v4257, 0.0
        %v4260 = vsel %vm1800, %v4258, 0.0
        %4261 = vrot.lane.b32.xlu0 %v4219, 113
        %v4262 = vpop.permute.xlu0 %4261
        %4263 = vrot.lane.b32.xlu0 %v4220, 113
        %v4264 = vpop.permute.xlu0 %4263
        %v4265 = vsel %vm1807, %v4262, %v4264
        %v4266 = vsel %vm1807, %v4264, %v4262
        %v4267 = vsel %vm1812, %v4265, 0.0
        %v4268 = vsel %vm1813, %v4266, 0.0
        %4269 = vrot.lane.b32.xlu0 %v4219, 112
        %v4270 = vpop.permute.xlu0 %4269
        %4271 = vrot.lane.b32.xlu0 %v4220, 112
        %v4272 = vpop.permute.xlu0 %4271
        %v4273 = vsel %vm1820, %v4270, %v4272
        %v4274 = vsel %vm1820, %v4272, %v4270
        %v4275 = vsel %vm1825, %v4273, 0.0
        %v4276 = vsel %vm1826, %v4274, 0.0
        %4277 = vrot.lane.b32.xlu0 %v4219, 111
        %v4278 = vpop.permute.xlu0 %4277
        %4279 = vrot.lane.b32.xlu0 %v4220, 111
        %v4280 = vpop.permute.xlu0 %4279
        %v4281 = vsel %vm1833, %v4278, %v4280
        %v4282 = vsel %vm1833, %v4280, %v4278
        %v4283 = vsel %vm1840, %v4281, 0.0
        %v4284 = vsel %vm1841, %v4282, 0.0
        %v4285 = vld [vmem:[#allocation5] sm:$0xf]
        %v4286 = vpack.c.bf16 %v4235, %v4227
        %v4287 = vpack.c.bf16 %v4236, %v4228
        %v4288 = vpack.c.bf16 %v4251, %v4243
        %v4289 = vpack.c.bf16 %v4252, %v4244
        %v4290 = vpack.c.bf16 %v4259, %v4219
        %v4291 = vpack.c.bf16 %v4260, %v4220
        %v4292 = vpack.c.bf16 %v4275, %v4267
        %v4293 = vpack.c.bf16 %v4276, %v4268
        %v4294 = vpack.c.bf16 %v4283, %v4283
        %v4295 = vpack.c.bf16 %v4284, %v4284
        %v4296 = vld [vmem:[%s59] sm:$0xff]
        %4298 = vset.pattern.permute.xlu0 0
        %4299 = vperm.xlu0 %4298, %v4296
        %v4300 = vpop.permute.xlu0 %4299
        %v4303 = vsel %vm1861, %v4285, 0
        %v4306 = vsel %vm1865, %v4294, 0
        %v4309 = vsel %vm1865, %v4295, 0
        %4311 = vmatpush.bf16.msra.mxu0 0
        %4312 = vmatpush.bf16.msra.mxu0 0
        %4313 = vmatpush.bf16.msra.mxu0 0
        %4314 = vmatpush.bf16.msra.mxu0 %v4306
        %4315 = vmatpush.bf16.msra.mxu0 %v4292
        %4316 = vmatpush.bf16.msra.mxu0 %v4290
        %4317 = vmatpush.bf16.msra.mxu0 %v4288
        %4318 = vmatpush.bf16.msra.mxu0 %v4286
        %4319 = vmatmul.bf16.gmra.mxu0 %v4303
        %v4320 = vpop.f32.mrf.mxu0
        %v4321 = vadd.f32 %v4300, %v4320
        %v4322 = vpop.f32.mrf.mxu0
        %4323 = vdwg.mxu0
        %4324 = vmatpush.bf16.msra.mxu0 0
        %4325 = vmatpush.bf16.msra.mxu0 0
        %4326 = vmatpush.bf16.msra.mxu0 0
        %4327 = vmatpush.bf16.msra.mxu0 %v4309
        %4328 = vmatpush.bf16.msra.mxu0 %v4293
        %4329 = vmatpush.bf16.msra.mxu0 %v4291
        %4330 = vmatpush.bf16.msra.mxu0 %v4289
        %4331 = vmatpush.bf16.msra.mxu0 %v4287
        %4332 = vmatmul.bf16.gmra.mxu0 %v4303
        %v4333 = vpop.f32.mrf.mxu0
        %v4334 = vadd.f32 %v4300, %v4333
        %v4335 = vpop.f32.mrf.mxu0
        %4336 = vdwg.mxu0
        %vm4337 = vcmp.ge.f32.partialorder %v4321, 0.0
        %vm4338 = vcmp.ge.f32.partialorder %v4334, 0.0
        %v4339 = vmul.f32 %v4321, 0.04
        %v4340 = vmul.f32 %v4334, 0.04
        %v4341 = vsel %vm4337, %v4321, %v4339
        %v4342 = vsel %vm4338, %v4334, %v4340
        %v4343 = vmul.f32 %v3999, %v4165
        %v4344 = vmul.f32 %v4000, %v4180
        %v4345 = vsub.f32 1.0, %v4165
        %v4346 = vsub.f32 1.0, %v4180
        %v4347 = vmul.f32 %v4341, %v4345
        %v4348 = vmul.f32 %v4342, %v4346
        %v4349 = vadd.f32 %v4343, %v4347
        %v4350 = vadd.f32 %v4344, %v4348
        %4351 = vrot.lane.b32.xlu0 %v4349, 17
        %v4352 = vpop.permute.xlu0 %4351
        %4353 = vrot.lane.b32.xlu0 %v4350, 17
        %v4354 = vpop.permute.xlu0 %4353
        %v4355 = vsel %vm1740, %v4352, %v4354
        %v4356 = vsel %vm1740, %v4354, %v4352
        %v4357 = vsel %vm1747, %v4356, 0.0
        %v4358 = vsel %vm1748, %v4355, 0.0
        %4359 = vrot.lane.b32.xlu0 %v4349, 16
        %v4360 = vpop.permute.xlu0 %4359
        %4361 = vrot.lane.b32.xlu0 %v4350, 16
        %v4362 = vpop.permute.xlu0 %4361
        %v4363 = vsel %vm1755, %v4360, %v4362
        %v4364 = vsel %vm1755, %v4362, %v4360
        %v4365 = vsel %vm1760, %v4364, 0.0
        %v4366 = vsel %vm1761, %v4363, 0.0
        %4367 = vrot.lane.b32.xlu0 %v4349, 15
        %v4368 = vpop.permute.xlu0 %4367
        %4369 = vrot.lane.b32.xlu0 %v4350, 15
        %v4370 = vpop.permute.xlu0 %4369
        %v4371 = vsel %vm1768, %v4368, %v4370
        %v4372 = vsel %vm1768, %v4370, %v4368
        %v4373 = vsel %vm1773, %v4372, 0.0
        %v4374 = vsel %vm1774, %v4371, 0.0
        %4375 = vrot.lane.b32.xlu0 %v4349, 1
        %v4376 = vpop.permute.xlu0 %4375
        %4377 = vrot.lane.b32.xlu0 %v4350, 1
        %v4378 = vpop.permute.xlu0 %4377
        %v4379 = vsel %vm1781, %v4376, %v4378
        %v4380 = vsel %vm1781, %v4378, %v4376
        %v4381 = vsel %vm1786, %v4380, 0.0
        %v4382 = vsel %vm1787, %v4379, 0.0
        %4383 = vrot.lane.b32.xlu0 %v4349, 127
        %v4384 = vpop.permute.xlu0 %4383
        %4385 = vrot.lane.b32.xlu0 %v4350, 127
        %v4386 = vpop.permute.xlu0 %4385
        %v4387 = vsel %vm1794, %v4384, %v4386
        %v4388 = vsel %vm1794, %v4386, %v4384
        %v4389 = vsel %vm1799, %v4387, 0.0
        %v4390 = vsel %vm1800, %v4388, 0.0
        %4391 = vrot.lane.b32.xlu0 %v4349, 113
        %v4392 = vpop.permute.xlu0 %4391
        %4393 = vrot.lane.b32.xlu0 %v4350, 113
        %v4394 = vpop.permute.xlu0 %4393
        %v4395 = vsel %vm1807, %v4392, %v4394
        %v4396 = vsel %vm1807, %v4394, %v4392
        %v4397 = vsel %vm1812, %v4395, 0.0
        %v4398 = vsel %vm1813, %v4396, 0.0
        %4399 = vrot.lane.b32.xlu0 %v4349, 112
        %v4400 = vpop.permute.xlu0 %4399
        %4401 = vrot.lane.b32.xlu0 %v4350, 112
        %v4402 = vpop.permute.xlu0 %4401
        %v4403 = vsel %vm1820, %v4400, %v4402
        %v4404 = vsel %vm1820, %v4402, %v4400
        %v4405 = vsel %vm1825, %v4403, 0.0
        %v4406 = vsel %vm1826, %v4404, 0.0
        %4407 = vrot.lane.b32.xlu0 %v4349, 111
        %v4408 = vpop.permute.xlu0 %4407
        %4409 = vrot.lane.b32.xlu0 %v4350, 111
        %v4410 = vpop.permute.xlu0 %4409
        %v4411 = vsel %vm1833, %v4408, %v4410
        %v4412 = vsel %vm1833, %v4410, %v4408
        %v4413 = vsel %vm1840, %v4411, 0.0
        %v4414 = vsel %vm1841, %v4412, 0.0
        %v4415 = vld [vmem:[#allocation7] sm:$0xf]
        %v4416 = vpack.c.bf16 %v4365, %v4357
        %v4417 = vpack.c.bf16 %v4366, %v4358
        %v4418 = vpack.c.bf16 %v4381, %v4373
        %v4419 = vpack.c.bf16 %v4382, %v4374
        %v4420 = vpack.c.bf16 %v4389, %v4349
        %v4421 = vpack.c.bf16 %v4390, %v4350
        %v4422 = vpack.c.bf16 %v4405, %v4397
        %v4423 = vpack.c.bf16 %v4406, %v4398
        %v4424 = vpack.c.bf16 %v4413, %v4413
        %v4425 = vpack.c.bf16 %v4414, %v4414
        %v4426 = vld [vmem:[%s63] sm:$0xff]
        %4428 = vset.pattern.permute.xlu0 0
        %4429 = vperm.xlu0 %4428, %v4426
        %v4430 = vpop.permute.xlu0 %4429
        %v4433 = vsel %vm1861, %v4415, 0
        %v4436 = vsel %vm1865, %v4424, 0
        %v4439 = vsel %vm1865, %v4425, 0
        %4441 = vmatpush.bf16.msra.mxu0 0
        %4442 = vmatpush.bf16.msra.mxu0 0
        %4443 = vmatpush.bf16.msra.mxu0 0
        %4444 = vmatpush.bf16.msra.mxu0 %v4436
        %4445 = vmatpush.bf16.msra.mxu0 %v4422
        %4446 = vmatpush.bf16.msra.mxu0 %v4420
        %4447 = vmatpush.bf16.msra.mxu0 %v4418
        %4448 = vmatpush.bf16.msra.mxu0 %v4416
        %4449 = vmatmul.bf16.gmra.mxu0 %v4433
        %v4450 = vpop.f32.mrf.mxu0
        %v4451 = vadd.f32 %v4430, %v4450
        %v4452 = vpop.f32.mrf.mxu0
        %4453 = vdwg.mxu0
        %4454 = vmatpush.bf16.msra.mxu0 0
        %4455 = vmatpush.bf16.msra.mxu0 0
        %4456 = vmatpush.bf16.msra.mxu0 0
        %4457 = vmatpush.bf16.msra.mxu0 %v4439
        %4458 = vmatpush.bf16.msra.mxu0 %v4423
        %4459 = vmatpush.bf16.msra.mxu0 %v4421
        %4460 = vmatpush.bf16.msra.mxu0 %v4419
        %4461 = vmatpush.bf16.msra.mxu0 %v4417
        %4462 = vmatmul.bf16.gmra.mxu0 %v4433
        %v4463 = vpop.f32.mrf.mxu0
        %v4464 = vadd.f32 %v4430, %v4463
        %v4465 = vpop.f32.mrf.mxu0
        %4466 = vdwg.mxu0
        %vm4467 = vcmp.ge.f32.partialorder %v4451, 0.0
        %vm4468 = vcmp.ge.f32.partialorder %v4464, 0.0
        %v4469 = vmul.f32 %v4451, 0.01
        %v4470 = vmul.f32 %v4464, 0.01
        %v4471 = vsel %vm4467, %v4451, %v4469
        %v4472 = vsel %vm4468, %v4464, %v4470
        %4473 = vrot.lane.b32.xlu0 %v4471, 17
        %v4474 = vpop.permute.xlu0 %4473
        %4475 = vrot.lane.b32.xlu0 %v4472, 17
        %v4476 = vpop.permute.xlu0 %4475
        %v4477 = vsel %vm1740, %v4474, %v4476
        %v4478 = vsel %vm1740, %v4476, %v4474
        %v4479 = vsel %vm1747, %v4478, 0.0
        %v4480 = vsel %vm1748, %v4477, 0.0
        %4481 = vrot.lane.b32.xlu0 %v4471, 16
        %v4482 = vpop.permute.xlu0 %4481
        %4483 = vrot.lane.b32.xlu0 %v4472, 16
        %v4484 = vpop.permute.xlu0 %4483
        %v4485 = vsel %vm1755, %v4482, %v4484
        %v4486 = vsel %vm1755, %v4484, %v4482
        %v4487 = vsel %vm1760, %v4486, 0.0
        %v4488 = vsel %vm1761, %v4485, 0.0
        %4489 = vrot.lane.b32.xlu0 %v4471, 15
        %v4490 = vpop.permute.xlu0 %4489
        %4491 = vrot.lane.b32.xlu0 %v4472, 15
        %v4492 = vpop.permute.xlu0 %4491
        %v4493 = vsel %vm1768, %v4490, %v4492
        %v4494 = vsel %vm1768, %v4492, %v4490
        %v4495 = vsel %vm1773, %v4494, 0.0
        %v4496 = vsel %vm1774, %v4493, 0.0
        %4497 = vrot.lane.b32.xlu0 %v4471, 1
        %v4498 = vpop.permute.xlu0 %4497
        %4499 = vrot.lane.b32.xlu0 %v4472, 1
        %v4500 = vpop.permute.xlu0 %4499
        %v4501 = vsel %vm1781, %v4498, %v4500
        %v4502 = vsel %vm1781, %v4500, %v4498
        %v4503 = vsel %vm1786, %v4502, 0.0
        %v4504 = vsel %vm1787, %v4501, 0.0
        %4505 = vrot.lane.b32.xlu0 %v4471, 127
        %v4506 = vpop.permute.xlu0 %4505
        %4507 = vrot.lane.b32.xlu0 %v4472, 127
        %v4508 = vpop.permute.xlu0 %4507
        %v4509 = vsel %vm1794, %v4506, %v4508
        %v4510 = vsel %vm1794, %v4508, %v4506
        %v4511 = vsel %vm1799, %v4509, 0.0
        %v4512 = vsel %vm1800, %v4510, 0.0
        %4513 = vrot.lane.b32.xlu0 %v4471, 113
        %v4514 = vpop.permute.xlu0 %4513
        %4515 = vrot.lane.b32.xlu0 %v4472, 113
        %v4516 = vpop.permute.xlu0 %4515
        %v4517 = vsel %vm1807, %v4514, %v4516
        %v4518 = vsel %vm1807, %v4516, %v4514
        %v4519 = vsel %vm1812, %v4517, 0.0
        %v4520 = vsel %vm1813, %v4518, 0.0
        %4521 = vrot.lane.b32.xlu0 %v4471, 112
        %v4522 = vpop.permute.xlu0 %4521
        %4523 = vrot.lane.b32.xlu0 %v4472, 112
        %v4524 = vpop.permute.xlu0 %4523
        %v4525 = vsel %vm1820, %v4522, %v4524
        %v4526 = vsel %vm1820, %v4524, %v4522
        %v4527 = vsel %vm1825, %v4525, 0.0
        %v4528 = vsel %vm1826, %v4526, 0.0
        %4529 = vrot.lane.b32.xlu0 %v4471, 111
        %v4530 = vpop.permute.xlu0 %4529
        %4531 = vrot.lane.b32.xlu0 %v4472, 111
        %v4532 = vpop.permute.xlu0 %4531
        %v4533 = vsel %vm1833, %v4530, %v4532
        %v4534 = vsel %vm1833, %v4532, %v4530
        %v4535 = vsel %vm1840, %v4533, 0.0
        %v4536 = vsel %vm1841, %v4534, 0.0
        %v4537 = vld [vmem:[%s65] sm:$0xff]
        %v4538 = vld [vmem:[%s65 + $0x8] sm:$0xff]
        %v4539 = vpack.c.bf16 %v4487, %v4479
        %v4540 = vpack.c.bf16 %v4488, %v4480
        %v4541 = vpack.c.bf16 %v4503, %v4495
        %v4542 = vpack.c.bf16 %v4504, %v4496
        %v4543 = vpack.c.bf16 %v4511, %v4471
        %v4544 = vpack.c.bf16 %v4512, %v4472
        %v4545 = vpack.c.bf16 %v4527, %v4519
        %v4546 = vpack.c.bf16 %v4528, %v4520
        %v4547 = vpack.c.bf16 %v3411, %v4535
        %v4548 = vpack.c.bf16 %v3412, %v4536
        %v4549 = vpack.c.bf16 %v3427, %v3419
        %v4550 = vpack.c.bf16 %v3428, %v3420
        %v4551 = vpack.c.bf16 %v3403, %v3435
        %v4552 = vpack.c.bf16 %v3404, %v3436
        %v4553 = vpack.c.bf16 %v3451, %v3443
        %v4554 = vpack.c.bf16 %v3452, %v3444
        %v4555 = vpack.c.bf16 %v3467, %v3459
        %v4556 = vpack.c.bf16 %v3468, %v3460
        %v4557 = vld [vmem:[%s67] sm:$0xff]
        %v4558 = vld [vmem:[%s67 + $0x8] sm:$0xff]
        %4560 = vset.pattern.permute.xlu0 0
        %4561 = vperm.xlu0 %4560, %v4557
        %v4562 = vpop.permute.xlu0 %4561
        %4565 = vset.pattern.permute.xlu0 0
        %4566 = vperm.xlu0 %4565, %v4558
        %v4567 = vpop.permute.xlu0 %4566
        %v4571 = vunpack.c.l.b16 %v4537
        %v4572 = vunpack.c.h.b16 %v4537
        %v4573 = vunpack.c.l.b16 %v4538
        %v4574 = vunpack.c.h.b16 %v4538
        %v4575 = vpack.c.b16 %v4573, %v4571
        %v4576 = vpack.c.b16 %v4574, %v4572
        %v4579 = vsel %vm2041, %v4576, 0
        %4581 = vmatpush.bf16.msra.mxu0 %v4553
        %4582 = vmatpush.bf16.msra.mxu0 %v4551
        %4583 = vmatpush.bf16.msra.mxu0 %v4549
        %4584 = vmatpush.bf16.msra.mxu0 %v4547
        %4585 = vmatpush.bf16.msra.mxu0 %v4545
        %4586 = vmatpush.bf16.msra.mxu0 %v4543
        %4587 = vmatpush.bf16.msra.mxu0 %v4541
        %4588 = vmatpush.bf16.msra.mxu0 %v4539
        %4589 = vmatmul.bf16.gmra.mxu0 %v4575
        %v4590 = vpop.f32.mrf.mxu0
        %v4591 = vadd.f32 %v4562, %v4590
        %v4592 = vpop.f32.mrf.mxu0
        %v4593 = vadd.f32 %v4567, %v4592
        %4594 = vdwg.mxu0
        %4595 = vmatpush.bf16.msra.mxu0 0
        %4596 = vmatpush.bf16.msra.mxu0 0
        %4597 = vmatpush.bf16.msra.mxu0 0
        %4598 = vmatpush.bf16.msra.mxu0 0
        %4599 = vmatpush.bf16.msra.mxu0 0
        %4600 = vmatpush.bf16.msra.mxu0 0
        %4601 = vmatpush.bf16.msra.mxu0 0
        %4602 = vmatpush.bf16.msra.mxu0 %v4555
        %4603 = vmatmul.bf16.gmra.mxu0 %v4579
        %v4604 = vpop.f32.mrf.mxu0
        %v4605 = vadd.f32 %v4591, %v4604
        %v4606 = vpop.f32.mrf.mxu0
        %v4607 = vadd.f32 %v4593, %v4606
        %4608 = vdwg.mxu0
        %4609 = vmatpush.bf16.msra.mxu0 %v4554
        %4610 = vmatpush.bf16.msra.mxu0 %v4552
        %4611 = vmatpush.bf16.msra.mxu0 %v4550
        %4612 = vmatpush.bf16.msra.mxu0 %v4548
        %4613 = vmatpush.bf16.msra.mxu0 %v4546
        %4614 = vmatpush.bf16.msra.mxu0 %v4544
        %4615 = vmatpush.bf16.msra.mxu0 %v4542
        %4616 = vmatpush.bf16.msra.mxu0 %v4540
        %4617 = vmatmul.bf16.gmra.mxu0 %v4575
        %v4618 = vpop.f32.mrf.mxu0
        %v4619 = vadd.f32 %v4562, %v4618
        %v4620 = vpop.f32.mrf.mxu0
        %v4621 = vadd.f32 %v4567, %v4620
        %4622 = vdwg.mxu0
        %4623 = vmatpush.bf16.msra.mxu0 0
        %4624 = vmatpush.bf16.msra.mxu0 0
        %4625 = vmatpush.bf16.msra.mxu0 0
        %4626 = vmatpush.bf16.msra.mxu0 0
        %4627 = vmatpush.bf16.msra.mxu0 0
        %4628 = vmatpush.bf16.msra.mxu0 0
        %4629 = vmatpush.bf16.msra.mxu0 0
        %4630 = vmatpush.bf16.msra.mxu0 %v4556
        %4631 = vmatmul.bf16.gmra.mxu0 %v4579
        %v4632 = vpop.f32.mrf.mxu0
        %v4633 = vadd.f32 %v4619, %v4632
        %v4634 = vpop.f32.mrf.mxu0
        %v4635 = vadd.f32 %v4621, %v4634
        %4636 = vdwg.mxu0
        %vm4637 = vcmp.ge.f32.partialorder %v4605, 0.0
        %vm4638 = vcmp.ge.f32.partialorder %v4633, 0.0
        %vm4639 = vcmp.ge.f32.partialorder %v4607, 0.0
        %vm4640 = vcmp.ge.f32.partialorder %v4635, 0.0
        %v4641 = vmul.f32 %v4605, 0.01
        %v4642 = vmul.f32 %v4633, 0.01
        %v4643 = vmul.f32 %v4607, 0.01
        %v4644 = vmul.f32 %v4635, 0.01
        %v4645 = vsel %vm4637, %v4605, %v4641
        %v4646 = vsel %vm4638, %v4633, %v4642
        %v4647 = vsel %vm4639, %v4607, %v4643
        %v4648 = vsel %vm4640, %v4635, %v4644
        %v4649 = vxor.u32 %v4645, 2147483648
        %v4650 = vxor.u32 %v4646, 2147483648
        %v4651 = vmul.f32 %v4649, 1.442695
        %v4652 = vpow.pop %v4651
        %v4653 = vmul.f32 %v4650, 1.442695
        %v4654 = vpow.pop %v4653
        %v4655 = vadd.f32 %v4652, 1.0
        %v4656 = vadd.f32 %v4654, 1.0
        %v4657 = vrcp.pop %v4655
        %v4658 = vmul.f32 %v4655, %v4657
        %v4659 = vsub.f32 1.0, %v4658
        %v4660 = vmul.f32 %v4657, %v4659
        %v4661 = vadd.f32 %v4657, %v4660
        %vm4662 = vweird.f32 %v4655
        %vm4663 = vweird.f32 %v4657
        %vm4664 = vmor %vm4662, %vm4663
        %v4665 = vsel %vm4664, %v4657, %v4661
        %v4666 = vand.u32 2147483647, %v4655
        %vm4667 = vcmp.eq.f32.partialorder %v4666, 8.507059e+37
        %v4668 = vand.u32 %v4655, 2147483648
        %v4669 = vor.u32 1.1754944e-38, %v4668
        %v4670 = vsel %vm4667, %v4669, %v4665
        %v4671 = vmul.f32 1.0, %v4670
        %v4672 = vrcp.pop %v4656
        %v4673 = vmul.f32 %v4656, %v4672
        %v4674 = vsub.f32 1.0, %v4673
        %v4675 = vmul.f32 %v4672, %v4674
        %v4676 = vadd.f32 %v4672, %v4675
        %vm4677 = vweird.f32 %v4656
        %vm4678 = vweird.f32 %v4672
        %vm4679 = vmor %vm4677, %vm4678
        %v4680 = vsel %vm4679, %v4672, %v4676
        %v4681 = vand.u32 2147483647, %v4656
        %vm4682 = vcmp.eq.f32.partialorder %v4681, 8.507059e+37
        %v4683 = vand.u32 %v4656, 2147483648
        %v4684 = vor.u32 1.1754944e-38, %v4683
        %v4685 = vsel %vm4682, %v4684, %v4680
        %v4686 = vmul.f32 1.0, %v4685
        %v4687 = vxor.u32 %v4647, 2147483648
        %v4688 = vxor.u32 %v4648, 2147483648
        %v4689 = vmul.f32 %v4687, 1.442695
        %v4690 = vpow.pop %v4689
        %v4691 = vmul.f32 %v4688, 1.442695
        %v4692 = vpow.pop %v4691
        %v4693 = vadd.f32 %v4690, 1.0
        %v4694 = vadd.f32 %v4692, 1.0
        %v4695 = vrcp.pop %v4693
        %v4696 = vmul.f32 %v4693, %v4695
        %v4697 = vsub.f32 1.0, %v4696
        %v4698 = vmul.f32 %v4695, %v4697
        %v4699 = vadd.f32 %v4695, %v4698
        %vm4700 = vweird.f32 %v4693
        %vm4701 = vweird.f32 %v4695
        %vm4702 = vmor %vm4700, %vm4701
        %v4703 = vsel %vm4702, %v4695, %v4699
        %v4704 = vand.u32 2147483647, %v4693
        %vm4705 = vcmp.eq.f32.partialorder %v4704, 8.507059e+37
        %v4706 = vand.u32 %v4693, 2147483648
        %v4707 = vor.u32 1.1754944e-38, %v4706
        %v4708 = vsel %vm4705, %v4707, %v4703
        %v4709 = vmul.f32 1.0, %v4708
        %v4710 = vrcp.pop %v4694
        %v4711 = vmul.f32 %v4694, %v4710
        %v4712 = vsub.f32 1.0, %v4711
        %v4713 = vmul.f32 %v4710, %v4712
        %v4714 = vadd.f32 %v4710, %v4713
        %vm4715 = vweird.f32 %v4694
        %vm4716 = vweird.f32 %v4710
        %vm4717 = vmor %vm4715, %vm4716
        %v4718 = vsel %vm4717, %v4710, %v4714
        %v4719 = vand.u32 2147483647, %v4694
        %vm4720 = vcmp.eq.f32.partialorder %v4719, 8.507059e+37
        %v4721 = vand.u32 %v4694, 2147483648
        %v4722 = vor.u32 1.1754944e-38, %v4721
        %v4723 = vsel %vm4720, %v4722, %v4718
        %v4724 = vmul.f32 1.0, %v4723
        %v4725 = vmul.f32 %v3403, %v4709
        %v4726 = vmul.f32 %v3404, %v4724
        %4727 = vrot.lane.b32.xlu0 %v4725, 17
        %v4728 = vpop.permute.xlu0 %4727
        %4729 = vrot.lane.b32.xlu0 %v4726, 17
        %v4730 = vpop.permute.xlu0 %4729
        %v4731 = vsel %vm1740, %v4728, %v4730
        %v4732 = vsel %vm1740, %v4730, %v4728
        %v4733 = vsel %vm1747, %v4732, 0.0
        %v4734 = vsel %vm1748, %v4731, 0.0
        %4735 = vrot.lane.b32.xlu0 %v4725, 16
        %v4736 = vpop.permute.xlu0 %4735
        %4737 = vrot.lane.b32.xlu0 %v4726, 16
        %v4738 = vpop.permute.xlu0 %4737
        %v4739 = vsel %vm1755, %v4736, %v4738
        %v4740 = vsel %vm1755, %v4738, %v4736
        %v4741 = vsel %vm1760, %v4740, 0.0
        %v4742 = vsel %vm1761, %v4739, 0.0
        %4743 = vrot.lane.b32.xlu0 %v4725, 15
        %v4744 = vpop.permute.xlu0 %4743
        %4745 = vrot.lane.b32.xlu0 %v4726, 15
        %v4746 = vpop.permute.xlu0 %4745
        %v4747 = vsel %vm1768, %v4744, %v4746
        %v4748 = vsel %vm1768, %v4746, %v4744
        %v4749 = vsel %vm1773, %v4748, 0.0
        %v4750 = vsel %vm1774, %v4747, 0.0
        %4751 = vrot.lane.b32.xlu0 %v4725, 1
        %v4752 = vpop.permute.xlu0 %4751
        %4753 = vrot.lane.b32.xlu0 %v4726, 1
        %v4754 = vpop.permute.xlu0 %4753
        %v4755 = vsel %vm1781, %v4752, %v4754
        %v4756 = vsel %vm1781, %v4754, %v4752
        %v4757 = vsel %vm1786, %v4756, 0.0
        %v4758 = vsel %vm1787, %v4755, 0.0
        %4759 = vrot.lane.b32.xlu0 %v4725, 127
        %v4760 = vpop.permute.xlu0 %4759
        %4761 = vrot.lane.b32.xlu0 %v4726, 127
        %v4762 = vpop.permute.xlu0 %4761
        %v4763 = vsel %vm1794, %v4760, %v4762
        %v4764 = vsel %vm1794, %v4762, %v4760
        %v4765 = vsel %vm1799, %v4763, 0.0
        %v4766 = vsel %vm1800, %v4764, 0.0
        %4767 = vrot.lane.b32.xlu0 %v4725, 113
        %v4768 = vpop.permute.xlu0 %4767
        %4769 = vrot.lane.b32.xlu0 %v4726, 113
        %v4770 = vpop.permute.xlu0 %4769
        %v4771 = vsel %vm1807, %v4768, %v4770
        %v4772 = vsel %vm1807, %v4770, %v4768
        %v4773 = vsel %vm1812, %v4771, 0.0
        %v4774 = vsel %vm1813, %v4772, 0.0
        %4775 = vrot.lane.b32.xlu0 %v4725, 112
        %v4776 = vpop.permute.xlu0 %4775
        %4777 = vrot.lane.b32.xlu0 %v4726, 112
        %v4778 = vpop.permute.xlu0 %4777
        %v4779 = vsel %vm1820, %v4776, %v4778
        %v4780 = vsel %vm1820, %v4778, %v4776
        %v4781 = vsel %vm1825, %v4779, 0.0
        %v4782 = vsel %vm1826, %v4780, 0.0
        %4783 = vrot.lane.b32.xlu0 %v4725, 111
        %v4784 = vpop.permute.xlu0 %4783
        %4785 = vrot.lane.b32.xlu0 %v4726, 111
        %v4786 = vpop.permute.xlu0 %4785
        %v4787 = vsel %vm1833, %v4784, %v4786
        %v4788 = vsel %vm1833, %v4786, %v4784
        %v4789 = vsel %vm1840, %v4787, 0.0
        %v4790 = vsel %vm1841, %v4788, 0.0
        %v4791 = vld [vmem:[%s69] sm:$0xff]
        %v4792 = vpack.c.bf16 %v4733, %v4535
        %v4793 = vpack.c.bf16 %v4734, %v4536
        %v4794 = vpack.c.bf16 %v4749, %v4741
        %v4795 = vpack.c.bf16 %v4750, %v4742
        %v4796 = vpack.c.bf16 %v4725, %v4757
        %v4797 = vpack.c.bf16 %v4726, %v4758
        %v4798 = vpack.c.bf16 %v4773, %v4765
        %v4799 = vpack.c.bf16 %v4774, %v4766
        %v4800 = vpack.c.bf16 %v4789, %v4781
        %v4801 = vpack.c.bf16 %v4790, %v4782
        %v4802 = vld [vmem:[%s71] sm:$0xff]
        %4804 = vset.pattern.permute.xlu0 0
        %4805 = vperm.xlu0 %4804, %v4802
        %v4806 = vpop.permute.xlu0 %4805
        %v4809 = vunpack.c.l.b16 %v4791
        %v4810 = vunpack.c.h.b16 %v4791
        %v4811 = vpack.c.b16 %v4809, %v4809
        %v4812 = vpack.c.b16 %v4810, %v4810
        %v4815 = vsel %vm2041, %v4812, 0
        %4817 = vmatpush.bf16.msra.mxu0 %v4798
        %4818 = vmatpush.bf16.msra.mxu0 %v4796
        %4819 = vmatpush.bf16.msra.mxu0 %v4794
        %4820 = vmatpush.bf16.msra.mxu0 %v4792
        %4821 = vmatpush.bf16.msra.mxu0 %v4545
        %4822 = vmatpush.bf16.msra.mxu0 %v4543
        %4823 = vmatpush.bf16.msra.mxu0 %v4541
        %4824 = vmatpush.bf16.msra.mxu0 %v4539
        %4825 = vmatmul.bf16.gmra.mxu0 %v4811
        %v4826 = vpop.f32.mrf.mxu0
        %v4827 = vadd.f32 %v4806, %v4826
        %v4828 = vpop.f32.mrf.mxu0
        %4829 = vdwg.mxu0
        %4830 = vmatpush.bf16.msra.mxu0 0
        %4831 = vmatpush.bf16.msra.mxu0 0
        %4832 = vmatpush.bf16.msra.mxu0 0
        %4833 = vmatpush.bf16.msra.mxu0 0
        %4834 = vmatpush.bf16.msra.mxu0 0
        %4835 = vmatpush.bf16.msra.mxu0 0
        %4836 = vmatpush.bf16.msra.mxu0 0
        %4837 = vmatpush.bf16.msra.mxu0 %v4800
        %4838 = vmatmul.bf16.gmra.mxu0 %v4815
        %v4839 = vpop.f32.mrf.mxu0
        %v4840 = vadd.f32 %v4827, %v4839
        %v4841 = vpop.f32.mrf.mxu0
        %4842 = vdwg.mxu0
        %4843 = vmatpush.bf16.msra.mxu0 %v4799
        %4844 = vmatpush.bf16.msra.mxu0 %v4797
        %4845 = vmatpush.bf16.msra.mxu0 %v4795
        %4846 = vmatpush.bf16.msra.mxu0 %v4793
        %4847 = vmatpush.bf16.msra.mxu0 %v4546
        %4848 = vmatpush.bf16.msra.mxu0 %v4544
        %4849 = vmatpush.bf16.msra.mxu0 %v4542
        %4850 = vmatpush.bf16.msra.mxu0 %v4540
        %4851 = vmatmul.bf16.gmra.mxu0 %v4811
        %v4852 = vpop.f32.mrf.mxu0
        %v4853 = vadd.f32 %v4806, %v4852
        %v4854 = vpop.f32.mrf.mxu0
        %4855 = vdwg.mxu0
        %4856 = vmatpush.bf16.msra.mxu0 0
        %4857 = vmatpush.bf16.msra.mxu0 0
        %4858 = vmatpush.bf16.msra.mxu0 0
        %4859 = vmatpush.bf16.msra.mxu0 0
        %4860 = vmatpush.bf16.msra.mxu0 0
        %4861 = vmatpush.bf16.msra.mxu0 0
        %4862 = vmatpush.bf16.msra.mxu0 0
        %4863 = vmatpush.bf16.msra.mxu0 %v4801
        %4864 = vmatmul.bf16.gmra.mxu0 %v4815
        %v4865 = vpop.f32.mrf.mxu0
        %v4866 = vadd.f32 %v4853, %v4865
        %v4867 = vpop.f32.mrf.mxu0
        %4868 = vdwg.mxu0
        %vm4869 = vcmp.ge.f32.partialorder %v4840, 0.0
        %vm4870 = vcmp.ge.f32.partialorder %v4866, 0.0
        %v4871 = vmul.f32 %v4840, 0.04
        %v4872 = vmul.f32 %v4866, 0.04
        %v4873 = vsel %vm4869, %v4840, %v4871
        %v4874 = vsel %vm4870, %v4866, %v4872
        %v4875 = vmul.f32 %v3403, %v4671
        %v4876 = vmul.f32 %v3404, %v4686
        %v4877 = vsub.f32 1.0, %v4671
        %v4878 = vsub.f32 1.0, %v4686
        %v4879 = vmul.f32 %v4873, %v4877
        %v4880 = vmul.f32 %v4874, %v4878
        %v4881 = vadd.f32 %v4875, %v4879
        %v4882 = vadd.f32 %v4876, %v4880
        %4883 = vrot.lane.b32.xlu0 %v4881, 17
        %v4884 = vpop.permute.xlu0 %4883
        %4885 = vrot.lane.b32.xlu0 %v4882, 17
        %v4886 = vpop.permute.xlu0 %4885
        %v4887 = vsel %vm1740, %v4884, %v4886
        %v4888 = vsel %vm1740, %v4886, %v4884
        %v4889 = vsel %vm1747, %v4888, 0.0
        %v4890 = vsel %vm1748, %v4887, 0.0
        %4891 = vrot.lane.b32.xlu0 %v4881, 16
        %v4892 = vpop.permute.xlu0 %4891
        %4893 = vrot.lane.b32.xlu0 %v4882, 16
        %v4894 = vpop.permute.xlu0 %4893
        %v4895 = vsel %vm1755, %v4892, %v4894
        %v4896 = vsel %vm1755, %v4894, %v4892
        %v4897 = vsel %vm1760, %v4896, 0.0
        %v4898 = vsel %vm1761, %v4895, 0.0
        %4899 = vrot.lane.b32.xlu0 %v4881, 15
        %v4900 = vpop.permute.xlu0 %4899
        %4901 = vrot.lane.b32.xlu0 %v4882, 15
        %v4902 = vpop.permute.xlu0 %4901
        %v4903 = vsel %vm1768, %v4900, %v4902
        %v4904 = vsel %vm1768, %v4902, %v4900
        %v4905 = vsel %vm1773, %v4904, 0.0
        %v4906 = vsel %vm1774, %v4903, 0.0
        %4907 = vrot.lane.b32.xlu0 %v4881, 1
        %v4908 = vpop.permute.xlu0 %4907
        %4909 = vrot.lane.b32.xlu0 %v4882, 1
        %v4910 = vpop.permute.xlu0 %4909
        %v4911 = vsel %vm1781, %v4908, %v4910
        %v4912 = vsel %vm1781, %v4910, %v4908
        %v4913 = vsel %vm1786, %v4912, 0.0
        %v4914 = vsel %vm1787, %v4911, 0.0
        %4915 = vrot.lane.b32.xlu0 %v4881, 127
        %v4916 = vpop.permute.xlu0 %4915
        %4917 = vrot.lane.b32.xlu0 %v4882, 127
        %v4918 = vpop.permute.xlu0 %4917
        %v4919 = vsel %vm1794, %v4916, %v4918
        %v4920 = vsel %vm1794, %v4918, %v4916
        %v4921 = vsel %vm1799, %v4919, 0.0
        %v4922 = vsel %vm1800, %v4920, 0.0
        %4923 = vrot.lane.b32.xlu0 %v4881, 113
        %v4924 = vpop.permute.xlu0 %4923
        %4925 = vrot.lane.b32.xlu0 %v4882, 113
        %v4926 = vpop.permute.xlu0 %4925
        %v4927 = vsel %vm1807, %v4924, %v4926
        %v4928 = vsel %vm1807, %v4926, %v4924
        %v4929 = vsel %vm1812, %v4927, 0.0
        %v4930 = vsel %vm1813, %v4928, 0.0
        %4931 = vrot.lane.b32.xlu0 %v4881, 112
        %v4932 = vpop.permute.xlu0 %4931
        %4933 = vrot.lane.b32.xlu0 %v4882, 112
        %v4934 = vpop.permute.xlu0 %4933
        %v4935 = vsel %vm1820, %v4932, %v4934
        %v4936 = vsel %vm1820, %v4934, %v4932
        %v4937 = vsel %vm1825, %v4935, 0.0
        %v4938 = vsel %vm1826, %v4936, 0.0
        %4939 = vrot.lane.b32.xlu0 %v4881, 111
        %v4940 = vpop.permute.xlu0 %4939
        %4941 = vrot.lane.b32.xlu0 %v4882, 111
        %v4942 = vpop.permute.xlu0 %4941
        %v4943 = vsel %vm1833, %v4940, %v4942
        %v4944 = vsel %vm1833, %v4942, %v4940
        %v4945 = vsel %vm1840, %v4943, 0.0
        %v4946 = vsel %vm1841, %v4944, 0.0
        %v4947 = vld [vmem:[#allocation9] sm:$0xf]
        %v4948 = vpack.c.bf16 %v4897, %v4889
        %v4949 = vpack.c.bf16 %v4898, %v4890
        %v4950 = vpack.c.bf16 %v4913, %v4905
        %v4951 = vpack.c.bf16 %v4914, %v4906
        %v4952 = vpack.c.bf16 %v4921, %v4881
        %v4953 = vpack.c.bf16 %v4922, %v4882
        %v4954 = vpack.c.bf16 %v4937, %v4929
        %v4955 = vpack.c.bf16 %v4938, %v4930
        %v4956 = vpack.c.bf16 %v4945, %v4945
        %v4957 = vpack.c.bf16 %v4946, %v4946
        %v4958 = vld [vmem:[%s75] sm:$0xff]
        %4960 = vset.pattern.permute.xlu0 0
        %4961 = vperm.xlu0 %4960, %v4958
        %v4962 = vpop.permute.xlu0 %4961
        %v4965 = vsel %vm1861, %v4947, 0
        %v4968 = vsel %vm1865, %v4956, 0
        %v4971 = vsel %vm1865, %v4957, 0
        %4973 = vmatpush.bf16.msra.mxu0 0
        %4974 = vmatpush.bf16.msra.mxu0 0
        %4975 = vmatpush.bf16.msra.mxu0 0
        %4976 = vmatpush.bf16.msra.mxu0 %v4968
        %4977 = vmatpush.bf16.msra.mxu0 %v4954
        %4978 = vmatpush.bf16.msra.mxu0 %v4952
        %4979 = vmatpush.bf16.msra.mxu0 %v4950
        %4980 = vmatpush.bf16.msra.mxu0 %v4948
        %4981 = vmatmul.bf16.gmra.mxu0 %v4965
        %v4982 = vpop.f32.mrf.mxu0
        %v4983 = vadd.f32 %v4962, %v4982
        %v4984 = vpop.f32.mrf.mxu0
        %4985 = vdwg.mxu0
        %4986 = vmatpush.bf16.msra.mxu0 0
        %4987 = vmatpush.bf16.msra.mxu0 0
        %4988 = vmatpush.bf16.msra.mxu0 0
        %4989 = vmatpush.bf16.msra.mxu0 %v4971
        %4990 = vmatpush.bf16.msra.mxu0 %v4955
        %4991 = vmatpush.bf16.msra.mxu0 %v4953
        %4992 = vmatpush.bf16.msra.mxu0 %v4951
        %4993 = vmatpush.bf16.msra.mxu0 %v4949
        %4994 = vmatmul.bf16.gmra.mxu0 %v4965
        %v4995 = vpop.f32.mrf.mxu0
        %v4996 = vadd.f32 %v4962, %v4995
        %v4997 = vpop.f32.mrf.mxu0
        %4998 = vdwg.mxu0
        %vm4999 = vcmp.ge.f32.partialorder %v4983, 0.0
        %vm5000 = vcmp.ge.f32.partialorder %v4996, 0.0
        %v5001 = vmul.f32 %v4983, 0.01
        %v5002 = vmul.f32 %v4996, 0.01
        %v5003 = vsel %vm4999, %v4983, %v5001
        %v5004 = vsel %vm5000, %v4996, %v5002
        %v5005 = vld [vmem:[%s77] sm:$0x1]
        %v5006 = vpack.c.bf16 %v5003, %v5003
        %v5007 = vpack.c.bf16 %v5004, %v5004
        %v5008 = vld [vmem:[#allocation2] sm:$0x1]
        %5010 = vset.pattern.permute.xlu0 0
        %5011 = vperm.xlu0 %5010, %v5008
        %v5012 = vpop.permute.xlu0 %5011
        %v5014 = vperm.slane %v5012, 0
        %vm5015 = vcmask 64512
        %v5017 = vsel %vm5015, %v5005, 0
        %v5020 = vsel %vm1865, %v5006, 0
        %v5023 = vsel %vm1865, %v5007, 0
        %5025 = vmatpush.bf16.msra.mxu0 0
        %5026 = vmatpush.bf16.msra.mxu0 0
        %5027 = vmatpush.bf16.msra.mxu0 0
        %5028 = vmatpush.bf16.msra.mxu0 0
        %5029 = vmatpush.bf16.msra.mxu0 0
        %5030 = vmatpush.bf16.msra.mxu0 0
        %5031 = vmatpush.bf16.msra.mxu0 0
        %5032 = vmatpush.bf16.msra.mxu0 %v5020
        %5033 = vmatmul.bf16.gmra.mxu0 %v5017
        %v5034 = vpop.f32.mrf.mxu0
        %v5035 = vadd.f32 %v5014, %v5034
        %v5036 = vpop.f32.mrf.mxu0
        %5037 = vdwg.mxu0
        %5038 = vmatpush.bf16.msra.mxu0 0
        %5039 = vmatpush.bf16.msra.mxu0 0
        %5040 = vmatpush.bf16.msra.mxu0 0
        %5041 = vmatpush.bf16.msra.mxu0 0
        %5042 = vmatpush.bf16.msra.mxu0 0
        %5043 = vmatpush.bf16.msra.mxu0 0
        %5044 = vmatpush.bf16.msra.mxu0 0
        %5045 = vmatpush.bf16.msra.mxu0 %v5023
        %5046 = vmatmul.bf16.gmra.mxu0 %v5017
        %v5047 = vpop.f32.mrf.mxu0
        %v5048 = vadd.f32 %v5014, %v5047
        %v5049 = vpop.f32.mrf.mxu0
        %5050 = vdwg.mxu0
        %vm5051 = vcmp.ge.f32.partialorder %v5035, 0.0
        %vm5052 = vcmp.ge.f32.partialorder %v5048, 0.0
        %v5053 = vmul.f32 %v5035, 0.01
        %v5054 = vmul.f32 %v5048, 0.01
        %v5055 = vsel %vm5051, %v5035, %v5053
        %v5056 = vsel %vm5052, %v5048, %v5054
        %v5057 = vmul.f32 %v5055, 0.23025851
        %v5058 = vmul.f32 %v5056, 0.23025851
        %v5059 = vsub.f32 %v5057, 5.2983174
        %v5060 = vsub.f32 %v5058, 5.2983174
        %v5061 = vmul.f32 %v5059, 0.625
        %v5062 = vmul.f32 %v5060, 0.625
        %v5063 = vmul.f32 %v5061, 1.442695
        %v5064 = vpow.pop %v5063
        %v5065 = vmul.f32 %v5062, 1.442695
        %v5066 = vpow.pop %v5065
        %v5069 = vrot.slane %v5066, 7
        %vm5070 = vcmask 1040384
        %v5071 = vsel %vm5070, %v5064, %v5069
        %v5073 = vlaneseq
        %vm5074 = vcmp.ge.s32.totalorder %v5073, 0
        %vm5075 = vcmp.lt.s32.totalorder %v5073, 256
        %vm5076 = vmand %vm5074, %vm5075
        %5077 = vst.msk [vmem:[%s1721] ss:$2 sm:$0x3] %vm5076, %v5071
        %v5078 = vld [vmem:[%s81] sm:$0xf]
        %v5079 = vld [vmem:[%s81 + $0x4] sm:$0xf]
        %v5080 = vld [vmem:[%s83] sm:$0xff]
        %v5081 = vld [vmem:[%s83 + $0x8] sm:$0xff]
        %5083 = vset.pattern.permute.xlu0 0
        %5084 = vperm.xlu0 %5083, %v5080
        %v5085 = vpop.permute.xlu0 %5084
        %5088 = vset.pattern.permute.xlu0 0
        %5089 = vperm.xlu0 %5088, %v5081
        %v5090 = vpop.permute.xlu0 %5089
        %v5094 = vunpack.c.l.b16 %v5078
        %v5095 = vunpack.c.l.b16 %v5079
        %v5096 = vpack.c.b16 %v5095, %v5094
        %v5098 = vsel %vm1861, %v5096, 0
        %5100 = vmatpush.bf16.msra.mxu0 0
        %5101 = vmatpush.bf16.msra.mxu0 0
        %5102 = vmatpush.bf16.msra.mxu0 0
        %5103 = vmatpush.bf16.msra.mxu0 %v4436
        %5104 = vmatpush.bf16.msra.mxu0 %v4422
        %5105 = vmatpush.bf16.msra.mxu0 %v4420
        %5106 = vmatpush.bf16.msra.mxu0 %v4418
        %5107 = vmatpush.bf16.msra.mxu0 %v4416
        %5108 = vmatmul.bf16.gmra.mxu0 %v5098
        %v5109 = vpop.f32.mrf.mxu0
        %v5110 = vadd.f32 %v5085, %v5109
        %v5111 = vpop.f32.mrf.mxu0
        %v5112 = vadd.f32 %v5090, %v5111
        %5113 = vdwg.mxu0
        %5114 = vmatpush.bf16.msra.mxu0 0
        %5115 = vmatpush.bf16.msra.mxu0 0
        %5116 = vmatpush.bf16.msra.mxu0 0
        %5117 = vmatpush.bf16.msra.mxu0 %v4439
        %5118 = vmatpush.bf16.msra.mxu0 %v4423
        %5119 = vmatpush.bf16.msra.mxu0 %v4421
        %5120 = vmatpush.bf16.msra.mxu0 %v4419
        %5121 = vmatpush.bf16.msra.mxu0 %v4417
        %5122 = vmatmul.bf16.gmra.mxu0 %v5098
        %v5123 = vpop.f32.mrf.mxu0
        %v5124 = vadd.f32 %v5085, %v5123
        %v5125 = vpop.f32.mrf.mxu0
        %v5126 = vadd.f32 %v5090, %v5125
        %5127 = vdwg.mxu0
        %vm5128 = vcmp.ge.f32.partialorder %v5110, 0.0
        %vm5129 = vcmp.ge.f32.partialorder %v5124, 0.0
        %vm5130 = vcmp.ge.f32.partialorder %v5112, 0.0
        %vm5131 = vcmp.ge.f32.partialorder %v5126, 0.0
        %v5132 = vmul.f32 %v5110, 0.01
        %v5133 = vmul.f32 %v5124, 0.01
        %v5134 = vmul.f32 %v5112, 0.01
        %v5135 = vmul.f32 %v5126, 0.01
        %v5136 = vsel %vm5128, %v5110, %v5132
        %v5137 = vsel %vm5129, %v5124, %v5133
        %v5138 = vsel %vm5130, %v5112, %v5134
        %v5139 = vsel %vm5131, %v5126, %v5135
        %v5140 = vxor.u32 %v5136, 2147483648
        %v5141 = vxor.u32 %v5137, 2147483648
        %v5142 = vmul.f32 %v5140, 1.442695
        %v5143 = vpow.pop %v5142
        %v5144 = vmul.f32 %v5141, 1.442695
        %v5145 = vpow.pop %v5144
        %v5146 = vadd.f32 %v5143, 1.0
        %v5147 = vadd.f32 %v5145, 1.0
        %v5148 = vrcp.pop %v5146
        %v5149 = vmul.f32 %v5146, %v5148
        %v5150 = vsub.f32 1.0, %v5149
        %v5151 = vmul.f32 %v5148, %v5150
        %v5152 = vadd.f32 %v5148, %v5151
        %vm5153 = vweird.f32 %v5146
        %vm5154 = vweird.f32 %v5148
        %vm5155 = vmor %vm5153, %vm5154
        %v5156 = vsel %vm5155, %v5148, %v5152
        %v5157 = vand.u32 2147483647, %v5146
        %vm5158 = vcmp.eq.f32.partialorder %v5157, 8.507059e+37
        %v5159 = vand.u32 %v5146, 2147483648
        %v5160 = vor.u32 1.1754944e-38, %v5159
        %v5161 = vsel %vm5158, %v5160, %v5156
        %v5162 = vmul.f32 1.0, %v5161
        %v5163 = vrcp.pop %v5147
        %v5164 = vmul.f32 %v5147, %v5163
        %v5165 = vsub.f32 1.0, %v5164
        %v5166 = vmul.f32 %v5163, %v5165
        %v5167 = vadd.f32 %v5163, %v5166
        %vm5168 = vweird.f32 %v5147
        %vm5169 = vweird.f32 %v5163
        %vm5170 = vmor %vm5168, %vm5169
        %v5171 = vsel %vm5170, %v5163, %v5167
        %v5172 = vand.u32 2147483647, %v5147
        %vm5173 = vcmp.eq.f32.partialorder %v5172, 8.507059e+37
        %v5174 = vand.u32 %v5147, 2147483648
        %v5175 = vor.u32 1.1754944e-38, %v5174
        %v5176 = vsel %vm5173, %v5175, %v5171
        %v5177 = vmul.f32 1.0, %v5176
        %v5178 = vxor.u32 %v5138, 2147483648
        %v5179 = vxor.u32 %v5139, 2147483648
        %v5180 = vmul.f32 %v5178, 1.442695
        %v5181 = vpow.pop %v5180
        %v5182 = vmul.f32 %v5179, 1.442695
        %v5183 = vpow.pop %v5182
        %v5184 = vadd.f32 %v5181, 1.0
        %v5185 = vadd.f32 %v5183, 1.0
        %v5186 = vrcp.pop %v5184
        %v5187 = vmul.f32 %v5184, %v5186
        %v5188 = vsub.f32 1.0, %v5187
        %v5189 = vmul.f32 %v5186, %v5188
        %v5190 = vadd.f32 %v5186, %v5189
        %vm5191 = vweird.f32 %v5184
        %vm5192 = vweird.f32 %v5186
        %vm5193 = vmor %vm5191, %vm5192
        %v5194 = vsel %vm5193, %v5186, %v5190
        %v5195 = vand.u32 2147483647, %v5184
        %vm5196 = vcmp.eq.f32.partialorder %v5195, 8.507059e+37
        %v5197 = vand.u32 %v5184, 2147483648
        %v5198 = vor.u32 1.1754944e-38, %v5197
        %v5199 = vsel %vm5196, %v5198, %v5194
        %v5200 = vmul.f32 1.0, %v5199
        %v5201 = vrcp.pop %v5185
        %v5202 = vmul.f32 %v5185, %v5201
        %v5203 = vsub.f32 1.0, %v5202
        %v5204 = vmul.f32 %v5201, %v5203
        %v5205 = vadd.f32 %v5201, %v5204
        %vm5206 = vweird.f32 %v5185
        %vm5207 = vweird.f32 %v5201
        %vm5208 = vmor %vm5206, %vm5207
        %v5209 = vsel %vm5208, %v5201, %v5205
        %v5210 = vand.u32 2147483647, %v5185
        %vm5211 = vcmp.eq.f32.partialorder %v5210, 8.507059e+37
        %v5212 = vand.u32 %v5185, 2147483648
        %v5213 = vor.u32 1.1754944e-38, %v5212
        %v5214 = vsel %vm5211, %v5213, %v5209
        %v5215 = vmul.f32 1.0, %v5214
        %v5216 = vmul.f32 %v4349, %v5200
        %v5217 = vmul.f32 %v4350, %v5215
        %5218 = vrot.lane.b32.xlu0 %v5216, 17
        %v5219 = vpop.permute.xlu0 %5218
        %5220 = vrot.lane.b32.xlu0 %v5217, 17
        %v5221 = vpop.permute.xlu0 %5220
        %v5222 = vsel %vm1740, %v5219, %v5221
        %v5223 = vsel %vm1740, %v5221, %v5219
        %v5224 = vsel %vm1747, %v5223, 0.0
        %v5225 = vsel %vm1748, %v5222, 0.0
        %5226 = vrot.lane.b32.xlu0 %v5216, 16
        %v5227 = vpop.permute.xlu0 %5226
        %5228 = vrot.lane.b32.xlu0 %v5217, 16
        %v5229 = vpop.permute.xlu0 %5228
        %v5230 = vsel %vm1755, %v5227, %v5229
        %v5231 = vsel %vm1755, %v5229, %v5227
        %v5232 = vsel %vm1760, %v5231, 0.0
        %v5233 = vsel %vm1761, %v5230, 0.0
        %5234 = vrot.lane.b32.xlu0 %v5216, 15
        %v5235 = vpop.permute.xlu0 %5234
        %5236 = vrot.lane.b32.xlu0 %v5217, 15
        %v5237 = vpop.permute.xlu0 %5236
        %v5238 = vsel %vm1768, %v5235, %v5237
        %v5239 = vsel %vm1768, %v5237, %v5235
        %v5240 = vsel %vm1773, %v5239, 0.0
        %v5241 = vsel %vm1774, %v5238, 0.0
        %5242 = vrot.lane.b32.xlu0 %v5216, 1
        %v5243 = vpop.permute.xlu0 %5242
        %5244 = vrot.lane.b32.xlu0 %v5217, 1
        %v5245 = vpop.permute.xlu0 %5244
        %v5246 = vsel %vm1781, %v5243, %v5245
        %v5247 = vsel %vm1781, %v5245, %v5243
        %v5248 = vsel %vm1786, %v5247, 0.0
        %v5249 = vsel %vm1787, %v5246, 0.0
        %5250 = vrot.lane.b32.xlu0 %v5216, 127
        %v5251 = vpop.permute.xlu0 %5250
        %5252 = vrot.lane.b32.xlu0 %v5217, 127
        %v5253 = vpop.permute.xlu0 %5252
        %v5254 = vsel %vm1794, %v5251, %v5253
        %v5255 = vsel %vm1794, %v5253, %v5251
        %v5256 = vsel %vm1799, %v5254, 0.0
        %v5257 = vsel %vm1800, %v5255, 0.0
        %5258 = vrot.lane.b32.xlu0 %v5216, 113
        %v5259 = vpop.permute.xlu0 %5258
        %5260 = vrot.lane.b32.xlu0 %v5217, 113
        %v5261 = vpop.permute.xlu0 %5260
        %v5262 = vsel %vm1807, %v5259, %v5261
        %v5263 = vsel %vm1807, %v5261, %v5259
        %v5264 = vsel %vm1812, %v5262, 0.0
        %v5265 = vsel %vm1813, %v5263, 0.0
        %5266 = vrot.lane.b32.xlu0 %v5216, 112
        %v5267 = vpop.permute.xlu0 %5266
        %5268 = vrot.lane.b32.xlu0 %v5217, 112
        %v5269 = vpop.permute.xlu0 %5268
        %v5270 = vsel %vm1820, %v5267, %v5269
        %v5271 = vsel %vm1820, %v5269, %v5267
        %v5272 = vsel %vm1825, %v5270, 0.0
        %v5273 = vsel %vm1826, %v5271, 0.0
        %5274 = vrot.lane.b32.xlu0 %v5216, 111
        %v5275 = vpop.permute.xlu0 %5274
        %5276 = vrot.lane.b32.xlu0 %v5217, 111
        %v5277 = vpop.permute.xlu0 %5276
        %v5278 = vsel %vm1833, %v5275, %v5277
        %v5279 = vsel %vm1833, %v5277, %v5275
        %v5280 = vsel %vm1840, %v5278, 0.0
        %v5281 = vsel %vm1841, %v5279, 0.0
        %v5282 = vld [vmem:[#allocation10] sm:$0xf]
        %v5283 = vpack.c.bf16 %v5232, %v5224
        %v5284 = vpack.c.bf16 %v5233, %v5225
        %v5285 = vpack.c.bf16 %v5248, %v5240
        %v5286 = vpack.c.bf16 %v5249, %v5241
        %v5287 = vpack.c.bf16 %v5256, %v5216
        %v5288 = vpack.c.bf16 %v5257, %v5217
        %v5289 = vpack.c.bf16 %v5272, %v5264
        %v5290 = vpack.c.bf16 %v5273, %v5265
        %v5291 = vpack.c.bf16 %v5280, %v5280
        %v5292 = vpack.c.bf16 %v5281, %v5281
        %v5293 = vld [vmem:[%s87] sm:$0xff]
        %5295 = vset.pattern.permute.xlu0 0
        %5296 = vperm.xlu0 %5295, %v5293
        %v5297 = vpop.permute.xlu0 %5296
        %v5300 = vsel %vm1861, %v5282, 0
        %v5303 = vsel %vm1865, %v5291, 0
        %v5306 = vsel %vm1865, %v5292, 0
        %5308 = vmatpush.bf16.msra.mxu0 0
        %5309 = vmatpush.bf16.msra.mxu0 0
        %5310 = vmatpush.bf16.msra.mxu0 0
        %5311 = vmatpush.bf16.msra.mxu0 %v5303
        %5312 = vmatpush.bf16.msra.mxu0 %v5289
        %5313 = vmatpush.bf16.msra.mxu0 %v5287
        %5314 = vmatpush.bf16.msra.mxu0 %v5285
        %5315 = vmatpush.bf16.msra.mxu0 %v5283
        %5316 = vmatmul.bf16.gmra.mxu0 %v5300
        %v5317 = vpop.f32.mrf.mxu0
        %v5318 = vadd.f32 %v5297, %v5317
        %v5319 = vpop.f32.mrf.mxu0
        %5320 = vdwg.mxu0
        %5321 = vmatpush.bf16.msra.mxu0 0
        %5322 = vmatpush.bf16.msra.mxu0 0
        %5323 = vmatpush.bf16.msra.mxu0 0
        %5324 = vmatpush.bf16.msra.mxu0 %v5306
        %5325 = vmatpush.bf16.msra.mxu0 %v5290
        %5326 = vmatpush.bf16.msra.mxu0 %v5288
        %5327 = vmatpush.bf16.msra.mxu0 %v5286
        %5328 = vmatpush.bf16.msra.mxu0 %v5284
        %5329 = vmatmul.bf16.gmra.mxu0 %v5300
        %v5330 = vpop.f32.mrf.mxu0
        %v5331 = vadd.f32 %v5297, %v5330
        %v5332 = vpop.f32.mrf.mxu0
        %5333 = vdwg.mxu0
        %vm5334 = vcmp.ge.f32.partialorder %v5318, 0.0
        %vm5335 = vcmp.ge.f32.partialorder %v5331, 0.0
        %v5336 = vmul.f32 %v5318, 0.04
        %v5337 = vmul.f32 %v5331, 0.04
        %v5338 = vsel %vm5334, %v5318, %v5336
        %v5339 = vsel %vm5335, %v5331, %v5337
        %v5340 = vmul.f32 %v4349, %v5162
        %v5341 = vmul.f32 %v4350, %v5177
        %v5342 = vsub.f32 1.0, %v5162
        %v5343 = vsub.f32 1.0, %v5177
        %v5344 = vmul.f32 %v5338, %v5342
        %v5345 = vmul.f32 %v5339, %v5343
        %v5346 = vadd.f32 %v5340, %v5344
        %v5347 = vadd.f32 %v5341, %v5345
        %5348 = vrot.lane.b32.xlu0 %v5346, 17
        %v5349 = vpop.permute.xlu0 %5348
        %5350 = vrot.lane.b32.xlu0 %v5347, 17
        %v5351 = vpop.permute.xlu0 %5350
        %v5352 = vsel %vm1740, %v5349, %v5351
        %v5353 = vsel %vm1740, %v5351, %v5349
        %v5354 = vsel %vm1747, %v5353, 0.0
        %v5355 = vsel %vm1748, %v5352, 0.0
        %5356 = vrot.lane.b32.xlu0 %v5346, 16
        %v5357 = vpop.permute.xlu0 %5356
        %5358 = vrot.lane.b32.xlu0 %v5347, 16
        %v5359 = vpop.permute.xlu0 %5358
        %v5360 = vsel %vm1755, %v5357, %v5359
        %v5361 = vsel %vm1755, %v5359, %v5357
        %v5362 = vsel %vm1760, %v5361, 0.0
        %v5363 = vsel %vm1761, %v5360, 0.0
        %5364 = vrot.lane.b32.xlu0 %v5346, 15
        %v5365 = vpop.permute.xlu0 %5364
        %5366 = vrot.lane.b32.xlu0 %v5347, 15
        %v5367 = vpop.permute.xlu0 %5366
        %v5368 = vsel %vm1768, %v5365, %v5367
        %v5369 = vsel %vm1768, %v5367, %v5365
        %v5370 = vsel %vm1773, %v5369, 0.0
        %v5371 = vsel %vm1774, %v5368, 0.0
        %5372 = vrot.lane.b32.xlu0 %v5346, 1
        %v5373 = vpop.permute.xlu0 %5372
        %5374 = vrot.lane.b32.xlu0 %v5347, 1
        %v5375 = vpop.permute.xlu0 %5374
        %v5376 = vsel %vm1781, %v5373, %v5375
        %v5377 = vsel %vm1781, %v5375, %v5373
        %v5378 = vsel %vm1786, %v5377, 0.0
        %v5379 = vsel %vm1787, %v5376, 0.0
        %5380 = vrot.lane.b32.xlu0 %v5346, 127
        %v5381 = vpop.permute.xlu0 %5380
        %5382 = vrot.lane.b32.xlu0 %v5347, 127
        %v5383 = vpop.permute.xlu0 %5382
        %v5384 = vsel %vm1794, %v5381, %v5383
        %v5385 = vsel %vm1794, %v5383, %v5381
        %v5386 = vsel %vm1799, %v5384, 0.0
        %v5387 = vsel %vm1800, %v5385, 0.0
        %5388 = vrot.lane.b32.xlu0 %v5346, 113
        %v5389 = vpop.permute.xlu0 %5388
        %5390 = vrot.lane.b32.xlu0 %v5347, 113
        %v5391 = vpop.permute.xlu0 %5390
        %v5392 = vsel %vm1807, %v5389, %v5391
        %v5393 = vsel %vm1807, %v5391, %v5389
        %v5394 = vsel %vm1812, %v5392, 0.0
        %v5395 = vsel %vm1813, %v5393, 0.0
        %5396 = vrot.lane.b32.xlu0 %v5346, 112
        %v5397 = vpop.permute.xlu0 %5396
        %5398 = vrot.lane.b32.xlu0 %v5347, 112
        %v5399 = vpop.permute.xlu0 %5398
        %v5400 = vsel %vm1820, %v5397, %v5399
        %v5401 = vsel %vm1820, %v5399, %v5397
        %v5402 = vsel %vm1825, %v5400, 0.0
        %v5403 = vsel %vm1826, %v5401, 0.0
        %5404 = vrot.lane.b32.xlu0 %v5346, 111
        %v5405 = vpop.permute.xlu0 %5404
        %5406 = vrot.lane.b32.xlu0 %v5347, 111
        %v5407 = vpop.permute.xlu0 %5406
        %v5408 = vsel %vm1833, %v5405, %v5407
        %v5409 = vsel %vm1833, %v5407, %v5405
        %v5410 = vsel %vm1840, %v5408, 0.0
        %v5411 = vsel %vm1841, %v5409, 0.0
        %v5412 = vld [vmem:[#allocation12] sm:$0xf]
        %v5413 = vpack.c.bf16 %v5362, %v5354
        %v5414 = vpack.c.bf16 %v5363, %v5355
        %v5415 = vpack.c.bf16 %v5378, %v5370
        %v5416 = vpack.c.bf16 %v5379, %v5371
        %v5417 = vpack.c.bf16 %v5386, %v5346
        %v5418 = vpack.c.bf16 %v5387, %v5347
        %v5419 = vpack.c.bf16 %v5402, %v5394
        %v5420 = vpack.c.bf16 %v5403, %v5395
        %v5421 = vpack.c.bf16 %v5410, %v5410
        %v5422 = vpack.c.bf16 %v5411, %v5411
        %v5423 = vld [vmem:[%s91] sm:$0xff]
        %5425 = vset.pattern.permute.xlu0 0
        %5426 = vperm.xlu0 %5425, %v5423
        %v5427 = vpop.permute.xlu0 %5426
        %v5430 = vsel %vm1861, %v5412, 0
        %v5433 = vsel %vm1865, %v5421, 0
        %v5436 = vsel %vm1865, %v5422, 0
        %5438 = vmatpush.bf16.msra.mxu0 0
        %5439 = vmatpush.bf16.msra.mxu0 0
        %5440 = vmatpush.bf16.msra.mxu0 0
        %5441 = vmatpush.bf16.msra.mxu0 %v5433
        %5442 = vmatpush.bf16.msra.mxu0 %v5419
        %5443 = vmatpush.bf16.msra.mxu0 %v5417
        %5444 = vmatpush.bf16.msra.mxu0 %v5415
        %5445 = vmatpush.bf16.msra.mxu0 %v5413
        %5446 = vmatmul.bf16.gmra.mxu0 %v5430
        %v5447 = vpop.f32.mrf.mxu0
        %v5448 = vadd.f32 %v5427, %v5447
        %v5449 = vpop.f32.mrf.mxu0
        %5450 = vdwg.mxu0
        %5451 = vmatpush.bf16.msra.mxu0 0
        %5452 = vmatpush.bf16.msra.mxu0 0
        %5453 = vmatpush.bf16.msra.mxu0 0
        %5454 = vmatpush.bf16.msra.mxu0 %v5436
        %5455 = vmatpush.bf16.msra.mxu0 %v5420
        %5456 = vmatpush.bf16.msra.mxu0 %v5418
        %5457 = vmatpush.bf16.msra.mxu0 %v5416
        %5458 = vmatpush.bf16.msra.mxu0 %v5414
        %5459 = vmatmul.bf16.gmra.mxu0 %v5430
        %v5460 = vpop.f32.mrf.mxu0
        %v5461 = vadd.f32 %v5427, %v5460
        %v5462 = vpop.f32.mrf.mxu0
        %5463 = vdwg.mxu0
        %vm5464 = vcmp.ge.f32.partialorder %v5448, 0.0
        %vm5465 = vcmp.ge.f32.partialorder %v5461, 0.0
        %v5466 = vmul.f32 %v5448, 0.01
        %v5467 = vmul.f32 %v5461, 0.01
        %v5468 = vsel %vm5464, %v5448, %v5466
        %v5469 = vsel %vm5465, %v5461, %v5467
        %5470 = vrot.lane.b32.xlu0 %v5468, 17
        %v5471 = vpop.permute.xlu0 %5470
        %5472 = vrot.lane.b32.xlu0 %v5469, 17
        %v5473 = vpop.permute.xlu0 %5472
        %v5474 = vsel %vm1740, %v5471, %v5473
        %v5475 = vsel %vm1740, %v5473, %v5471
        %v5476 = vsel %vm1747, %v5475, 0.0
        %v5477 = vsel %vm1748, %v5474, 0.0
        %5478 = vrot.lane.b32.xlu0 %v5468, 16
        %v5479 = vpop.permute.xlu0 %5478
        %5480 = vrot.lane.b32.xlu0 %v5469, 16
        %v5481 = vpop.permute.xlu0 %5480
        %v5482 = vsel %vm1755, %v5479, %v5481
        %v5483 = vsel %vm1755, %v5481, %v5479
        %v5484 = vsel %vm1760, %v5483, 0.0
        %v5485 = vsel %vm1761, %v5482, 0.0
        %5486 = vrot.lane.b32.xlu0 %v5468, 15
        %v5487 = vpop.permute.xlu0 %5486
        %5488 = vrot.lane.b32.xlu0 %v5469, 15
        %v5489 = vpop.permute.xlu0 %5488
        %v5490 = vsel %vm1768, %v5487, %v5489
        %v5491 = vsel %vm1768, %v5489, %v5487
        %v5492 = vsel %vm1773, %v5491, 0.0
        %v5493 = vsel %vm1774, %v5490, 0.0
        %5494 = vrot.lane.b32.xlu0 %v5468, 1
        %v5495 = vpop.permute.xlu0 %5494
        %5496 = vrot.lane.b32.xlu0 %v5469, 1
        %v5497 = vpop.permute.xlu0 %5496
        %v5498 = vsel %vm1781, %v5495, %v5497
        %v5499 = vsel %vm1781, %v5497, %v5495
        %v5500 = vsel %vm1786, %v5499, 0.0
        %v5501 = vsel %vm1787, %v5498, 0.0
        %5502 = vrot.lane.b32.xlu0 %v5468, 127
        %v5503 = vpop.permute.xlu0 %5502
        %5504 = vrot.lane.b32.xlu0 %v5469, 127
        %v5505 = vpop.permute.xlu0 %5504
        %v5506 = vsel %vm1794, %v5503, %v5505
        %v5507 = vsel %vm1794, %v5505, %v5503
        %v5508 = vsel %vm1799, %v5506, 0.0
        %v5509 = vsel %vm1800, %v5507, 0.0
        %5510 = vrot.lane.b32.xlu0 %v5468, 113
        %v5511 = vpop.permute.xlu0 %5510
        %5512 = vrot.lane.b32.xlu0 %v5469, 113
        %v5513 = vpop.permute.xlu0 %5512
        %v5514 = vsel %vm1807, %v5511, %v5513
        %v5515 = vsel %vm1807, %v5513, %v5511
        %v5516 = vsel %vm1812, %v5514, 0.0
        %v5517 = vsel %vm1813, %v5515, 0.0
        %5518 = vrot.lane.b32.xlu0 %v5468, 112
        %v5519 = vpop.permute.xlu0 %5518
        %5520 = vrot.lane.b32.xlu0 %v5469, 112
        %v5521 = vpop.permute.xlu0 %5520
        %v5522 = vsel %vm1820, %v5519, %v5521
        %v5523 = vsel %vm1820, %v5521, %v5519
        %v5524 = vsel %vm1825, %v5522, 0.0
        %v5525 = vsel %vm1826, %v5523, 0.0
        %5526 = vrot.lane.b32.xlu0 %v5468, 111
        %v5527 = vpop.permute.xlu0 %5526
        %5528 = vrot.lane.b32.xlu0 %v5469, 111
        %v5529 = vpop.permute.xlu0 %5528
        %v5530 = vsel %vm1833, %v5527, %v5529
        %v5531 = vsel %vm1833, %v5529, %v5527
        %v5532 = vsel %vm1840, %v5530, 0.0
        %v5533 = vsel %vm1841, %v5531, 0.0
        %v5534 = vld [vmem:[%s93] sm:$0xff]
        %v5535 = vld [vmem:[%s93 + $0x8] sm:$0xff]
        %v5536 = vpack.c.bf16 %v5484, %v5476
        %v5537 = vpack.c.bf16 %v5485, %v5477
        %v5538 = vpack.c.bf16 %v5500, %v5492
        %v5539 = vpack.c.bf16 %v5501, %v5493
        %v5540 = vpack.c.bf16 %v5508, %v5468
        %v5541 = vpack.c.bf16 %v5509, %v5469
        %v5542 = vpack.c.bf16 %v5524, %v5516
        %v5543 = vpack.c.bf16 %v5525, %v5517
        %v5544 = vpack.c.bf16 %v4889, %v5532
        %v5545 = vpack.c.bf16 %v4890, %v5533
        %v5546 = vpack.c.bf16 %v4905, %v4897
        %v5547 = vpack.c.bf16 %v4906, %v4898
        %v5548 = vpack.c.bf16 %v4881, %v4913
        %v5549 = vpack.c.bf16 %v4882, %v4914
        %v5550 = vpack.c.bf16 %v4929, %v4921
        %v5551 = vpack.c.bf16 %v4930, %v4922
        %v5552 = vpack.c.bf16 %v4945, %v4937
        %v5553 = vpack.c.bf16 %v4946, %v4938
        %v5554 = vld [vmem:[%s95] sm:$0xff]
        %v5555 = vld [vmem:[%s95 + $0x8] sm:$0xff]
        %5557 = vset.pattern.permute.xlu0 0
        %5558 = vperm.xlu0 %5557, %v5554
        %v5559 = vpop.permute.xlu0 %5558
        %5562 = vset.pattern.permute.xlu0 0
        %5563 = vperm.xlu0 %5562, %v5555
        %v5564 = vpop.permute.xlu0 %5563
        %v5568 = vunpack.c.l.b16 %v5534
        %v5569 = vunpack.c.h.b16 %v5534
        %v5570 = vunpack.c.l.b16 %v5535
        %v5571 = vunpack.c.h.b16 %v5535
        %v5572 = vpack.c.b16 %v5570, %v5568
        %v5573 = vpack.c.b16 %v5571, %v5569
        %v5576 = vsel %vm2041, %v5573, 0
        %5578 = vmatpush.bf16.msra.mxu0 %v5550
        %5579 = vmatpush.bf16.msra.mxu0 %v5548
        %5580 = vmatpush.bf16.msra.mxu0 %v5546
        %5581 = vmatpush.bf16.msra.mxu0 %v5544
        %5582 = vmatpush.bf16.msra.mxu0 %v5542
        %5583 = vmatpush.bf16.msra.mxu0 %v5540
        %5584 = vmatpush.bf16.msra.mxu0 %v5538
        %5585 = vmatpush.bf16.msra.mxu0 %v5536
        %5586 = vmatmul.bf16.gmra.mxu0 %v5572
        %v5587 = vpop.f32.mrf.mxu0
        %v5588 = vadd.f32 %v5559, %v5587
        %v5589 = vpop.f32.mrf.mxu0
        %v5590 = vadd.f32 %v5564, %v5589
        %5591 = vdwg.mxu0
        %5592 = vmatpush.bf16.msra.mxu0 0
        %5593 = vmatpush.bf16.msra.mxu0 0
        %5594 = vmatpush.bf16.msra.mxu0 0
        %5595 = vmatpush.bf16.msra.mxu0 0
        %5596 = vmatpush.bf16.msra.mxu0 0
        %5597 = vmatpush.bf16.msra.mxu0 0
        %5598 = vmatpush.bf16.msra.mxu0 0
        %5599 = vmatpush.bf16.msra.mxu0 %v5552
        %5600 = vmatmul.bf16.gmra.mxu0 %v5576
        %v5601 = vpop.f32.mrf.mxu0
        %v5602 = vadd.f32 %v5588, %v5601
        %v5603 = vpop.f32.mrf.mxu0
        %v5604 = vadd.f32 %v5590, %v5603
        %5605 = vdwg.mxu0
        %5606 = vmatpush.bf16.msra.mxu0 %v5551
        %5607 = vmatpush.bf16.msra.mxu0 %v5549
        %5608 = vmatpush.bf16.msra.mxu0 %v5547
        %5609 = vmatpush.bf16.msra.mxu0 %v5545
        %5610 = vmatpush.bf16.msra.mxu0 %v5543
        %5611 = vmatpush.bf16.msra.mxu0 %v5541
        %5612 = vmatpush.bf16.msra.mxu0 %v5539
        %5613 = vmatpush.bf16.msra.mxu0 %v5537
        %5614 = vmatmul.bf16.gmra.mxu0 %v5572
        %v5615 = vpop.f32.mrf.mxu0
        %v5616 = vadd.f32 %v5559, %v5615
        %v5617 = vpop.f32.mrf.mxu0
        %v5618 = vadd.f32 %v5564, %v5617
        %5619 = vdwg.mxu0
        %5620 = vmatpush.bf16.msra.mxu0 0
        %5621 = vmatpush.bf16.msra.mxu0 0
        %5622 = vmatpush.bf16.msra.mxu0 0
        %5623 = vmatpush.bf16.msra.mxu0 0
        %5624 = vmatpush.bf16.msra.mxu0 0
        %5625 = vmatpush.bf16.msra.mxu0 0
        %5626 = vmatpush.bf16.msra.mxu0 0
        %5627 = vmatpush.bf16.msra.mxu0 %v5553
        %5628 = vmatmul.bf16.gmra.mxu0 %v5576
        %v5629 = vpop.f32.mrf.mxu0
        %v5630 = vadd.f32 %v5616, %v5629
        %v5631 = vpop.f32.mrf.mxu0
        %v5632 = vadd.f32 %v5618, %v5631
        %5633 = vdwg.mxu0
        %vm5634 = vcmp.ge.f32.partialorder %v5602, 0.0
        %vm5635 = vcmp.ge.f32.partialorder %v5630, 0.0
        %vm5636 = vcmp.ge.f32.partialorder %v5604, 0.0
        %vm5637 = vcmp.ge.f32.partialorder %v5632, 0.0
        %v5638 = vmul.f32 %v5602, 0.01
        %v5639 = vmul.f32 %v5630, 0.01
        %v5640 = vmul.f32 %v5604, 0.01
        %v5641 = vmul.f32 %v5632, 0.01
        %v5642 = vsel %vm5634, %v5602, %v5638
        %v5643 = vsel %vm5635, %v5630, %v5639
        %v5644 = vsel %vm5636, %v5604, %v5640
        %v5645 = vsel %vm5637, %v5632, %v5641
        %v5646 = vxor.u32 %v5642, 2147483648
        %v5647 = vxor.u32 %v5643, 2147483648
        %v5648 = vmul.f32 %v5646, 1.442695
        %v5649 = vpow.pop %v5648
        %v5650 = vmul.f32 %v5647, 1.442695
        %v5651 = vpow.pop %v5650
        %v5652 = vadd.f32 %v5649, 1.0
        %v5653 = vadd.f32 %v5651, 1.0
        %v5654 = vrcp.pop %v5652
        %v5655 = vmul.f32 %v5652, %v5654
        %v5656 = vsub.f32 1.0, %v5655
        %v5657 = vmul.f32 %v5654, %v5656
        %v5658 = vadd.f32 %v5654, %v5657
        %vm5659 = vweird.f32 %v5652
        %vm5660 = vweird.f32 %v5654
        %vm5661 = vmor %vm5659, %vm5660
        %v5662 = vsel %vm5661, %v5654, %v5658
        %v5663 = vand.u32 2147483647, %v5652
        %vm5664 = vcmp.eq.f32.partialorder %v5663, 8.507059e+37
        %v5665 = vand.u32 %v5652, 2147483648
        %v5666 = vor.u32 1.1754944e-38, %v5665
        %v5667 = vsel %vm5664, %v5666, %v5662
        %v5668 = vmul.f32 1.0, %v5667
        %v5669 = vrcp.pop %v5653
        %v5670 = vmul.f32 %v5653, %v5669
        %v5671 = vsub.f32 1.0, %v5670
        %v5672 = vmul.f32 %v5669, %v5671
        %v5673 = vadd.f32 %v5669, %v5672
        %vm5674 = vweird.f32 %v5653
        %vm5675 = vweird.f32 %v5669
        %vm5676 = vmor %vm5674, %vm5675
        %v5677 = vsel %vm5676, %v5669, %v5673
        %v5678 = vand.u32 2147483647, %v5653
        %vm5679 = vcmp.eq.f32.partialorder %v5678, 8.507059e+37
        %v5680 = vand.u32 %v5653, 2147483648
        %v5681 = vor.u32 1.1754944e-38, %v5680
        %v5682 = vsel %vm5679, %v5681, %v5677
        %v5683 = vmul.f32 1.0, %v5682
        %v5684 = vxor.u32 %v5644, 2147483648
        %v5685 = vxor.u32 %v5645, 2147483648
        %v5686 = vmul.f32 %v5684, 1.442695
        %v5687 = vpow.pop %v5686
        %v5688 = vmul.f32 %v5685, 1.442695
        %v5689 = vpow.pop %v5688
        %v5690 = vadd.f32 %v5687, 1.0
        %v5691 = vadd.f32 %v5689, 1.0
        %v5692 = vrcp.pop %v5690
        %v5693 = vmul.f32 %v5690, %v5692
        %v5694 = vsub.f32 1.0, %v5693
        %v5695 = vmul.f32 %v5692, %v5694
        %v5696 = vadd.f32 %v5692, %v5695
        %vm5697 = vweird.f32 %v5690
        %vm5698 = vweird.f32 %v5692
        %vm5699 = vmor %vm5697, %vm5698
        %v5700 = vsel %vm5699, %v5692, %v5696
        %v5701 = vand.u32 2147483647, %v5690
        %vm5702 = vcmp.eq.f32.partialorder %v5701, 8.507059e+37
        %v5703 = vand.u32 %v5690, 2147483648
        %v5704 = vor.u32 1.1754944e-38, %v5703
        %v5705 = vsel %vm5702, %v5704, %v5700
        %v5706 = vmul.f32 1.0, %v5705
        %v5707 = vrcp.pop %v5691
        %v5708 = vmul.f32 %v5691, %v5707
        %v5709 = vsub.f32 1.0, %v5708
        %v5710 = vmul.f32 %v5707, %v5709
        %v5711 = vadd.f32 %v5707, %v5710
        %vm5712 = vweird.f32 %v5691
        %vm5713 = vweird.f32 %v5707
        %vm5714 = vmor %vm5712, %vm5713
        %v5715 = vsel %vm5714, %v5707, %v5711
        %v5716 = vand.u32 2147483647, %v5691
        %vm5717 = vcmp.eq.f32.partialorder %v5716, 8.507059e+37
        %v5718 = vand.u32 %v5691, 2147483648
        %v5719 = vor.u32 1.1754944e-38, %v5718
        %v5720 = vsel %vm5717, %v5719, %v5715
        %v5721 = vmul.f32 1.0, %v5720
        %v5722 = vmul.f32 %v4881, %v5706
        %v5723 = vmul.f32 %v4882, %v5721
        %5724 = vrot.lane.b32.xlu0 %v5722, 17
        %v5725 = vpop.permute.xlu0 %5724
        %5726 = vrot.lane.b32.xlu0 %v5723, 17
        %v5727 = vpop.permute.xlu0 %5726
        %v5728 = vsel %vm1740, %v5725, %v5727
        %v5729 = vsel %vm1740, %v5727, %v5725
        %v5730 = vsel %vm1747, %v5729, 0.0
        %v5731 = vsel %vm1748, %v5728, 0.0
        %5732 = vrot.lane.b32.xlu0 %v5722, 16
        %v5733 = vpop.permute.xlu0 %5732
        %5734 = vrot.lane.b32.xlu0 %v5723, 16
        %v5735 = vpop.permute.xlu0 %5734
        %v5736 = vsel %vm1755, %v5733, %v5735
        %v5737 = vsel %vm1755, %v5735, %v5733
        %v5738 = vsel %vm1760, %v5737, 0.0
        %v5739 = vsel %vm1761, %v5736, 0.0
        %5740 = vrot.lane.b32.xlu0 %v5722, 15
        %v5741 = vpop.permute.xlu0 %5740
        %5742 = vrot.lane.b32.xlu0 %v5723, 15
        %v5743 = vpop.permute.xlu0 %5742
        %v5744 = vsel %vm1768, %v5741, %v5743
        %v5745 = vsel %vm1768, %v5743, %v5741
        %v5746 = vsel %vm1773, %v5745, 0.0
        %v5747 = vsel %vm1774, %v5744, 0.0
        %5748 = vrot.lane.b32.xlu0 %v5722, 1
        %v5749 = vpop.permute.xlu0 %5748
        %5750 = vrot.lane.b32.xlu0 %v5723, 1
        %v5751 = vpop.permute.xlu0 %5750
        %v5752 = vsel %vm1781, %v5749, %v5751
        %v5753 = vsel %vm1781, %v5751, %v5749
        %v5754 = vsel %vm1786, %v5753, 0.0
        %v5755 = vsel %vm1787, %v5752, 0.0
        %5756 = vrot.lane.b32.xlu0 %v5722, 127
        %v5757 = vpop.permute.xlu0 %5756
        %5758 = vrot.lane.b32.xlu0 %v5723, 127
        %v5759 = vpop.permute.xlu0 %5758
        %v5760 = vsel %vm1794, %v5757, %v5759
        %v5761 = vsel %vm1794, %v5759, %v5757
        %v5762 = vsel %vm1799, %v5760, 0.0
        %v5763 = vsel %vm1800, %v5761, 0.0
        %5764 = vrot.lane.b32.xlu0 %v5722, 113
        %v5765 = vpop.permute.xlu0 %5764
        %5766 = vrot.lane.b32.xlu0 %v5723, 113
        %v5767 = vpop.permute.xlu0 %5766
        %v5768 = vsel %vm1807, %v5765, %v5767
        %v5769 = vsel %vm1807, %v5767, %v5765
        %v5770 = vsel %vm1812, %v5768, 0.0
        %v5771 = vsel %vm1813, %v5769, 0.0
        %5772 = vrot.lane.b32.xlu0 %v5722, 112
        %v5773 = vpop.permute.xlu0 %5772
        %5774 = vrot.lane.b32.xlu0 %v5723, 112
        %v5775 = vpop.permute.xlu0 %5774
        %v5776 = vsel %vm1820, %v5773, %v5775
        %v5777 = vsel %vm1820, %v5775, %v5773
        %v5778 = vsel %vm1825, %v5776, 0.0
        %v5779 = vsel %vm1826, %v5777, 0.0
        %5780 = vrot.lane.b32.xlu0 %v5722, 111
        %v5781 = vpop.permute.xlu0 %5780
        %5782 = vrot.lane.b32.xlu0 %v5723, 111
        %v5783 = vpop.permute.xlu0 %5782
        %v5784 = vsel %vm1833, %v5781, %v5783
        %v5785 = vsel %vm1833, %v5783, %v5781
        %v5786 = vsel %vm1840, %v5784, 0.0
        %v5787 = vsel %vm1841, %v5785, 0.0
        %v5788 = vld [vmem:[%s97] sm:$0xff]
        %v5789 = vpack.c.bf16 %v5730, %v5532
        %v5790 = vpack.c.bf16 %v5731, %v5533
        %v5791 = vpack.c.bf16 %v5746, %v5738
        %v5792 = vpack.c.bf16 %v5747, %v5739
        %v5793 = vpack.c.bf16 %v5722, %v5754
        %v5794 = vpack.c.bf16 %v5723, %v5755
        %v5795 = vpack.c.bf16 %v5770, %v5762
        %v5796 = vpack.c.bf16 %v5771, %v5763
        %v5797 = vpack.c.bf16 %v5786, %v5778
        %v5798 = vpack.c.bf16 %v5787, %v5779
        %v5799 = vld [vmem:[%s99] sm:$0xff]
        %5801 = vset.pattern.permute.xlu0 0
        %5802 = vperm.xlu0 %5801, %v5799
        %v5803 = vpop.permute.xlu0 %5802
        %v5806 = vunpack.c.l.b16 %v5788
        %v5807 = vunpack.c.h.b16 %v5788
        %v5808 = vpack.c.b16 %v5806, %v5806
        %v5809 = vpack.c.b16 %v5807, %v5807
        %v5812 = vsel %vm2041, %v5809, 0
        %5814 = vmatpush.bf16.msra.mxu0 %v5795
        %5815 = vmatpush.bf16.msra.mxu0 %v5793
        %5816 = vmatpush.bf16.msra.mxu0 %v5791
        %5817 = vmatpush.bf16.msra.mxu0 %v5789
        %5818 = vmatpush.bf16.msra.mxu0 %v5542
        %5819 = vmatpush.bf16.msra.mxu0 %v5540
        %5820 = vmatpush.bf16.msra.mxu0 %v5538
        %5821 = vmatpush.bf16.msra.mxu0 %v5536
        %5822 = vmatmul.bf16.gmra.mxu0 %v5808
        %v5823 = vpop.f32.mrf.mxu0
        %v5824 = vadd.f32 %v5803, %v5823
        %v5825 = vpop.f32.mrf.mxu0
        %5826 = vdwg.mxu0
        %5827 = vmatpush.bf16.msra.mxu0 0
        %5828 = vmatpush.bf16.msra.mxu0 0
        %5829 = vmatpush.bf16.msra.mxu0 0
        %5830 = vmatpush.bf16.msra.mxu0 0
        %5831 = vmatpush.bf16.msra.mxu0 0
        %5832 = vmatpush.bf16.msra.mxu0 0
        %5833 = vmatpush.bf16.msra.mxu0 0
        %5834 = vmatpush.bf16.msra.mxu0 %v5797
        %5835 = vmatmul.bf16.gmra.mxu0 %v5812
        %v5836 = vpop.f32.mrf.mxu0
        %v5837 = vadd.f32 %v5824, %v5836
        %v5838 = vpop.f32.mrf.mxu0
        %5839 = vdwg.mxu0
        %5840 = vmatpush.bf16.msra.mxu0 %v5796
        %5841 = vmatpush.bf16.msra.mxu0 %v5794
        %5842 = vmatpush.bf16.msra.mxu0 %v5792
        %5843 = vmatpush.bf16.msra.mxu0 %v5790
        %5844 = vmatpush.bf16.msra.mxu0 %v5543
        %5845 = vmatpush.bf16.msra.mxu0 %v5541
        %5846 = vmatpush.bf16.msra.mxu0 %v5539
        %5847 = vmatpush.bf16.msra.mxu0 %v5537
        %5848 = vmatmul.bf16.gmra.mxu0 %v5808
        %v5849 = vpop.f32.mrf.mxu0
        %v5850 = vadd.f32 %v5803, %v5849
        %v5851 = vpop.f32.mrf.mxu0
        %5852 = vdwg.mxu0
        %5853 = vmatpush.bf16.msra.mxu0 0
        %5854 = vmatpush.bf16.msra.mxu0 0
        %5855 = vmatpush.bf16.msra.mxu0 0
        %5856 = vmatpush.bf16.msra.mxu0 0
        %5857 = vmatpush.bf16.msra.mxu0 0
        %5858 = vmatpush.bf16.msra.mxu0 0
        %5859 = vmatpush.bf16.msra.mxu0 0
        %5860 = vmatpush.bf16.msra.mxu0 %v5798
        %5861 = vmatmul.bf16.gmra.mxu0 %v5812
        %v5862 = vpop.f32.mrf.mxu0
        %v5863 = vadd.f32 %v5850, %v5862
        %v5864 = vpop.f32.mrf.mxu0
        %5865 = vdwg.mxu0
        %vm5866 = vcmp.ge.f32.partialorder %v5837, 0.0
        %vm5867 = vcmp.ge.f32.partialorder %v5863, 0.0
        %v5868 = vmul.f32 %v5837, 0.04
        %v5869 = vmul.f32 %v5863, 0.04
        %v5870 = vsel %vm5866, %v5837, %v5868
        %v5871 = vsel %vm5867, %v5863, %v5869
        %v5872 = vmul.f32 %v4881, %v5668
        %v5873 = vmul.f32 %v4882, %v5683
        %v5874 = vsub.f32 1.0, %v5668
        %v5875 = vsub.f32 1.0, %v5683
        %v5876 = vmul.f32 %v5870, %v5874
        %v5877 = vmul.f32 %v5871, %v5875
        %v5878 = vadd.f32 %v5872, %v5876
        %v5879 = vadd.f32 %v5873, %v5877
        %5880 = vrot.lane.b32.xlu0 %v5878, 17
        %v5881 = vpop.permute.xlu0 %5880
        %5882 = vrot.lane.b32.xlu0 %v5879, 17
        %v5883 = vpop.permute.xlu0 %5882
        %v5884 = vsel %vm1740, %v5881, %v5883
        %v5885 = vsel %vm1740, %v5883, %v5881
        %v5886 = vsel %vm1747, %v5885, 0.0
        %v5887 = vsel %vm1748, %v5884, 0.0
        %5888 = vrot.lane.b32.xlu0 %v5878, 16
        %v5889 = vpop.permute.xlu0 %5888
        %5890 = vrot.lane.b32.xlu0 %v5879, 16
        %v5891 = vpop.permute.xlu0 %5890
        %v5892 = vsel %vm1755, %v5889, %v5891
        %v5893 = vsel %vm1755, %v5891, %v5889
        %v5894 = vsel %vm1760, %v5893, 0.0
        %v5895 = vsel %vm1761, %v5892, 0.0
        %5896 = vrot.lane.b32.xlu0 %v5878, 15
        %v5897 = vpop.permute.xlu0 %5896
        %5898 = vrot.lane.b32.xlu0 %v5879, 15
        %v5899 = vpop.permute.xlu0 %5898
        %v5900 = vsel %vm1768, %v5897, %v5899
        %v5901 = vsel %vm1768, %v5899, %v5897
        %v5902 = vsel %vm1773, %v5901, 0.0
        %v5903 = vsel %vm1774, %v5900, 0.0
        %5904 = vrot.lane.b32.xlu0 %v5878, 1
        %v5905 = vpop.permute.xlu0 %5904
        %5906 = vrot.lane.b32.xlu0 %v5879, 1
        %v5907 = vpop.permute.xlu0 %5906
        %v5908 = vsel %vm1781, %v5905, %v5907
        %v5909 = vsel %vm1781, %v5907, %v5905
        %v5910 = vsel %vm1786, %v5909, 0.0
        %v5911 = vsel %vm1787, %v5908, 0.0
        %5912 = vrot.lane.b32.xlu0 %v5878, 127
        %v5913 = vpop.permute.xlu0 %5912
        %5914 = vrot.lane.b32.xlu0 %v5879, 127
        %v5915 = vpop.permute.xlu0 %5914
        %v5916 = vsel %vm1794, %v5913, %v5915
        %v5917 = vsel %vm1794, %v5915, %v5913
        %v5918 = vsel %vm1799, %v5916, 0.0
        %v5919 = vsel %vm1800, %v5917, 0.0
        %5920 = vrot.lane.b32.xlu0 %v5878, 113
        %v5921 = vpop.permute.xlu0 %5920
        %5922 = vrot.lane.b32.xlu0 %v5879, 113
        %v5923 = vpop.permute.xlu0 %5922
        %v5924 = vsel %vm1807, %v5921, %v5923
        %v5925 = vsel %vm1807, %v5923, %v5921
        %v5926 = vsel %vm1812, %v5924, 0.0
        %v5927 = vsel %vm1813, %v5925, 0.0
        %5928 = vrot.lane.b32.xlu0 %v5878, 112
        %v5929 = vpop.permute.xlu0 %5928
        %5930 = vrot.lane.b32.xlu0 %v5879, 112
        %v5931 = vpop.permute.xlu0 %5930
        %v5932 = vsel %vm1820, %v5929, %v5931
        %v5933 = vsel %vm1820, %v5931, %v5929
        %v5934 = vsel %vm1825, %v5932, 0.0
        %v5935 = vsel %vm1826, %v5933, 0.0
        %5936 = vrot.lane.b32.xlu0 %v5878, 111
        %v5937 = vpop.permute.xlu0 %5936
        %5938 = vrot.lane.b32.xlu0 %v5879, 111
        %v5939 = vpop.permute.xlu0 %5938
        %v5940 = vsel %vm1833, %v5937, %v5939
        %v5941 = vsel %vm1833, %v5939, %v5937
        %v5942 = vsel %vm1840, %v5940, 0.0
        %v5943 = vsel %vm1841, %v5941, 0.0
        %v5944 = vld [vmem:[#allocation13] sm:$0xf]
        %v5945 = vpack.c.bf16 %v5894, %v5886
        %v5946 = vpack.c.bf16 %v5895, %v5887
        %v5947 = vpack.c.bf16 %v5910, %v5902
        %v5948 = vpack.c.bf16 %v5911, %v5903
        %v5949 = vpack.c.bf16 %v5918, %v5878
        %v5950 = vpack.c.bf16 %v5919, %v5879
        %v5951 = vpack.c.bf16 %v5934, %v5926
        %v5952 = vpack.c.bf16 %v5935, %v5927
        %v5953 = vpack.c.bf16 %v5942, %v5942
        %v5954 = vpack.c.bf16 %v5943, %v5943
        %v5955 = vld [vmem:[%s103] sm:$0xff]
        %5957 = vset.pattern.permute.xlu0 0
        %5958 = vperm.xlu0 %5957, %v5955
        %v5959 = vpop.permute.xlu0 %5958
        %v5962 = vsel %vm1861, %v5944, 0
        %v5965 = vsel %vm1865, %v5953, 0
        %v5968 = vsel %vm1865, %v5954, 0
        %5970 = vmatpush.bf16.msra.mxu0 0
        %5971 = vmatpush.bf16.msra.mxu0 0
        %5972 = vmatpush.bf16.msra.mxu0 0
        %5973 = vmatpush.bf16.msra.mxu0 %v5965
        %5974 = vmatpush.bf16.msra.mxu0 %v5951
        %5975 = vmatpush.bf16.msra.mxu0 %v5949
        %5976 = vmatpush.bf16.msra.mxu0 %v5947
        %5977 = vmatpush.bf16.msra.mxu0 %v5945
        %5978 = vmatmul.bf16.gmra.mxu0 %v5962
        %v5979 = vpop.f32.mrf.mxu0
        %v5980 = vadd.f32 %v5959, %v5979
        %v5981 = vpop.f32.mrf.mxu0
        %5982 = vdwg.mxu0
        %5983 = vmatpush.bf16.msra.mxu0 0
        %5984 = vmatpush.bf16.msra.mxu0 0
        %5985 = vmatpush.bf16.msra.mxu0 0
        %5986 = vmatpush.bf16.msra.mxu0 %v5968
        %5987 = vmatpush.bf16.msra.mxu0 %v5952
        %5988 = vmatpush.bf16.msra.mxu0 %v5950
        %5989 = vmatpush.bf16.msra.mxu0 %v5948
        %5990 = vmatpush.bf16.msra.mxu0 %v5946
        %5991 = vmatmul.bf16.gmra.mxu0 %v5962
        %v5992 = vpop.f32.mrf.mxu0
        %v5993 = vadd.f32 %v5959, %v5992
        %v5994 = vpop.f32.mrf.mxu0
        %5995 = vdwg.mxu0
        %vm5996 = vcmp.ge.f32.partialorder %v5980, 0.0
        %vm5997 = vcmp.ge.f32.partialorder %v5993, 0.0
        %v5998 = vmul.f32 %v5980, 0.01
        %v5999 = vmul.f32 %v5993, 0.01
        %v6000 = vsel %vm5996, %v5980, %v5998
        %v6001 = vsel %vm5997, %v5993, %v5999
        %v6002 = vld [vmem:[%s105] sm:$0x1]
        %v6003 = vpack.c.bf16 %v6000, %v6000
        %v6004 = vpack.c.bf16 %v6001, %v6001
        %v6005 = vld [vmem:[#allocation3] sm:$0x1]
        %6007 = vset.pattern.permute.xlu0 0
        %6008 = vperm.xlu0 %6007, %v6005
        %v6009 = vpop.permute.xlu0 %6008
        %v6011 = vperm.slane %v6009, 0
        %v6013 = vsel %vm5015, %v6002, 0
        %v6016 = vsel %vm1865, %v6003, 0
        %v6019 = vsel %vm1865, %v6004, 0
        %6021 = vmatpush.bf16.msra.mxu0 0
        %6022 = vmatpush.bf16.msra.mxu0 0
        %6023 = vmatpush.bf16.msra.mxu0 0
        %6024 = vmatpush.bf16.msra.mxu0 0
        %6025 = vmatpush.bf16.msra.mxu0 0
        %6026 = vmatpush.bf16.msra.mxu0 0
        %6027 = vmatpush.bf16.msra.mxu0 0
        %6028 = vmatpush.bf16.msra.mxu0 %v6016
        %6029 = vmatmul.bf16.gmra.mxu0 %v6013
        %v6030 = vpop.f32.mrf.mxu0
        %v6031 = vadd.f32 %v6011, %v6030
        %v6032 = vpop.f32.mrf.mxu0
        %6033 = vdwg.mxu0
        %6034 = vmatpush.bf16.msra.mxu0 0
        %6035 = vmatpush.bf16.msra.mxu0 0
        %6036 = vmatpush.bf16.msra.mxu0 0
        %6037 = vmatpush.bf16.msra.mxu0 0
        %6038 = vmatpush.bf16.msra.mxu0 0
        %6039 = vmatpush.bf16.msra.mxu0 0
        %6040 = vmatpush.bf16.msra.mxu0 0
        %6041 = vmatpush.bf16.msra.mxu0 %v6019
        %6042 = vmatmul.bf16.gmra.mxu0 %v6013
        %v6043 = vpop.f32.mrf.mxu0
        %v6044 = vadd.f32 %v6011, %v6043
        %v6045 = vpop.f32.mrf.mxu0
        %6046 = vdwg.mxu0
        %vm6047 = vcmp.ge.f32.partialorder %v6031, 0.0
        %vm6048 = vcmp.ge.f32.partialorder %v6044, 0.0
        %v6049 = vmul.f32 %v6031, 0.01
        %v6050 = vmul.f32 %v6044, 0.01
        %v6051 = vsel %vm6047, %v6031, %v6049
        %v6052 = vsel %vm6048, %v6044, %v6050
        %v6053 = vmul.f32 %v6051, 0.23025851
        %v6054 = vmul.f32 %v6052, 0.23025851
        %v6055 = vsub.f32 %v6053, 5.2983174
        %v6056 = vsub.f32 %v6054, 5.2983174
        %v6057 = vmul.f32 %v6055, 0.625
        %v6058 = vmul.f32 %v6056, 0.625
        %v6059 = vmul.f32 %v6057, 1.442695
        %v6060 = vpow.pop %v6059
        %v6061 = vmul.f32 %v6058, 1.442695
        %v6062 = vpow.pop %v6061
        %v6065 = vrot.slane %v6062, 7
        %v6066 = vsel %vm5070, %v6060, %v6065
        %s6068 = scalar_lea.vmem %s1721, 1
        %6069 = vst.msk [vmem:[%s6068] ss:$2 sm:$0x3] %vm5076, %v6066
        %s6070 = smul.u32 2, %s128
        %p6071 = scmp.lt.s32.totalorder %s6070, 3
        %s6072 = scalar_select %p6071, %s6070, 3
        %s6073 = smul.addr %s6072, 2
        %s6074 = scalar_lea.vmem %s109, %s6073
        // Predicated region
        $region284: #{multi_unit_forward.1} parent=254 // pred_check
          %p6075 = pneg %p1285
        $region285: #{multi_unit_forward.1} parent=254 // pred_check_branch
          %6077 = sbr.rel (%p6075) target = $region287
        $region286: #{multi_unit_forward.1} parent=254 // pred_region
          %s6078 = smul.u32 2, %s128
        $region287: #{multi_unit_forward.1} parent=254 // pred_fallthru
          _
      $region255: #{multi_unit_forward.1} parent=5 // pred_fallthru
        _
      %p6079 = scmp.le.s32.totalorder 2, %s123
      // Predicated region
      $region288: #{multi_unit_forward.1} parent=5 // pred_check
        %p6080 = pneg %p6079
      $region289: #{multi_unit_forward.1} parent=5 // pred_check_branch
        %6082 = sbr.rel (%p6080) target = $region291
      $region290: #{multi_unit_forward.1} parent=5 // pred_region
        %s6083 = ssub.s32 %s123, 2
        // Predicated region
        $region292: #{multi_unit_forward.1} parent=290 // pred_check
          %p6084 = pneg %p1291
        $region293: #{multi_unit_forward.1} parent=290 // pred_check_branch
          %6086 = sbr.rel (%p6084) target = $region295
        $region294: #{multi_unit_forward.1} parent=290 // pred_region
          %s6087 = smul.u32 2, %s129
          %p6088 = scmp.lt.s32.totalorder %s6087, 3
          %s6089 = scalar_select %p6088, %s6087, 3
          %s6090 = smul.addr %s6089, 2
          %s6091 = scalar_lea.vmem %s109, %s6090
        $region295: #{multi_unit_forward.1} parent=290 // pred_fallthru
          _
      $region291: #{multi_unit_forward.1} parent=5 // pred_fallthru
        _
    $region6: #{multi_unit_forward.1} parent=1 // loop_footer
      %s127 = sadd.s32 1, %s123
    $region7: #{multi_unit_forward.1} parent=1 // loop_footer_branch
      %122 = sbr.rel target = $region3
    $region8: #{multi_unit_forward.1} parent=1 // loop_exit
      _
    %6092 = vsyncpa [#allocation6], 1
    %s6093 = scalar_lea.sflag [#allocation6], 1
    %6094 = vsyncpa %s6093, 1
    %6095 = vsyncpa [#allocation8], 1
    %6096 = vsyncpa [#allocation11], 1
    %6097 = vsyncpa [#allocation14], 1

</llo_original>
